<compile_context>
chip_gen: v6e
topology: v6e:2x2x1
jax: 0.10.0
libtpu: 0.0.40
codegen_flags: <defaults>
</compile_context>

<pallas_src>
import functools
import math
import numpy as np

import jax
import jax.numpy as jnp
from jax import lax
from jax.experimental import pallas as pl
from jax.experimental.pallas import tpu as pltpu


# ----------------------------- in-kernel helpers ------------------------------

def _layer_norm(h, g, b, eps):
    mu = jnp.mean(h, axis=-1, keepdims=True)
    var = jnp.mean((h - mu) ** 2, axis=-1, keepdims=True)
    return (h - mu) * lax.rsqrt(var + eps) * g + b


def _ffn(h, w1, b1, w2, b2, g, b, eps):
    f = jnp.dot(h.astype(jnp.bfloat16), w1, preferred_element_type=jnp.float32) + b1
    f = jnp.maximum(f, 0.0)
    f = jnp.dot(f.astype(jnp.bfloat16), w2, preferred_element_type=jnp.float32) + b2
    return _layer_norm(h + f, g, b, eps)


def _mh_attention(q, k, v, adj, num_heads, dk, rel_score=None, rel_value=None):
    """Masked multi-head attention with per-head static lane masks.

    q is pre-scaled by 1/sqrt(dk).  Per head h, wv lands only in head-h's lane block
    (v is lane-masked), so the accumulated `o` is the concatenated multi-head output
    and a single full output projection can follow.
    rel_score(hm) -> extra [n, n] score term; rel_value(sc_bf16, hm) -> extra
    (already lane-masked) [n, d] weighted-value term.
    """
    ndim = q.shape[-1]
    lane = lax.broadcasted_iota(jnp.int32, (1, ndim), 1)
    kb = k.astype(jnp.bfloat16)
    o = jnp.zeros(v.shape, jnp.float32)
    for h in range(num_heads):                      # static unroll
        hm = jnp.where((lane >= h * dk) & (lane < (h + 1) * dk), 1.0, 0.0)
        qm = (q * hm).astype(jnp.bfloat16)
        s = lax.dot_general(qm, kb, (((1,), (1,)), ((), ())),
                            preferred_element_type=jnp.float32)        # q_h . k_h
        if rel_score is not None:
            s = s + rel_score(hm)                                       # q_h . e_h
        sc = jnp.exp(jnp.clip(s, -10.0, 10.0)) * adj
        z = jnp.maximum(jnp.sum(sc, axis=-1, keepdims=True), 1e-9)      # guard empty rows
        scb = sc.astype(jnp.bfloat16)
        vm = (v * hm).astype(jnp.bfloat16)
        wv = jnp.dot(scb, vm, preferred_element_type=jnp.float32)
        if rel_value is not None:
            wv = wv + rel_value(scb, hm)
        o = o + wv / z                                                   # exact division
    return o


# ----------------------------- fused layer-stack kernel ------------------------

def _lgesql_stack_kernel(*refs, num_heads, eps):
    (x0_ref, lgx0_ref, nmask_ref, lgmask_ref, gsrc_ref, gdst_ref, gdstT_ref,
     n_wqkv, n_bqkv, n_wo, n_bo, n_g1, n_b1, n_fw1, n_fb1, n_fw2, n_fb2, n_g2, n_b2,
     e_wqkv, e_bqkv, e_wo, e_bo, e_g1, e_b1, e_fw1, e_fb1, e_fw2, e_fb2, e_g2, e_b2,
     outx_ref, outlgx_ref, xs_ref, lgs_ref) = refs

    l = pl.program_id(0)

    @pl.when(l == 0)
    def _():
        xs_ref[...] = x0_ref[...]
        lgs_ref[...] = lgx0_ref[...]

    x = xs_ref[...]            # [N, ndim] f32, layer input (carried in VMEM)
    lgx = lgs_ref[...]         # [E, edim] f32
    N, ndim = x.shape
    E, edim = lgx.shape
    dk = ndim // num_heads
    inv_s = 1.0 / math.sqrt(dk)

    nmask = nmask_ref[...].astype(jnp.float32)     # [dst, src]
    lgmask = lgmask_ref[...].astype(jnp.float32)   # [E_dst, E_src]
    gsrcb = gsrc_ref[...]                          # [E, N] bf16 one-hot of src node
    gdstb = gdst_ref[...]                          # [E, N] bf16 one-hot of dst node
    gdstTb = gdstT_ref[...]                        # [N, E] bf16
    gsrc_f = gsrcb.astype(jnp.float32)

    xb = x.astype(jnp.bfloat16)
    lgxb = lgx.astype(jnp.bfloat16)

    # ---------------- node update: RGATLayer (relation-aware attention) --------
    # Fused QKV projection; 1/sqrt(dk) folded into q (scales both q.k and q.e terms).
    qkv = jnp.dot(xb, n_wqkv[0], preferred_element_type=jnp.float32) + n_bqkv[0]
    q = qkv[:, 0:ndim] * inv_s
    k = qkv[:, ndim:2 * ndim]
    v = qkv[:, 2 * ndim:3 * ndim]

    # Relation terms computed in EDGE space (no dense [N, N, edim] tensor).
    qd = jnp.dot(gdstb, q.astype(jnp.bfloat16),
                 preferred_element_type=jnp.float32)           # q of dst node per edge [E, ndim]
    qlg = qd * lgx                                             # [E, edim] (edim == ndim)

    def node_rel_score(hm):
        rel_e = jnp.sum(qlg * hm, axis=-1, keepdims=True)      # q_h[dst(e)] . e_h   [E, 1]
        return jnp.dot(gdstTb, (rel_e * gsrc_f).astype(jnp.bfloat16),
                       preferred_element_type=jnp.float32)     # scatter -> [dst, src]

    def node_rel_value(scb, hm):
        sc_rows = jnp.dot(gdstb, scb, preferred_element_type=jnp.float32)   # sc[dst(e), :]
        sc_e = jnp.sum(sc_rows * gsrc_f, axis=-1, keepdims=True)            # sc[dst(e), src(e)]
        wv_rel = jnp.dot(gdstTb, (sc_e * lgx).astype(jnp.bfloat16),
                         preferred_element_type=jnp.float32)                # [N, edim]
        return wv_rel * hm

    o = _mh_attention(q, k, v, nmask, num_heads, dk,
                      rel_score=node_rel_score, rel_value=node_rel_value)
    o = jnp.dot(o.astype(jnp.bfloat16), n_wo[0],
                preferred_element_type=jnp.float32) + n_bo[0]
    h1 = _layer_norm(x + o, n_g1[0], n_b1[0], eps)
    newx = _ffn(h1, n_fw1[0], n_fb1[0], n_fw2[0], n_fb2[0], n_g2[0], n_b2[0], eps)

    # ---------------- edge update: EdgeRGATLayer on the line graph -------------
    # Uses the layer-INPUT x (matches DualRGATLayer: src/dst gathers come from x).
    srcx = jnp.dot(gsrcb, xb, preferred_element_type=jnp.float32)   # x[src_ids]  [E, ndim]
    dstx = jnp.dot(gdstb, xb, preferred_element_type=jnp.float32)   # x[dst_ids]  [E, ndim]
    qkve = jnp.dot(lgxb, e_wqkv[0], preferred_element_type=jnp.float32) + e_bqkv[0]
    qe = (qkve[:, 0:ndim] + srcx) * inv_s
    ke = qkve[:, ndim:2 * ndim]
    ve = qkve[:, 2 * ndim:3 * ndim] + dstx

    oe = _mh_attention(qe, ke, ve, lgmask, num_heads, dk)
    oe = jnp.dot(oe.astype(jnp.bfloat16), e_wo[0],
                 preferred_element_type=jnp.float32) + e_bo[0]
    h1e = _layer_norm(lgx + oe, e_g1[0], e_b1[0], eps)
    newlgx = _ffn(h1e, e_fw1[0], e_fb1[0], e_fw2[0], e_fb2[0], e_g2[0], e_b2[0], eps)

    # carry to next layer; write outputs on the last layer only
    xs_ref[...] = newx
    lgs_ref[...] = newlgx

    @pl.when(l == pl.num_programs(0) - 1)
    def _():
        outx_ref[...] = newx
        outlgx_ref[...] = newlgx


# ----------------------------- full model forward ------------------------------

def lgesql_forward(params, x, rel_ids, local_idx, nmask, lgmask, gsrc, gdst, gdstT,
                   *, num_heads, num_layers):
    # relation embedding lookup + local-edge gather (cheap, done once outside the kernel)
    global_lgx = jnp.take(params['relation_embed'], rel_ids, axis=0)   # [N*N, edim]
    lgx0 = jnp.take(global_lgx, local_idx, axis=0)                     # [E, edim]

    N, ndim = x.shape
    E, edim = lgx0.shape
    node_p, edge_p = params['node'], params['edge']

    def const2(shape):                       # structural inputs: resident, loaded once
        return pl.BlockSpec(shape, lambda l: (0, 0))

    def stack3(shape):                       # per-layer weights: prefetched per grid step
        return pl.BlockSpec((1,) + shape, lambda l: (l, 0, 0))

    in_specs = [const2((N, ndim)), const2((E, edim)),
                const2((N, N)), const2((E, E)),
                const2((E, N)), const2((E, N)), const2((N, E))]
    for p in node_p + edge_p:
        in_specs.append(stack3(p.shape[1:]))

    kern = functools.partial(_lgesql_stack_kernel, num_heads=num_heads, eps=1e-5)
    outx, _ = pl.pallas_call(
        kern,
        out_shape=(jax.ShapeDtypeStruct((N, ndim), jnp.float32),
                   jax.ShapeDtypeStruct((E, edim), jnp.float32)),
        grid_spec=pltpu.PrefetchScalarGridSpec(
            num_scalar_prefetch=0,
            grid=(num_layers,),
            in_specs=in_specs,
            out_specs=[pl.BlockSpec((N, ndim), lambda l: (0, 0)),
                       pl.BlockSpec((E, edim), lambda l: (0, 0))],
            scratch_shapes=[pltpu.VMEM((N, ndim), jnp.float32),
                            pltpu.VMEM((E, edim), jnp.float32)]),
        compiler_params=pltpu.CompilerParams(
            dimension_semantics=("arbitrary",),          # layer carry is sequential
            vmem_limit_bytes=32 * 1024 * 1024),
    )(x, lgx0, nmask, lgmask, gsrc, gdst, gdstT, *node_p, *edge_p)
    return outx


# ----------------------------- parameter init ----------------------------------

def init_params(key, num_layers, ndim, edim, relation_num):
    assert ndim == edim, "graph_view='local', relation_share_heads=False => edim == ndim"
    L = num_layers

    def w(k, shape, scale=0.1):
        return scale * jax.random.normal(k, shape, jnp.float32)

    def side(k, in_dim, attn_dim, out_dim):
        ks = jax.random.split(k, 8)
        wqkv = w(ks[0], (L, in_dim, 3 * attn_dim)).astype(jnp.bfloat16)   # fused Q/K/V
        bq = w(ks[1], (L, 1, attn_dim))
        bqkv = jnp.concatenate(                                           # k, v have no bias
            [bq, jnp.zeros((L, 1, 2 * attn_dim), jnp.float32)], axis=-1)
        wo = w(ks[2], (L, attn_dim, out_dim)).astype(jnp.bfloat16)
        bo = w(ks[3], (L, 1, out_dim))
        g1 = jnp.ones((L, 1, out_dim), jnp.float32)
        b1 = jnp.zeros((L, 1, out_dim), jnp.float32)
        fw1 = w(ks[4], (L, out_dim, 4 * out_dim)).astype(jnp.bfloat16)
        fb1 = w(ks[5], (L, 1, 4 * out_dim))
        fw2 = w(ks[6], (L, 4 * out_dim, out_dim)).astype(jnp.bfloat16)
        fb2 = w(ks[7], (L, 1, out_dim))
        g2 = jnp.ones((L, 1, out_dim), jnp.float32)
        b2 = jnp.zeros((L, 1, out_dim), jnp.float32)
        return [wqkv, bqkv, wo, bo, g1, b1, fw1, fb1, fw2, fb2, g2, b2]

    k0, kn, ke = jax.random.split(key, 3)
    relation_embed = 0.1 * jax.random.normal(k0, (relation_num, edim), jnp.float32)
    return dict(relation_embed=relation_embed,
                node=side(kn, ndim, ndim, ndim),
                edge=side(ke, edim, ndim, edim))


# ----------------------------------- main ---------------------------------------

if __name__ == "__main__":
    # LGESQL config (small): gnn_hidden_size=32, num_heads=4, gnn_num_layers=2,
    # local_and_nonlocal='local', relation_share_heads=False  ->  edim = ndim.
    N = 16
    ndim = 32
    edim = ndim
    num_heads = 4
    num_layers = 2
    relation_num = 10

    # Deterministic graph structure (host-side, static shapes).
    src = np.arange(N).repeat(N).astype(np.int32)        # global edge g = src*N + dst
    dst = np.tile(np.arange(N), N).astype(np.int32)
    local_flat = ((dst - src) % N) < 4                   # local_mask over the N*N global edges
    local_idx = np.nonzero(local_flat)[0].astype(np.int32)   # E = 64 local edges
    E = int(local_idx.size)
    src_ids = (local_idx // N).astype(np.int32)
    dst_ids = (local_idx % N).astype(np.int32)
    node_mask = local_flat.reshape(N, N).T.astype(np.float32)          # [dst, src]
    # line graph lg: edge u -> edge v iff dst(u) == src(v), no backtracking; mask[v, u]
    lg_mask = ((dst_ids[None, :] == src_ids[:, None]) &
               ~(src_ids[None, :] == dst_ids[:, None])).astype(np.float32)
    # one-hot incidence matrices (src / dst node of each local edge)
    gsrc = np.zeros((E, N), np.float32); gsrc[np.arange(E), src_ids] = 1.0
    gdst = np.zeros((E, N), np.float32); gdst[np.arange(E), dst_ids] = 1.0
    rel_ids = (np.arange(N * N, dtype=np.int32) % relation_num)        # batch.graph.global_edges

    key = jax.random.PRNGKey(0)
    key, kx, kp = jax.random.split(key, 3)
    x = jax.random.normal(kx, (N, ndim), jnp.float32)
    params = init_params(kp, num_layers, ndim, edim, relation_num)

    nmask_b = jnp.asarray(node_mask, jnp.bfloat16)
    lgmask_b = jnp.asarray(lg_mask, jnp.bfloat16)
    gsrc_b = jnp.asarray(gsrc, jnp.bfloat16)
    gdst_b = jnp.asarray(gdst, jnp.bfloat16)
    gdstT_b = jnp.asarray(gdst.T.copy(), jnp.bfloat16)

    fwd = jax.jit(functools.partial(lgesql_forward,
                                    num_heads=num_heads, num_layers=num_layers))
    out = fwd(params, x, jnp.asarray(rel_ids), jnp.asarray(local_idx),
              nmask_b, lgmask_b, gsrc_b, gdst_b, gdstT_b)
    out = jax.block_until_ready(out)

    assert out.shape == (N, ndim), out.shape
    assert bool(jnp.all(jnp.isfinite(out)))
    print("KERNEL_OK")
</pallas_src>

<mosaic_0001>
module attributes {stable_mosaic.version = 11 : i64} {
  func.func @_lgesql_stack_kernel(%arg0: i32, %arg1: memref<16x32xf32, #tpu.memory_space<vmem>>, %arg2: memref<64x32xf32, #tpu.memory_space<vmem>>, %arg3: memref<16x16xbf16, #tpu.memory_space<vmem>>, %arg4: memref<64x64xbf16, #tpu.memory_space<vmem>>, %arg5: memref<64x16xbf16, #tpu.memory_space<vmem>>, %arg6: memref<64x16xbf16, #tpu.memory_space<vmem>>, %arg7: memref<16x64xbf16, #tpu.memory_space<vmem>>, %arg8: memref<1x32x96xbf16, #tpu.memory_space<vmem>>, %arg9: memref<1x1x96xf32, #tpu.memory_space<vmem>>, %arg10: memref<1x32x32xbf16, #tpu.memory_space<vmem>>, %arg11: memref<1x1x32xf32, #tpu.memory_space<vmem>>, %arg12: memref<1x1x32xf32, #tpu.memory_space<vmem>>, %arg13: memref<1x1x32xf32, #tpu.memory_space<vmem>>, %arg14: memref<1x32x128xbf16, #tpu.memory_space<vmem>>, %arg15: memref<1x1x128xf32, #tpu.memory_space<vmem>>, %arg16: memref<1x128x32xbf16, #tpu.memory_space<vmem>>, %arg17: memref<1x1x32xf32, #tpu.memory_space<vmem>>, %arg18: memref<1x1x32xf32, #tpu.memory_space<vmem>>, %arg19: memref<1x1x32xf32, #tpu.memory_space<vmem>>, %arg20: memref<1x32x96xbf16, #tpu.memory_space<vmem>>, %arg21: memref<1x1x96xf32, #tpu.memory_space<vmem>>, %arg22: memref<1x32x32xbf16, #tpu.memory_space<vmem>>, %arg23: memref<1x1x32xf32, #tpu.memory_space<vmem>>, %arg24: memref<1x1x32xf32, #tpu.memory_space<vmem>>, %arg25: memref<1x1x32xf32, #tpu.memory_space<vmem>>, %arg26: memref<1x32x128xbf16, #tpu.memory_space<vmem>>, %arg27: memref<1x1x128xf32, #tpu.memory_space<vmem>>, %arg28: memref<1x128x32xbf16, #tpu.memory_space<vmem>>, %arg29: memref<1x1x32xf32, #tpu.memory_space<vmem>>, %arg30: memref<1x1x32xf32, #tpu.memory_space<vmem>>, %arg31: memref<1x1x32xf32, #tpu.memory_space<vmem>>, %arg32: memref<16x32xf32, #tpu.memory_space<vmem>>, %arg33: memref<64x32xf32, #tpu.memory_space<vmem>>, %arg34: memref<16x32xf32, #tpu.memory_space<vmem>>, %arg35: memref<64x32xf32, #tpu.memory_space<vmem>>) attributes {dimension_semantics = [#tpu.dimension_semantics<arbitrary>], iteration_bounds = array<i64: 2>, scalar_prefetch = 0 : i64, scratch_operands = 2 : i64, tpu.core_type = #tpu.core_type<tc>, window_params = [{pipeline_mode = #tpu.pipeline_mode<synchronous>, transform_indices = @transform_0, window_bounds = array<i64: 16, 32>}, {pipeline_mode = #tpu.pipeline_mode<synchronous>, transform_indices = @transform_1, window_bounds = array<i64: 64, 32>}, {pipeline_mode = #tpu.pipeline_mode<synchronous>, transform_indices = @transform_2, window_bounds = array<i64: 16, 16>}, {pipeline_mode = #tpu.pipeline_mode<synchronous>, transform_indices = @transform_3, window_bounds = array<i64: 64, 64>}, {pipeline_mode = #tpu.pipeline_mode<synchronous>, transform_indices = @transform_4, window_bounds = array<i64: 64, 16>}, {pipeline_mode = #tpu.pipeline_mode<synchronous>, transform_indices = @transform_5, window_bounds = array<i64: 64, 16>}, {pipeline_mode = #tpu.pipeline_mode<synchronous>, transform_indices = @transform_6, window_bounds = array<i64: 16, 64>}, {transform_indices = @transform_7, window_bounds = array<i64: 1, 32, 96>}, {transform_indices = @transform_8, window_bounds = array<i64: 1, 1, 96>}, {transform_indices = @transform_9, window_bounds = array<i64: 1, 32, 32>}, {transform_indices = @transform_10, window_bounds = array<i64: 1, 1, 32>}, {transform_indices = @transform_11, window_bounds = array<i64: 1, 1, 32>}, {transform_indices = @transform_12, window_bounds = array<i64: 1, 1, 32>}, {transform_indices = @transform_13, window_bounds = array<i64: 1, 32, 128>}, {transform_indices = @transform_14, window_bounds = array<i64: 1, 1, 128>}, {transform_indices = @transform_15, window_bounds = array<i64: 1, 128, 32>}, {transform_indices = @transform_16, window_bounds = array<i64: 1, 1, 32>}, {transform_indices = @transform_17, window_bounds = array<i64: 1, 1, 32>}, {transform_indices = @transform_18, window_bounds = array<i64: 1, 1, 32>}, {transform_indices = @transform_19, window_bounds = array<i64: 1, 32, 96>}, {transform_indices = @transform_20, window_bounds = array<i64: 1, 1, 96>}, {transform_indices = @transform_21, window_bounds = array<i64: 1, 32, 32>}, {transform_indices = @transform_22, window_bounds = array<i64: 1, 1, 32>}, {transform_indices = @transform_23, window_bounds = array<i64: 1, 1, 32>}, {transform_indices = @transform_24, window_bounds = array<i64: 1, 1, 32>}, {transform_indices = @transform_25, window_bounds = array<i64: 1, 32, 128>}, {transform_indices = @transform_26, window_bounds = array<i64: 1, 1, 128>}, {transform_indices = @transform_27, window_bounds = array<i64: 1, 128, 32>}, {transform_indices = @transform_28, window_bounds = array<i64: 1, 1, 32>}, {transform_indices = @transform_29, window_bounds = array<i64: 1, 1, 32>}, {transform_indices = @transform_30, window_bounds = array<i64: 1, 1, 32>}, {pipeline_mode = #tpu.pipeline_mode<synchronous>, transform_indices = @transform_31, window_bounds = array<i64: 16, 32>}, {pipeline_mode = #tpu.pipeline_mode<synchronous>, transform_indices = @transform_32, window_bounds = array<i64: 64, 32>}]} {
    %c0_i32 = arith.constant 0 : i32
    %0 = arith.cmpi eq, %arg0, %c0_i32 : i32
    %1 = arith.extui %0 : i1 to i32
    %c0_i32_0 = arith.constant 0 : i32
    %2 = arith.cmpi ne, %1, %c0_i32_0 : i32
    scf.if %2 {
      %c0_223 = arith.constant 0 : index
      %c0_224 = arith.constant 0 : index
      %537 = vector.load %arg1[%c0_223, %c0_224] : memref<16x32xf32, #tpu.memory_space<vmem>>, vector<16x32xf32>
      %c0_225 = arith.constant 0 : index
      %c0_226 = arith.constant 0 : index
      %538 = vector.load %arg34[%c0_225, %c0_226] : memref<16x32xf32, #tpu.memory_space<vmem>>, vector<16x32xf32>
      tpu.vector_store %arg34[%c0_225, %c0_226], %537 {strides = array<i32>} : memref<16x32xf32, #tpu.memory_space<vmem>>, vector<16x32xf32>,
      %c0_227 = arith.constant 0 : index
      %c0_228 = arith.constant 0 : index
      %539 = vector.load %arg2[%c0_227, %c0_228] : memref<64x32xf32, #tpu.memory_space<vmem>>, vector<64x32xf32>
      %c0_229 = arith.constant 0 : index
      %c0_230 = arith.constant 0 : index
      %540 = vector.load %arg35[%c0_229, %c0_230] : memref<64x32xf32, #tpu.memory_space<vmem>>, vector<64x32xf32>
      tpu.vector_store %arg35[%c0_229, %c0_230], %539 {strides = array<i32>} : memref<64x32xf32, #tpu.memory_space<vmem>>, vector<64x32xf32>,
    } else {
    }
    %c0 = arith.constant 0 : index
    %c0_1 = arith.constant 0 : index
    %3 = vector.load %arg34[%c0, %c0_1] : memref<16x32xf32, #tpu.memory_space<vmem>>, vector<16x32xf32>
    %c0_2 = arith.constant 0 : index
    %c0_3 = arith.constant 0 : index
    %4 = vector.load %arg35[%c0_2, %c0_3] : memref<64x32xf32, #tpu.memory_space<vmem>>, vector<64x32xf32>
    %c0_4 = arith.constant 0 : index
    %c0_5 = arith.constant 0 : index
    %5 = vector.load %arg3[%c0_4, %c0_5] : memref<16x16xbf16, #tpu.memory_space<vmem>>, vector<16x16xbf16>
    %6 = arith.extf %5 : vector<16x16xbf16> to vector<16x16xf32>
    %c0_6 = arith.constant 0 : index
    %c0_7 = arith.constant 0 : index
    %7 = vector.load %arg4[%c0_6, %c0_7] : memref<64x64xbf16, #tpu.memory_space<vmem>>, vector<64x64xbf16>
    %8 = arith.extf %7 : vector<64x64xbf16> to vector<64x64xf32>
    %c0_8 = arith.constant 0 : index
    %c0_9 = arith.constant 0 : index
    %9 = vector.load %arg5[%c0_8, %c0_9] : memref<64x16xbf16, #tpu.memory_space<vmem>>, vector<64x16xbf16>
    %c0_10 = arith.constant 0 : index
    %c0_11 = arith.constant 0 : index
    %10 = vector.load %arg6[%c0_10, %c0_11] : memref<64x16xbf16, #tpu.memory_space<vmem>>, vector<64x16xbf16>
    %c0_12 = arith.constant 0 : index
    %c0_13 = arith.constant 0 : index
    %11 = vector.load %arg7[%c0_12, %c0_13] : memref<16x64xbf16, #tpu.memory_space<vmem>>, vector<16x64xbf16>
    %12 = arith.extf %9 : vector<64x16xbf16> to vector<64x16xf32>
    %13 = arith.truncf %3 : vector<16x32xf32> to vector<16x32xbf16>
    %14 = arith.truncf %4 : vector<64x32xf32> to vector<64x32xbf16>
    %c0_14 = arith.constant 0 : index
    %c0_15 = arith.constant 0 : index
    %c0_16 = arith.constant 0 : index
    %15 = vector.load %arg8[%c0_14, %c0_15, %c0_16] : memref<1x32x96xbf16, #tpu.memory_space<vmem>>, vector<1x32x96xbf16>
    %16 = vector.shape_cast %15 : vector<1x32x96xbf16> to vector<32x96xbf16>
    %cst = arith.constant dense<0.000000e+00> : vector<16x96xf32>
    %17 = tpu.matmul %13, %16, %cst {dimension_numbers = #tpu.dot_dimension_numbers<[1], [0], [0], [1], [0, 0, 1, 1], [], []>} : vector<16x32xbf16>, vector<32x96xbf16>, vector<16x96xf32> -> vector<16x96xf32>
    %c0_17 = arith.constant 0 : index
    %c0_18 = arith.constant 0 : index
    %c0_19 = arith.constant 0 : index
    %18 = vector.load %arg9[%c0_17, %c0_18, %c0_19] : memref<1x1x96xf32, #tpu.memory_space<vmem>>, vector<1x1x96xf32>
    %19 = vector.shape_cast %18 : vector<1x1x96xf32> to vector<1x96xf32>
    %20 = vector.broadcast %19 : vector<1x96xf32> to vector<16x96xf32>
    %21 = arith.addf %17, %20 : vector<16x96xf32>
    %22 = vector.extract_strided_slice %21 {offsets = [0, 0], sizes = [16, 32], strides = [1, 1]} : vector<16x96xf32> to vector<16x32xf32>
    %cst_20 = arith.constant 0.353553385 : f32
    %23 = vector.broadcast %cst_20 : f32 to vector<16x32xf32>
    %24 = arith.mulf %22, %23 : vector<16x32xf32>
    %25 = vector.extract_strided_slice %21 {offsets = [0, 32], sizes = [16, 32], strides = [1, 1]} : vector<16x96xf32> to vector<16x32xf32>
    %26 = vector.extract_strided_slice %21 {offsets = [0, 64], sizes = [16, 32], strides = [1, 1]} : vector<16x96xf32> to vector<16x32xf32>
    %27 = arith.truncf %24 : vector<16x32xf32> to vector<16x32xbf16>
    %cst_21 = arith.constant dense<0.000000e+00> : vector<64x32xf32>
    %28 = tpu.matmul %10, %27, %cst_21 {dimension_numbers = #tpu.dot_dimension_numbers<[1], [0], [0], [1], [0, 0, 1, 1], [], []>} : vector<64x16xbf16>, vector<16x32xbf16>, vector<64x32xf32> -> vector<64x32xf32>
    %29 = arith.mulf %28, %4 : vector<64x32xf32>
    %30 = tpu.iota {dimensions = array<i32: 1>} : vector<1x32xi32>
    %31 = arith.truncf %25 : vector<16x32xf32> to vector<16x32xbf16>
    %cst_22 = arith.constant 0.000000e+00 : f32
    %32 = vector.broadcast %cst_22 : f32 to vector<16x32xf32>
    %c0_i32_23 = arith.constant 0 : i32
    %33 = vector.broadcast %c0_i32_23 : i32 to vector<1x32xi32>
    %34 = arith.cmpi sge, %30, %33 : vector<1x32xi32>
    %c8_i32 = arith.constant 8 : i32
    %35 = vector.broadcast %c8_i32 : i32 to vector<1x32xi32>
    %36 = arith.cmpi slt, %30, %35 : vector<1x32xi32>
    %37 = arith.andi %34, %36 : vector<1x32xi1>
    %cst_24 = arith.constant 1.000000e+00 : f32
    %cst_25 = arith.constant 0.000000e+00 : f32
    %38 = vector.broadcast %cst_24 : f32 to vector<1x32xf32>
    %39 = vector.broadcast %cst_25 : f32 to vector<1x32xf32>
    %40 = arith.select %37, %38, %39 : vector<1x32xi1>, vector<1x32xf32>
    %41 = vector.broadcast %40 : vector<1x32xf32> to vector<16x32xf32>
    %42 = arith.mulf %24, %41 : vector<16x32xf32>
    %43 = arith.truncf %42 : vector<16x32xf32> to vector<16x32xbf16>
    %cst_26 = arith.constant dense<0.000000e+00> : vector<16x16xf32>
    %44 = tpu.matmul %43, %31, %cst_26 {dimension_numbers = #tpu.dot_dimension_numbers<[1], [1], [0], [0], [0, 0, 1, 0], [], []>} : vector<16x32xbf16>, vector<16x32xbf16>, vector<16x16xf32> -> vector<16x16xf32>
    %45 = vector.broadcast %40 : vector<1x32xf32> to vector<64x32xf32>
    %46 = arith.mulf %29, %45 : vector<64x32xf32>
    %cst_27 = arith.constant dense<0.000000e+00> : vector<64xf32>
    %47 = vector.multi_reduction <add>, %46, %cst_27 [1] : vector<64x32xf32> to vector<64xf32>
    %48 = vector.shape_cast %47 : vector<64xf32> to vector<64x1xf32>
    %49 = vector.broadcast %48 : vector<64x1xf32> to vector<64x16xf32>
    %50 = arith.mulf %49, %12 : vector<64x16xf32>
    %51 = arith.truncf %50 : vector<64x16xf32> to vector<64x16xbf16>
    %cst_28 = arith.constant dense<0.000000e+00> : vector<16x16xf32>
    %52 = tpu.matmul %11, %51, %cst_28 {dimension_numbers = #tpu.dot_dimension_numbers<[1], [0], [0], [1], [0, 0, 1, 1], [], []>} : vector<16x64xbf16>, vector<64x16xbf16>, vector<16x16xf32> -> vector<16x16xf32>
    %53 = arith.addf %44, %52 : vector<16x16xf32>
    %cst_29 = arith.constant -1.000000e+01 : f32
    %cst_30 = arith.constant 1.000000e+01 : f32
    %54 = vector.broadcast %cst_29 : f32 to vector<16x16xf32>
    %55 = arith.maximumf %54, %53 : vector<16x16xf32>
    %56 = vector.broadcast %cst_30 : f32 to vector<16x16xf32>
    %57 = arith.minimumf %56, %55 : vector<16x16xf32>
    %58 = math.exp %57 : vector<16x16xf32>
    %59 = arith.mulf %58, %6 : vector<16x16xf32>
    %cst_31 = arith.constant dense<0.000000e+00> : vector<16xf32>
    %60 = vector.multi_reduction <add>, %59, %cst_31 [1] : vector<16x16xf32> to vector<16xf32>
    %61 = vector.shape_cast %60 : vector<16xf32> to vector<16x1xf32>
    %cst_32 = arith.constant 9.99999971E-10 : f32
    %62 = vector.broadcast %cst_32 : f32 to vector<16x1xf32>
    %63 = arith.maximumf %61, %62 : vector<16x1xf32>
    %64 = arith.truncf %59 : vector<16x16xf32> to vector<16x16xbf16>
    %65 = vector.broadcast %40 : vector<1x32xf32> to vector<16x32xf32>
    %66 = arith.mulf %26, %65 : vector<16x32xf32>
    %67 = arith.truncf %66 : vector<16x32xf32> to vector<16x32xbf16>
    %cst_33 = arith.constant dense<0.000000e+00> : vector<16x32xf32>
    %68 = tpu.matmul %64, %67, %cst_33 {dimension_numbers = #tpu.dot_dimension_numbers<[1], [0], [0], [1], [0, 0, 1, 1], [], []>} : vector<16x16xbf16>, vector<16x32xbf16>, vector<16x32xf32> -> vector<16x32xf32>
    %cst_34 = arith.constant dense<0.000000e+00> : vector<64x16xf32>
    %69 = tpu.matmul %10, %64, %cst_34 {dimension_numbers = #tpu.dot_dimension_numbers<[1], [0], [0], [1], [0, 0, 1, 1], [], []>} : vector<64x16xbf16>, vector<16x16xbf16>, vector<64x16xf32> -> vector<64x16xf32>
    %70 = arith.mulf %69, %12 : vector<64x16xf32>
    %cst_35 = arith.constant dense<0.000000e+00> : vector<64xf32>
    %71 = vector.multi_reduction <add>, %70, %cst_35 [1] : vector<64x16xf32> to vector<64xf32>
    %72 = vector.shape_cast %71 : vector<64xf32> to vector<64x1xf32>
    %73 = vector.broadcast %72 : vector<64x1xf32> to vector<64x32xf32>
    %74 = arith.mulf %73, %4 : vector<64x32xf32>
    %75 = arith.truncf %74 : vector<64x32xf32> to vector<64x32xbf16>
    %cst_36 = arith.constant dense<0.000000e+00> : vector<16x32xf32>
    %76 = tpu.matmul %11, %75, %cst_36 {dimension_numbers = #tpu.dot_dimension_numbers<[1], [0], [0], [1], [0, 0, 1, 1], [], []>} : vector<16x64xbf16>, vector<64x32xbf16>, vector<16x32xf32> -> vector<16x32xf32>
    %77 = vector.broadcast %40 : vector<1x32xf32> to vector<16x32xf32>
    %78 = arith.mulf %76, %77 : vector<16x32xf32>
    %79 = arith.addf %68, %78 : vector<16x32xf32>
    %80 = vector.broadcast %63 : vector<16x1xf32> to vector<16x32xf32>
    %81 = arith.divf %79, %80 : vector<16x32xf32>
    %82 = arith.addf %32, %81 : vector<16x32xf32>
    %c8_i32_37 = arith.constant 8 : i32
    %83 = vector.broadcast %c8_i32_37 : i32 to vector<1x32xi32>
    %84 = arith.cmpi sge, %30, %83 : vector<1x32xi32>
    %c16_i32 = arith.constant 16 : i32
    %85 = vector.broadcast %c16_i32 : i32 to vector<1x32xi32>
    %86 = arith.cmpi slt, %30, %85 : vector<1x32xi32>
    %87 = arith.andi %84, %86 : vector<1x32xi1>
    %cst_38 = arith.constant 1.000000e+00 : f32
    %cst_39 = arith.constant 0.000000e+00 : f32
    %88 = vector.broadcast %cst_38 : f32 to vector<1x32xf32>
    %89 = vector.broadcast %cst_39 : f32 to vector<1x32xf32>
    %90 = arith.select %87, %88, %89 : vector<1x32xi1>, vector<1x32xf32>
    %91 = vector.broadcast %90 : vector<1x32xf32> to vector<16x32xf32>
    %92 = arith.mulf %24, %91 : vector<16x32xf32>
    %93 = arith.truncf %92 : vector<16x32xf32> to vector<16x32xbf16>
    %cst_40 = arith.constant dense<0.000000e+00> : vector<16x16xf32>
    %94 = tpu.matmul %93, %31, %cst_40 {dimension_numbers = #tpu.dot_dimension_numbers<[1], [1], [0], [0], [0, 0, 1, 0], [], []>} : vector<16x32xbf16>, vector<16x32xbf16>, vector<16x16xf32> -> vector<16x16xf32>
    %95 = vector.broadcast %90 : vector<1x32xf32> to vector<64x32xf32>
    %96 = arith.mulf %29, %95 : vector<64x32xf32>
    %cst_41 = arith.constant dense<0.000000e+00> : vector<64xf32>
    %97 = vector.multi_reduction <add>, %96, %cst_41 [1] : vector<64x32xf32> to vector<64xf32>
    %98 = vector.shape_cast %97 : vector<64xf32> to vector<64x1xf32>
    %99 = vector.broadcast %98 : vector<64x1xf32> to vector<64x16xf32>
    %100 = arith.mulf %99, %12 : vector<64x16xf32>
    %101 = arith.truncf %100 : vector<64x16xf32> to vector<64x16xbf16>
    %cst_42 = arith.constant dense<0.000000e+00> : vector<16x16xf32>
    %102 = tpu.matmul %11, %101, %cst_42 {dimension_numbers = #tpu.dot_dimension_numbers<[1], [0], [0], [1], [0, 0, 1, 1], [], []>} : vector<16x64xbf16>, vector<64x16xbf16>, vector<16x16xf32> -> vector<16x16xf32>
    %103 = arith.addf %94, %102 : vector<16x16xf32>
    %cst_43 = arith.constant -1.000000e+01 : f32
    %cst_44 = arith.constant 1.000000e+01 : f32
    %104 = vector.broadcast %cst_43 : f32 to vector<16x16xf32>
    %105 = arith.maximumf %104, %103 : vector<16x16xf32>
    %106 = vector.broadcast %cst_44 : f32 to vector<16x16xf32>
    %107 = arith.minimumf %106, %105 : vector<16x16xf32>
    %108 = math.exp %107 : vector<16x16xf32>
    %109 = arith.mulf %108, %6 : vector<16x16xf32>
    %cst_45 = arith.constant dense<0.000000e+00> : vector<16xf32>
    %110 = vector.multi_reduction <add>, %109, %cst_45 [1] : vector<16x16xf32> to vector<16xf32>
    %111 = vector.shape_cast %110 : vector<16xf32> to vector<16x1xf32>
    %cst_46 = arith.constant 9.99999971E-10 : f32
    %112 = vector.broadcast %cst_46 : f32 to vector<16x1xf32>
    %113 = arith.maximumf %111, %112 : vector<16x1xf32>
    %114 = arith.truncf %109 : vector<16x16xf32> to vector<16x16xbf16>
    %115 = vector.broadcast %90 : vector<1x32xf32> to vector<16x32xf32>
    %116 = arith.mulf %26, %115 : vector<16x32xf32>
    %117 = arith.truncf %116 : vector<16x32xf32> to vector<16x32xbf16>
    %cst_47 = arith.constant dense<0.000000e+00> : vector<16x32xf32>
    %118 = tpu.matmul %114, %117, %cst_47 {dimension_numbers = #tpu.dot_dimension_numbers<[1], [0], [0], [1], [0, 0, 1, 1], [], []>} : vector<16x16xbf16>, vector<16x32xbf16>, vector<16x32xf32> -> vector<16x32xf32>
    %cst_48 = arith.constant dense<0.000000e+00> : vector<64x16xf32>
    %119 = tpu.matmul %10, %114, %cst_48 {dimension_numbers = #tpu.dot_dimension_numbers<[1], [0], [0], [1], [0, 0, 1, 1], [], []>} : vector<64x16xbf16>, vector<16x16xbf16>, vector<64x16xf32> -> vector<64x16xf32>
    %120 = arith.mulf %119, %12 : vector<64x16xf32>
    %cst_49 = arith.constant dense<0.000000e+00> : vector<64xf32>
    %121 = vector.multi_reduction <add>, %120, %cst_49 [1] : vector<64x16xf32> to vector<64xf32>
    %122 = vector.shape_cast %121 : vector<64xf32> to vector<64x1xf32>
    %123 = vector.broadcast %122 : vector<64x1xf32> to vector<64x32xf32>
    %124 = arith.mulf %123, %4 : vector<64x32xf32>
    %125 = arith.truncf %124 : vector<64x32xf32> to vector<64x32xbf16>
    %cst_50 = arith.constant dense<0.000000e+00> : vector<16x32xf32>
    %126 = tpu.matmul %11, %125, %cst_50 {dimension_numbers = #tpu.dot_dimension_numbers<[1], [0], [0], [1], [0, 0, 1, 1], [], []>} : vector<16x64xbf16>, vector<64x32xbf16>, vector<16x32xf32> -> vector<16x32xf32>
    %127 = vector.broadcast %90 : vector<1x32xf32> to vector<16x32xf32>
    %128 = arith.mulf %126, %127 : vector<16x32xf32>
    %129 = arith.addf %118, %128 : vector<16x32xf32>
    %130 = vector.broadcast %113 : vector<16x1xf32> to vector<16x32xf32>
    %131 = arith.divf %129, %130 : vector<16x32xf32>
    %132 = arith.addf %82, %131 : vector<16x32xf32>
    %c16_i32_51 = arith.constant 16 : i32
    %133 = vector.broadcast %c16_i32_51 : i32 to vector<1x32xi32>
    %134 = arith.cmpi sge, %30, %133 : vector<1x32xi32>
    %c24_i32 = arith.constant 24 : i32
    %135 = vector.broadcast %c24_i32 : i32 to vector<1x32xi32>
    %136 = arith.cmpi slt, %30, %135 : vector<1x32xi32>
    %137 = arith.andi %134, %136 : vector<1x32xi1>
    %cst_52 = arith.constant 1.000000e+00 : f32
    %cst_53 = arith.constant 0.000000e+00 : f32
    %138 = vector.broadcast %cst_52 : f32 to vector<1x32xf32>
    %139 = vector.broadcast %cst_53 : f32 to vector<1x32xf32>
    %140 = arith.select %137, %138, %139 : vector<1x32xi1>, vector<1x32xf32>
    %141 = vector.broadcast %140 : vector<1x32xf32> to vector<16x32xf32>
    %142 = arith.mulf %24, %141 : vector<16x32xf32>
    %143 = arith.truncf %142 : vector<16x32xf32> to vector<16x32xbf16>
    %cst_54 = arith.constant dense<0.000000e+00> : vector<16x16xf32>
    %144 = tpu.matmul %143, %31, %cst_54 {dimension_numbers = #tpu.dot_dimension_numbers<[1], [1], [0], [0], [0, 0, 1, 0], [], []>} : vector<16x32xbf16>, vector<16x32xbf16>, vector<16x16xf32> -> vector<16x16xf32>
    %145 = vector.broadcast %140 : vector<1x32xf32> to vector<64x32xf32>
    %146 = arith.mulf %29, %145 : vector<64x32xf32>
    %cst_55 = arith.constant dense<0.000000e+00> : vector<64xf32>
    %147 = vector.multi_reduction <add>, %146, %cst_55 [1] : vector<64x32xf32> to vector<64xf32>
    %148 = vector.shape_cast %147 : vector<64xf32> to vector<64x1xf32>
    %149 = vector.broadcast %148 : vector<64x1xf32> to vector<64x16xf32>
    %150 = arith.mulf %149, %12 : vector<64x16xf32>
    %151 = arith.truncf %150 : vector<64x16xf32> to vector<64x16xbf16>
    %cst_56 = arith.constant dense<0.000000e+00> : vector<16x16xf32>
    %152 = tpu.matmul %11, %151, %cst_56 {dimension_numbers = #tpu.dot_dimension_numbers<[1], [0], [0], [1], [0, 0, 1, 1], [], []>} : vector<16x64xbf16>, vector<64x16xbf16>, vector<16x16xf32> -> vector<16x16xf32>
    %153 = arith.addf %144, %152 : vector<16x16xf32>
    %cst_57 = arith.constant -1.000000e+01 : f32
    %cst_58 = arith.constant 1.000000e+01 : f32
    %154 = vector.broadcast %cst_57 : f32 to vector<16x16xf32>
    %155 = arith.maximumf %154, %153 : vector<16x16xf32>
    %156 = vector.broadcast %cst_58 : f32 to vector<16x16xf32>
    %157 = arith.minimumf %156, %155 : vector<16x16xf32>
    %158 = math.exp %157 : vector<16x16xf32>
    %159 = arith.mulf %158, %6 : vector<16x16xf32>
    %cst_59 = arith.constant dense<0.000000e+00> : vector<16xf32>
    %160 = vector.multi_reduction <add>, %159, %cst_59 [1] : vector<16x16xf32> to vector<16xf32>
    %161 = vector.shape_cast %160 : vector<16xf32> to vector<16x1xf32>
    %cst_60 = arith.constant 9.99999971E-10 : f32
    %162 = vector.broadcast %cst_60 : f32 to vector<16x1xf32>
    %163 = arith.maximumf %161, %162 : vector<16x1xf32>
    %164 = arith.truncf %159 : vector<16x16xf32> to vector<16x16xbf16>
    %165 = vector.broadcast %140 : vector<1x32xf32> to vector<16x32xf32>
    %166 = arith.mulf %26, %165 : vector<16x32xf32>
    %167 = arith.truncf %166 : vector<16x32xf32> to vector<16x32xbf16>
    %cst_61 = arith.constant dense<0.000000e+00> : vector<16x32xf32>
    %168 = tpu.matmul %164, %167, %cst_61 {dimension_numbers = #tpu.dot_dimension_numbers<[1], [0], [0], [1], [0, 0, 1, 1], [], []>} : vector<16x16xbf16>, vector<16x32xbf16>, vector<16x32xf32> -> vector<16x32xf32>
    %cst_62 = arith.constant dense<0.000000e+00> : vector<64x16xf32>
    %169 = tpu.matmul %10, %164, %cst_62 {dimension_numbers = #tpu.dot_dimension_numbers<[1], [0], [0], [1], [0, 0, 1, 1], [], []>} : vector<64x16xbf16>, vector<16x16xbf16>, vector<64x16xf32> -> vector<64x16xf32>
    %170 = arith.mulf %169, %12 : vector<64x16xf32>
    %cst_63 = arith.constant dense<0.000000e+00> : vector<64xf32>
    %171 = vector.multi_reduction <add>, %170, %cst_63 [1] : vector<64x16xf32> to vector<64xf32>
    %172 = vector.shape_cast %171 : vector<64xf32> to vector<64x1xf32>
    %173 = vector.broadcast %172 : vector<64x1xf32> to vector<64x32xf32>
    %174 = arith.mulf %173, %4 : vector<64x32xf32>
    %175 = arith.truncf %174 : vector<64x32xf32> to vector<64x32xbf16>
    %cst_64 = arith.constant dense<0.000000e+00> : vector<16x32xf32>
    %176 = tpu.matmul %11, %175, %cst_64 {dimension_numbers = #tpu.dot_dimension_numbers<[1], [0], [0], [1], [0, 0, 1, 1], [], []>} : vector<16x64xbf16>, vector<64x32xbf16>, vector<16x32xf32> -> vector<16x32xf32>
    %177 = vector.broadcast %140 : vector<1x32xf32> to vector<16x32xf32>
    %178 = arith.mulf %176, %177 : vector<16x32xf32>
    %179 = arith.addf %168, %178 : vector<16x32xf32>
    %180 = vector.broadcast %163 : vector<16x1xf32> to vector<16x32xf32>
    %181 = arith.divf %179, %180 : vector<16x32xf32>
    %182 = arith.addf %132, %181 : vector<16x32xf32>
    %c24_i32_65 = arith.constant 24 : i32
    %183 = vector.broadcast %c24_i32_65 : i32 to vector<1x32xi32>
    %184 = arith.cmpi sge, %30, %183 : vector<1x32xi32>
    %c32_i32 = arith.constant 32 : i32
    %185 = vector.broadcast %c32_i32 : i32 to vector<1x32xi32>
    %186 = arith.cmpi slt, %30, %185 : vector<1x32xi32>
    %187 = arith.andi %184, %186 : vector<1x32xi1>
    %cst_66 = arith.constant 1.000000e+00 : f32
    %cst_67 = arith.constant 0.000000e+00 : f32
    %188 = vector.broadcast %cst_66 : f32 to vector<1x32xf32>
    %189 = vector.broadcast %cst_67 : f32 to vector<1x32xf32>
    %190 = arith.select %187, %188, %189 : vector<1x32xi1>, vector<1x32xf32>
    %191 = vector.broadcast %190 : vector<1x32xf32> to vector<16x32xf32>
    %192 = arith.mulf %24, %191 : vector<16x32xf32>
    %193 = arith.truncf %192 : vector<16x32xf32> to vector<16x32xbf16>
    %cst_68 = arith.constant dense<0.000000e+00> : vector<16x16xf32>
    %194 = tpu.matmul %193, %31, %cst_68 {dimension_numbers = #tpu.dot_dimension_numbers<[1], [1], [0], [0], [0, 0, 1, 0], [], []>} : vector<16x32xbf16>, vector<16x32xbf16>, vector<16x16xf32> -> vector<16x16xf32>
    %195 = vector.broadcast %190 : vector<1x32xf32> to vector<64x32xf32>
    %196 = arith.mulf %29, %195 : vector<64x32xf32>
    %cst_69 = arith.constant dense<0.000000e+00> : vector<64xf32>
    %197 = vector.multi_reduction <add>, %196, %cst_69 [1] : vector<64x32xf32> to vector<64xf32>
    %198 = vector.shape_cast %197 : vector<64xf32> to vector<64x1xf32>
    %199 = vector.broadcast %198 : vector<64x1xf32> to vector<64x16xf32>
    %200 = arith.mulf %199, %12 : vector<64x16xf32>
    %201 = arith.truncf %200 : vector<64x16xf32> to vector<64x16xbf16>
    %cst_70 = arith.constant dense<0.000000e+00> : vector<16x16xf32>
    %202 = tpu.matmul %11, %201, %cst_70 {dimension_numbers = #tpu.dot_dimension_numbers<[1], [0], [0], [1], [0, 0, 1, 1], [], []>} : vector<16x64xbf16>, vector<64x16xbf16>, vector<16x16xf32> -> vector<16x16xf32>
    %203 = arith.addf %194, %202 : vector<16x16xf32>
    %cst_71 = arith.constant -1.000000e+01 : f32
    %cst_72 = arith.constant 1.000000e+01 : f32
    %204 = vector.broadcast %cst_71 : f32 to vector<16x16xf32>
    %205 = arith.maximumf %204, %203 : vector<16x16xf32>
    %206 = vector.broadcast %cst_72 : f32 to vector<16x16xf32>
    %207 = arith.minimumf %206, %205 : vector<16x16xf32>
    %208 = math.exp %207 : vector<16x16xf32>
    %209 = arith.mulf %208, %6 : vector<16x16xf32>
    %cst_73 = arith.constant dense<0.000000e+00> : vector<16xf32>
    %210 = vector.multi_reduction <add>, %209, %cst_73 [1] : vector<16x16xf32> to vector<16xf32>
    %211 = vector.shape_cast %210 : vector<16xf32> to vector<16x1xf32>
    %cst_74 = arith.constant 9.99999971E-10 : f32
    %212 = vector.broadcast %cst_74 : f32 to vector<16x1xf32>
    %213 = arith.maximumf %211, %212 : vector<16x1xf32>
    %214 = arith.truncf %209 : vector<16x16xf32> to vector<16x16xbf16>
    %215 = vector.broadcast %190 : vector<1x32xf32> to vector<16x32xf32>
    %216 = arith.mulf %26, %215 : vector<16x32xf32>
    %217 = arith.truncf %216 : vector<16x32xf32> to vector<16x32xbf16>
    %cst_75 = arith.constant dense<0.000000e+00> : vector<16x32xf32>
    %218 = tpu.matmul %214, %217, %cst_75 {dimension_numbers = #tpu.dot_dimension_numbers<[1], [0], [0], [1], [0, 0, 1, 1], [], []>} : vector<16x16xbf16>, vector<16x32xbf16>, vector<16x32xf32> -> vector<16x32xf32>
    %cst_76 = arith.constant dense<0.000000e+00> : vector<64x16xf32>
    %219 = tpu.matmul %10, %214, %cst_76 {dimension_numbers = #tpu.dot_dimension_numbers<[1], [0], [0], [1], [0, 0, 1, 1], [], []>} : vector<64x16xbf16>, vector<16x16xbf16>, vector<64x16xf32> -> vector<64x16xf32>
    %220 = arith.mulf %219, %12 : vector<64x16xf32>
    %cst_77 = arith.constant dense<0.000000e+00> : vector<64xf32>
    %221 = vector.multi_reduction <add>, %220, %cst_77 [1] : vector<64x16xf32> to vector<64xf32>
    %222 = vector.shape_cast %221 : vector<64xf32> to vector<64x1xf32>
    %223 = vector.broadcast %222 : vector<64x1xf32> to vector<64x32xf32>
    %224 = arith.mulf %223, %4 : vector<64x32xf32>
    %225 = arith.truncf %224 : vector<64x32xf32> to vector<64x32xbf16>
    %cst_78 = arith.constant dense<0.000000e+00> : vector<16x32xf32>
    %226 = tpu.matmul %11, %225, %cst_78 {dimension_numbers = #tpu.dot_dimension_numbers<[1], [0], [0], [1], [0, 0, 1, 1], [], []>} : vector<16x64xbf16>, vector<64x32xbf16>, vector<16x32xf32> -> vector<16x32xf32>
    %227 = vector.broadcast %190 : vector<1x32xf32> to vector<16x32xf32>
    %228 = arith.mulf %226, %227 : vector<16x32xf32>
    %229 = arith.addf %218, %228 : vector<16x32xf32>
    %230 = vector.broadcast %213 : vector<16x1xf32> to vector<16x32xf32>
    %231 = arith.divf %229, %230 : vector<16x32xf32>
    %232 = arith.addf %182, %231 : vector<16x32xf32>
    %233 = arith.truncf %232 : vector<16x32xf32> to vector<16x32xbf16>
    %c0_79 = arith.constant 0 : index
    %c0_80 = arith.constant 0 : index
    %c0_81 = arith.constant 0 : index
    %234 = vector.load %arg10[%c0_79, %c0_80, %c0_81] : memref<1x32x32xbf16, #tpu.memory_space<vmem>>, vector<1x32x32xbf16>
    %235 = vector.shape_cast %234 : vector<1x32x32xbf16> to vector<32x32xbf16>
    %cst_82 = arith.constant dense<0.000000e+00> : vector<16x32xf32>
    %236 = tpu.matmul %233, %235, %cst_82 {dimension_numbers = #tpu.dot_dimension_numbers<[1], [0], [0], [1], [0, 0, 1, 1], [], []>} : vector<16x32xbf16>, vector<32x32xbf16>, vector<16x32xf32> -> vector<16x32xf32>
    %c0_83 = arith.constant 0 : index
    %c0_84 = arith.constant 0 : index
    %c0_85 = arith.constant 0 : index
    %237 = vector.load %arg11[%c0_83, %c0_84, %c0_85] : memref<1x1x32xf32, #tpu.memory_space<vmem>>, vector<1x1x32xf32>
    %238 = vector.shape_cast %237 : vector<1x1x32xf32> to vector<1x32xf32>
    %239 = vector.broadcast %238 : vector<1x32xf32> to vector<16x32xf32>
    %240 = arith.addf %236, %239 : vector<16x32xf32>
    %241 = arith.addf %3, %240 : vector<16x32xf32>
    %c0_86 = arith.constant 0 : index
    %c0_87 = arith.constant 0 : index
    %c0_88 = arith.constant 0 : index
    %242 = vector.load %arg12[%c0_86, %c0_87, %c0_88] : memref<1x1x32xf32, #tpu.memory_space<vmem>>, vector<1x1x32xf32>
    %243 = vector.shape_cast %242 : vector<1x1x32xf32> to vector<1x32xf32>
    %c0_89 = arith.constant 0 : index
    %c0_90 = arith.constant 0 : index
    %c0_91 = arith.constant 0 : index
    %244 = vector.load %arg13[%c0_89, %c0_90, %c0_91] : memref<1x1x32xf32, #tpu.memory_space<vmem>>, vector<1x1x32xf32>
    %245 = vector.shape_cast %244 : vector<1x1x32xf32> to vector<1x32xf32>
    %cst_92 = arith.constant dense<0.000000e+00> : vector<16xf32>
    %246 = vector.multi_reduction <add>, %241, %cst_92 [1] : vector<16x32xf32> to vector<16xf32>
    %247 = vector.shape_cast %246 : vector<16xf32> to vector<16x1xf32>
    %cst_93 = arith.constant 3.200000e+01 : f32
    %248 = vector.broadcast %cst_93 : f32 to vector<16x1xf32>
    %249 = arith.divf %247, %248 : vector<16x1xf32>
    %250 = vector.broadcast %249 : vector<16x1xf32> to vector<16x32xf32>
    %251 = arith.subf %241, %250 : vector<16x32xf32>
    %252 = arith.mulf %251, %251 : vector<16x32xf32>
    %cst_94 = arith.constant dense<0.000000e+00> : vector<16xf32>
    %253 = vector.multi_reduction <add>, %252, %cst_94 [1] : vector<16x32xf32> to vector<16xf32>
    %254 = vector.shape_cast %253 : vector<16xf32> to vector<16x1xf32>
    %cst_95 = arith.constant 3.200000e+01 : f32
    %255 = vector.broadcast %cst_95 : f32 to vector<16x1xf32>
    %256 = arith.divf %254, %255 : vector<16x1xf32>
    %257 = vector.broadcast %249 : vector<16x1xf32> to vector<16x32xf32>
    %258 = arith.subf %241, %257 : vector<16x32xf32>
    %cst_96 = arith.constant 9.99999974E-6 : f32
    %259 = vector.broadcast %cst_96 : f32 to vector<16x1xf32>
    %260 = arith.addf %256, %259 : vector<16x1xf32>
    %261 = math.rsqrt %260 : vector<16x1xf32>
    %262 = vector.broadcast %261 : vector<16x1xf32> to vector<16x32xf32>
    %263 = arith.mulf %258, %262 : vector<16x32xf32>
    %264 = vector.broadcast %243 : vector<1x32xf32> to vector<16x32xf32>
    %265 = arith.mulf %263, %264 : vector<16x32xf32>
    %266 = vector.broadcast %245 : vector<1x32xf32> to vector<16x32xf32>
    %267 = arith.addf %265, %266 : vector<16x32xf32>
    %c0_97 = arith.constant 0 : index
    %c0_98 = arith.constant 0 : index
    %c0_99 = arith.constant 0 : index
    %268 = vector.load %arg14[%c0_97, %c0_98, %c0_99] : memref<1x32x128xbf16, #tpu.memory_space<vmem>>, vector<1x32x128xbf16>
    %269 = vector.shape_cast %268 : vector<1x32x128xbf16> to vector<32x128xbf16>
    %c0_100 = arith.constant 0 : index
    %c0_101 = arith.constant 0 : index
    %c0_102 = arith.constant 0 : index
    %270 = vector.load %arg15[%c0_100, %c0_101, %c0_102] : memref<1x1x128xf32, #tpu.memory_space<vmem>>, vector<1x1x128xf32>
    %271 = vector.shape_cast %270 : vector<1x1x128xf32> to vector<1x128xf32>
    %c0_103 = arith.constant 0 : index
    %c0_104 = arith.constant 0 : index
    %c0_105 = arith.constant 0 : index
    %272 = vector.load %arg16[%c0_103, %c0_104, %c0_105] : memref<1x128x32xbf16, #tpu.memory_space<vmem>>, vector<1x128x32xbf16>
    %273 = vector.shape_cast %272 : vector<1x128x32xbf16> to vector<128x32xbf16>
    %c0_106 = arith.constant 0 : index
    %c0_107 = arith.constant 0 : index
    %c0_108 = arith.constant 0 : index
    %274 = vector.load %arg17[%c0_106, %c0_107, %c0_108] : memref<1x1x32xf32, #tpu.memory_space<vmem>>, vector<1x1x32xf32>
    %275 = vector.shape_cast %274 : vector<1x1x32xf32> to vector<1x32xf32>
    %c0_109 = arith.constant 0 : index
    %c0_110 = arith.constant 0 : index
    %c0_111 = arith.constant 0 : index
    %276 = vector.load %arg18[%c0_109, %c0_110, %c0_111] : memref<1x1x32xf32, #tpu.memory_space<vmem>>, vector<1x1x32xf32>
    %277 = vector.shape_cast %276 : vector<1x1x32xf32> to vector<1x32xf32>
    %c0_112 = arith.constant 0 : index
    %c0_113 = arith.constant 0 : index
    %c0_114 = arith.constant 0 : index
    %278 = vector.load %arg19[%c0_112, %c0_113, %c0_114] : memref<1x1x32xf32, #tpu.memory_space<vmem>>, vector<1x1x32xf32>
    %279 = vector.shape_cast %278 : vector<1x1x32xf32> to vector<1x32xf32>
    %280 = arith.truncf %267 : vector<16x32xf32> to vector<16x32xbf16>
    %cst_115 = arith.constant dense<0.000000e+00> : vector<16x128xf32>
    %281 = tpu.matmul %280, %269, %cst_115 {dimension_numbers = #tpu.dot_dimension_numbers<[1], [0], [0], [1], [0, 0, 1, 1], [], []>} : vector<16x32xbf16>, vector<32x128xbf16>, vector<16x128xf32> -> vector<16x128xf32>
    %282 = vector.broadcast %271 : vector<1x128xf32> to vector<16x128xf32>
    %283 = arith.addf %281, %282 : vector<16x128xf32>
    %cst_116 = arith.constant 0.000000e+00 : f32
    %284 = vector.broadcast %cst_116 : f32 to vector<16x128xf32>
    %285 = arith.maximumf %283, %284 : vector<16x128xf32>
    %286 = arith.truncf %285 : vector<16x128xf32> to vector<16x128xbf16>
    %cst_117 = arith.constant dense<0.000000e+00> : vector<16x32xf32>
    %287 = tpu.matmul %286, %273, %cst_117 {dimension_numbers = #tpu.dot_dimension_numbers<[1], [0], [0], [1], [0, 0, 1, 1], [], []>} : vector<16x128xbf16>, vector<128x32xbf16>, vector<16x32xf32> -> vector<16x32xf32>
    %288 = vector.broadcast %275 : vector<1x32xf32> to vector<16x32xf32>
    %289 = arith.addf %287, %288 : vector<16x32xf32>
    %290 = arith.addf %267, %289 : vector<16x32xf32>
    %cst_118 = arith.constant dense<0.000000e+00> : vector<16xf32>
    %291 = vector.multi_reduction <add>, %290, %cst_118 [1] : vector<16x32xf32> to vector<16xf32>
    %292 = vector.shape_cast %291 : vector<16xf32> to vector<16x1xf32>
    %cst_119 = arith.constant 3.200000e+01 : f32
    %293 = vector.broadcast %cst_119 : f32 to vector<16x1xf32>
    %294 = arith.divf %292, %293 : vector<16x1xf32>
    %295 = vector.broadcast %294 : vector<16x1xf32> to vector<16x32xf32>
    %296 = arith.subf %290, %295 : vector<16x32xf32>
    %297 = arith.mulf %296, %296 : vector<16x32xf32>
    %cst_120 = arith.constant dense<0.000000e+00> : vector<16xf32>
    %298 = vector.multi_reduction <add>, %297, %cst_120 [1] : vector<16x32xf32> to vector<16xf32>
    %299 = vector.shape_cast %298 : vector<16xf32> to vector<16x1xf32>
    %cst_121 = arith.constant 3.200000e+01 : f32
    %300 = vector.broadcast %cst_121 : f32 to vector<16x1xf32>
    %301 = arith.divf %299, %300 : vector<16x1xf32>
    %302 = vector.broadcast %294 : vector<16x1xf32> to vector<16x32xf32>
    %303 = arith.subf %290, %302 : vector<16x32xf32>
    %cst_122 = arith.constant 9.99999974E-6 : f32
    %304 = vector.broadcast %cst_122 : f32 to vector<16x1xf32>
    %305 = arith.addf %301, %304 : vector<16x1xf32>
    %306 = math.rsqrt %305 : vector<16x1xf32>
    %307 = vector.broadcast %306 : vector<16x1xf32> to vector<16x32xf32>
    %308 = arith.mulf %303, %307 : vector<16x32xf32>
    %309 = vector.broadcast %277 : vector<1x32xf32> to vector<16x32xf32>
    %310 = arith.mulf %308, %309 : vector<16x32xf32>
    %311 = vector.broadcast %279 : vector<1x32xf32> to vector<16x32xf32>
    %312 = arith.addf %310, %311 : vector<16x32xf32>
    %cst_123 = arith.constant dense<0.000000e+00> : vector<64x32xf32>
    %313 = tpu.matmul %9, %13, %cst_123 {dimension_numbers = #tpu.dot_dimension_numbers<[1], [0], [0], [1], [0, 0, 1, 1], [], []>} : vector<64x16xbf16>, vector<16x32xbf16>, vector<64x32xf32> -> vector<64x32xf32>
    %cst_124 = arith.constant dense<0.000000e+00> : vector<64x32xf32>
    %314 = tpu.matmul %10, %13, %cst_124 {dimension_numbers = #tpu.dot_dimension_numbers<[1], [0], [0], [1], [0, 0, 1, 1], [], []>} : vector<64x16xbf16>, vector<16x32xbf16>, vector<64x32xf32> -> vector<64x32xf32>
    %c0_125 = arith.constant 0 : index
    %c0_126 = arith.constant 0 : index
    %c0_127 = arith.constant 0 : index
    %315 = vector.load %arg20[%c0_125, %c0_126, %c0_127] : memref<1x32x96xbf16, #tpu.memory_space<vmem>>, vector<1x32x96xbf16>
    %316 = vector.shape_cast %315 : vector<1x32x96xbf16> to vector<32x96xbf16>
    %cst_128 = arith.constant dense<0.000000e+00> : vector<64x96xf32>
    %317 = tpu.matmul %14, %316, %cst_128 {dimension_numbers = #tpu.dot_dimension_numbers<[1], [0], [0], [1], [0, 0, 1, 1], [], []>} : vector<64x32xbf16>, vector<32x96xbf16>, vector<64x96xf32> -> vector<64x96xf32>
    %c0_129 = arith.constant 0 : index
    %c0_130 = arith.constant 0 : index
    %c0_131 = arith.constant 0 : index
    %318 = vector.load %arg21[%c0_129, %c0_130, %c0_131] : memref<1x1x96xf32, #tpu.memory_space<vmem>>, vector<1x1x96xf32>
    %319 = vector.shape_cast %318 : vector<1x1x96xf32> to vector<1x96xf32>
    %320 = vector.broadcast %319 : vector<1x96xf32> to vector<64x96xf32>
    %321 = arith.addf %317, %320 : vector<64x96xf32>
    %322 = vector.extract_strided_slice %321 {offsets = [0, 0], sizes = [64, 32], strides = [1, 1]} : vector<64x96xf32> to vector<64x32xf32>
    %323 = arith.addf %322, %313 : vector<64x32xf32>
    %cst_132 = arith.constant 0.353553385 : f32
    %324 = vector.broadcast %cst_132 : f32 to vector<64x32xf32>
    %325 = arith.mulf %323, %324 : vector<64x32xf32>
    %326 = vector.extract_strided_slice %321 {offsets = [0, 32], sizes = [64, 32], strides = [1, 1]} : vector<64x96xf32> to vector<64x32xf32>
    %327 = vector.extract_strided_slice %321 {offsets = [0, 64], sizes = [64, 32], strides = [1, 1]} : vector<64x96xf32> to vector<64x32xf32>
    %328 = arith.addf %327, %314 : vector<64x32xf32>
    %329 = tpu.iota {dimensions = array<i32: 1>} : vector<1x32xi32>
    %330 = arith.truncf %326 : vector<64x32xf32> to vector<64x32xbf16>
    %cst_133 = arith.constant 0.000000e+00 : f32
    %331 = vector.broadcast %cst_133 : f32 to vector<64x32xf32>
    %c0_i32_134 = arith.constant 0 : i32
    %332 = vector.broadcast %c0_i32_134 : i32 to vector<1x32xi32>
    %333 = arith.cmpi sge, %329, %332 : vector<1x32xi32>
    %c8_i32_135 = arith.constant 8 : i32
    %334 = vector.broadcast %c8_i32_135 : i32 to vector<1x32xi32>
    %335 = arith.cmpi slt, %329, %334 : vector<1x32xi32>
    %336 = arith.andi %333, %335 : vector<1x32xi1>
    %cst_136 = arith.constant 1.000000e+00 : f32
    %cst_137 = arith.constant 0.000000e+00 : f32
    %337 = vector.broadcast %cst_136 : f32 to vector<1x32xf32>
    %338 = vector.broadcast %cst_137 : f32 to vector<1x32xf32>
    %339 = arith.select %336, %337, %338 : vector<1x32xi1>, vector<1x32xf32>
    %340 = vector.broadcast %339 : vector<1x32xf32> to vector<64x32xf32>
    %341 = arith.mulf %325, %340 : vector<64x32xf32>
    %342 = arith.truncf %341 : vector<64x32xf32> to vector<64x32xbf16>
    %cst_138 = arith.constant dense<0.000000e+00> : vector<64x64xf32>
    %343 = tpu.matmul %342, %330, %cst_138 {dimension_numbers = #tpu.dot_dimension_numbers<[1], [1], [0], [0], [0, 0, 1, 0], [], []>} : vector<64x32xbf16>, vector<64x32xbf16>, vector<64x64xf32> -> vector<64x64xf32>
    %cst_139 = arith.constant -1.000000e+01 : f32
    %cst_140 = arith.constant 1.000000e+01 : f32
    %344 = vector.broadcast %cst_139 : f32 to vector<64x64xf32>
    %345 = arith.maximumf %344, %343 : vector<64x64xf32>
    %346 = vector.broadcast %cst_140 : f32 to vector<64x64xf32>
    %347 = arith.minimumf %346, %345 : vector<64x64xf32>
    %348 = math.exp %347 : vector<64x64xf32>
    %349 = arith.mulf %348, %8 : vector<64x64xf32>
    %cst_141 = arith.constant dense<0.000000e+00> : vector<64xf32>
    %350 = vector.multi_reduction <add>, %349, %cst_141 [1] : vector<64x64xf32> to vector<64xf32>
    %351 = vector.shape_cast %350 : vector<64xf32> to vector<64x1xf32>
    %cst_142 = arith.constant 9.99999971E-10 : f32
    %352 = vector.broadcast %cst_142 : f32 to vector<64x1xf32>
    %353 = arith.maximumf %351, %352 : vector<64x1xf32>
    %354 = arith.truncf %349 : vector<64x64xf32> to vector<64x64xbf16>
    %355 = vector.broadcast %339 : vector<1x32xf32> to vector<64x32xf32>
    %356 = arith.mulf %328, %355 : vector<64x32xf32>
    %357 = arith.truncf %356 : vector<64x32xf32> to vector<64x32xbf16>
    %cst_143 = arith.constant dense<0.000000e+00> : vector<64x32xf32>
    %358 = tpu.matmul %354, %357, %cst_143 {dimension_numbers = #tpu.dot_dimension_numbers<[1], [0], [0], [1], [0, 0, 1, 1], [], []>} : vector<64x64xbf16>, vector<64x32xbf16>, vector<64x32xf32> -> vector<64x32xf32>
    %359 = vector.broadcast %353 : vector<64x1xf32> to vector<64x32xf32>
    %360 = arith.divf %358, %359 : vector<64x32xf32>
    %361 = arith.addf %331, %360 : vector<64x32xf32>
    %c8_i32_144 = arith.constant 8 : i32
    %362 = vector.broadcast %c8_i32_144 : i32 to vector<1x32xi32>
    %363 = arith.cmpi sge, %329, %362 : vector<1x32xi32>
    %c16_i32_145 = arith.constant 16 : i32
    %364 = vector.broadcast %c16_i32_145 : i32 to vector<1x32xi32>
    %365 = arith.cmpi slt, %329, %364 : vector<1x32xi32>
    %366 = arith.andi %363, %365 : vector<1x32xi1>
    %cst_146 = arith.constant 1.000000e+00 : f32
    %cst_147 = arith.constant 0.000000e+00 : f32
    %367 = vector.broadcast %cst_146 : f32 to vector<1x32xf32>
    %368 = vector.broadcast %cst_147 : f32 to vector<1x32xf32>
    %369 = arith.select %366, %367, %368 : vector<1x32xi1>, vector<1x32xf32>
    %370 = vector.broadcast %369 : vector<1x32xf32> to vector<64x32xf32>
    %371 = arith.mulf %325, %370 : vector<64x32xf32>
    %372 = arith.truncf %371 : vector<64x32xf32> to vector<64x32xbf16>
    %cst_148 = arith.constant dense<0.000000e+00> : vector<64x64xf32>
    %373 = tpu.matmul %372, %330, %cst_148 {dimension_numbers = #tpu.dot_dimension_numbers<[1], [1], [0], [0], [0, 0, 1, 0], [], []>} : vector<64x32xbf16>, vector<64x32xbf16>, vector<64x64xf32> -> vector<64x64xf32>
    %cst_149 = arith.constant -1.000000e+01 : f32
    %cst_150 = arith.constant 1.000000e+01 : f32
    %374 = vector.broadcast %cst_149 : f32 to vector<64x64xf32>
    %375 = arith.maximumf %374, %373 : vector<64x64xf32>
    %376 = vector.broadcast %cst_150 : f32 to vector<64x64xf32>
    %377 = arith.minimumf %376, %375 : vector<64x64xf32>
    %378 = math.exp %377 : vector<64x64xf32>
    %379 = arith.mulf %378, %8 : vector<64x64xf32>
    %cst_151 = arith.constant dense<0.000000e+00> : vector<64xf32>
    %380 = vector.multi_reduction <add>, %379, %cst_151 [1] : vector<64x64xf32> to vector<64xf32>
    %381 = vector.shape_cast %380 : vector<64xf32> to vector<64x1xf32>
    %cst_152 = arith.constant 9.99999971E-10 : f32
    %382 = vector.broadcast %cst_152 : f32 to vector<64x1xf32>
    %383 = arith.maximumf %381, %382 : vector<64x1xf32>
    %384 = arith.truncf %379 : vector<64x64xf32> to vector<64x64xbf16>
    %385 = vector.broadcast %369 : vector<1x32xf32> to vector<64x32xf32>
    %386 = arith.mulf %328, %385 : vector<64x32xf32>
    %387 = arith.truncf %386 : vector<64x32xf32> to vector<64x32xbf16>
    %cst_153 = arith.constant dense<0.000000e+00> : vector<64x32xf32>
    %388 = tpu.matmul %384, %387, %cst_153 {dimension_numbers = #tpu.dot_dimension_numbers<[1], [0], [0], [1], [0, 0, 1, 1], [], []>} : vector<64x64xbf16>, vector<64x32xbf16>, vector<64x32xf32> -> vector<64x32xf32>
    %389 = vector.broadcast %383 : vector<64x1xf32> to vector<64x32xf32>
    %390 = arith.divf %388, %389 : vector<64x32xf32>
    %391 = arith.addf %361, %390 : vector<64x32xf32>
    %c16_i32_154 = arith.constant 16 : i32
    %392 = vector.broadcast %c16_i32_154 : i32 to vector<1x32xi32>
    %393 = arith.cmpi sge, %329, %392 : vector<1x32xi32>
    %c24_i32_155 = arith.constant 24 : i32
    %394 = vector.broadcast %c24_i32_155 : i32 to vector<1x32xi32>
    %395 = arith.cmpi slt, %329, %394 : vector<1x32xi32>
    %396 = arith.andi %393, %395 : vector<1x32xi1>
    %cst_156 = arith.constant 1.000000e+00 : f32
    %cst_157 = arith.constant 0.000000e+00 : f32
    %397 = vector.broadcast %cst_156 : f32 to vector<1x32xf32>
    %398 = vector.broadcast %cst_157 : f32 to vector<1x32xf32>
    %399 = arith.select %396, %397, %398 : vector<1x32xi1>, vector<1x32xf32>
    %400 = vector.broadcast %399 : vector<1x32xf32> to vector<64x32xf32>
    %401 = arith.mulf %325, %400 : vector<64x32xf32>
    %402 = arith.truncf %401 : vector<64x32xf32> to vector<64x32xbf16>
    %cst_158 = arith.constant dense<0.000000e+00> : vector<64x64xf32>
    %403 = tpu.matmul %402, %330, %cst_158 {dimension_numbers = #tpu.dot_dimension_numbers<[1], [1], [0], [0], [0, 0, 1, 0], [], []>} : vector<64x32xbf16>, vector<64x32xbf16>, vector<64x64xf32> -> vector<64x64xf32>
    %cst_159 = arith.constant -1.000000e+01 : f32
    %cst_160 = arith.constant 1.000000e+01 : f32
    %404 = vector.broadcast %cst_159 : f32 to vector<64x64xf32>
    %405 = arith.maximumf %404, %403 : vector<64x64xf32>
    %406 = vector.broadcast %cst_160 : f32 to vector<64x64xf32>
    %407 = arith.minimumf %406, %405 : vector<64x64xf32>
    %408 = math.exp %407 : vector<64x64xf32>
    %409 = arith.mulf %408, %8 : vector<64x64xf32>
    %cst_161 = arith.constant dense<0.000000e+00> : vector<64xf32>
    %410 = vector.multi_reduction <add>, %409, %cst_161 [1] : vector<64x64xf32> to vector<64xf32>
    %411 = vector.shape_cast %410 : vector<64xf32> to vector<64x1xf32>
    %cst_162 = arith.constant 9.99999971E-10 : f32
    %412 = vector.broadcast %cst_162 : f32 to vector<64x1xf32>
    %413 = arith.maximumf %411, %412 : vector<64x1xf32>
    %414 = arith.truncf %409 : vector<64x64xf32> to vector<64x64xbf16>
    %415 = vector.broadcast %399 : vector<1x32xf32> to vector<64x32xf32>
    %416 = arith.mulf %328, %415 : vector<64x32xf32>
    %417 = arith.truncf %416 : vector<64x32xf32> to vector<64x32xbf16>
    %cst_163 = arith.constant dense<0.000000e+00> : vector<64x32xf32>
    %418 = tpu.matmul %414, %417, %cst_163 {dimension_numbers = #tpu.dot_dimension_numbers<[1], [0], [0], [1], [0, 0, 1, 1], [], []>} : vector<64x64xbf16>, vector<64x32xbf16>, vector<64x32xf32> -> vector<64x32xf32>
    %419 = vector.broadcast %413 : vector<64x1xf32> to vector<64x32xf32>
    %420 = arith.divf %418, %419 : vector<64x32xf32>
    %421 = arith.addf %391, %420 : vector<64x32xf32>
    %c24_i32_164 = arith.constant 24 : i32
    %422 = vector.broadcast %c24_i32_164 : i32 to vector<1x32xi32>
    %423 = arith.cmpi sge, %329, %422 : vector<1x32xi32>
    %c32_i32_165 = arith.constant 32 : i32
    %424 = vector.broadcast %c32_i32_165 : i32 to vector<1x32xi32>
    %425 = arith.cmpi slt, %329, %424 : vector<1x32xi32>
    %426 = arith.andi %423, %425 : vector<1x32xi1>
    %cst_166 = arith.constant 1.000000e+00 : f32
    %cst_167 = arith.constant 0.000000e+00 : f32
    %427 = vector.broadcast %cst_166 : f32 to vector<1x32xf32>
    %428 = vector.broadcast %cst_167 : f32 to vector<1x32xf32>
    %429 = arith.select %426, %427, %428 : vector<1x32xi1>, vector<1x32xf32>
    %430 = vector.broadcast %429 : vector<1x32xf32> to vector<64x32xf32>
    %431 = arith.mulf %325, %430 : vector<64x32xf32>
    %432 = arith.truncf %431 : vector<64x32xf32> to vector<64x32xbf16>
    %cst_168 = arith.constant dense<0.000000e+00> : vector<64x64xf32>
    %433 = tpu.matmul %432, %330, %cst_168 {dimension_numbers = #tpu.dot_dimension_numbers<[1], [1], [0], [0], [0, 0, 1, 0], [], []>} : vector<64x32xbf16>, vector<64x32xbf16>, vector<64x64xf32> -> vector<64x64xf32>
    %cst_169 = arith.constant -1.000000e+01 : f32
    %cst_170 = arith.constant 1.000000e+01 : f32
    %434 = vector.broadcast %cst_169 : f32 to vector<64x64xf32>
    %435 = arith.maximumf %434, %433 : vector<64x64xf32>
    %436 = vector.broadcast %cst_170 : f32 to vector<64x64xf32>
    %437 = arith.minimumf %436, %435 : vector<64x64xf32>
    %438 = math.exp %437 : vector<64x64xf32>
    %439 = arith.mulf %438, %8 : vector<64x64xf32>
    %cst_171 = arith.constant dense<0.000000e+00> : vector<64xf32>
    %440 = vector.multi_reduction <add>, %439, %cst_171 [1] : vector<64x64xf32> to vector<64xf32>
    %441 = vector.shape_cast %440 : vector<64xf32> to vector<64x1xf32>
    %cst_172 = arith.constant 9.99999971E-10 : f32
    %442 = vector.broadcast %cst_172 : f32 to vector<64x1xf32>
    %443 = arith.maximumf %441, %442 : vector<64x1xf32>
    %444 = arith.truncf %439 : vector<64x64xf32> to vector<64x64xbf16>
    %445 = vector.broadcast %429 : vector<1x32xf32> to vector<64x32xf32>
    %446 = arith.mulf %328, %445 : vector<64x32xf32>
    %447 = arith.truncf %446 : vector<64x32xf32> to vector<64x32xbf16>
    %cst_173 = arith.constant dense<0.000000e+00> : vector<64x32xf32>
    %448 = tpu.matmul %444, %447, %cst_173 {dimension_numbers = #tpu.dot_dimension_numbers<[1], [0], [0], [1], [0, 0, 1, 1], [], []>} : vector<64x64xbf16>, vector<64x32xbf16>, vector<64x32xf32> -> vector<64x32xf32>
    %449 = vector.broadcast %443 : vector<64x1xf32> to vector<64x32xf32>
    %450 = arith.divf %448, %449 : vector<64x32xf32>
    %451 = arith.addf %421, %450 : vector<64x32xf32>
    %452 = arith.truncf %451 : vector<64x32xf32> to vector<64x32xbf16>
    %c0_174 = arith.constant 0 : index
    %c0_175 = arith.constant 0 : index
    %c0_176 = arith.constant 0 : index
    %453 = vector.load %arg22[%c0_174, %c0_175, %c0_176] : memref<1x32x32xbf16, #tpu.memory_space<vmem>>, vector<1x32x32xbf16>
    %454 = vector.shape_cast %453 : vector<1x32x32xbf16> to vector<32x32xbf16>
    %cst_177 = arith.constant dense<0.000000e+00> : vector<64x32xf32>
    %455 = tpu.matmul %452, %454, %cst_177 {dimension_numbers = #tpu.dot_dimension_numbers<[1], [0], [0], [1], [0, 0, 1, 1], [], []>} : vector<64x32xbf16>, vector<32x32xbf16>, vector<64x32xf32> -> vector<64x32xf32>
    %c0_178 = arith.constant 0 : index
    %c0_179 = arith.constant 0 : index
    %c0_180 = arith.constant 0 : index
    %456 = vector.load %arg23[%c0_178, %c0_179, %c0_180] : memref<1x1x32xf32, #tpu.memory_space<vmem>>, vector<1x1x32xf32>
    %457 = vector.shape_cast %456 : vector<1x1x32xf32> to vector<1x32xf32>
    %458 = vector.broadcast %457 : vector<1x32xf32> to vector<64x32xf32>
    %459 = arith.addf %455, %458 : vector<64x32xf32>
    %460 = arith.addf %4, %459 : vector<64x32xf32>
    %c0_181 = arith.constant 0 : index
    %c0_182 = arith.constant 0 : index
    %c0_183 = arith.constant 0 : index
    %461 = vector.load %arg24[%c0_181, %c0_182, %c0_183] : memref<1x1x32xf32, #tpu.memory_space<vmem>>, vector<1x1x32xf32>
    %462 = vector.shape_cast %461 : vector<1x1x32xf32> to vector<1x32xf32>
    %c0_184 = arith.constant 0 : index
    %c0_185 = arith.constant 0 : index
    %c0_186 = arith.constant 0 : index
    %463 = vector.load %arg25[%c0_184, %c0_185, %c0_186] : memref<1x1x32xf32, #tpu.memory_space<vmem>>, vector<1x1x32xf32>
    %464 = vector.shape_cast %463 : vector<1x1x32xf32> to vector<1x32xf32>
    %cst_187 = arith.constant dense<0.000000e+00> : vector<64xf32>
    %465 = vector.multi_reduction <add>, %460, %cst_187 [1] : vector<64x32xf32> to vector<64xf32>
    %466 = vector.shape_cast %465 : vector<64xf32> to vector<64x1xf32>
    %cst_188 = arith.constant 3.200000e+01 : f32
    %467 = vector.broadcast %cst_188 : f32 to vector<64x1xf32>
    %468 = arith.divf %466, %467 : vector<64x1xf32>
    %469 = vector.broadcast %468 : vector<64x1xf32> to vector<64x32xf32>
    %470 = arith.subf %460, %469 : vector<64x32xf32>
    %471 = arith.mulf %470, %470 : vector<64x32xf32>
    %cst_189 = arith.constant dense<0.000000e+00> : vector<64xf32>
    %472 = vector.multi_reduction <add>, %471, %cst_189 [1] : vector<64x32xf32> to vector<64xf32>
    %473 = vector.shape_cast %472 : vector<64xf32> to vector<64x1xf32>
    %cst_190 = arith.constant 3.200000e+01 : f32
    %474 = vector.broadcast %cst_190 : f32 to vector<64x1xf32>
    %475 = arith.divf %473, %474 : vector<64x1xf32>
    %476 = vector.broadcast %468 : vector<64x1xf32> to vector<64x32xf32>
    %477 = arith.subf %460, %476 : vector<64x32xf32>
    %cst_191 = arith.constant 9.99999974E-6 : f32
    %478 = vector.broadcast %cst_191 : f32 to vector<64x1xf32>
    %479 = arith.addf %475, %478 : vector<64x1xf32>
    %480 = math.rsqrt %479 : vector<64x1xf32>
    %481 = vector.broadcast %480 : vector<64x1xf32> to vector<64x32xf32>
    %482 = arith.mulf %477, %481 : vector<64x32xf32>
    %483 = vector.broadcast %462 : vector<1x32xf32> to vector<64x32xf32>
    %484 = arith.mulf %482, %483 : vector<64x32xf32>
    %485 = vector.broadcast %464 : vector<1x32xf32> to vector<64x32xf32>
    %486 = arith.addf %484, %485 : vector<64x32xf32>
    %c0_192 = arith.constant 0 : index
    %c0_193 = arith.constant 0 : index
    %c0_194 = arith.constant 0 : index
    %487 = vector.load %arg26[%c0_192, %c0_193, %c0_194] : memref<1x32x128xbf16, #tpu.memory_space<vmem>>, vector<1x32x128xbf16>
    %488 = vector.shape_cast %487 : vector<1x32x128xbf16> to vector<32x128xbf16>
    %c0_195 = arith.constant 0 : index
    %c0_196 = arith.constant 0 : index
    %c0_197 = arith.constant 0 : index
    %489 = vector.load %arg27[%c0_195, %c0_196, %c0_197] : memref<1x1x128xf32, #tpu.memory_space<vmem>>, vector<1x1x128xf32>
    %490 = vector.shape_cast %489 : vector<1x1x128xf32> to vector<1x128xf32>
    %c0_198 = arith.constant 0 : index
    %c0_199 = arith.constant 0 : index
    %c0_200 = arith.constant 0 : index
    %491 = vector.load %arg28[%c0_198, %c0_199, %c0_200] : memref<1x128x32xbf16, #tpu.memory_space<vmem>>, vector<1x128x32xbf16>
    %492 = vector.shape_cast %491 : vector<1x128x32xbf16> to vector<128x32xbf16>
    %c0_201 = arith.constant 0 : index
    %c0_202 = arith.constant 0 : index
    %c0_203 = arith.constant 0 : index
    %493 = vector.load %arg29[%c0_201, %c0_202, %c0_203] : memref<1x1x32xf32, #tpu.memory_space<vmem>>, vector<1x1x32xf32>
    %494 = vector.shape_cast %493 : vector<1x1x32xf32> to vector<1x32xf32>
    %c0_204 = arith.constant 0 : index
    %c0_205 = arith.constant 0 : index
    %c0_206 = arith.constant 0 : index
    %495 = vector.load %arg30[%c0_204, %c0_205, %c0_206] : memref<1x1x32xf32, #tpu.memory_space<vmem>>, vector<1x1x32xf32>
    %496 = vector.shape_cast %495 : vector<1x1x32xf32> to vector<1x32xf32>
    %c0_207 = arith.constant 0 : index
    %c0_208 = arith.constant 0 : index
    %c0_209 = arith.constant 0 : index
    %497 = vector.load %arg31[%c0_207, %c0_208, %c0_209] : memref<1x1x32xf32, #tpu.memory_space<vmem>>, vector<1x1x32xf32>
    %498 = vector.shape_cast %497 : vector<1x1x32xf32> to vector<1x32xf32>
    %499 = arith.truncf %486 : vector<64x32xf32> to vector<64x32xbf16>
    %cst_210 = arith.constant dense<0.000000e+00> : vector<64x128xf32>
    %500 = tpu.matmul %499, %488, %cst_210 {dimension_numbers = #tpu.dot_dimension_numbers<[1], [0], [0], [1], [0, 0, 1, 1], [], []>} : vector<64x32xbf16>, vector<32x128xbf16>, vector<64x128xf32> -> vector<64x128xf32>
    %501 = vector.broadcast %490 : vector<1x128xf32> to vector<64x128xf32>
    %502 = arith.addf %500, %501 : vector<64x128xf32>
    %cst_211 = arith.constant 0.000000e+00 : f32
    %503 = vector.broadcast %cst_211 : f32 to vector<64x128xf32>
    %504 = arith.maximumf %502, %503 : vector<64x128xf32>
    %505 = arith.truncf %504 : vector<64x128xf32> to vector<64x128xbf16>
    %cst_212 = arith.constant dense<0.000000e+00> : vector<64x32xf32>
    %506 = tpu.matmul %505, %492, %cst_212 {dimension_numbers = #tpu.dot_dimension_numbers<[1], [0], [0], [1], [0, 0, 1, 1], [], []>} : vector<64x128xbf16>, vector<128x32xbf16>, vector<64x32xf32> -> vector<64x32xf32>
    %507 = vector.broadcast %494 : vector<1x32xf32> to vector<64x32xf32>
    %508 = arith.addf %506, %507 : vector<64x32xf32>
    %509 = arith.addf %486, %508 : vector<64x32xf32>
    %cst_213 = arith.constant dense<0.000000e+00> : vector<64xf32>
    %510 = vector.multi_reduction <add>, %509, %cst_213 [1] : vector<64x32xf32> to vector<64xf32>
    %511 = vector.shape_cast %510 : vector<64xf32> to vector<64x1xf32>
    %cst_214 = arith.constant 3.200000e+01 : f32
    %512 = vector.broadcast %cst_214 : f32 to vector<64x1xf32>
    %513 = arith.divf %511, %512 : vector<64x1xf32>
    %514 = vector.broadcast %513 : vector<64x1xf32> to vector<64x32xf32>
    %515 = arith.subf %509, %514 : vector<64x32xf32>
    %516 = arith.mulf %515, %515 : vector<64x32xf32>
    %cst_215 = arith.constant dense<0.000000e+00> : vector<64xf32>
    %517 = vector.multi_reduction <add>, %516, %cst_215 [1] : vector<64x32xf32> to vector<64xf32>
    %518 = vector.shape_cast %517 : vector<64xf32> to vector<64x1xf32>
    %cst_216 = arith.constant 3.200000e+01 : f32
    %519 = vector.broadcast %cst_216 : f32 to vector<64x1xf32>
    %520 = arith.divf %518, %519 : vector<64x1xf32>
    %521 = vector.broadcast %513 : vector<64x1xf32> to vector<64x32xf32>
    %522 = arith.subf %509, %521 : vector<64x32xf32>
    %cst_217 = arith.constant 9.99999974E-6 : f32
    %523 = vector.broadcast %cst_217 : f32 to vector<64x1xf32>
    %524 = arith.addf %520, %523 : vector<64x1xf32>
    %525 = math.rsqrt %524 : vector<64x1xf32>
    %526 = vector.broadcast %525 : vector<64x1xf32> to vector<64x32xf32>
    %527 = arith.mulf %522, %526 : vector<64x32xf32>
    %528 = vector.broadcast %496 : vector<1x32xf32> to vector<64x32xf32>
    %529 = arith.mulf %527, %528 : vector<64x32xf32>
    %530 = vector.broadcast %498 : vector<1x32xf32> to vector<64x32xf32>
    %531 = arith.addf %529, %530 : vector<64x32xf32>
    %c0_218 = arith.constant 0 : index
    %c0_219 = arith.constant 0 : index
    %532 = vector.load %arg34[%c0_218, %c0_219] : memref<16x32xf32, #tpu.memory_space<vmem>>, vector<16x32xf32>
    tpu.vector_store %arg34[%c0_218, %c0_219], %312 {strides = array<i32>} : memref<16x32xf32, #tpu.memory_space<vmem>>, vector<16x32xf32>,
    %c0_220 = arith.constant 0 : index
    %c0_221 = arith.constant 0 : index
    %533 = vector.load %arg35[%c0_220, %c0_221] : memref<64x32xf32, #tpu.memory_space<vmem>>, vector<64x32xf32>
    tpu.vector_store %arg35[%c0_220, %c0_221], %531 {strides = array<i32>} : memref<64x32xf32, #tpu.memory_space<vmem>>, vector<64x32xf32>,
    %c1_i32 = arith.constant 1 : i32
    %534 = arith.cmpi eq, %arg0, %c1_i32 : i32
    %535 = arith.extui %534 : i1 to i32
    %c0_i32_222 = arith.constant 0 : i32
    %536 = arith.cmpi ne, %535, %c0_i32_222 : i32
    scf.if %536 {
      %c0_223 = arith.constant 0 : index
      %c0_224 = arith.constant 0 : index
      %537 = vector.load %arg32[%c0_223, %c0_224] : memref<16x32xf32, #tpu.memory_space<vmem>>, vector<16x32xf32>
      tpu.vector_store %arg32[%c0_223, %c0_224], %312 {strides = array<i32>} : memref<16x32xf32, #tpu.memory_space<vmem>>, vector<16x32xf32>,
      %c0_225 = arith.constant 0 : index
      %c0_226 = arith.constant 0 : index
      %538 = vector.load %arg33[%c0_225, %c0_226] : memref<64x32xf32, #tpu.memory_space<vmem>>, vector<64x32xf32>
      tpu.vector_store %arg33[%c0_225, %c0_226], %531 {strides = array<i32>} : memref<64x32xf32, #tpu.memory_space<vmem>>, vector<64x32xf32>,
    } else {
    }
    return
  }
  func.func @transform_0(%arg0: i32) -> (i32, i32) {
    %c0_i32 = arith.constant 0 : i32
    %c0_i32_0 = arith.constant 0 : i32
    %c0_i32_1 = arith.constant 0 : i32
    return %c0_i32, %c0_i32_0 : i32, i32
  }
  func.func @transform_1(%arg0: i32) -> (i32, i32) {
    %c0_i32 = arith.constant 0 : i32
    %c0_i32_0 = arith.constant 0 : i32
    %c0_i32_1 = arith.constant 0 : i32
    return %c0_i32, %c0_i32_0 : i32, i32
  }
  func.func @transform_2(%arg0: i32) -> (i32, i32) {
    %c0_i32 = arith.constant 0 : i32
    %c0_i32_0 = arith.constant 0 : i32
    %c0_i32_1 = arith.constant 0 : i32
    return %c0_i32, %c0_i32_0 : i32, i32
  }
  func.func @transform_3(%arg0: i32) -> (i32, i32) {
    %c0_i32 = arith.constant 0 : i32
    %c0_i32_0 = arith.constant 0 : i32
    %c0_i32_1 = arith.constant 0 : i32
    return %c0_i32, %c0_i32_0 : i32, i32
  }
  func.func @transform_4(%arg0: i32) -> (i32, i32) {
    %c0_i32 = arith.constant 0 : i32
    %c0_i32_0 = arith.constant 0 : i32
    %c0_i32_1 = arith.constant 0 : i32
    return %c0_i32, %c0_i32_0 : i32, i32
  }
  func.func @transform_5(%arg0: i32) -> (i32, i32) {
    %c0_i32 = arith.constant 0 : i32
    %c0_i32_0 = arith.constant 0 : i32
    %c0_i32_1 = arith.constant 0 : i32
    return %c0_i32, %c0_i32_0 : i32, i32
  }
  func.func @transform_6(%arg0: i32) -> (i32, i32) {
    %c0_i32 = arith.constant 0 : i32
    %c0_i32_0 = arith.constant 0 : i32
    %c0_i32_1 = arith.constant 0 : i32
    return %c0_i32, %c0_i32_0 : i32, i32
  }
  func.func @transform_7(%arg0: i32) -> (i32, i32, i32) {
    %c0_i32 = arith.constant 0 : i32
    %c0_i32_0 = arith.constant 0 : i32
    %c0_i32_1 = arith.constant 0 : i32
    return %arg0, %c0_i32, %c0_i32_0 : i32, i32, i32
  }
  func.func @transform_8(%arg0: i32) -> (i32, i32, i32) {
    %c0_i32 = arith.constant 0 : i32
    %c0_i32_0 = arith.constant 0 : i32
    %c0_i32_1 = arith.constant 0 : i32
    return %arg0, %c0_i32, %c0_i32_0 : i32, i32, i32
  }
  func.func @transform_9(%arg0: i32) -> (i32, i32, i32) {
    %c0_i32 = arith.constant 0 : i32
    %c0_i32_0 = arith.constant 0 : i32
    %c0_i32_1 = arith.constant 0 : i32
    return %arg0, %c0_i32, %c0_i32_0 : i32, i32, i32
  }
  func.func @transform_10(%arg0: i32) -> (i32, i32, i32) {
    %c0_i32 = arith.constant 0 : i32
    %c0_i32_0 = arith.constant 0 : i32
    %c0_i32_1 = arith.constant 0 : i32
    return %arg0, %c0_i32, %c0_i32_0 : i32, i32, i32
  }
  func.func @transform_11(%arg0: i32) -> (i32, i32, i32) {
    %c0_i32 = arith.constant 0 : i32
    %c0_i32_0 = arith.constant 0 : i32
    %c0_i32_1 = arith.constant 0 : i32
    return %arg0, %c0_i32, %c0_i32_0 : i32, i32, i32
  }
  func.func @transform_12(%arg0: i32) -> (i32, i32, i32) {
    %c0_i32 = arith.constant 0 : i32
    %c0_i32_0 = arith.constant 0 : i32
    %c0_i32_1 = arith.constant 0 : i32
    return %arg0, %c0_i32, %c0_i32_0 : i32, i32, i32
  }
  func.func @transform_13(%arg0: i32) -> (i32, i32, i32) {
    %c0_i32 = arith.constant 0 : i32
    %c0_i32_0 = arith.constant 0 : i32
    %c0_i32_1 = arith.constant 0 : i32
    return %arg0, %c0_i32, %c0_i32_0 : i32, i32, i32
  }
  func.func @transform_14(%arg0: i32) -> (i32, i32, i32) {
    %c0_i32 = arith.constant 0 : i32
    %c0_i32_0 = arith.constant 0 : i32
    %c0_i32_1 = arith.constant 0 : i32
    return %arg0, %c0_i32, %c0_i32_0 : i32, i32, i32
  }
  func.func @transform_15(%arg0: i32) -> (i32, i32, i32) {
    %c0_i32 = arith.constant 0 : i32
    %c0_i32_0 = arith.constant 0 : i32
    %c0_i32_1 = arith.constant 0 : i32
    return %arg0, %c0_i32, %c0_i32_0 : i32, i32, i32
  }
  func.func @transform_16(%arg0: i32) -> (i32, i32, i32) {
    %c0_i32 = arith.constant 0 : i32
    %c0_i32_0 = arith.constant 0 : i32
    %c0_i32_1 = arith.constant 0 : i32
    return %arg0, %c0_i32, %c0_i32_0 : i32, i32, i32
  }
  func.func @transform_17(%arg0: i32) -> (i32, i32, i32) {
    %c0_i32 = arith.constant 0 : i32
    %c0_i32_0 = arith.constant 0 : i32
    %c0_i32_1 = arith.constant 0 : i32
    return %arg0, %c0_i32, %c0_i32_0 : i32, i32, i32
  }
  func.func @transform_18(%arg0: i32) -> (i32, i32, i32) {
    %c0_i32 = arith.constant 0 : i32
    %c0_i32_0 = arith.constant 0 : i32
    %c0_i32_1 = arith.constant 0 : i32
    return %arg0, %c0_i32, %c0_i32_0 : i32, i32, i32
  }
  func.func @transform_19(%arg0: i32) -> (i32, i32, i32) {
    %c0_i32 = arith.constant 0 : i32
    %c0_i32_0 = arith.constant 0 : i32
    %c0_i32_1 = arith.constant 0 : i32
    return %arg0, %c0_i32, %c0_i32_0 : i32, i32, i32
  }
  func.func @transform_20(%arg0: i32) -> (i32, i32, i32) {
    %c0_i32 = arith.constant 0 : i32
    %c0_i32_0 = arith.constant 0 : i32
    %c0_i32_1 = arith.constant 0 : i32
    return %arg0, %c0_i32, %c0_i32_0 : i32, i32, i32
  }
  func.func @transform_21(%arg0: i32) -> (i32, i32, i32) {
    %c0_i32 = arith.constant 0 : i32
    %c0_i32_0 = arith.constant 0 : i32
    %c0_i32_1 = arith.constant 0 : i32
    return %arg0, %c0_i32, %c0_i32_0 : i32, i32, i32
  }
  func.func @transform_22(%arg0: i32) -> (i32, i32, i32) {
    %c0_i32 = arith.constant 0 : i32
    %c0_i32_0 = arith.constant 0 : i32
    %c0_i32_1 = arith.constant 0 : i32
    return %arg0, %c0_i32, %c0_i32_0 : i32, i32, i32
  }
  func.func @transform_23(%arg0: i32) -> (i32, i32, i32) {
    %c0_i32 = arith.constant 0 : i32
    %c0_i32_0 = arith.constant 0 : i32
    %c0_i32_1 = arith.constant 0 : i32
    return %arg0, %c0_i32, %c0_i32_0 : i32, i32, i32
  }
  func.func @transform_24(%arg0: i32) -> (i32, i32, i32) {
    %c0_i32 = arith.constant 0 : i32
    %c0_i32_0 = arith.constant 0 : i32
    %c0_i32_1 = arith.constant 0 : i32
    return %arg0, %c0_i32, %c0_i32_0 : i32, i32, i32
  }
  func.func @transform_25(%arg0: i32) -> (i32, i32, i32) {
    %c0_i32 = arith.constant 0 : i32
    %c0_i32_0 = arith.constant 0 : i32
    %c0_i32_1 = arith.constant 0 : i32
    return %arg0, %c0_i32, %c0_i32_0 : i32, i32, i32
  }
  func.func @transform_26(%arg0: i32) -> (i32, i32, i32) {
    %c0_i32 = arith.constant 0 : i32
    %c0_i32_0 = arith.constant 0 : i32
    %c0_i32_1 = arith.constant 0 : i32
    return %arg0, %c0_i32, %c0_i32_0 : i32, i32, i32
  }
  func.func @transform_27(%arg0: i32) -> (i32, i32, i32) {
    %c0_i32 = arith.constant 0 : i32
    %c0_i32_0 = arith.constant 0 : i32
    %c0_i32_1 = arith.constant 0 : i32
    return %arg0, %c0_i32, %c0_i32_0 : i32, i32, i32
  }
  func.func @transform_28(%arg0: i32) -> (i32, i32, i32) {
    %c0_i32 = arith.constant 0 : i32
    %c0_i32_0 = arith.constant 0 : i32
    %c0_i32_1 = arith.constant 0 : i32
    return %arg0, %c0_i32, %c0_i32_0 : i32, i32, i32
  }
  func.func @transform_29(%arg0: i32) -> (i32, i32, i32) {
    %c0_i32 = arith.constant 0 : i32
    %c0_i32_0 = arith.constant 0 : i32
    %c0_i32_1 = arith.constant 0 : i32
    return %arg0, %c0_i32, %c0_i32_0 : i32, i32, i32
  }
  func.func @transform_30(%arg0: i32) -> (i32, i32, i32) {
    %c0_i32 = arith.constant 0 : i32
    %c0_i32_0 = arith.constant 0 : i32
    %c0_i32_1 = arith.constant 0 : i32
    return %arg0, %c0_i32, %c0_i32_0 : i32, i32, i32
  }
  func.func @transform_31(%arg0: i32) -> (i32, i32) {
    %c0_i32 = arith.constant 0 : i32
    %c0_i32_0 = arith.constant 0 : i32
    %c0_i32_1 = arith.constant 0 : i32
    return %c0_i32, %c0_i32_0 : i32, i32
  }
  func.func @transform_32(%arg0: i32) -> (i32, i32) {
    %c0_i32 = arith.constant 0 : i32
    %c0_i32_0 = arith.constant 0 : i32
    %c0_i32_1 = arith.constant 0 : i32
    return %c0_i32, %c0_i32_0 : i32, i32
  }
}

</mosaic_0001>

<llo_original>
// kernel: lgesql_forward.1
$region0: #{lgesql_forward.1}
  #allocation0 [shape = 'u32[]', space=smem, size = 0x4, offset = 0x4, fixed_abs, tag = 'smem constant byte address 0x4 - core index']
  #allocation1 [shape = 'u32[144,128]{1,0:T(1,128)}', space=vmem, size = 0x12000, scoped, tag = 'internal scratch']
  #allocation2 [shape = 'f32[16,32]{1,0:T(8,128)}', space=vmem, size = 0x2000, scoped, tag = 'scratch operand']
  #allocation3 [shape = 'f32[64,32]{1,0:T(8,128)}', space=vmem, size = 0x8000, scoped, tag = 'scratch operand']
  %s0 = inlined_call_operand.smem [shape: u32[33], index: -1, kind: input, shape index: {}]
  %s1 = sld [smem:[%s0]]
  %s2 = scalar_lea.smem %s0, 1
  %s3 = sld [smem:[%s2]]
  %s4 = scalar_lea.smem %s0, 2
  %s5 = sld [smem:[%s4]]
  %s6 = scalar_lea.smem %s0, 3
  %s7 = sld [smem:[%s6]]
  %s8 = scalar_lea.smem %s0, 4
  %s9 = sld [smem:[%s8]]
  %s10 = scalar_lea.smem %s0, 5
  %s11 = sld [smem:[%s10]]
  %s12 = scalar_lea.smem %s0, 6
  %s13 = sld [smem:[%s12]]
  %s14 = scalar_lea.smem %s0, 7
  %s15 = sld [smem:[%s14]]
  %s16 = scalar_lea.smem %s0, 8
  %s17 = sld [smem:[%s16]]
  %s18 = scalar_lea.smem %s0, 9
  %s19 = sld [smem:[%s18]]
  %s20 = scalar_lea.smem %s0, 10
  %s21 = sld [smem:[%s20]]
  %s22 = scalar_lea.smem %s0, 11
  %s23 = sld [smem:[%s22]]
  %s24 = scalar_lea.smem %s0, 12
  %s25 = sld [smem:[%s24]]
  %s26 = scalar_lea.smem %s0, 13
  %s27 = sld [smem:[%s26]]
  %s28 = scalar_lea.smem %s0, 14
  %s29 = sld [smem:[%s28]]
  %s30 = scalar_lea.smem %s0, 15
  %s31 = sld [smem:[%s30]]
  %s32 = scalar_lea.smem %s0, 16
  %s33 = sld [smem:[%s32]]
  %s34 = scalar_lea.smem %s0, 17
  %s35 = sld [smem:[%s34]]
  %s36 = scalar_lea.smem %s0, 18
  %s37 = sld [smem:[%s36]]
  %s38 = scalar_lea.smem %s0, 19
  %s39 = sld [smem:[%s38]]
  %s40 = scalar_lea.smem %s0, 20
  %s41 = sld [smem:[%s40]]
  %s42 = scalar_lea.smem %s0, 21
  %s43 = sld [smem:[%s42]]
  %s44 = scalar_lea.smem %s0, 22
  %s45 = sld [smem:[%s44]]
  %s46 = scalar_lea.smem %s0, 23
  %s47 = sld [smem:[%s46]]
  %s48 = scalar_lea.smem %s0, 24
  %s49 = sld [smem:[%s48]]
  %s50 = scalar_lea.smem %s0, 25
  %s51 = sld [smem:[%s50]]
  %s52 = scalar_lea.smem %s0, 26
  %s53 = sld [smem:[%s52]]
  %s54 = scalar_lea.smem %s0, 27
  %s55 = sld [smem:[%s54]]
  %s56 = scalar_lea.smem %s0, 28
  %s57 = sld [smem:[%s56]]
  %s58 = scalar_lea.smem %s0, 29
  %s59 = sld [smem:[%s58]]
  %s60 = scalar_lea.smem %s0, 30
  %s61 = sld [smem:[%s60]]
  %s62 = scalar_lea.smem %s0, 31
  %s63 = sld [smem:[%s62]]
  %s64 = scalar_lea.smem %s0, 32
  %s65 = sld [smem:[%s64]]
  %66 = xla_tuple %s63, %s65
  %s67 = sld [smem:[#allocation0]]
  $region173: #{lgesql_forward.1} parent=0
    _
  %s69 = ssub.s32 1, %s67
  %s70 = scalar_select 0, %s69, %s67
  $region1: #{lgesql_forward.1} parent=0
    #allocation4 [shape = 'u8[8192]{0}', space=vmem, size = 0x2000, scoped, tag = 'output window, operand 0, single buffered']
    #allocation5 [shape = 's32[2]{0}', space=sflag, size = 0x8, scoped, tag = 'scoped memory for lgesql_forward.1']
    #allocation6 [shape = 'u8[32768]{0}', space=vmem, size = 0x8000, scoped, tag = 'output window, operand 1, single buffered']
    #allocation7 [shape = 's32[1]{0}', space=sflag, size = 0x4, scoped, tag = 'scoped memory for lgesql_forward.1']
    %71 = vsyncpa [#allocation5], 0
    %72 = vsyncpa [#allocation7], 0
    loop: start=0, step=1, limit=4
    $region2: #{lgesql_forward.1} parent=1 // loop_pre_header
      _
    $region3: #{lgesql_forward.1} parent=1 // loop_header
      %s74 = sphi 0, %s78
      %p75 = scmp.ge.s32.totalorder %s74, 4
      %s82 = sphi 0, %s82
      %s84 = sphi 0, %s82
      %s85 = sphi 0, %s84
      %s99 = sphi 0, %s85
      %s103 = sphi 0, %s103
      %s105 = sphi 0, %s103
      %s106 = sphi 0, %s105
      %s120 = sphi 0, %s106
      %s124 = sphi 0, %s124
      %s126 = sphi 0, %s124
      %s127 = sphi 0, %s126
      %s141 = sphi 0, %s127
      %s145 = sphi 0, %s145
      %s147 = sphi 0, %s145
      %s148 = sphi 0, %s147
      %s162 = sphi 0, %s148
      %s166 = sphi 0, %s166
      %s168 = sphi 0, %s166
      %s169 = sphi 0, %s168
      %s183 = sphi 0, %s169
      %s187 = sphi 0, %s187
      %s189 = sphi 0, %s187
      %s190 = sphi 0, %s189
      %s204 = sphi 0, %s190
      %s208 = sphi 0, %s208
      %s210 = sphi 0, %s208
      %s211 = sphi 0, %s210
      %s225 = sphi 0, %s211
      %s231 = sphi 0, %s233
      %s234 = sphi 0, %s231
      %s235 = sphi 0, %s234
      %s251 = sphi 0, %s235
      %s257 = sphi 0, %s259
      %s260 = sphi 0, %s257
      %s261 = sphi 0, %s260
      %s277 = sphi 0, %s261
      %s283 = sphi 0, %s285
      %s286 = sphi 0, %s283
      %s287 = sphi 0, %s286
      %s303 = sphi 0, %s287
      %s309 = sphi 0, %s311
      %s312 = sphi 0, %s309
      %s313 = sphi 0, %s312
      %s329 = sphi 0, %s313
      %s335 = sphi 0, %s337
      %s338 = sphi 0, %s335
      %s339 = sphi 0, %s338
      %s355 = sphi 0, %s339
      %s361 = sphi 0, %s363
      %s364 = sphi 0, %s361
      %s365 = sphi 0, %s364
      %s381 = sphi 0, %s365
      %s387 = sphi 0, %s389
      %s390 = sphi 0, %s387
      %s391 = sphi 0, %s390
      %s407 = sphi 0, %s391
      %s413 = sphi 0, %s415
      %s416 = sphi 0, %s413
      %s417 = sphi 0, %s416
      %s433 = sphi 0, %s417
      %s439 = sphi 0, %s441
      %s442 = sphi 0, %s439
      %s443 = sphi 0, %s442
      %s459 = sphi 0, %s443
      %s465 = sphi 0, %s467
      %s468 = sphi 0, %s465
      %s469 = sphi 0, %s468
      %s485 = sphi 0, %s469
      %s491 = sphi 0, %s493
      %s494 = sphi 0, %s491
      %s495 = sphi 0, %s494
      %s511 = sphi 0, %s495
      %s517 = sphi 0, %s519
      %s520 = sphi 0, %s517
      %s521 = sphi 0, %s520
      %s537 = sphi 0, %s521
      %s543 = sphi 0, %s545
      %s546 = sphi 0, %s543
      %s547 = sphi 0, %s546
      %s563 = sphi 0, %s547
      %s569 = sphi 0, %s571
      %s572 = sphi 0, %s569
      %s573 = sphi 0, %s572
      %s589 = sphi 0, %s573
      %s595 = sphi 0, %s597
      %s598 = sphi 0, %s595
      %s599 = sphi 0, %s598
      %s615 = sphi 0, %s599
      %s621 = sphi 0, %s623
      %s624 = sphi 0, %s621
      %s625 = sphi 0, %s624
      %s641 = sphi 0, %s625
      %s647 = sphi 0, %s649
      %s650 = sphi 0, %s647
      %s651 = sphi 0, %s650
      %s667 = sphi 0, %s651
      %s673 = sphi 0, %s675
      %s676 = sphi 0, %s673
      %s677 = sphi 0, %s676
      %s693 = sphi 0, %s677
      %s699 = sphi 0, %s701
      %s702 = sphi 0, %s699
      %s703 = sphi 0, %s702
      %s719 = sphi 0, %s703
      %s725 = sphi 0, %s727
      %s728 = sphi 0, %s725
      %s729 = sphi 0, %s728
      %s745 = sphi 0, %s729
      %s751 = sphi 0, %s753
      %s754 = sphi 0, %s751
      %s755 = sphi 0, %s754
      %s771 = sphi 0, %s755
      %s777 = sphi 0, %s779
      %s780 = sphi 0, %s777
      %s781 = sphi 0, %s780
      %s797 = sphi 0, %s781
      %s803 = sphi 0, %s805
      %s806 = sphi 0, %s803
      %s807 = sphi 0, %s806
      %s823 = sphi 0, %s807
      %s829 = sphi 0, %s831
      %s832 = sphi 0, %s829
      %s833 = sphi 0, %s832
      %s849 = sphi 0, %s833
      %s853 = sphi 0, %s853
      %s855 = sphi 0, %s853
      %s856 = sphi 0, %s855
      %s870 = sphi 0, %s856
      %s874 = sphi 0, %s874
      %s876 = sphi 0, %s874
      %s877 = sphi 0, %s876
      %s891 = sphi 0, %s877
    $region4: #{lgesql_forward.1} parent=1 // loop_header_branch
      %77 = sbr.rel (%p75) target = $region8
    $region5: #{lgesql_forward.1} parent=1 // loop_body
      %s79 = ssub.s32 %s74, 1
      %s80 = ssub.s32 %s74, 2
      %s81 = sadd.s32 %s74, 1
      %s83 = sadd.s32 %s82, 1
      %p86 = scmp.eq.s32.totalorder %s74, 1
      %p87 = scmp.ne.s32.totalorder %s82, %s84
      %p88 = scmp.eq.s32.totalorder %s74, 0
      %p89 = por %p87, %p88
      %p90 = scmp.ne.s32.totalorder %s82, %s84
      %p91 = scmp.eq.s32.totalorder %s79, 1
      %p92 = por %p90, %p91
      %p93 = scmp.ne.s32.totalorder %s84, %s85
      %p94 = scmp.eq.s32.totalorder %s79, 0
      %p95 = por %p93, %p94
      %p96 = scmp.ne.s32.totalorder %s84, %s85
      %p97 = scmp.eq.s32.totalorder %s80, 1
      %p98 = por %p96, %p97
      %p100 = scmp.ne.s32.totalorder %s85, %s99
      %p101 = scmp.eq.s32.totalorder %s80, 0
      %p102 = por %p100, %p101
      %s104 = sadd.s32 %s103, 1
      %p107 = scmp.eq.s32.totalorder %s74, 1
      %p108 = scmp.ne.s32.totalorder %s103, %s105
      %p109 = scmp.eq.s32.totalorder %s74, 0
      %p110 = por %p108, %p109
      %p111 = scmp.ne.s32.totalorder %s103, %s105
      %p112 = scmp.eq.s32.totalorder %s79, 1
      %p113 = por %p111, %p112
      %p114 = scmp.ne.s32.totalorder %s105, %s106
      %p115 = scmp.eq.s32.totalorder %s79, 0
      %p116 = por %p114, %p115
      %p117 = scmp.ne.s32.totalorder %s105, %s106
      %p118 = scmp.eq.s32.totalorder %s80, 1
      %p119 = por %p117, %p118
      %p121 = scmp.ne.s32.totalorder %s106, %s120
      %p122 = scmp.eq.s32.totalorder %s80, 0
      %p123 = por %p121, %p122
      %s125 = sadd.s32 %s124, 1
      %p128 = scmp.eq.s32.totalorder %s74, 1
      %p129 = scmp.ne.s32.totalorder %s124, %s126
      %p130 = scmp.eq.s32.totalorder %s74, 0
      %p131 = por %p129, %p130
      %p132 = scmp.ne.s32.totalorder %s124, %s126
      %p133 = scmp.eq.s32.totalorder %s79, 1
      %p134 = por %p132, %p133
      %p135 = scmp.ne.s32.totalorder %s126, %s127
      %p136 = scmp.eq.s32.totalorder %s79, 0
      %p137 = por %p135, %p136
      %p138 = scmp.ne.s32.totalorder %s126, %s127
      %p139 = scmp.eq.s32.totalorder %s80, 1
      %p140 = por %p138, %p139
      %p142 = scmp.ne.s32.totalorder %s127, %s141
      %p143 = scmp.eq.s32.totalorder %s80, 0
      %p144 = por %p142, %p143
      %s146 = sadd.s32 %s145, 1
      %p149 = scmp.eq.s32.totalorder %s74, 1
      %p150 = scmp.ne.s32.totalorder %s145, %s147
      %p151 = scmp.eq.s32.totalorder %s74, 0
      %p152 = por %p150, %p151
      %p153 = scmp.ne.s32.totalorder %s145, %s147
      %p154 = scmp.eq.s32.totalorder %s79, 1
      %p155 = por %p153, %p154
      %p156 = scmp.ne.s32.totalorder %s147, %s148
      %p157 = scmp.eq.s32.totalorder %s79, 0
      %p158 = por %p156, %p157
      %p159 = scmp.ne.s32.totalorder %s147, %s148
      %p160 = scmp.eq.s32.totalorder %s80, 1
      %p161 = por %p159, %p160
      %p163 = scmp.ne.s32.totalorder %s148, %s162
      %p164 = scmp.eq.s32.totalorder %s80, 0
      %p165 = por %p163, %p164
      %s167 = sadd.s32 %s166, 1
      %p170 = scmp.eq.s32.totalorder %s74, 1
      %p171 = scmp.ne.s32.totalorder %s166, %s168
      %p172 = scmp.eq.s32.totalorder %s74, 0
      %p173 = por %p171, %p172
      %p174 = scmp.ne.s32.totalorder %s166, %s168
      %p175 = scmp.eq.s32.totalorder %s79, 1
      %p176 = por %p174, %p175
      %p177 = scmp.ne.s32.totalorder %s168, %s169
      %p178 = scmp.eq.s32.totalorder %s79, 0
      %p179 = por %p177, %p178
      %p180 = scmp.ne.s32.totalorder %s168, %s169
      %p181 = scmp.eq.s32.totalorder %s80, 1
      %p182 = por %p180, %p181
      %p184 = scmp.ne.s32.totalorder %s169, %s183
      %p185 = scmp.eq.s32.totalorder %s80, 0
      %p186 = por %p184, %p185
      %s188 = sadd.s32 %s187, 1
      %p191 = scmp.eq.s32.totalorder %s74, 1
      %p192 = scmp.ne.s32.totalorder %s187, %s189
      %p193 = scmp.eq.s32.totalorder %s74, 0
      %p194 = por %p192, %p193
      %p195 = scmp.ne.s32.totalorder %s187, %s189
      %p196 = scmp.eq.s32.totalorder %s79, 1
      %p197 = por %p195, %p196
      %p198 = scmp.ne.s32.totalorder %s189, %s190
      %p199 = scmp.eq.s32.totalorder %s79, 0
      %p200 = por %p198, %p199
      %p201 = scmp.ne.s32.totalorder %s189, %s190
      %p202 = scmp.eq.s32.totalorder %s80, 1
      %p203 = por %p201, %p202
      %p205 = scmp.ne.s32.totalorder %s190, %s204
      %p206 = scmp.eq.s32.totalorder %s80, 0
      %p207 = por %p205, %p206
      %s209 = sadd.s32 %s208, 1
      %p212 = scmp.eq.s32.totalorder %s74, 1
      %p213 = scmp.ne.s32.totalorder %s208, %s210
      %p214 = scmp.eq.s32.totalorder %s74, 0
      %p215 = por %p213, %p214
      %p216 = scmp.ne.s32.totalorder %s208, %s210
      %p217 = scmp.eq.s32.totalorder %s79, 1
      %p218 = por %p216, %p217
      %p219 = scmp.ne.s32.totalorder %s210, %s211
      %p220 = scmp.eq.s32.totalorder %s79, 0
      %p221 = por %p219, %p220
      %p222 = scmp.ne.s32.totalorder %s210, %s211
      %p223 = scmp.eq.s32.totalorder %s80, 1
      %p224 = por %p222, %p223
      %p226 = scmp.ne.s32.totalorder %s211, %s225
      %p227 = scmp.eq.s32.totalorder %s80, 0
      %p228 = por %p226, %p227
      %s229 = ssub.s32 %s74, %s81
      %p230 = scmp.eq.s32.totalorder %s229, 0
      %s232 = sadd.s32 %s231, 1
      %s233 = scalar_select %p230, %s231, %s232
      %p236 = pneg %p230
      %p237 = scmp.eq.s32.totalorder %s74, 1
      %p238 = por %p236, %p237
      %p239 = scmp.ne.s32.totalorder %s231, %s234
      %p240 = scmp.eq.s32.totalorder %s74, 0
      %p241 = por %p239, %p240
      %p242 = scmp.ne.s32.totalorder %s231, %s234
      %p243 = scmp.eq.s32.totalorder %s79, 1
      %p244 = por %p242, %p243
      %p245 = scmp.ne.s32.totalorder %s234, %s235
      %p246 = scmp.eq.s32.totalorder %s79, 0
      %p247 = por %p245, %p246
      %p248 = scmp.ne.s32.totalorder %s234, %s235
      %p249 = scmp.eq.s32.totalorder %s80, 1
      %p250 = por %p248, %p249
      %p252 = scmp.ne.s32.totalorder %s235, %s251
      %p253 = scmp.eq.s32.totalorder %s80, 0
      %p254 = por %p252, %p253
      %s255 = ssub.s32 %s74, %s81
      %p256 = scmp.eq.s32.totalorder %s255, 0
      %s258 = sadd.s32 %s257, 1
      %s259 = scalar_select %p256, %s257, %s258
      %p262 = pneg %p256
      %p263 = scmp.eq.s32.totalorder %s74, 1
      %p264 = por %p262, %p263
      %p265 = scmp.ne.s32.totalorder %s257, %s260
      %p266 = scmp.eq.s32.totalorder %s74, 0
      %p267 = por %p265, %p266
      %p268 = scmp.ne.s32.totalorder %s257, %s260
      %p269 = scmp.eq.s32.totalorder %s79, 1
      %p270 = por %p268, %p269
      %p271 = scmp.ne.s32.totalorder %s260, %s261
      %p272 = scmp.eq.s32.totalorder %s79, 0
      %p273 = por %p271, %p272
      %p274 = scmp.ne.s32.totalorder %s260, %s261
      %p275 = scmp.eq.s32.totalorder %s80, 1
      %p276 = por %p274, %p275
      %p278 = scmp.ne.s32.totalorder %s261, %s277
      %p279 = scmp.eq.s32.totalorder %s80, 0
      %p280 = por %p278, %p279
      %s281 = ssub.s32 %s74, %s81
      %p282 = scmp.eq.s32.totalorder %s281, 0
      %s284 = sadd.s32 %s283, 1
      %s285 = scalar_select %p282, %s283, %s284
      %p288 = pneg %p282
      %p289 = scmp.eq.s32.totalorder %s74, 1
      %p290 = por %p288, %p289
      %p291 = scmp.ne.s32.totalorder %s283, %s286
      %p292 = scmp.eq.s32.totalorder %s74, 0
      %p293 = por %p291, %p292
      %p294 = scmp.ne.s32.totalorder %s283, %s286
      %p295 = scmp.eq.s32.totalorder %s79, 1
      %p296 = por %p294, %p295
      %p297 = scmp.ne.s32.totalorder %s286, %s287
      %p298 = scmp.eq.s32.totalorder %s79, 0
      %p299 = por %p297, %p298
      %p300 = scmp.ne.s32.totalorder %s286, %s287
      %p301 = scmp.eq.s32.totalorder %s80, 1
      %p302 = por %p300, %p301
      %p304 = scmp.ne.s32.totalorder %s287, %s303
      %p305 = scmp.eq.s32.totalorder %s80, 0
      %p306 = por %p304, %p305
      %s307 = ssub.s32 %s74, %s81
      %p308 = scmp.eq.s32.totalorder %s307, 0
      %s310 = sadd.s32 %s309, 1
      %s311 = scalar_select %p308, %s309, %s310
      %p314 = pneg %p308
      %p315 = scmp.eq.s32.totalorder %s74, 1
      %p316 = por %p314, %p315
      %p317 = scmp.ne.s32.totalorder %s309, %s312
      %p318 = scmp.eq.s32.totalorder %s74, 0
      %p319 = por %p317, %p318
      %p320 = scmp.ne.s32.totalorder %s309, %s312
      %p321 = scmp.eq.s32.totalorder %s79, 1
      %p322 = por %p320, %p321
      %p323 = scmp.ne.s32.totalorder %s312, %s313
      %p324 = scmp.eq.s32.totalorder %s79, 0
      %p325 = por %p323, %p324
      %p326 = scmp.ne.s32.totalorder %s312, %s313
      %p327 = scmp.eq.s32.totalorder %s80, 1
      %p328 = por %p326, %p327
      %p330 = scmp.ne.s32.totalorder %s313, %s329
      %p331 = scmp.eq.s32.totalorder %s80, 0
      %p332 = por %p330, %p331
      %s333 = ssub.s32 %s74, %s81
      %p334 = scmp.eq.s32.totalorder %s333, 0
      %s336 = sadd.s32 %s335, 1
      %s337 = scalar_select %p334, %s335, %s336
      %p340 = pneg %p334
      %p341 = scmp.eq.s32.totalorder %s74, 1
      %p342 = por %p340, %p341
      %p343 = scmp.ne.s32.totalorder %s335, %s338
      %p344 = scmp.eq.s32.totalorder %s74, 0
      %p345 = por %p343, %p344
      %p346 = scmp.ne.s32.totalorder %s335, %s338
      %p347 = scmp.eq.s32.totalorder %s79, 1
      %p348 = por %p346, %p347
      %p349 = scmp.ne.s32.totalorder %s338, %s339
      %p350 = scmp.eq.s32.totalorder %s79, 0
      %p351 = por %p349, %p350
      %p352 = scmp.ne.s32.totalorder %s338, %s339
      %p353 = scmp.eq.s32.totalorder %s80, 1
      %p354 = por %p352, %p353
      %p356 = scmp.ne.s32.totalorder %s339, %s355
      %p357 = scmp.eq.s32.totalorder %s80, 0
      %p358 = por %p356, %p357
      %s359 = ssub.s32 %s74, %s81
      %p360 = scmp.eq.s32.totalorder %s359, 0
      %s362 = sadd.s32 %s361, 1
      %s363 = scalar_select %p360, %s361, %s362
      %p366 = pneg %p360
      %p367 = scmp.eq.s32.totalorder %s74, 1
      %p368 = por %p366, %p367
      %p369 = scmp.ne.s32.totalorder %s361, %s364
      %p370 = scmp.eq.s32.totalorder %s74, 0
      %p371 = por %p369, %p370
      %p372 = scmp.ne.s32.totalorder %s361, %s364
      %p373 = scmp.eq.s32.totalorder %s79, 1
      %p374 = por %p372, %p373
      %p375 = scmp.ne.s32.totalorder %s364, %s365
      %p376 = scmp.eq.s32.totalorder %s79, 0
      %p377 = por %p375, %p376
      %p378 = scmp.ne.s32.totalorder %s364, %s365
      %p379 = scmp.eq.s32.totalorder %s80, 1
      %p380 = por %p378, %p379
      %p382 = scmp.ne.s32.totalorder %s365, %s381
      %p383 = scmp.eq.s32.totalorder %s80, 0
      %p384 = por %p382, %p383
      %s385 = ssub.s32 %s74, %s81
      %p386 = scmp.eq.s32.totalorder %s385, 0
      %s388 = sadd.s32 %s387, 1
      %s389 = scalar_select %p386, %s387, %s388
      %p392 = pneg %p386
      %p393 = scmp.eq.s32.totalorder %s74, 1
      %p394 = por %p392, %p393
      %p395 = scmp.ne.s32.totalorder %s387, %s390
      %p396 = scmp.eq.s32.totalorder %s74, 0
      %p397 = por %p395, %p396
      %p398 = scmp.ne.s32.totalorder %s387, %s390
      %p399 = scmp.eq.s32.totalorder %s79, 1
      %p400 = por %p398, %p399
      %p401 = scmp.ne.s32.totalorder %s390, %s391
      %p402 = scmp.eq.s32.totalorder %s79, 0
      %p403 = por %p401, %p402
      %p404 = scmp.ne.s32.totalorder %s390, %s391
      %p405 = scmp.eq.s32.totalorder %s80, 1
      %p406 = por %p404, %p405
      %p408 = scmp.ne.s32.totalorder %s391, %s407
      %p409 = scmp.eq.s32.totalorder %s80, 0
      %p410 = por %p408, %p409
      %s411 = ssub.s32 %s74, %s81
      %p412 = scmp.eq.s32.totalorder %s411, 0
      %s414 = sadd.s32 %s413, 1
      %s415 = scalar_select %p412, %s413, %s414
      %p418 = pneg %p412
      %p419 = scmp.eq.s32.totalorder %s74, 1
      %p420 = por %p418, %p419
      %p421 = scmp.ne.s32.totalorder %s413, %s416
      %p422 = scmp.eq.s32.totalorder %s74, 0
      %p423 = por %p421, %p422
      %p424 = scmp.ne.s32.totalorder %s413, %s416
      %p425 = scmp.eq.s32.totalorder %s79, 1
      %p426 = por %p424, %p425
      %p427 = scmp.ne.s32.totalorder %s416, %s417
      %p428 = scmp.eq.s32.totalorder %s79, 0
      %p429 = por %p427, %p428
      %p430 = scmp.ne.s32.totalorder %s416, %s417
      %p431 = scmp.eq.s32.totalorder %s80, 1
      %p432 = por %p430, %p431
      %p434 = scmp.ne.s32.totalorder %s417, %s433
      %p435 = scmp.eq.s32.totalorder %s80, 0
      %p436 = por %p434, %p435
      %s437 = ssub.s32 %s74, %s81
      %p438 = scmp.eq.s32.totalorder %s437, 0
      %s440 = sadd.s32 %s439, 1
      %s441 = scalar_select %p438, %s439, %s440
      %p444 = pneg %p438
      %p445 = scmp.eq.s32.totalorder %s74, 1
      %p446 = por %p444, %p445
      %p447 = scmp.ne.s32.totalorder %s439, %s442
      %p448 = scmp.eq.s32.totalorder %s74, 0
      %p449 = por %p447, %p448
      %p450 = scmp.ne.s32.totalorder %s439, %s442
      %p451 = scmp.eq.s32.totalorder %s79, 1
      %p452 = por %p450, %p451
      %p453 = scmp.ne.s32.totalorder %s442, %s443
      %p454 = scmp.eq.s32.totalorder %s79, 0
      %p455 = por %p453, %p454
      %p456 = scmp.ne.s32.totalorder %s442, %s443
      %p457 = scmp.eq.s32.totalorder %s80, 1
      %p458 = por %p456, %p457
      %p460 = scmp.ne.s32.totalorder %s443, %s459
      %p461 = scmp.eq.s32.totalorder %s80, 0
      %p462 = por %p460, %p461
      %s463 = ssub.s32 %s74, %s81
      %p464 = scmp.eq.s32.totalorder %s463, 0
      %s466 = sadd.s32 %s465, 1
      %s467 = scalar_select %p464, %s465, %s466
      %p470 = pneg %p464
      %p471 = scmp.eq.s32.totalorder %s74, 1
      %p472 = por %p470, %p471
      %p473 = scmp.ne.s32.totalorder %s465, %s468
      %p474 = scmp.eq.s32.totalorder %s74, 0
      %p475 = por %p473, %p474
      %p476 = scmp.ne.s32.totalorder %s465, %s468
      %p477 = scmp.eq.s32.totalorder %s79, 1
      %p478 = por %p476, %p477
      %p479 = scmp.ne.s32.totalorder %s468, %s469
      %p480 = scmp.eq.s32.totalorder %s79, 0
      %p481 = por %p479, %p480
      %p482 = scmp.ne.s32.totalorder %s468, %s469
      %p483 = scmp.eq.s32.totalorder %s80, 1
      %p484 = por %p482, %p483
      %p486 = scmp.ne.s32.totalorder %s469, %s485
      %p487 = scmp.eq.s32.totalorder %s80, 0
      %p488 = por %p486, %p487
      %s489 = ssub.s32 %s74, %s81
      %p490 = scmp.eq.s32.totalorder %s489, 0
      %s492 = sadd.s32 %s491, 1
      %s493 = scalar_select %p490, %s491, %s492
      %p496 = pneg %p490
      %p497 = scmp.eq.s32.totalorder %s74, 1
      %p498 = por %p496, %p497
      %p499 = scmp.ne.s32.totalorder %s491, %s494
      %p500 = scmp.eq.s32.totalorder %s74, 0
      %p501 = por %p499, %p500
      %p502 = scmp.ne.s32.totalorder %s491, %s494
      %p503 = scmp.eq.s32.totalorder %s79, 1
      %p504 = por %p502, %p503
      %p505 = scmp.ne.s32.totalorder %s494, %s495
      %p506 = scmp.eq.s32.totalorder %s79, 0
      %p507 = por %p505, %p506
      %p508 = scmp.ne.s32.totalorder %s494, %s495
      %p509 = scmp.eq.s32.totalorder %s80, 1
      %p510 = por %p508, %p509
      %p512 = scmp.ne.s32.totalorder %s495, %s511
      %p513 = scmp.eq.s32.totalorder %s80, 0
      %p514 = por %p512, %p513
      %s515 = ssub.s32 %s74, %s81
      %p516 = scmp.eq.s32.totalorder %s515, 0
      %s518 = sadd.s32 %s517, 1
      %s519 = scalar_select %p516, %s517, %s518
      %p522 = pneg %p516
      %p523 = scmp.eq.s32.totalorder %s74, 1
      %p524 = por %p522, %p523
      %p525 = scmp.ne.s32.totalorder %s517, %s520
      %p526 = scmp.eq.s32.totalorder %s74, 0
      %p527 = por %p525, %p526
      %p528 = scmp.ne.s32.totalorder %s517, %s520
      %p529 = scmp.eq.s32.totalorder %s79, 1
      %p530 = por %p528, %p529
      %p531 = scmp.ne.s32.totalorder %s520, %s521
      %p532 = scmp.eq.s32.totalorder %s79, 0
      %p533 = por %p531, %p532
      %p534 = scmp.ne.s32.totalorder %s520, %s521
      %p535 = scmp.eq.s32.totalorder %s80, 1
      %p536 = por %p534, %p535
      %p538 = scmp.ne.s32.totalorder %s521, %s537
      %p539 = scmp.eq.s32.totalorder %s80, 0
      %p540 = por %p538, %p539
      %s541 = ssub.s32 %s74, %s81
      %p542 = scmp.eq.s32.totalorder %s541, 0
      %s544 = sadd.s32 %s543, 1
      %s545 = scalar_select %p542, %s543, %s544
      %p548 = pneg %p542
      %p549 = scmp.eq.s32.totalorder %s74, 1
      %p550 = por %p548, %p549
      %p551 = scmp.ne.s32.totalorder %s543, %s546
      %p552 = scmp.eq.s32.totalorder %s74, 0
      %p553 = por %p551, %p552
      %p554 = scmp.ne.s32.totalorder %s543, %s546
      %p555 = scmp.eq.s32.totalorder %s79, 1
      %p556 = por %p554, %p555
      %p557 = scmp.ne.s32.totalorder %s546, %s547
      %p558 = scmp.eq.s32.totalorder %s79, 0
      %p559 = por %p557, %p558
      %p560 = scmp.ne.s32.totalorder %s546, %s547
      %p561 = scmp.eq.s32.totalorder %s80, 1
      %p562 = por %p560, %p561
      %p564 = scmp.ne.s32.totalorder %s547, %s563
      %p565 = scmp.eq.s32.totalorder %s80, 0
      %p566 = por %p564, %p565
      %s567 = ssub.s32 %s74, %s81
      %p568 = scmp.eq.s32.totalorder %s567, 0
      %s570 = sadd.s32 %s569, 1
      %s571 = scalar_select %p568, %s569, %s570
      %p574 = pneg %p568
      %p575 = scmp.eq.s32.totalorder %s74, 1
      %p576 = por %p574, %p575
      %p577 = scmp.ne.s32.totalorder %s569, %s572
      %p578 = scmp.eq.s32.totalorder %s74, 0
      %p579 = por %p577, %p578
      %p580 = scmp.ne.s32.totalorder %s569, %s572
      %p581 = scmp.eq.s32.totalorder %s79, 1
      %p582 = por %p580, %p581
      %p583 = scmp.ne.s32.totalorder %s572, %s573
      %p584 = scmp.eq.s32.totalorder %s79, 0
      %p585 = por %p583, %p584
      %p586 = scmp.ne.s32.totalorder %s572, %s573
      %p587 = scmp.eq.s32.totalorder %s80, 1
      %p588 = por %p586, %p587
      %p590 = scmp.ne.s32.totalorder %s573, %s589
      %p591 = scmp.eq.s32.totalorder %s80, 0
      %p592 = por %p590, %p591
      %s593 = ssub.s32 %s74, %s81
      %p594 = scmp.eq.s32.totalorder %s593, 0
      %s596 = sadd.s32 %s595, 1
      %s597 = scalar_select %p594, %s595, %s596
      %p600 = pneg %p594
      %p601 = scmp.eq.s32.totalorder %s74, 1
      %p602 = por %p600, %p601
      %p603 = scmp.ne.s32.totalorder %s595, %s598
      %p604 = scmp.eq.s32.totalorder %s74, 0
      %p605 = por %p603, %p604
      %p606 = scmp.ne.s32.totalorder %s595, %s598
      %p607 = scmp.eq.s32.totalorder %s79, 1
      %p608 = por %p606, %p607
      %p609 = scmp.ne.s32.totalorder %s598, %s599
      %p610 = scmp.eq.s32.totalorder %s79, 0
      %p611 = por %p609, %p610
      %p612 = scmp.ne.s32.totalorder %s598, %s599
      %p613 = scmp.eq.s32.totalorder %s80, 1
      %p614 = por %p612, %p613
      %p616 = scmp.ne.s32.totalorder %s599, %s615
      %p617 = scmp.eq.s32.totalorder %s80, 0
      %p618 = por %p616, %p617
      %s619 = ssub.s32 %s74, %s81
      %p620 = scmp.eq.s32.totalorder %s619, 0
      %s622 = sadd.s32 %s621, 1
      %s623 = scalar_select %p620, %s621, %s622
      %p626 = pneg %p620
      %p627 = scmp.eq.s32.totalorder %s74, 1
      %p628 = por %p626, %p627
      %p629 = scmp.ne.s32.totalorder %s621, %s624
      %p630 = scmp.eq.s32.totalorder %s74, 0
      %p631 = por %p629, %p630
      %p632 = scmp.ne.s32.totalorder %s621, %s624
      %p633 = scmp.eq.s32.totalorder %s79, 1
      %p634 = por %p632, %p633
      %p635 = scmp.ne.s32.totalorder %s624, %s625
      %p636 = scmp.eq.s32.totalorder %s79, 0
      %p637 = por %p635, %p636
      %p638 = scmp.ne.s32.totalorder %s624, %s625
      %p639 = scmp.eq.s32.totalorder %s80, 1
      %p640 = por %p638, %p639
      %p642 = scmp.ne.s32.totalorder %s625, %s641
      %p643 = scmp.eq.s32.totalorder %s80, 0
      %p644 = por %p642, %p643
      %s645 = ssub.s32 %s74, %s81
      %p646 = scmp.eq.s32.totalorder %s645, 0
      %s648 = sadd.s32 %s647, 1
      %s649 = scalar_select %p646, %s647, %s648
      %p652 = pneg %p646
      %p653 = scmp.eq.s32.totalorder %s74, 1
      %p654 = por %p652, %p653
      %p655 = scmp.ne.s32.totalorder %s647, %s650
      %p656 = scmp.eq.s32.totalorder %s74, 0
      %p657 = por %p655, %p656
      %p658 = scmp.ne.s32.totalorder %s647, %s650
      %p659 = scmp.eq.s32.totalorder %s79, 1
      %p660 = por %p658, %p659
      %p661 = scmp.ne.s32.totalorder %s650, %s651
      %p662 = scmp.eq.s32.totalorder %s79, 0
      %p663 = por %p661, %p662
      %p664 = scmp.ne.s32.totalorder %s650, %s651
      %p665 = scmp.eq.s32.totalorder %s80, 1
      %p666 = por %p664, %p665
      %p668 = scmp.ne.s32.totalorder %s651, %s667
      %p669 = scmp.eq.s32.totalorder %s80, 0
      %p670 = por %p668, %p669
      %s671 = ssub.s32 %s74, %s81
      %p672 = scmp.eq.s32.totalorder %s671, 0
      %s674 = sadd.s32 %s673, 1
      %s675 = scalar_select %p672, %s673, %s674
      %p678 = pneg %p672
      %p679 = scmp.eq.s32.totalorder %s74, 1
      %p680 = por %p678, %p679
      %p681 = scmp.ne.s32.totalorder %s673, %s676
      %p682 = scmp.eq.s32.totalorder %s74, 0
      %p683 = por %p681, %p682
      %p684 = scmp.ne.s32.totalorder %s673, %s676
      %p685 = scmp.eq.s32.totalorder %s79, 1
      %p686 = por %p684, %p685
      %p687 = scmp.ne.s32.totalorder %s676, %s677
      %p688 = scmp.eq.s32.totalorder %s79, 0
      %p689 = por %p687, %p688
      %p690 = scmp.ne.s32.totalorder %s676, %s677
      %p691 = scmp.eq.s32.totalorder %s80, 1
      %p692 = por %p690, %p691
      %p694 = scmp.ne.s32.totalorder %s677, %s693
      %p695 = scmp.eq.s32.totalorder %s80, 0
      %p696 = por %p694, %p695
      %s697 = ssub.s32 %s74, %s81
      %p698 = scmp.eq.s32.totalorder %s697, 0
      %s700 = sadd.s32 %s699, 1
      %s701 = scalar_select %p698, %s699, %s700
      %p704 = pneg %p698
      %p705 = scmp.eq.s32.totalorder %s74, 1
      %p706 = por %p704, %p705
      %p707 = scmp.ne.s32.totalorder %s699, %s702
      %p708 = scmp.eq.s32.totalorder %s74, 0
      %p709 = por %p707, %p708
      %p710 = scmp.ne.s32.totalorder %s699, %s702
      %p711 = scmp.eq.s32.totalorder %s79, 1
      %p712 = por %p710, %p711
      %p713 = scmp.ne.s32.totalorder %s702, %s703
      %p714 = scmp.eq.s32.totalorder %s79, 0
      %p715 = por %p713, %p714
      %p716 = scmp.ne.s32.totalorder %s702, %s703
      %p717 = scmp.eq.s32.totalorder %s80, 1
      %p718 = por %p716, %p717
      %p720 = scmp.ne.s32.totalorder %s703, %s719
      %p721 = scmp.eq.s32.totalorder %s80, 0
      %p722 = por %p720, %p721
      %s723 = ssub.s32 %s74, %s81
      %p724 = scmp.eq.s32.totalorder %s723, 0
      %s726 = sadd.s32 %s725, 1
      %s727 = scalar_select %p724, %s725, %s726
      %p730 = pneg %p724
      %p731 = scmp.eq.s32.totalorder %s74, 1
      %p732 = por %p730, %p731
      %p733 = scmp.ne.s32.totalorder %s725, %s728
      %p734 = scmp.eq.s32.totalorder %s74, 0
      %p735 = por %p733, %p734
      %p736 = scmp.ne.s32.totalorder %s725, %s728
      %p737 = scmp.eq.s32.totalorder %s79, 1
      %p738 = por %p736, %p737
      %p739 = scmp.ne.s32.totalorder %s728, %s729
      %p740 = scmp.eq.s32.totalorder %s79, 0
      %p741 = por %p739, %p740
      %p742 = scmp.ne.s32.totalorder %s728, %s729
      %p743 = scmp.eq.s32.totalorder %s80, 1
      %p744 = por %p742, %p743
      %p746 = scmp.ne.s32.totalorder %s729, %s745
      %p747 = scmp.eq.s32.totalorder %s80, 0
      %p748 = por %p746, %p747
      %s749 = ssub.s32 %s74, %s81
      %p750 = scmp.eq.s32.totalorder %s749, 0
      %s752 = sadd.s32 %s751, 1
      %s753 = scalar_select %p750, %s751, %s752
      %p756 = pneg %p750
      %p757 = scmp.eq.s32.totalorder %s74, 1
      %p758 = por %p756, %p757
      %p759 = scmp.ne.s32.totalorder %s751, %s754
      %p760 = scmp.eq.s32.totalorder %s74, 0
      %p761 = por %p759, %p760
      %p762 = scmp.ne.s32.totalorder %s751, %s754
      %p763 = scmp.eq.s32.totalorder %s79, 1
      %p764 = por %p762, %p763
      %p765 = scmp.ne.s32.totalorder %s754, %s755
      %p766 = scmp.eq.s32.totalorder %s79, 0
      %p767 = por %p765, %p766
      %p768 = scmp.ne.s32.totalorder %s754, %s755
      %p769 = scmp.eq.s32.totalorder %s80, 1
      %p770 = por %p768, %p769
      %p772 = scmp.ne.s32.totalorder %s755, %s771
      %p773 = scmp.eq.s32.totalorder %s80, 0
      %p774 = por %p772, %p773
      %s775 = ssub.s32 %s74, %s81
      %p776 = scmp.eq.s32.totalorder %s775, 0
      %s778 = sadd.s32 %s777, 1
      %s779 = scalar_select %p776, %s777, %s778
      %p782 = pneg %p776
      %p783 = scmp.eq.s32.totalorder %s74, 1
      %p784 = por %p782, %p783
      %p785 = scmp.ne.s32.totalorder %s777, %s780
      %p786 = scmp.eq.s32.totalorder %s74, 0
      %p787 = por %p785, %p786
      %p788 = scmp.ne.s32.totalorder %s777, %s780
      %p789 = scmp.eq.s32.totalorder %s79, 1
      %p790 = por %p788, %p789
      %p791 = scmp.ne.s32.totalorder %s780, %s781
      %p792 = scmp.eq.s32.totalorder %s79, 0
      %p793 = por %p791, %p792
      %p794 = scmp.ne.s32.totalorder %s780, %s781
      %p795 = scmp.eq.s32.totalorder %s80, 1
      %p796 = por %p794, %p795
      %p798 = scmp.ne.s32.totalorder %s781, %s797
      %p799 = scmp.eq.s32.totalorder %s80, 0
      %p800 = por %p798, %p799
      %s801 = ssub.s32 %s74, %s81
      %p802 = scmp.eq.s32.totalorder %s801, 0
      %s804 = sadd.s32 %s803, 1
      %s805 = scalar_select %p802, %s803, %s804
      %p808 = pneg %p802
      %p809 = scmp.eq.s32.totalorder %s74, 1
      %p810 = por %p808, %p809
      %p811 = scmp.ne.s32.totalorder %s803, %s806
      %p812 = scmp.eq.s32.totalorder %s74, 0
      %p813 = por %p811, %p812
      %p814 = scmp.ne.s32.totalorder %s803, %s806
      %p815 = scmp.eq.s32.totalorder %s79, 1
      %p816 = por %p814, %p815
      %p817 = scmp.ne.s32.totalorder %s806, %s807
      %p818 = scmp.eq.s32.totalorder %s79, 0
      %p819 = por %p817, %p818
      %p820 = scmp.ne.s32.totalorder %s806, %s807
      %p821 = scmp.eq.s32.totalorder %s80, 1
      %p822 = por %p820, %p821
      %p824 = scmp.ne.s32.totalorder %s807, %s823
      %p825 = scmp.eq.s32.totalorder %s80, 0
      %p826 = por %p824, %p825
      %s827 = ssub.s32 %s74, %s81
      %p828 = scmp.eq.s32.totalorder %s827, 0
      %s830 = sadd.s32 %s829, 1
      %s831 = scalar_select %p828, %s829, %s830
      %p834 = pneg %p828
      %p835 = scmp.eq.s32.totalorder %s74, 1
      %p836 = por %p834, %p835
      %p837 = scmp.ne.s32.totalorder %s829, %s832
      %p838 = scmp.eq.s32.totalorder %s74, 0
      %p839 = por %p837, %p838
      %p840 = scmp.ne.s32.totalorder %s829, %s832
      %p841 = scmp.eq.s32.totalorder %s79, 1
      %p842 = por %p840, %p841
      %p843 = scmp.ne.s32.totalorder %s832, %s833
      %p844 = scmp.eq.s32.totalorder %s79, 0
      %p845 = por %p843, %p844
      %p846 = scmp.ne.s32.totalorder %s832, %s833
      %p847 = scmp.eq.s32.totalorder %s80, 1
      %p848 = por %p846, %p847
      %p850 = scmp.ne.s32.totalorder %s833, %s849
      %p851 = scmp.eq.s32.totalorder %s80, 0
      %p852 = por %p850, %p851
      %s854 = sadd.s32 %s853, 1
      %p857 = scmp.eq.s32.totalorder %s74, 1
      %p858 = scmp.ne.s32.totalorder %s853, %s855
      %p859 = scmp.eq.s32.totalorder %s74, 0
      %p860 = por %p858, %p859
      %p861 = scmp.ne.s32.totalorder %s853, %s855
      %p862 = scmp.eq.s32.totalorder %s79, 1
      %p863 = por %p861, %p862
      %p864 = scmp.ne.s32.totalorder %s855, %s856
      %p865 = scmp.eq.s32.totalorder %s79, 0
      %p866 = por %p864, %p865
      %p867 = scmp.ne.s32.totalorder %s855, %s856
      %p868 = scmp.eq.s32.totalorder %s80, 1
      %p869 = por %p867, %p868
      %p871 = scmp.ne.s32.totalorder %s856, %s870
      %p872 = scmp.eq.s32.totalorder %s80, 0
      %p873 = por %p871, %p872
      %s875 = sadd.s32 %s874, 1
      %p878 = scmp.eq.s32.totalorder %s74, 1
      %p879 = scmp.ne.s32.totalorder %s874, %s876
      %p880 = scmp.eq.s32.totalorder %s74, 0
      %p881 = por %p879, %p880
      %p882 = scmp.ne.s32.totalorder %s874, %s876
      %p883 = scmp.eq.s32.totalorder %s79, 1
      %p884 = por %p882, %p883
      %p885 = scmp.ne.s32.totalorder %s876, %s877
      %p886 = scmp.eq.s32.totalorder %s79, 0
      %p887 = por %p885, %p886
      %p888 = scmp.ne.s32.totalorder %s876, %s877
      %p889 = scmp.eq.s32.totalorder %s80, 1
      %p890 = por %p888, %p889
      %p892 = scmp.ne.s32.totalorder %s877, %s891
      %p893 = scmp.eq.s32.totalorder %s80, 0
      %p894 = por %p892, %p893
      %p895 = scmp.le.s32.totalorder 1, %s74
      %p896 = scmp.lt.s32.totalorder %s74, 3
      %p897 = pnand %p895, %p896
      %p898 = pneg %p897
      // Predicated region
      $region9: #{lgesql_forward.1} parent=5 // pred_check
        _
      $region10: #{lgesql_forward.1} parent=5 // pred_check_branch
        %900 = sbr.rel (%p897) target = $region12
      $region11: #{lgesql_forward.1} parent=5 // pred_region
        %s901 = ssub.s32 %s74, 1
        // Predicated region
        $region13: #{lgesql_forward.1} parent=11 // pred_check
          %p902 = pneg %p95
        $region14: #{lgesql_forward.1} parent=11 // pred_check_branch
          %904 = sbr.rel (%p902) target = $region16
        $region15: #{lgesql_forward.1} parent=11 // pred_region
          _
        $region16: #{lgesql_forward.1} parent=11 // pred_fallthru
          _
        // Predicated region
        $region17: #{lgesql_forward.1} parent=11 // pred_check
          %p905 = pneg %p116
        $region18: #{lgesql_forward.1} parent=11 // pred_check_branch
          %907 = sbr.rel (%p905) target = $region20
        $region19: #{lgesql_forward.1} parent=11 // pred_region
          _
        $region20: #{lgesql_forward.1} parent=11 // pred_fallthru
          _
        // Predicated region
        $region21: #{lgesql_forward.1} parent=11 // pred_check
          %p908 = pneg %p137
        $region22: #{lgesql_forward.1} parent=11 // pred_check_branch
          %910 = sbr.rel (%p908) target = $region24
        $region23: #{lgesql_forward.1} parent=11 // pred_region
          _
        $region24: #{lgesql_forward.1} parent=11 // pred_fallthru
          _
        // Predicated region
        $region25: #{lgesql_forward.1} parent=11 // pred_check
          %p911 = pneg %p158
        $region26: #{lgesql_forward.1} parent=11 // pred_check_branch
          %913 = sbr.rel (%p911) target = $region28
        $region27: #{lgesql_forward.1} parent=11 // pred_region
          _
        $region28: #{lgesql_forward.1} parent=11 // pred_fallthru
          _
        // Predicated region
        $region29: #{lgesql_forward.1} parent=11 // pred_check
          %p914 = pneg %p179
        $region30: #{lgesql_forward.1} parent=11 // pred_check_branch
          %916 = sbr.rel (%p914) target = $region32
        $region31: #{lgesql_forward.1} parent=11 // pred_region
          _
        $region32: #{lgesql_forward.1} parent=11 // pred_fallthru
          _
        // Predicated region
        $region33: #{lgesql_forward.1} parent=11 // pred_check
          %p917 = pneg %p200
        $region34: #{lgesql_forward.1} parent=11 // pred_check_branch
          %919 = sbr.rel (%p917) target = $region36
        $region35: #{lgesql_forward.1} parent=11 // pred_region
          _
        $region36: #{lgesql_forward.1} parent=11 // pred_fallthru
          _
        // Predicated region
        $region37: #{lgesql_forward.1} parent=11 // pred_check
          %p920 = pneg %p221
        $region38: #{lgesql_forward.1} parent=11 // pred_check_branch
          %922 = sbr.rel (%p920) target = $region40
        $region39: #{lgesql_forward.1} parent=11 // pred_region
          _
        $region40: #{lgesql_forward.1} parent=11 // pred_fallthru
          _
      $region12: #{lgesql_forward.1} parent=5 // pred_fallthru
        _
      %p923 = scmp.lt.s32.totalorder %s74, 2
      // Predicated region
      $region41: #{lgesql_forward.1} parent=5 // pred_check
        %p924 = pneg %p923
      $region42: #{lgesql_forward.1} parent=5 // pred_check_branch
        %926 = sbr.rel (%p924) target = $region44
      $region43: #{lgesql_forward.1} parent=5 // pred_region
        // Predicated region
        $region45: #{lgesql_forward.1} parent=43 // pred_check
          %p927 = pneg %p241
        $region46: #{lgesql_forward.1} parent=43 // pred_check_branch
          %929 = sbr.rel (%p927) target = $region48
        $region47: #{lgesql_forward.1} parent=43 // pred_region
          %p930 = scmp.lt.s32.totalorder %s74, 1
          %s931 = scalar_select %p930, %s74, 1
          %s932 = smul.addr %s931, 4
          %s933 = smul.addr %s932, 4
          %s934 = scalar_lea.vmem %s15, %s933
        $region48: #{lgesql_forward.1} parent=43 // pred_fallthru
          _
        // Predicated region
        $region49: #{lgesql_forward.1} parent=43 // pred_check
          %p935 = pneg %p267
        $region50: #{lgesql_forward.1} parent=43 // pred_check_branch
          %937 = sbr.rel (%p935) target = $region52
        $region51: #{lgesql_forward.1} parent=43 // pred_region
          %p938 = scmp.lt.s32.totalorder %s74, 1
          %s939 = scalar_select %p938, %s74, 1
          %s940 = scalar_lea.vmem %s17, %s939
        $region52: #{lgesql_forward.1} parent=43 // pred_fallthru
          _
        // Predicated region
        $region53: #{lgesql_forward.1} parent=43 // pred_check
          %p941 = pneg %p293
        $region54: #{lgesql_forward.1} parent=43 // pred_check_branch
          %943 = sbr.rel (%p941) target = $region56
        $region55: #{lgesql_forward.1} parent=43 // pred_region
          %p944 = scmp.lt.s32.totalorder %s74, 1
          %s945 = scalar_select %p944, %s74, 1
          %s946 = smul.addr %s945, 4
          %s947 = smul.addr %s946, 4
          %s948 = scalar_lea.vmem %s19, %s947
        $region56: #{lgesql_forward.1} parent=43 // pred_fallthru
          _
        // Predicated region
        $region57: #{lgesql_forward.1} parent=43 // pred_check
          %p949 = pneg %p319
        $region58: #{lgesql_forward.1} parent=43 // pred_check_branch
          %951 = sbr.rel (%p949) target = $region60
        $region59: #{lgesql_forward.1} parent=43 // pred_region
          %p952 = scmp.lt.s32.totalorder %s74, 1
          %s953 = scalar_select %p952, %s74, 1
          %s954 = scalar_lea.vmem %s21, %s953
        $region60: #{lgesql_forward.1} parent=43 // pred_fallthru
          _
        // Predicated region
        $region61: #{lgesql_forward.1} parent=43 // pred_check
          %p955 = pneg %p345
        $region62: #{lgesql_forward.1} parent=43 // pred_check_branch
          %957 = sbr.rel (%p955) target = $region64
        $region63: #{lgesql_forward.1} parent=43 // pred_region
          %p958 = scmp.lt.s32.totalorder %s74, 1
          %s959 = scalar_select %p958, %s74, 1
          %s960 = scalar_lea.vmem %s23, %s959
        $region64: #{lgesql_forward.1} parent=43 // pred_fallthru
          _
        // Predicated region
        $region65: #{lgesql_forward.1} parent=43 // pred_check
          %p961 = pneg %p371
        $region66: #{lgesql_forward.1} parent=43 // pred_check_branch
          %963 = sbr.rel (%p961) target = $region68
        $region67: #{lgesql_forward.1} parent=43 // pred_region
          %p964 = scmp.lt.s32.totalorder %s74, 1
          %s965 = scalar_select %p964, %s74, 1
          %s966 = scalar_lea.vmem %s25, %s965
        $region68: #{lgesql_forward.1} parent=43 // pred_fallthru
          _
        // Predicated region
        $region69: #{lgesql_forward.1} parent=43 // pred_check
          %p967 = pneg %p397
        $region70: #{lgesql_forward.1} parent=43 // pred_check_branch
          %969 = sbr.rel (%p967) target = $region72
        $region71: #{lgesql_forward.1} parent=43 // pred_region
          %p970 = scmp.lt.s32.totalorder %s74, 1
          %s971 = scalar_select %p970, %s74, 1
          %s972 = smul.addr %s971, 4
          %s973 = smul.addr %s972, 4
          %s974 = scalar_lea.vmem %s27, %s973
        $region72: #{lgesql_forward.1} parent=43 // pred_fallthru
          _
        // Predicated region
        $region73: #{lgesql_forward.1} parent=43 // pred_check
          %p975 = pneg %p423
        $region74: #{lgesql_forward.1} parent=43 // pred_check_branch
          %977 = sbr.rel (%p975) target = $region76
        $region75: #{lgesql_forward.1} parent=43 // pred_region
          %p978 = scmp.lt.s32.totalorder %s74, 1
          %s979 = scalar_select %p978, %s74, 1
          %s980 = scalar_lea.vmem %s29, %s979
        $region76: #{lgesql_forward.1} parent=43 // pred_fallthru
          _
        // Predicated region
        $region77: #{lgesql_forward.1} parent=43 // pred_check
          %p981 = pneg %p449
        $region78: #{lgesql_forward.1} parent=43 // pred_check_branch
          %983 = sbr.rel (%p981) target = $region80
        $region79: #{lgesql_forward.1} parent=43 // pred_region
          %p984 = scmp.lt.s32.totalorder %s74, 1
          %s985 = scalar_select %p984, %s74, 1
          %s986 = smul.addr %s985, 16
          %s987 = smul.addr %s986, 4
          %s988 = scalar_lea.vmem %s31, %s987
        $region80: #{lgesql_forward.1} parent=43 // pred_fallthru
          _
        // Predicated region
        $region81: #{lgesql_forward.1} parent=43 // pred_check
          %p989 = pneg %p475
        $region82: #{lgesql_forward.1} parent=43 // pred_check_branch
          %991 = sbr.rel (%p989) target = $region84
        $region83: #{lgesql_forward.1} parent=43 // pred_region
          %p992 = scmp.lt.s32.totalorder %s74, 1
          %s993 = scalar_select %p992, %s74, 1
          %s994 = scalar_lea.vmem %s33, %s993
        $region84: #{lgesql_forward.1} parent=43 // pred_fallthru
          _
        // Predicated region
        $region85: #{lgesql_forward.1} parent=43 // pred_check
          %p995 = pneg %p501
        $region86: #{lgesql_forward.1} parent=43 // pred_check_branch
          %997 = sbr.rel (%p995) target = $region88
        $region87: #{lgesql_forward.1} parent=43 // pred_region
          %p998 = scmp.lt.s32.totalorder %s74, 1
          %s999 = scalar_select %p998, %s74, 1
          %s1000 = scalar_lea.vmem %s35, %s999
        $region88: #{lgesql_forward.1} parent=43 // pred_fallthru
          _
        // Predicated region
        $region89: #{lgesql_forward.1} parent=43 // pred_check
          %p1001 = pneg %p527
        $region90: #{lgesql_forward.1} parent=43 // pred_check_branch
          %1003 = sbr.rel (%p1001) target = $region92
        $region91: #{lgesql_forward.1} parent=43 // pred_region
          %p1004 = scmp.lt.s32.totalorder %s74, 1
          %s1005 = scalar_select %p1004, %s74, 1
          %s1006 = scalar_lea.vmem %s37, %s1005
        $region92: #{lgesql_forward.1} parent=43 // pred_fallthru
          _
        // Predicated region
        $region93: #{lgesql_forward.1} parent=43 // pred_check
          %p1007 = pneg %p553
        $region94: #{lgesql_forward.1} parent=43 // pred_check_branch
          %1009 = sbr.rel (%p1007) target = $region96
        $region95: #{lgesql_forward.1} parent=43 // pred_region
          %p1010 = scmp.lt.s32.totalorder %s74, 1
          %s1011 = scalar_select %p1010, %s74, 1
          %s1012 = smul.addr %s1011, 4
          %s1013 = smul.addr %s1012, 4
          %s1014 = scalar_lea.vmem %s39, %s1013
        $region96: #{lgesql_forward.1} parent=43 // pred_fallthru
          _
        // Predicated region
        $region97: #{lgesql_forward.1} parent=43 // pred_check
          %p1015 = pneg %p579
        $region98: #{lgesql_forward.1} parent=43 // pred_check_branch
          %1017 = sbr.rel (%p1015) target = $region100
        $region99: #{lgesql_forward.1} parent=43 // pred_region
          %p1018 = scmp.lt.s32.totalorder %s74, 1
          %s1019 = scalar_select %p1018, %s74, 1
          %s1020 = scalar_lea.vmem %s41, %s1019
        $region100: #{lgesql_forward.1} parent=43 // pred_fallthru
          _
        // Predicated region
        $region101: #{lgesql_forward.1} parent=43 // pred_check
          %p1021 = pneg %p605
        $region102: #{lgesql_forward.1} parent=43 // pred_check_branch
          %1023 = sbr.rel (%p1021) target = $region104
        $region103: #{lgesql_forward.1} parent=43 // pred_region
          %p1024 = scmp.lt.s32.totalorder %s74, 1
          %s1025 = scalar_select %p1024, %s74, 1
          %s1026 = smul.addr %s1025, 4
          %s1027 = smul.addr %s1026, 4
          %s1028 = scalar_lea.vmem %s43, %s1027
        $region104: #{lgesql_forward.1} parent=43 // pred_fallthru
          _
        // Predicated region
        $region105: #{lgesql_forward.1} parent=43 // pred_check
          %p1029 = pneg %p631
        $region106: #{lgesql_forward.1} parent=43 // pred_check_branch
          %1031 = sbr.rel (%p1029) target = $region108
        $region107: #{lgesql_forward.1} parent=43 // pred_region
          %p1032 = scmp.lt.s32.totalorder %s74, 1
          %s1033 = scalar_select %p1032, %s74, 1
          %s1034 = scalar_lea.vmem %s45, %s1033
        $region108: #{lgesql_forward.1} parent=43 // pred_fallthru
          _
        // Predicated region
        $region109: #{lgesql_forward.1} parent=43 // pred_check
          %p1035 = pneg %p657
        $region110: #{lgesql_forward.1} parent=43 // pred_check_branch
          %1037 = sbr.rel (%p1035) target = $region112
        $region111: #{lgesql_forward.1} parent=43 // pred_region
          %p1038 = scmp.lt.s32.totalorder %s74, 1
          %s1039 = scalar_select %p1038, %s74, 1
          %s1040 = scalar_lea.vmem %s47, %s1039
        $region112: #{lgesql_forward.1} parent=43 // pred_fallthru
          _
        // Predicated region
        $region113: #{lgesql_forward.1} parent=43 // pred_check
          %p1041 = pneg %p683
        $region114: #{lgesql_forward.1} parent=43 // pred_check_branch
          %1043 = sbr.rel (%p1041) target = $region116
        $region115: #{lgesql_forward.1} parent=43 // pred_region
          %p1044 = scmp.lt.s32.totalorder %s74, 1
          %s1045 = scalar_select %p1044, %s74, 1
          %s1046 = scalar_lea.vmem %s49, %s1045
        $region116: #{lgesql_forward.1} parent=43 // pred_fallthru
          _
        // Predicated region
        $region117: #{lgesql_forward.1} parent=43 // pred_check
          %p1047 = pneg %p709
        $region118: #{lgesql_forward.1} parent=43 // pred_check_branch
          %1049 = sbr.rel (%p1047) target = $region120
        $region119: #{lgesql_forward.1} parent=43 // pred_region
          %p1050 = scmp.lt.s32.totalorder %s74, 1
          %s1051 = scalar_select %p1050, %s74, 1
          %s1052 = smul.addr %s1051, 4
          %s1053 = smul.addr %s1052, 4
          %s1054 = scalar_lea.vmem %s51, %s1053
        $region120: #{lgesql_forward.1} parent=43 // pred_fallthru
          _
        // Predicated region
        $region121: #{lgesql_forward.1} parent=43 // pred_check
          %p1055 = pneg %p735
        $region122: #{lgesql_forward.1} parent=43 // pred_check_branch
          %1057 = sbr.rel (%p1055) target = $region124
        $region123: #{lgesql_forward.1} parent=43 // pred_region
          %p1058 = scmp.lt.s32.totalorder %s74, 1
          %s1059 = scalar_select %p1058, %s74, 1
          %s1060 = scalar_lea.vmem %s53, %s1059
        $region124: #{lgesql_forward.1} parent=43 // pred_fallthru
          _
        // Predicated region
        $region125: #{lgesql_forward.1} parent=43 // pred_check
          %p1061 = pneg %p761
        $region126: #{lgesql_forward.1} parent=43 // pred_check_branch
          %1063 = sbr.rel (%p1061) target = $region128
        $region127: #{lgesql_forward.1} parent=43 // pred_region
          %p1064 = scmp.lt.s32.totalorder %s74, 1
          %s1065 = scalar_select %p1064, %s74, 1
          %s1066 = smul.addr %s1065, 16
          %s1067 = smul.addr %s1066, 4
          %s1068 = scalar_lea.vmem %s55, %s1067
        $region128: #{lgesql_forward.1} parent=43 // pred_fallthru
          _
        // Predicated region
        $region129: #{lgesql_forward.1} parent=43 // pred_check
          %p1069 = pneg %p787
        $region130: #{lgesql_forward.1} parent=43 // pred_check_branch
          %1071 = sbr.rel (%p1069) target = $region132
        $region131: #{lgesql_forward.1} parent=43 // pred_region
          %p1072 = scmp.lt.s32.totalorder %s74, 1
          %s1073 = scalar_select %p1072, %s74, 1
          %s1074 = scalar_lea.vmem %s57, %s1073
        $region132: #{lgesql_forward.1} parent=43 // pred_fallthru
          _
        // Predicated region
        $region133: #{lgesql_forward.1} parent=43 // pred_check
          %p1075 = pneg %p813
        $region134: #{lgesql_forward.1} parent=43 // pred_check_branch
          %1077 = sbr.rel (%p1075) target = $region136
        $region135: #{lgesql_forward.1} parent=43 // pred_region
          %p1078 = scmp.lt.s32.totalorder %s74, 1
          %s1079 = scalar_select %p1078, %s74, 1
          %s1080 = scalar_lea.vmem %s59, %s1079
        $region136: #{lgesql_forward.1} parent=43 // pred_fallthru
          _
        // Predicated region
        $region137: #{lgesql_forward.1} parent=43 // pred_check
          %p1081 = pneg %p839
        $region138: #{lgesql_forward.1} parent=43 // pred_check_branch
          %1083 = sbr.rel (%p1081) target = $region140
        $region139: #{lgesql_forward.1} parent=43 // pred_region
          %p1084 = scmp.lt.s32.totalorder %s74, 1
          %s1085 = scalar_select %p1084, %s74, 1
          %s1086 = scalar_lea.vmem %s61, %s1085
        $region140: #{lgesql_forward.1} parent=43 // pred_fallthru
          _
      $region44: #{lgesql_forward.1} parent=5 // pred_fallthru
        _
      %p1087 = scmp.le.s32.totalorder 1, %s74
      %p1088 = scmp.lt.s32.totalorder %s74, 3
      %p1089 = pnand %p1087, %p1088
      %p1090 = pneg %p1089
      // Predicated region
      $region141: #{lgesql_forward.1} parent=5 // pred_check
        _
      $region142: #{lgesql_forward.1} parent=5 // pred_check_branch
        %1092 = sbr.rel (%p1089) target = $region144
      $region143: #{lgesql_forward.1} parent=5 // pred_region
        %s1093 = ssub.s32 %s74, 1
        %p1094 = pneg %p95
        %p1095 = pneg %p92
        %p1096 = pneg %p116
        %p1097 = pneg %p113
        %p1098 = pneg %p137
        %p1099 = pneg %p134
        %p1100 = pneg %p158
        %p1101 = pneg %p155
        %p1102 = pneg %p179
        %p1103 = pneg %p176
        %p1104 = pneg %p200
        %p1105 = pneg %p197
        %p1106 = pneg %p221
        %p1107 = pneg %p218
        %p1108 = scmp.lt.s32.totalorder %s79, 1
        %s1109 = scalar_select %p1108, %s79, 1
        %s1110 = smul.addr %s1109, 4
        %s1111 = smul.addr %s1110, 4
        %s1112 = scalar_lea.vmem %s15, %s1111
        %p1113 = pneg %p247
        %p1114 = pneg %p244
        %p1115 = scmp.lt.s32.totalorder %s79, 1
        %s1116 = scalar_select %p1115, %s79, 1
        %s1117 = scalar_lea.vmem %s17, %s1116
        %p1118 = pneg %p273
        %p1119 = pneg %p270
        %p1120 = scmp.lt.s32.totalorder %s79, 1
        %s1121 = scalar_select %p1120, %s79, 1
        %s1122 = smul.addr %s1121, 4
        %s1123 = smul.addr %s1122, 4
        %s1124 = scalar_lea.vmem %s19, %s1123
        %p1125 = pneg %p299
        %p1126 = pneg %p296
        %p1127 = scmp.lt.s32.totalorder %s79, 1
        %s1128 = scalar_select %p1127, %s79, 1
        %s1129 = scalar_lea.vmem %s21, %s1128
        %p1130 = pneg %p325
        %p1131 = pneg %p322
        %p1132 = scmp.lt.s32.totalorder %s79, 1
        %s1133 = scalar_select %p1132, %s79, 1
        %s1134 = scalar_lea.vmem %s23, %s1133
        %p1135 = pneg %p351
        %p1136 = pneg %p348
        %p1137 = scmp.lt.s32.totalorder %s79, 1
        %s1138 = scalar_select %p1137, %s79, 1
        %s1139 = scalar_lea.vmem %s25, %s1138
        %p1140 = pneg %p377
        %p1141 = pneg %p374
        %p1142 = scmp.lt.s32.totalorder %s79, 1
        %s1143 = scalar_select %p1142, %s79, 1
        %s1144 = smul.addr %s1143, 4
        %s1145 = smul.addr %s1144, 4
        %s1146 = scalar_lea.vmem %s27, %s1145
        %p1147 = pneg %p403
        %p1148 = pneg %p400
        %p1149 = scmp.lt.s32.totalorder %s79, 1
        %s1150 = scalar_select %p1149, %s79, 1
        %s1151 = scalar_lea.vmem %s29, %s1150
        %p1152 = pneg %p429
        %p1153 = pneg %p426
        %p1154 = scmp.lt.s32.totalorder %s79, 1
        %s1155 = scalar_select %p1154, %s79, 1
        %s1156 = smul.addr %s1155, 16
        %s1157 = smul.addr %s1156, 4
        %s1158 = scalar_lea.vmem %s31, %s1157
        %p1159 = pneg %p455
        %p1160 = pneg %p452
        %p1161 = scmp.lt.s32.totalorder %s79, 1
        %s1162 = scalar_select %p1161, %s79, 1
        %s1163 = scalar_lea.vmem %s33, %s1162
        %p1164 = pneg %p481
        %p1165 = pneg %p478
        %p1166 = scmp.lt.s32.totalorder %s79, 1
        %s1167 = scalar_select %p1166, %s79, 1
        %s1168 = scalar_lea.vmem %s35, %s1167
        %p1169 = pneg %p507
        %p1170 = pneg %p504
        %p1171 = scmp.lt.s32.totalorder %s79, 1
        %s1172 = scalar_select %p1171, %s79, 1
        %s1173 = scalar_lea.vmem %s37, %s1172
        %p1174 = pneg %p533
        %p1175 = pneg %p530
        %p1176 = scmp.lt.s32.totalorder %s79, 1
        %s1177 = scalar_select %p1176, %s79, 1
        %s1178 = smul.addr %s1177, 4
        %s1179 = smul.addr %s1178, 4
        %s1180 = scalar_lea.vmem %s39, %s1179
        %p1181 = pneg %p559
        %p1182 = pneg %p556
        %p1183 = scmp.lt.s32.totalorder %s79, 1
        %s1184 = scalar_select %p1183, %s79, 1
        %s1185 = scalar_lea.vmem %s41, %s1184
        %p1186 = pneg %p585
        %p1187 = pneg %p582
        %p1188 = scmp.lt.s32.totalorder %s79, 1
        %s1189 = scalar_select %p1188, %s79, 1
        %s1190 = smul.addr %s1189, 4
        %s1191 = smul.addr %s1190, 4
        %s1192 = scalar_lea.vmem %s43, %s1191
        %p1193 = pneg %p611
        %p1194 = pneg %p608
        %p1195 = scmp.lt.s32.totalorder %s79, 1
        %s1196 = scalar_select %p1195, %s79, 1
        %s1197 = scalar_lea.vmem %s45, %s1196
        %p1198 = pneg %p637
        %p1199 = pneg %p634
        %p1200 = scmp.lt.s32.totalorder %s79, 1
        %s1201 = scalar_select %p1200, %s79, 1
        %s1202 = scalar_lea.vmem %s47, %s1201
        %p1203 = pneg %p663
        %p1204 = pneg %p660
        %p1205 = scmp.lt.s32.totalorder %s79, 1
        %s1206 = scalar_select %p1205, %s79, 1
        %s1207 = scalar_lea.vmem %s49, %s1206
        %p1208 = pneg %p689
        %p1209 = pneg %p686
        %p1210 = scmp.lt.s32.totalorder %s79, 1
        %s1211 = scalar_select %p1210, %s79, 1
        %s1212 = smul.addr %s1211, 4
        %s1213 = smul.addr %s1212, 4
        %s1214 = scalar_lea.vmem %s51, %s1213
        %p1215 = pneg %p715
        %p1216 = pneg %p712
        %p1217 = scmp.lt.s32.totalorder %s79, 1
        %s1218 = scalar_select %p1217, %s79, 1
        %s1219 = scalar_lea.vmem %s53, %s1218
        %p1220 = pneg %p741
        %p1221 = pneg %p738
        %p1222 = scmp.lt.s32.totalorder %s79, 1
        %s1223 = scalar_select %p1222, %s79, 1
        %s1224 = smul.addr %s1223, 16
        %s1225 = smul.addr %s1224, 4
        %s1226 = scalar_lea.vmem %s55, %s1225
        %p1227 = pneg %p767
        %p1228 = pneg %p764
        %p1229 = scmp.lt.s32.totalorder %s79, 1
        %s1230 = scalar_select %p1229, %s79, 1
        %s1231 = scalar_lea.vmem %s57, %s1230
        %p1232 = pneg %p793
        %p1233 = pneg %p790
        %p1234 = scmp.lt.s32.totalorder %s79, 1
        %s1235 = scalar_select %p1234, %s79, 1
        %s1236 = scalar_lea.vmem %s59, %s1235
        %p1237 = pneg %p819
        %p1238 = pneg %p816
        %p1239 = scmp.lt.s32.totalorder %s79, 1
        %s1240 = scalar_select %p1239, %s79, 1
        %s1241 = scalar_lea.vmem %s61, %s1240
        %p1242 = pneg %p845
        %p1243 = pneg %p842
        %p1244 = pneg %p866
        %p1245 = pneg %p863
        %p1246 = pneg %p887
        %p1247 = pneg %p884
        %p1248 = scmp.lt.s32.totalorder %s79, 1
        %s1249 = scalar_select %p1248, %s79, 1
        %s1250 = smul.addr %s1249, 4
        %s1251 = smul.addr %s1250, 4
        %s1252 = scalar_lea.vmem %s15, %s1251
        %p1253 = scmp.lt.s32.totalorder %s79, 1
        %s1254 = scalar_select %p1253, %s79, 1
        %s1255 = scalar_lea.vmem %s17, %s1254
        %p1256 = scmp.lt.s32.totalorder %s79, 1
        %s1257 = scalar_select %p1256, %s79, 1
        %s1258 = smul.addr %s1257, 4
        %s1259 = smul.addr %s1258, 4
        %s1260 = scalar_lea.vmem %s19, %s1259
        %p1261 = scmp.lt.s32.totalorder %s79, 1
        %s1262 = scalar_select %p1261, %s79, 1
        %s1263 = scalar_lea.vmem %s21, %s1262
        %p1264 = scmp.lt.s32.totalorder %s79, 1
        %s1265 = scalar_select %p1264, %s79, 1
        %s1266 = scalar_lea.vmem %s23, %s1265
        %p1267 = scmp.lt.s32.totalorder %s79, 1
        %s1268 = scalar_select %p1267, %s79, 1
        %s1269 = scalar_lea.vmem %s25, %s1268
        %p1270 = scmp.lt.s32.totalorder %s79, 1
        %s1271 = scalar_select %p1270, %s79, 1
        %s1272 = smul.addr %s1271, 4
        %s1273 = smul.addr %s1272, 4
        %s1274 = scalar_lea.vmem %s27, %s1273
        %p1275 = scmp.lt.s32.totalorder %s79, 1
        %s1276 = scalar_select %p1275, %s79, 1
        %s1277 = scalar_lea.vmem %s29, %s1276
        %p1278 = scmp.lt.s32.totalorder %s79, 1
        %s1279 = scalar_select %p1278, %s79, 1
        %s1280 = smul.addr %s1279, 16
        %s1281 = smul.addr %s1280, 4
        %s1282 = scalar_lea.vmem %s31, %s1281
        %p1283 = scmp.lt.s32.totalorder %s79, 1
        %s1284 = scalar_select %p1283, %s79, 1
        %s1285 = scalar_lea.vmem %s33, %s1284
        %p1286 = scmp.lt.s32.totalorder %s79, 1
        %s1287 = scalar_select %p1286, %s79, 1
        %s1288 = scalar_lea.vmem %s35, %s1287
        %p1289 = scmp.lt.s32.totalorder %s79, 1
        %s1290 = scalar_select %p1289, %s79, 1
        %s1291 = scalar_lea.vmem %s37, %s1290
        %p1292 = scmp.lt.s32.totalorder %s79, 1
        %s1293 = scalar_select %p1292, %s79, 1
        %s1294 = smul.addr %s1293, 4
        %s1295 = smul.addr %s1294, 4
        %s1296 = scalar_lea.vmem %s39, %s1295
        %p1297 = scmp.lt.s32.totalorder %s79, 1
        %s1298 = scalar_select %p1297, %s79, 1
        %s1299 = scalar_lea.vmem %s41, %s1298
        %p1300 = scmp.lt.s32.totalorder %s79, 1
        %s1301 = scalar_select %p1300, %s79, 1
        %s1302 = smul.addr %s1301, 4
        %s1303 = smul.addr %s1302, 4
        %s1304 = scalar_lea.vmem %s43, %s1303
        %p1305 = scmp.lt.s32.totalorder %s79, 1
        %s1306 = scalar_select %p1305, %s79, 1
        %s1307 = scalar_lea.vmem %s45, %s1306
        %p1308 = scmp.lt.s32.totalorder %s79, 1
        %s1309 = scalar_select %p1308, %s79, 1
        %s1310 = scalar_lea.vmem %s47, %s1309
        %p1311 = scmp.lt.s32.totalorder %s79, 1
        %s1312 = scalar_select %p1311, %s79, 1
        %s1313 = scalar_lea.vmem %s49, %s1312
        %p1314 = scmp.lt.s32.totalorder %s79, 1
        %s1315 = scalar_select %p1314, %s79, 1
        %s1316 = smul.addr %s1315, 4
        %s1317 = smul.addr %s1316, 4
        %s1318 = scalar_lea.vmem %s51, %s1317
        %p1319 = scmp.lt.s32.totalorder %s79, 1
        %s1320 = scalar_select %p1319, %s79, 1
        %s1321 = scalar_lea.vmem %s53, %s1320
        %p1322 = scmp.lt.s32.totalorder %s79, 1
        %s1323 = scalar_select %p1322, %s79, 1
        %s1324 = smul.addr %s1323, 16
        %s1325 = smul.addr %s1324, 4
        %s1326 = scalar_lea.vmem %s55, %s1325
        %p1327 = scmp.lt.s32.totalorder %s79, 1
        %s1328 = scalar_select %p1327, %s79, 1
        %s1329 = scalar_lea.vmem %s57, %s1328
        %p1330 = scmp.lt.s32.totalorder %s79, 1
        %s1331 = scalar_select %p1330, %s79, 1
        %s1332 = scalar_lea.vmem %s59, %s1331
        %p1333 = scmp.lt.s32.totalorder %s79, 1
        %s1334 = scalar_select %p1333, %s79, 1
        %s1335 = scalar_lea.vmem %s61, %s1334
        %p1337 = scmp.eq.s32.totalorder %s79, 0
        // Predicated region
        $region145: #{lgesql_forward.1} parent=143 // pred_check
          %p1338 = pneg %p1337
        $region146: #{lgesql_forward.1} parent=143 // pred_check_branch
          %1340 = sbr.rel (%p1338) target = $region148
        $region147: #{lgesql_forward.1} parent=143 // pred_region
          %v1341 = vld [vmem:[%s1] sm:$0xff]
          %v1342 = vld [vmem:[%s1 + $0x8] sm:$0xff]
          %vm1343 = vcmask 261120
          %1344 = vst.msk [vmem:[#allocation2] sm:$0xff] %vm1343, %v1341
          %1345 = vst.msk [vmem:[#allocation2 + $0x8] sm:$0xff] %vm1343, %v1342
          %v1346 = vld [vmem:[%s3] sm:$0xff]
          %v1347 = vld [vmem:[%s3 + $0x8] sm:$0xff]
          %v1348 = vld [vmem:[%s3 + $0x10] sm:$0xff]
          %v1349 = vld [vmem:[%s3 + $0x18] sm:$0xff]
          %v1350 = vld [vmem:[%s3 + $0x20] sm:$0xff]
          %v1351 = vld [vmem:[%s3 + $0x28] sm:$0xff]
          %v1352 = vld [vmem:[%s3 + $0x30] sm:$0xff]
          %v1353 = vld [vmem:[%s3 + $0x38] sm:$0xff]
          %1354 = vst.msk [vmem:[#allocation3] sm:$0xff] %vm1343, %v1346
          %1355 = vst.msk [vmem:[#allocation3 + $0x8] sm:$0xff] %vm1343, %v1347
          %1356 = vst.msk [vmem:[#allocation3 + $0x10] sm:$0xff] %vm1343, %v1348
          %1357 = vst.msk [vmem:[#allocation3 + $0x18] sm:$0xff] %vm1343, %v1349
          %1358 = vst.msk [vmem:[#allocation3 + $0x20] sm:$0xff] %vm1343, %v1350
          %1359 = vst.msk [vmem:[#allocation3 + $0x28] sm:$0xff] %vm1343, %v1351
          %1360 = vst.msk [vmem:[#allocation3 + $0x30] sm:$0xff] %vm1343, %v1352
          %1361 = vst.msk [vmem:[#allocation3 + $0x38] sm:$0xff] %vm1343, %v1353
        $region148: #{lgesql_forward.1} parent=143 // pred_fallthru
          _
        %v1362 = vld [vmem:[#allocation2] sm:$0xff]
        %v1363 = vld [vmem:[#allocation2 + $0x8] sm:$0xff]
        %v1364 = vld [vmem:[#allocation3] sm:$0xff]
        %v1365 = vld [vmem:[#allocation3 + $0x8] sm:$0xff]
        %v1366 = vld [vmem:[#allocation3 + $0x10] sm:$0xff]
        %v1367 = vld [vmem:[#allocation3 + $0x18] sm:$0xff]
        %v1368 = vld [vmem:[#allocation3 + $0x20] sm:$0xff]
        %v1369 = vld [vmem:[#allocation3 + $0x28] sm:$0xff]
        %v1370 = vld [vmem:[#allocation3 + $0x30] sm:$0xff]
        %v1371 = vld [vmem:[#allocation3 + $0x38] sm:$0xff]
        %v1372 = vld [vmem:[%s5] sm:$0xf]
        %v1373 = vld [vmem:[%s5 + $0x4] sm:$0xf]
        %v1374 = vunpack.c.l.bf16 %v1372
        %v1375 = vunpack.c.l.bf16 %v1373
        %v1376 = vld [vmem:[%s7] sm:$0xf]
        %v1377 = vld [vmem:[%s7 + $0x4] sm:$0xf]
        %v1378 = vld [vmem:[%s7 + $0x8] sm:$0xf]
        %v1379 = vld [vmem:[%s7 + $0xc] sm:$0xf]
        %v1380 = vld [vmem:[%s7 + $0x10] sm:$0xf]
        %v1381 = vld [vmem:[%s7 + $0x14] sm:$0xf]
        %v1382 = vld [vmem:[%s7 + $0x18] sm:$0xf]
        %v1383 = vld [vmem:[%s7 + $0x1c] sm:$0xf]
        %v1384 = vunpack.c.l.bf16 %v1376
        %v1385 = vunpack.c.l.bf16 %v1377
        %v1386 = vunpack.c.l.bf16 %v1378
        %v1387 = vunpack.c.l.bf16 %v1379
        %v1388 = vunpack.c.l.bf16 %v1380
        %v1389 = vunpack.c.l.bf16 %v1381
        %v1390 = vunpack.c.l.bf16 %v1382
        %v1391 = vunpack.c.l.bf16 %v1383
        %v1392 = vld [vmem:[%s9] sm:$0xf]
        %v1393 = vld [vmem:[%s9 + $0x4] sm:$0xf]
        %v1394 = vld [vmem:[%s9 + $0x8] sm:$0xf]
        %v1395 = vld [vmem:[%s9 + $0xc] sm:$0xf]
        %v1396 = vld [vmem:[%s9 + $0x10] sm:$0xf]
        %v1397 = vld [vmem:[%s9 + $0x14] sm:$0xf]
        %v1398 = vld [vmem:[%s9 + $0x18] sm:$0xf]
        %v1399 = vld [vmem:[%s9 + $0x1c] sm:$0xf]
        %v1400 = vld [vmem:[%s11] sm:$0xf]
        %v1401 = vld [vmem:[%s11 + $0x4] sm:$0xf]
        %v1402 = vld [vmem:[%s11 + $0x8] sm:$0xf]
        %v1403 = vld [vmem:[%s11 + $0xc] sm:$0xf]
        %v1404 = vld [vmem:[%s11 + $0x10] sm:$0xf]
        %v1405 = vld [vmem:[%s11 + $0x14] sm:$0xf]
        %v1406 = vld [vmem:[%s11 + $0x18] sm:$0xf]
        %v1407 = vld [vmem:[%s11 + $0x1c] sm:$0xf]
        %v1408 = vld [vmem:[%s13] sm:$0xf]
        %v1409 = vld [vmem:[%s13 + $0x4] sm:$0xf]
        %v1410 = vunpack.c.l.bf16 %v1392
        %v1411 = vunpack.c.l.bf16 %v1393
        %v1412 = vunpack.c.l.bf16 %v1394
        %v1413 = vunpack.c.l.bf16 %v1395
        %v1414 = vunpack.c.l.bf16 %v1396
        %v1415 = vunpack.c.l.bf16 %v1397
        %v1416 = vunpack.c.l.bf16 %v1398
        %v1417 = vunpack.c.l.bf16 %v1399
        %v1418 = vpack.c.bf16 %v1363, %v1362
        %v1419 = vpack.c.bf16 %v1365, %v1364
        %v1420 = vpack.c.bf16 %v1367, %v1366
        %v1421 = vpack.c.bf16 %v1369, %v1368
        %v1422 = vpack.c.bf16 %v1371, %v1370
        %v1423 = vld [vmem:[%s1252] sm:$0xf]
        %v1424 = vld [vmem:[%s1252 + $0x4] sm:$0xf]
        %v1425 = vld [vmem:[%s1252 + $0x8] sm:$0xf]
        %v1426 = vld [vmem:[%s1252 + $0xc] sm:$0xf]
        %v1427 = vld [vmem:[%s1255] sm:$0x1]
        %v1429 = vlaneseq
        %v1430 = vshrl.u32 %v1429, 7
        %v1431 = vsub.s32 0, %v1430
        %v1432 = vrot.slane %v1427, %v1431
        %v1438 = vunpack.c.l.b16 %v1423
        %v1439 = vunpack.c.l.b16 %v1424
        %v1440 = vunpack.c.l.b16 %v1425
        %v1441 = vunpack.c.l.b16 %v1426
        %v1442 = vpack.c.b16 %v1439, %v1438
        %v1443 = vpack.c.b16 %v1441, %v1440
        %vm1446 = vcmask 261120
        %v1448 = vsel %vm1446, %v1418, 0
        %1450 = vmatprep.subr.bf16.mxu0 0
        %1451 = vmatpush1.bf16.msra.mxu0 0
        %1452 = vmatprep.subr.bf16.mxu0 0
        %1453 = vmatpush1.bf16.msra.mxu0 0
        %1454 = vmatprep.subr.bf16.mxu0 0
        %1455 = vmatpush1.bf16.msra.mxu0 0
        %1456 = vmatprep.subr.bf16.mxu0 0
        %1457 = vmatpush1.bf16.msra.mxu0 0
        %1458 = vmatprep.subr.bf16.mxu0 0
        %1459 = vmatpush1.bf16.msra.mxu0 0
        %1460 = vmatprep.subr.bf16.mxu0 0
        %1461 = vmatpush1.bf16.msra.mxu0 0
        %1462 = vmatprep.subr.bf16.mxu0 0
        %1463 = vmatpush1.bf16.msra.mxu0 %v1443
        %1464 = vmatprep.subr.bf16.mxu0 0
        %1465 = vmatpush1.bf16.msra.mxu0 %v1442
        %1466 = vmatprep.subr.bf16.mxu0 0
        %1467 = vmatpush2.bf16.msra.mxu0 0
        %1468 = vmatprep.subr.bf16.mxu0 0
        %1469 = vmatpush2.bf16.msra.mxu0 0
        %1470 = vmatprep.subr.bf16.mxu0 0
        %1471 = vmatpush2.bf16.msra.mxu0 0
        %1472 = vmatprep.subr.bf16.mxu0 0
        %1473 = vmatpush2.bf16.msra.mxu0 0
        %1474 = vmatprep.subr.bf16.mxu0 0
        %1475 = vmatpush2.bf16.msra.mxu0 0
        %1476 = vmatprep.subr.bf16.mxu0 0
        %1477 = vmatpush2.bf16.msra.mxu0 0
        %1478 = vmatprep.subr.bf16.mxu0 0
        %1479 = vmatpush2.bf16.msra.mxu0 0
        %1480 = vmatprep.subr.bf16.mxu0 0
        %1481 = vmatpush2.bf16.msra.mxu0 0
        %1482 = vmatprep.mubr.bf16.mxu0 0
        %1483 = vmatmul.mubr.bf16.gmra.mxu0 %v1448
        %v1484 = vpop.f32.mrf.mxu0
        %v1485 = vadd.f32 %v1432, %v1484
        %v1486 = vpop.f32.mrf.mxu0
        %v1487 = vpop.f32.mrf.mxu0
        %v1488 = vadd.f32 %v1432, %v1487
        %v1489 = vpop.f32.mrf.mxu0
        %1490 = vdwg.mxu0
        %v1491 = vmul.f32 %v1485, 0.35355338
        %v1492 = vmul.f32 %v1488, 0.35355338
        %v1493 = vpack.c.bf16 %v1492, %v1491
        %v1502 = vunpack.c.l.b16 %v1400
        %v1503 = vunpack.c.l.b16 %v1401
        %v1504 = vunpack.c.l.b16 %v1402
        %v1505 = vunpack.c.l.b16 %v1403
        %v1506 = vunpack.c.l.b16 %v1404
        %v1507 = vunpack.c.l.b16 %v1405
        %v1508 = vunpack.c.l.b16 %v1406
        %v1509 = vunpack.c.l.b16 %v1407
        %v1510 = vpack.c.b16 %v1503, %v1502
        %v1511 = vpack.c.b16 %v1505, %v1504
        %v1512 = vpack.c.b16 %v1507, %v1506
        %v1513 = vpack.c.b16 %v1509, %v1508
        %vm1514 = vcmask 130048
        %v1516 = vsel %vm1514, %v1510, 0
        %v1519 = vsel %vm1514, %v1511, 0
        %v1522 = vsel %vm1514, %v1512, 0
        %v1525 = vsel %vm1514, %v1513, 0
        %1527 = vmatprep.subr.bf16.mxu0 0
        %1528 = vmatpush1.bf16.msra.mxu0 0
        %1529 = vmatprep.subr.bf16.mxu0 0
        %1530 = vmatpush1.bf16.msra.mxu0 0
        %1531 = vmatprep.subr.bf16.mxu0 0
        %1532 = vmatpush1.bf16.msra.mxu0 0
        %1533 = vmatprep.subr.bf16.mxu0 0
        %1534 = vmatpush1.bf16.msra.mxu0 0
        %1535 = vmatprep.subr.bf16.mxu0 0
        %1536 = vmatpush1.bf16.msra.mxu0 0
        %1537 = vmatprep.subr.bf16.mxu0 0
        %1538 = vmatpush1.bf16.msra.mxu0 0
        %1539 = vmatprep.subr.bf16.mxu0 0
        %1540 = vmatpush1.bf16.msra.mxu0 0
        %1541 = vmatprep.subr.bf16.mxu0 0
        %1542 = vmatpush1.bf16.msra.mxu0 %v1493
        %1543 = vmatprep.subr.bf16.mxu0 0
        %1544 = vmatpush2.bf16.msra.mxu0 0
        %1545 = vmatprep.subr.bf16.mxu0 0
        %1546 = vmatpush2.bf16.msra.mxu0 0
        %1547 = vmatprep.subr.bf16.mxu0 0
        %1548 = vmatpush2.bf16.msra.mxu0 0
        %1549 = vmatprep.subr.bf16.mxu0 0
        %1550 = vmatpush2.bf16.msra.mxu0 0
        %1551 = vmatprep.subr.bf16.mxu0 0
        %1552 = vmatpush2.bf16.msra.mxu0 0
        %1553 = vmatprep.subr.bf16.mxu0 0
        %1554 = vmatpush2.bf16.msra.mxu0 0
        %1555 = vmatprep.subr.bf16.mxu0 0
        %1556 = vmatpush2.bf16.msra.mxu0 0
        %1557 = vmatprep.subr.bf16.mxu0 0
        %1558 = vmatpush2.bf16.msra.mxu0 0
        %1559 = vmatprep.mubr.bf16.mxu0 0
        %1560 = vmatmul.mubr.bf16.gmra.mxu0 %v1516
        %v1561 = vpop.f32.mrf.mxu0
        %v1562 = vadd.f32 0.0, %v1561
        %v1563 = vpop.f32.mrf.mxu0
        %v1564 = vpop.f32.mrf.mxu0
        %v1565 = vadd.f32 0.0, %v1564
        %v1566 = vpop.f32.mrf.mxu0
        %1567 = vmatprep.mubr.bf16.mxu0 0
        %1568 = vmatmul.mubr.bf16.gmra.mxu0 %v1519
        %v1569 = vpop.f32.mrf.mxu0
        %v1570 = vadd.f32 0.0, %v1569
        %v1571 = vpop.f32.mrf.mxu0
        %v1572 = vpop.f32.mrf.mxu0
        %v1573 = vadd.f32 0.0, %v1572
        %v1574 = vpop.f32.mrf.mxu0
        %1575 = vmatprep.mubr.bf16.mxu0 0
        %1576 = vmatmul.mubr.bf16.gmra.mxu0 %v1522
        %v1577 = vpop.f32.mrf.mxu0
        %v1578 = vadd.f32 0.0, %v1577
        %v1579 = vpop.f32.mrf.mxu0
        %v1580 = vpop.f32.mrf.mxu0
        %v1581 = vadd.f32 0.0, %v1580
        %v1582 = vpop.f32.mrf.mxu0
        %1583 = vmatprep.mubr.bf16.mxu0 0
        %1584 = vmatmul.mubr.bf16.gmra.mxu0 %v1525
        %v1585 = vpop.f32.mrf.mxu0
        %v1586 = vadd.f32 0.0, %v1585
        %v1587 = vpop.f32.mrf.mxu0
        %v1588 = vpop.f32.mrf.mxu0
        %v1589 = vadd.f32 0.0, %v1588
        %v1590 = vpop.f32.mrf.mxu0
        %1591 = vdwg.mxu0
        %v1592 = vmul.f32 %v1562, %v1364
        %v1593 = vmul.f32 %v1565, %v1365
        %v1594 = vmul.f32 %v1570, %v1366
        %v1595 = vmul.f32 %v1573, %v1367
        %v1596 = vmul.f32 %v1578, %v1368
        %v1597 = vmul.f32 %v1581, %v1369
        %v1598 = vmul.f32 %v1586, %v1370
        %v1599 = vmul.f32 %v1589, %v1371
        %v1600 = vlaneseq
        %v1601 = vand.u32 %v1600, 127
        %v1602 = vpack.c.bf16 %v1488, %v1485
        %vm1603 = vcmp.ge.s32.totalorder %v1601, 0
        %vm1604 = vcmp.lt.s32.totalorder %v1601, 8
        %vm1605 = vmand %vm1603, %vm1604
        %v1606 = vsel %vm1605, 1.0, 0.0
        %v1607 = vmul.f32 %v1491, %v1606
        %v1608 = vmul.f32 %v1492, %v1606
        %v1609 = vpack.c.bf16 %v1608, %v1607
        %v1610 = vmul.f32 %v1592, %v1606
        %v1611 = vmul.f32 %v1593, %v1606
        %v1612 = vmul.f32 %v1594, %v1606
        %v1613 = vmul.f32 %v1595, %v1606
        %v1614 = vmul.f32 %v1596, %v1606
        %v1615 = vmul.f32 %v1597, %v1606
        %v1616 = vmul.f32 %v1598, %v1606
        %v1617 = vmul.f32 %v1599, %v1606
        %v1618 = vsel %vm1446, %v1610, 0.0
        %1619 = vadd.xlane.f32.xlu0 %v1618
        %v1620 = vpop.xlane.xlu0 %1619
        %v1621 = vsel %vm1446, %v1611, 0.0
        %1622 = vadd.xlane.f32.xlu0 %v1621
        %v1623 = vpop.xlane.xlu0 %1622
        %v1624 = vsel %vm1446, %v1612, 0.0
        %1625 = vadd.xlane.f32.xlu0 %v1624
        %v1626 = vpop.xlane.xlu0 %1625
        %v1627 = vsel %vm1446, %v1613, 0.0
        %1628 = vadd.xlane.f32.xlu0 %v1627
        %v1629 = vpop.xlane.xlu0 %1628
        %v1630 = vsel %vm1446, %v1614, 0.0
        %1631 = vadd.xlane.f32.xlu0 %v1630
        %v1632 = vpop.xlane.xlu0 %1631
        %v1633 = vsel %vm1446, %v1615, 0.0
        %1634 = vadd.xlane.f32.xlu0 %v1633
        %v1635 = vpop.xlane.xlu0 %1634
        %v1636 = vsel %vm1446, %v1616, 0.0
        %1637 = vadd.xlane.f32.xlu0 %v1636
        %v1638 = vpop.xlane.xlu0 %1637
        %v1639 = vsel %vm1446, %v1617, 0.0
        %1640 = vadd.xlane.f32.xlu0 %v1639
        %v1641 = vpop.xlane.xlu0 %1640
        %v1642 = vmul.f32 %v1620, %v1410
        %v1643 = vmul.f32 %v1623, %v1411
        %v1644 = vmul.f32 %v1626, %v1412
        %v1645 = vmul.f32 %v1629, %v1413
        %v1646 = vmul.f32 %v1632, %v1414
        %v1647 = vmul.f32 %v1635, %v1415
        %v1648 = vmul.f32 %v1638, %v1416
        %v1649 = vmul.f32 %v1641, %v1417
        %v1650 = vpack.c.bf16 %v1643, %v1642
        %v1651 = vpack.c.bf16 %v1645, %v1644
        %v1652 = vpack.c.bf16 %v1647, %v1646
        %v1653 = vpack.c.bf16 %v1649, %v1648
        %v1656 = vunpack.c.l.b16 %v1408
        %v1657 = vunpack.c.l.b16 %v1409
        %v1658 = vpack.c.b16 %v1657, %v1656
        %vm1659 = vcmask 523264
        %v1661 = vsel %vm1659, %v1658, 0
        %1663 = vmatprep.subr.bf16.mxu0 0
        %1664 = vmatpush1.bf16.msra.mxu0 0
        %1665 = vmatprep.subr.bf16.mxu0 0
        %1666 = vmatpush1.bf16.msra.mxu0 0
        %1667 = vmatprep.subr.bf16.mxu0 0
        %1668 = vmatpush1.bf16.msra.mxu0 0
        %1669 = vmatprep.subr.bf16.mxu0 0
        %1670 = vmatpush1.bf16.msra.mxu0 0
        %1671 = vmatprep.subr.bf16.mxu0 0
        %1672 = vmatpush1.bf16.msra.mxu0 %v1653
        %1673 = vmatprep.subr.bf16.mxu0 0
        %1674 = vmatpush1.bf16.msra.mxu0 %v1652
        %1675 = vmatprep.subr.bf16.mxu0 0
        %1676 = vmatpush1.bf16.msra.mxu0 %v1651
        %1677 = vmatprep.subr.bf16.mxu0 0
        %1678 = vmatpush1.bf16.msra.mxu0 %v1650
        %1679 = vmatprep.subr.bf16.mxu0 0
        %1680 = vmatpush2.bf16.msra.mxu0 0
        %1681 = vmatprep.subr.bf16.mxu0 0
        %1682 = vmatpush2.bf16.msra.mxu0 0
        %1683 = vmatprep.subr.bf16.mxu0 0
        %1684 = vmatpush2.bf16.msra.mxu0 0
        %1685 = vmatprep.subr.bf16.mxu0 0
        %1686 = vmatpush2.bf16.msra.mxu0 0
        %1687 = vmatprep.subr.bf16.mxu0 0
        %1688 = vmatpush2.bf16.msra.mxu0 0
        %1689 = vmatprep.subr.bf16.mxu0 0
        %1690 = vmatpush2.bf16.msra.mxu0 0
        %1691 = vmatprep.subr.bf16.mxu0 0
        %1692 = vmatpush2.bf16.msra.mxu0 0
        %1693 = vmatprep.subr.bf16.mxu0 0
        %1694 = vmatpush2.bf16.msra.mxu0 0
        %1695 = vmatprep.mubr.bf16.mxu0 0
        %1696 = vmatmul.mubr.bf16.gmra.mxu0 %v1661
        %v1697 = vpop.f32.mrf.mxu0
        %v1698 = vadd.f32 0.0, %v1697
        %v1699 = vpop.f32.mrf.mxu0
        %v1700 = vpop.f32.mrf.mxu0
        %v1701 = vadd.f32 0.0, %v1700
        %v1702 = vpop.f32.mrf.mxu0
        %1703 = vdwg.mxu0
        %1705 = vrot.lane.b32.xlu0 %v1602, 96
        %v1706 = vpop.permute.xlu0 %1705
        %v1708 = vsel %vm1446, %v1609, 0
        %v1711 = vsel %vm1446, %v1706, 0
        %1713 = vmatprep.subr.bf16.mxu0 0
        %1714 = vmatpush1.bf16.xpose.msra.mxu0 0
        %1715 = vmatprep.subr.bf16.mxu0 0
        %1716 = vmatpush1.bf16.xpose.msra.mxu0 0
        %1717 = vmatprep.subr.bf16.mxu0 0
        %1718 = vmatpush1.bf16.xpose.msra.mxu0 0
        %1719 = vmatprep.subr.bf16.mxu0 0
        %1720 = vmatpush1.bf16.xpose.msra.mxu0 0
        %1721 = vmatprep.subr.bf16.mxu0 0
        %1722 = vmatpush1.bf16.xpose.msra.mxu0 0
        %1723 = vmatprep.subr.bf16.mxu0 0
        %1724 = vmatpush1.bf16.xpose.msra.mxu0 0
        %1725 = vmatprep.subr.bf16.mxu0 0
        %1726 = vmatpush1.bf16.xpose.msra.mxu0 0
        %1727 = vmatprep.subr.bf16.mxu0 0
        %1728 = vmatpush1.bf16.xpose.msra.mxu0 %v1711
        %1729 = vmatprep.subr.bf16.mxu0 0
        %1730 = vmatpush2.bf16.xpose.msra.mxu0 0
        %1731 = vmatprep.subr.bf16.mxu0 0
        %1732 = vmatpush2.bf16.xpose.msra.mxu0 0
        %1733 = vmatprep.subr.bf16.mxu0 0
        %1734 = vmatpush2.bf16.xpose.msra.mxu0 0
        %1735 = vmatprep.subr.bf16.mxu0 0
        %1736 = vmatpush2.bf16.xpose.msra.mxu0 0
        %1737 = vmatprep.subr.bf16.mxu0 0
        %1738 = vmatpush2.bf16.xpose.msra.mxu0 0
        %1739 = vmatprep.subr.bf16.mxu0 0
        %1740 = vmatpush2.bf16.xpose.msra.mxu0 0
        %1741 = vmatprep.subr.bf16.mxu0 0
        %1742 = vmatpush2.bf16.xpose.msra.mxu0 0
        %1743 = vmatprep.subr.bf16.mxu0 0
        %1744 = vmatpush2.bf16.xpose.msra.mxu0 0
        %1745 = vmatprep.mubr.bf16.mxu0 0
        %1746 = vmatmul.mubr.bf16.gmra.mxu0 %v1708
        %v1747 = vpop.f32.mrf.mxu0
        %v1748 = vadd.f32 %v1698, %v1747
        %v1749 = vpop.f32.mrf.mxu0
        %v1750 = vpop.f32.mrf.mxu0
        %v1751 = vadd.f32 %v1701, %v1750
        %v1752 = vpop.f32.mrf.mxu0
        %1753 = vdwg.mxu0
        %v1754 = vmax.f32 %v1748, -10.0
        %v1755 = vmax.f32 %v1751, -10.0
        %v1756 = vmin.f32 %v1754, 10.0
        %v1757 = vmin.f32 %v1755, 10.0
        %v1758 = vmul.f32 %v1756, 1.442695
        %v1759 = vpow.pop %v1758
        %v1760 = vmul.f32 %v1757, 1.442695
        %v1761 = vpow.pop %v1760
        %v1762 = vmul.f32 %v1759, %v1374
        %v1763 = vmul.f32 %v1761, %v1375
        %v1764 = vsel %vm1514, %v1762, 0.0
        %1765 = vadd.xlane.f32.xlu0 %v1764
        %v1766 = vpop.xlane.xlu0 %1765
        %v1767 = vsel %vm1514, %v1763, 0.0
        %1768 = vadd.xlane.f32.xlu0 %v1767
        %v1769 = vpop.xlane.xlu0 %1768
        %v1770 = vmax.f32 %v1766, 1e-09
        %v1771 = vmax.f32 %v1769, 1e-09
        %v1772 = vpack.c.bf16 %v1763, %v1762
        %1774 = vrot.lane.b32.xlu0 %v1606, 64
        %v1775 = vpop.permute.xlu0 %1774
        %v1777 = vmul.f32 %v1485, %v1775
        %v1778 = vmul.f32 %v1488, %v1775
        %v1779 = vpack.c.bf16 %v1778, %v1777
        %1780 = vmatprep.subr.bf16.mxu0 0
        %1781 = vmatpush1.bf16.msra.mxu0 0
        %1782 = vmatprep.subr.bf16.mxu0 0
        %1783 = vmatpush1.bf16.msra.mxu0 0
        %1784 = vmatprep.subr.bf16.mxu0 0
        %1785 = vmatpush1.bf16.msra.mxu0 0
        %1786 = vmatprep.subr.bf16.mxu0 0
        %1787 = vmatpush1.bf16.msra.mxu0 0
        %1788 = vmatprep.subr.bf16.mxu0 0
        %1789 = vmatpush1.bf16.msra.mxu0 0
        %1790 = vmatprep.subr.bf16.mxu0 0
        %1791 = vmatpush1.bf16.msra.mxu0 0
        %1792 = vmatprep.subr.bf16.mxu0 0
        %1793 = vmatpush1.bf16.msra.mxu0 0
        %1794 = vmatprep.subr.bf16.mxu0 0
        %1795 = vmatpush1.bf16.msra.mxu0 %v1772
        %1796 = vmatprep.subr.bf16.mxu0 0
        %1797 = vmatpush2.bf16.msra.mxu0 0
        %1798 = vmatprep.subr.bf16.mxu0 0
        %1799 = vmatpush2.bf16.msra.mxu0 0
        %1800 = vmatprep.subr.bf16.mxu0 0
        %1801 = vmatpush2.bf16.msra.mxu0 0
        %1802 = vmatprep.subr.bf16.mxu0 0
        %1803 = vmatpush2.bf16.msra.mxu0 0
        %1804 = vmatprep.subr.bf16.mxu0 0
        %1805 = vmatpush2.bf16.msra.mxu0 0
        %1806 = vmatprep.subr.bf16.mxu0 0
        %1807 = vmatpush2.bf16.msra.mxu0 0
        %1808 = vmatprep.subr.bf16.mxu0 0
        %1809 = vmatpush2.bf16.msra.mxu0 0
        %1810 = vmatprep.subr.bf16.mxu0 0
        %1811 = vmatpush2.bf16.msra.mxu0 0
        %1812 = vmatprep.mubr.bf16.mxu0 0
        %1813 = vmatmul.mubr.bf16.gmra.mxu0 %v1516
        %v1814 = vpop.f32.mrf.mxu0
        %v1815 = vadd.f32 0.0, %v1814
        %v1816 = vpop.f32.mrf.mxu0
        %v1817 = vpop.f32.mrf.mxu0
        %v1818 = vadd.f32 0.0, %v1817
        %v1819 = vpop.f32.mrf.mxu0
        %1820 = vmatprep.mubr.bf16.mxu0 0
        %1821 = vmatmul.mubr.bf16.gmra.mxu0 %v1519
        %v1822 = vpop.f32.mrf.mxu0
        %v1823 = vadd.f32 0.0, %v1822
        %v1824 = vpop.f32.mrf.mxu0
        %v1825 = vpop.f32.mrf.mxu0
        %v1826 = vadd.f32 0.0, %v1825
        %v1827 = vpop.f32.mrf.mxu0
        %1828 = vmatprep.mubr.bf16.mxu0 0
        %1829 = vmatmul.mubr.bf16.gmra.mxu0 %v1522
        %v1830 = vpop.f32.mrf.mxu0
        %v1831 = vadd.f32 0.0, %v1830
        %v1832 = vpop.f32.mrf.mxu0
        %v1833 = vpop.f32.mrf.mxu0
        %v1834 = vadd.f32 0.0, %v1833
        %v1835 = vpop.f32.mrf.mxu0
        %1836 = vmatprep.mubr.bf16.mxu0 0
        %1837 = vmatmul.mubr.bf16.gmra.mxu0 %v1525
        %v1838 = vpop.f32.mrf.mxu0
        %v1839 = vadd.f32 0.0, %v1838
        %v1840 = vpop.f32.mrf.mxu0
        %v1841 = vpop.f32.mrf.mxu0
        %v1842 = vadd.f32 0.0, %v1841
        %v1843 = vpop.f32.mrf.mxu0
        %1844 = vdwg.mxu0
        %v1845 = vmul.f32 %v1815, %v1410
        %v1846 = vmul.f32 %v1818, %v1411
        %v1847 = vmul.f32 %v1823, %v1412
        %v1848 = vmul.f32 %v1826, %v1413
        %v1849 = vmul.f32 %v1831, %v1414
        %v1850 = vmul.f32 %v1834, %v1415
        %v1851 = vmul.f32 %v1839, %v1416
        %v1852 = vmul.f32 %v1842, %v1417
        %v1853 = vsel %vm1514, %v1845, 0.0
        %1854 = vadd.xlane.f32.xlu0 %v1853
        %v1855 = vpop.xlane.xlu0 %1854
        %v1856 = vsel %vm1514, %v1846, 0.0
        %1857 = vadd.xlane.f32.xlu0 %v1856
        %v1858 = vpop.xlane.xlu0 %1857
        %v1859 = vsel %vm1514, %v1847, 0.0
        %1860 = vadd.xlane.f32.xlu0 %v1859
        %v1861 = vpop.xlane.xlu0 %1860
        %v1862 = vsel %vm1514, %v1848, 0.0
        %1863 = vadd.xlane.f32.xlu0 %v1862
        %v1864 = vpop.xlane.xlu0 %1863
        %v1865 = vsel %vm1514, %v1849, 0.0
        %1866 = vadd.xlane.f32.xlu0 %v1865
        %v1867 = vpop.xlane.xlu0 %1866
        %v1868 = vsel %vm1514, %v1850, 0.0
        %1869 = vadd.xlane.f32.xlu0 %v1868
        %v1870 = vpop.xlane.xlu0 %1869
        %v1871 = vsel %vm1514, %v1851, 0.0
        %1872 = vadd.xlane.f32.xlu0 %v1871
        %v1873 = vpop.xlane.xlu0 %1872
        %v1874 = vsel %vm1514, %v1852, 0.0
        %1875 = vadd.xlane.f32.xlu0 %v1874
        %v1876 = vpop.xlane.xlu0 %1875
        %v1877 = vmul.f32 %v1855, %v1364
        %v1878 = vmul.f32 %v1858, %v1365
        %v1879 = vmul.f32 %v1861, %v1366
        %v1880 = vmul.f32 %v1864, %v1367
        %v1881 = vmul.f32 %v1867, %v1368
        %v1882 = vmul.f32 %v1870, %v1369
        %v1883 = vmul.f32 %v1873, %v1370
        %v1884 = vmul.f32 %v1876, %v1371
        %v1885 = vpack.c.bf16 %v1878, %v1877
        %v1886 = vpack.c.bf16 %v1880, %v1879
        %v1887 = vpack.c.bf16 %v1882, %v1881
        %v1888 = vpack.c.bf16 %v1884, %v1883
        %1889 = vmatprep.subr.bf16.mxu0 0
        %1890 = vmatpush1.bf16.msra.mxu0 0
        %1891 = vmatprep.subr.bf16.mxu0 0
        %1892 = vmatpush1.bf16.msra.mxu0 0
        %1893 = vmatprep.subr.bf16.mxu0 0
        %1894 = vmatpush1.bf16.msra.mxu0 0
        %1895 = vmatprep.subr.bf16.mxu0 0
        %1896 = vmatpush1.bf16.msra.mxu0 0
        %1897 = vmatprep.subr.bf16.mxu0 0
        %1898 = vmatpush1.bf16.msra.mxu0 %v1888
        %1899 = vmatprep.subr.bf16.mxu0 0
        %1900 = vmatpush1.bf16.msra.mxu0 %v1887
        %1901 = vmatprep.subr.bf16.mxu0 0
        %1902 = vmatpush1.bf16.msra.mxu0 %v1886
        %1903 = vmatprep.subr.bf16.mxu0 0
        %1904 = vmatpush1.bf16.msra.mxu0 %v1885
        %1905 = vmatprep.subr.bf16.mxu0 0
        %1906 = vmatpush2.bf16.msra.mxu0 0
        %1907 = vmatprep.subr.bf16.mxu0 0
        %1908 = vmatpush2.bf16.msra.mxu0 0
        %1909 = vmatprep.subr.bf16.mxu0 0
        %1910 = vmatpush2.bf16.msra.mxu0 0
        %1911 = vmatprep.subr.bf16.mxu0 0
        %1912 = vmatpush2.bf16.msra.mxu0 0
        %1913 = vmatprep.subr.bf16.mxu0 0
        %1914 = vmatpush2.bf16.msra.mxu0 0
        %1915 = vmatprep.subr.bf16.mxu0 0
        %1916 = vmatpush2.bf16.msra.mxu0 0
        %1917 = vmatprep.subr.bf16.mxu0 0
        %1918 = vmatpush2.bf16.msra.mxu0 0
        %1919 = vmatprep.subr.bf16.mxu0 0
        %1920 = vmatpush2.bf16.msra.mxu0 0
        %1921 = vmatprep.mubr.bf16.mxu0 0
        %1922 = vmatmul.mubr.bf16.gmra.mxu0 %v1661
        %v1923 = vpop.f32.mrf.mxu0
        %v1924 = vadd.f32 0.0, %v1923
        %v1925 = vpop.f32.mrf.mxu0
        %v1926 = vpop.f32.mrf.mxu0
        %v1927 = vadd.f32 0.0, %v1926
        %v1928 = vpop.f32.mrf.mxu0
        %1929 = vdwg.mxu0
        %v1930 = vmul.f32 %v1924, %v1606
        %v1931 = vmul.f32 %v1927, %v1606
        %1933 = vrot.lane.b32.xlu0 %v1779, 64
        %v1934 = vpop.permute.xlu0 %1933
        %v1937 = vsel %vm1514, %v1772, 0
        %1939 = vmatprep.subr.bf16.mxu0 0
        %1940 = vmatpush1.bf16.msra.mxu0 0
        %1941 = vmatprep.subr.bf16.mxu0 0
        %1942 = vmatpush1.bf16.msra.mxu0 0
        %1943 = vmatprep.subr.bf16.mxu0 0
        %1944 = vmatpush1.bf16.msra.mxu0 0
        %1945 = vmatprep.subr.bf16.mxu0 0
        %1946 = vmatpush1.bf16.msra.mxu0 0
        %1947 = vmatprep.subr.bf16.mxu0 0
        %1948 = vmatpush1.bf16.msra.mxu0 0
        %1949 = vmatprep.subr.bf16.mxu0 0
        %1950 = vmatpush1.bf16.msra.mxu0 0
        %1951 = vmatprep.subr.bf16.mxu0 0
        %1952 = vmatpush1.bf16.msra.mxu0 0
        %1953 = vmatprep.subr.bf16.mxu0 0
        %1954 = vmatpush1.bf16.msra.mxu0 %v1934
        %1955 = vmatprep.subr.bf16.mxu0 0
        %1956 = vmatpush2.bf16.msra.mxu0 0
        %1957 = vmatprep.subr.bf16.mxu0 0
        %1958 = vmatpush2.bf16.msra.mxu0 0
        %1959 = vmatprep.subr.bf16.mxu0 0
        %1960 = vmatpush2.bf16.msra.mxu0 0
        %1961 = vmatprep.subr.bf16.mxu0 0
        %1962 = vmatpush2.bf16.msra.mxu0 0
        %1963 = vmatprep.subr.bf16.mxu0 0
        %1964 = vmatpush2.bf16.msra.mxu0 0
        %1965 = vmatprep.subr.bf16.mxu0 0
        %1966 = vmatpush2.bf16.msra.mxu0 0
        %1967 = vmatprep.subr.bf16.mxu0 0
        %1968 = vmatpush2.bf16.msra.mxu0 0
        %1969 = vmatprep.subr.bf16.mxu0 0
        %1970 = vmatpush2.bf16.msra.mxu0 0
        %1971 = vmatprep.mubr.bf16.mxu0 0
        %1972 = vmatmul.mubr.bf16.gmra.mxu0 %v1937
        %v1973 = vpop.f32.mrf.mxu0
        %v1974 = vadd.f32 %v1930, %v1973
        %v1975 = vpop.f32.mrf.mxu0
        %v1976 = vpop.f32.mrf.mxu0
        %v1977 = vadd.f32 %v1931, %v1976
        %v1978 = vpop.f32.mrf.mxu0
        %1979 = vdwg.mxu0
        %v1980 = vrcp.pop %v1770
        %v1981 = vmul.f32 %v1974, %v1980
        %v1982 = vrcp.pop %v1771
        %v1983 = vmul.f32 %v1977, %v1982
        %v1984 = vadd.f32 %v1981, 0.0
        %v1985 = vadd.f32 %v1983, 0.0
        %vm1986 = vcmp.ge.s32.totalorder %v1601, 8
        %vm1987 = vcmp.lt.s32.totalorder %v1601, 16
        %vm1988 = vmand %vm1986, %vm1987
        %v1989 = vsel %vm1988, 1.0, 0.0
        %v1990 = vmul.f32 %v1491, %v1989
        %v1991 = vmul.f32 %v1492, %v1989
        %v1992 = vpack.c.bf16 %v1991, %v1990
        %v1993 = vmul.f32 %v1592, %v1989
        %v1994 = vmul.f32 %v1593, %v1989
        %v1995 = vmul.f32 %v1594, %v1989
        %v1996 = vmul.f32 %v1595, %v1989
        %v1997 = vmul.f32 %v1596, %v1989
        %v1998 = vmul.f32 %v1597, %v1989
        %v1999 = vmul.f32 %v1598, %v1989
        %v2000 = vmul.f32 %v1599, %v1989
        %v2001 = vsel %vm1446, %v1993, 0.0
        %2002 = vadd.xlane.f32.xlu0 %v2001
        %v2003 = vpop.xlane.xlu0 %2002
        %v2004 = vsel %vm1446, %v1994, 0.0
        %2005 = vadd.xlane.f32.xlu0 %v2004
        %v2006 = vpop.xlane.xlu0 %2005
        %v2007 = vsel %vm1446, %v1995, 0.0
        %2008 = vadd.xlane.f32.xlu0 %v2007
        %v2009 = vpop.xlane.xlu0 %2008
        %v2010 = vsel %vm1446, %v1996, 0.0
        %2011 = vadd.xlane.f32.xlu0 %v2010
        %v2012 = vpop.xlane.xlu0 %2011
        %v2013 = vsel %vm1446, %v1997, 0.0
        %2014 = vadd.xlane.f32.xlu0 %v2013
        %v2015 = vpop.xlane.xlu0 %2014
        %v2016 = vsel %vm1446, %v1998, 0.0
        %2017 = vadd.xlane.f32.xlu0 %v2016
        %v2018 = vpop.xlane.xlu0 %2017
        %v2019 = vsel %vm1446, %v1999, 0.0
        %2020 = vadd.xlane.f32.xlu0 %v2019
        %v2021 = vpop.xlane.xlu0 %2020
        %v2022 = vsel %vm1446, %v2000, 0.0
        %2023 = vadd.xlane.f32.xlu0 %v2022
        %v2024 = vpop.xlane.xlu0 %2023
        %v2025 = vmul.f32 %v2003, %v1410
        %v2026 = vmul.f32 %v2006, %v1411
        %v2027 = vmul.f32 %v2009, %v1412
        %v2028 = vmul.f32 %v2012, %v1413
        %v2029 = vmul.f32 %v2015, %v1414
        %v2030 = vmul.f32 %v2018, %v1415
        %v2031 = vmul.f32 %v2021, %v1416
        %v2032 = vmul.f32 %v2024, %v1417
        %v2033 = vpack.c.bf16 %v2026, %v2025
        %v2034 = vpack.c.bf16 %v2028, %v2027
        %v2035 = vpack.c.bf16 %v2030, %v2029
        %v2036 = vpack.c.bf16 %v2032, %v2031
        %2037 = vmatprep.subr.bf16.mxu0 0
        %2038 = vmatpush1.bf16.msra.mxu0 0
        %2039 = vmatprep.subr.bf16.mxu0 0
        %2040 = vmatpush1.bf16.msra.mxu0 0
        %2041 = vmatprep.subr.bf16.mxu0 0
        %2042 = vmatpush1.bf16.msra.mxu0 0
        %2043 = vmatprep.subr.bf16.mxu0 0
        %2044 = vmatpush1.bf16.msra.mxu0 0
        %2045 = vmatprep.subr.bf16.mxu0 0
        %2046 = vmatpush1.bf16.msra.mxu0 %v2036
        %2047 = vmatprep.subr.bf16.mxu0 0
        %2048 = vmatpush1.bf16.msra.mxu0 %v2035
        %2049 = vmatprep.subr.bf16.mxu0 0
        %2050 = vmatpush1.bf16.msra.mxu0 %v2034
        %2051 = vmatprep.subr.bf16.mxu0 0
        %2052 = vmatpush1.bf16.msra.mxu0 %v2033
        %2053 = vmatprep.subr.bf16.mxu0 0
        %2054 = vmatpush2.bf16.msra.mxu0 0
        %2055 = vmatprep.subr.bf16.mxu0 0
        %2056 = vmatpush2.bf16.msra.mxu0 0
        %2057 = vmatprep.subr.bf16.mxu0 0
        %2058 = vmatpush2.bf16.msra.mxu0 0
        %2059 = vmatprep.subr.bf16.mxu0 0
        %2060 = vmatpush2.bf16.msra.mxu0 0
        %2061 = vmatprep.subr.bf16.mxu0 0
        %2062 = vmatpush2.bf16.msra.mxu0 0
        %2063 = vmatprep.subr.bf16.mxu0 0
        %2064 = vmatpush2.bf16.msra.mxu0 0
        %2065 = vmatprep.subr.bf16.mxu0 0
        %2066 = vmatpush2.bf16.msra.mxu0 0
        %2067 = vmatprep.subr.bf16.mxu0 0
        %2068 = vmatpush2.bf16.msra.mxu0 0
        %2069 = vmatprep.mubr.bf16.mxu0 0
        %2070 = vmatmul.mubr.bf16.gmra.mxu0 %v1661
        %v2071 = vpop.f32.mrf.mxu0
        %v2072 = vadd.f32 0.0, %v2071
        %v2073 = vpop.f32.mrf.mxu0
        %v2074 = vpop.f32.mrf.mxu0
        %v2075 = vadd.f32 0.0, %v2074
        %v2076 = vpop.f32.mrf.mxu0
        %2077 = vdwg.mxu0
        %v2079 = vsel %vm1446, %v1992, 0
        %2081 = vmatprep.subr.bf16.mxu0 0
        %2082 = vmatpush1.bf16.xpose.msra.mxu0 0
        %2083 = vmatprep.subr.bf16.mxu0 0
        %2084 = vmatpush1.bf16.xpose.msra.mxu0 0
        %2085 = vmatprep.subr.bf16.mxu0 0
        %2086 = vmatpush1.bf16.xpose.msra.mxu0 0
        %2087 = vmatprep.subr.bf16.mxu0 0
        %2088 = vmatpush1.bf16.xpose.msra.mxu0 0
        %2089 = vmatprep.subr.bf16.mxu0 0
        %2090 = vmatpush1.bf16.xpose.msra.mxu0 0
        %2091 = vmatprep.subr.bf16.mxu0 0
        %2092 = vmatpush1.bf16.xpose.msra.mxu0 0
        %2093 = vmatprep.subr.bf16.mxu0 0
        %2094 = vmatpush1.bf16.xpose.msra.mxu0 0
        %2095 = vmatprep.subr.bf16.mxu0 0
        %2096 = vmatpush1.bf16.xpose.msra.mxu0 %v1711
        %2097 = vmatprep.subr.bf16.mxu0 0
        %2098 = vmatpush2.bf16.xpose.msra.mxu0 0
        %2099 = vmatprep.subr.bf16.mxu0 0
        %2100 = vmatpush2.bf16.xpose.msra.mxu0 0
        %2101 = vmatprep.subr.bf16.mxu0 0
        %2102 = vmatpush2.bf16.xpose.msra.mxu0 0
        %2103 = vmatprep.subr.bf16.mxu0 0
        %2104 = vmatpush2.bf16.xpose.msra.mxu0 0
        %2105 = vmatprep.subr.bf16.mxu0 0
        %2106 = vmatpush2.bf16.xpose.msra.mxu0 0
        %2107 = vmatprep.subr.bf16.mxu0 0
        %2108 = vmatpush2.bf16.xpose.msra.mxu0 0
        %2109 = vmatprep.subr.bf16.mxu0 0
        %2110 = vmatpush2.bf16.xpose.msra.mxu0 0
        %2111 = vmatprep.subr.bf16.mxu0 0
        %2112 = vmatpush2.bf16.xpose.msra.mxu0 0
        %2113 = vmatprep.mubr.bf16.mxu0 0
        %2114 = vmatmul.mubr.bf16.gmra.mxu0 %v2079
        %v2115 = vpop.f32.mrf.mxu0
        %v2116 = vadd.f32 %v2072, %v2115
        %v2117 = vpop.f32.mrf.mxu0
        %v2118 = vpop.f32.mrf.mxu0
        %v2119 = vadd.f32 %v2075, %v2118
        %v2120 = vpop.f32.mrf.mxu0
        %2121 = vdwg.mxu0
        %v2122 = vmax.f32 %v2116, -10.0
        %v2123 = vmax.f32 %v2119, -10.0
        %v2124 = vmin.f32 %v2122, 10.0
        %v2125 = vmin.f32 %v2123, 10.0
        %v2126 = vmul.f32 %v2124, 1.442695
        %v2127 = vpow.pop %v2126
        %v2128 = vmul.f32 %v2125, 1.442695
        %v2129 = vpow.pop %v2128
        %v2130 = vmul.f32 %v2127, %v1374
        %v2131 = vmul.f32 %v2129, %v1375
        %v2132 = vsel %vm1514, %v2130, 0.0
        %2133 = vadd.xlane.f32.xlu0 %v2132
        %v2134 = vpop.xlane.xlu0 %2133
        %v2135 = vsel %vm1514, %v2131, 0.0
        %2136 = vadd.xlane.f32.xlu0 %v2135
        %v2137 = vpop.xlane.xlu0 %2136
        %v2138 = vmax.f32 %v2134, 1e-09
        %v2139 = vmax.f32 %v2137, 1e-09
        %v2140 = vpack.c.bf16 %v2131, %v2130
        %2142 = vrot.lane.b32.xlu0 %v1989, 64
        %v2143 = vpop.permute.xlu0 %2142
        %v2145 = vmul.f32 %v1485, %v2143
        %v2146 = vmul.f32 %v1488, %v2143
        %v2147 = vpack.c.bf16 %v2146, %v2145
        %2148 = vmatprep.subr.bf16.mxu0 0
        %2149 = vmatpush1.bf16.msra.mxu0 0
        %2150 = vmatprep.subr.bf16.mxu0 0
        %2151 = vmatpush1.bf16.msra.mxu0 0
        %2152 = vmatprep.subr.bf16.mxu0 0
        %2153 = vmatpush1.bf16.msra.mxu0 0
        %2154 = vmatprep.subr.bf16.mxu0 0
        %2155 = vmatpush1.bf16.msra.mxu0 0
        %2156 = vmatprep.subr.bf16.mxu0 0
        %2157 = vmatpush1.bf16.msra.mxu0 0
        %2158 = vmatprep.subr.bf16.mxu0 0
        %2159 = vmatpush1.bf16.msra.mxu0 0
        %2160 = vmatprep.subr.bf16.mxu0 0
        %2161 = vmatpush1.bf16.msra.mxu0 0
        %2162 = vmatprep.subr.bf16.mxu0 0
        %2163 = vmatpush1.bf16.msra.mxu0 %v2140
        %2164 = vmatprep.subr.bf16.mxu0 0
        %2165 = vmatpush2.bf16.msra.mxu0 0
        %2166 = vmatprep.subr.bf16.mxu0 0
        %2167 = vmatpush2.bf16.msra.mxu0 0
        %2168 = vmatprep.subr.bf16.mxu0 0
        %2169 = vmatpush2.bf16.msra.mxu0 0
        %2170 = vmatprep.subr.bf16.mxu0 0
        %2171 = vmatpush2.bf16.msra.mxu0 0
        %2172 = vmatprep.subr.bf16.mxu0 0
        %2173 = vmatpush2.bf16.msra.mxu0 0
        %2174 = vmatprep.subr.bf16.mxu0 0
        %2175 = vmatpush2.bf16.msra.mxu0 0
        %2176 = vmatprep.subr.bf16.mxu0 0
        %2177 = vmatpush2.bf16.msra.mxu0 0
        %2178 = vmatprep.subr.bf16.mxu0 0
        %2179 = vmatpush2.bf16.msra.mxu0 0
        %2180 = vmatprep.mubr.bf16.mxu0 0
        %2181 = vmatmul.mubr.bf16.gmra.mxu0 %v1516
        %v2182 = vpop.f32.mrf.mxu0
        %v2183 = vadd.f32 0.0, %v2182
        %v2184 = vpop.f32.mrf.mxu0
        %v2185 = vpop.f32.mrf.mxu0
        %v2186 = vadd.f32 0.0, %v2185
        %v2187 = vpop.f32.mrf.mxu0
        %2188 = vmatprep.mubr.bf16.mxu0 0
        %2189 = vmatmul.mubr.bf16.gmra.mxu0 %v1519
        %v2190 = vpop.f32.mrf.mxu0
        %v2191 = vadd.f32 0.0, %v2190
        %v2192 = vpop.f32.mrf.mxu0
        %v2193 = vpop.f32.mrf.mxu0
        %v2194 = vadd.f32 0.0, %v2193
        %v2195 = vpop.f32.mrf.mxu0
        %2196 = vmatprep.mubr.bf16.mxu0 0
        %2197 = vmatmul.mubr.bf16.gmra.mxu0 %v1522
        %v2198 = vpop.f32.mrf.mxu0
        %v2199 = vadd.f32 0.0, %v2198
        %v2200 = vpop.f32.mrf.mxu0
        %v2201 = vpop.f32.mrf.mxu0
        %v2202 = vadd.f32 0.0, %v2201
        %v2203 = vpop.f32.mrf.mxu0
        %2204 = vmatprep.mubr.bf16.mxu0 0
        %2205 = vmatmul.mubr.bf16.gmra.mxu0 %v1525
        %v2206 = vpop.f32.mrf.mxu0
        %v2207 = vadd.f32 0.0, %v2206
        %v2208 = vpop.f32.mrf.mxu0
        %v2209 = vpop.f32.mrf.mxu0
        %v2210 = vadd.f32 0.0, %v2209
        %v2211 = vpop.f32.mrf.mxu0
        %2212 = vdwg.mxu0
        %v2213 = vmul.f32 %v2183, %v1410
        %v2214 = vmul.f32 %v2186, %v1411
        %v2215 = vmul.f32 %v2191, %v1412
        %v2216 = vmul.f32 %v2194, %v1413
        %v2217 = vmul.f32 %v2199, %v1414
        %v2218 = vmul.f32 %v2202, %v1415
        %v2219 = vmul.f32 %v2207, %v1416
        %v2220 = vmul.f32 %v2210, %v1417
        %v2221 = vsel %vm1514, %v2213, 0.0
        %2222 = vadd.xlane.f32.xlu0 %v2221
        %v2223 = vpop.xlane.xlu0 %2222
        %v2224 = vsel %vm1514, %v2214, 0.0
        %2225 = vadd.xlane.f32.xlu0 %v2224
        %v2226 = vpop.xlane.xlu0 %2225
        %v2227 = vsel %vm1514, %v2215, 0.0
        %2228 = vadd.xlane.f32.xlu0 %v2227
        %v2229 = vpop.xlane.xlu0 %2228
        %v2230 = vsel %vm1514, %v2216, 0.0
        %2231 = vadd.xlane.f32.xlu0 %v2230
        %v2232 = vpop.xlane.xlu0 %2231
        %v2233 = vsel %vm1514, %v2217, 0.0
        %2234 = vadd.xlane.f32.xlu0 %v2233
        %v2235 = vpop.xlane.xlu0 %2234
        %v2236 = vsel %vm1514, %v2218, 0.0
        %2237 = vadd.xlane.f32.xlu0 %v2236
        %v2238 = vpop.xlane.xlu0 %2237
        %v2239 = vsel %vm1514, %v2219, 0.0
        %2240 = vadd.xlane.f32.xlu0 %v2239
        %v2241 = vpop.xlane.xlu0 %2240
        %v2242 = vsel %vm1514, %v2220, 0.0
        %2243 = vadd.xlane.f32.xlu0 %v2242
        %v2244 = vpop.xlane.xlu0 %2243
        %v2245 = vmul.f32 %v2223, %v1364
        %v2246 = vmul.f32 %v2226, %v1365
        %v2247 = vmul.f32 %v2229, %v1366
        %v2248 = vmul.f32 %v2232, %v1367
        %v2249 = vmul.f32 %v2235, %v1368
        %v2250 = vmul.f32 %v2238, %v1369
        %v2251 = vmul.f32 %v2241, %v1370
        %v2252 = vmul.f32 %v2244, %v1371
        %v2253 = vpack.c.bf16 %v2246, %v2245
        %v2254 = vpack.c.bf16 %v2248, %v2247
        %v2255 = vpack.c.bf16 %v2250, %v2249
        %v2256 = vpack.c.bf16 %v2252, %v2251
        %2257 = vmatprep.subr.bf16.mxu0 0
        %2258 = vmatpush1.bf16.msra.mxu0 0
        %2259 = vmatprep.subr.bf16.mxu0 0
        %2260 = vmatpush1.bf16.msra.mxu0 0
        %2261 = vmatprep.subr.bf16.mxu0 0
        %2262 = vmatpush1.bf16.msra.mxu0 0
        %2263 = vmatprep.subr.bf16.mxu0 0
        %2264 = vmatpush1.bf16.msra.mxu0 0
        %2265 = vmatprep.subr.bf16.mxu0 0
        %2266 = vmatpush1.bf16.msra.mxu0 %v2256
        %2267 = vmatprep.subr.bf16.mxu0 0
        %2268 = vmatpush1.bf16.msra.mxu0 %v2255
        %2269 = vmatprep.subr.bf16.mxu0 0
        %2270 = vmatpush1.bf16.msra.mxu0 %v2254
        %2271 = vmatprep.subr.bf16.mxu0 0
        %2272 = vmatpush1.bf16.msra.mxu0 %v2253
        %2273 = vmatprep.subr.bf16.mxu0 0
        %2274 = vmatpush2.bf16.msra.mxu0 0
        %2275 = vmatprep.subr.bf16.mxu0 0
        %2276 = vmatpush2.bf16.msra.mxu0 0
        %2277 = vmatprep.subr.bf16.mxu0 0
        %2278 = vmatpush2.bf16.msra.mxu0 0
        %2279 = vmatprep.subr.bf16.mxu0 0
        %2280 = vmatpush2.bf16.msra.mxu0 0
        %2281 = vmatprep.subr.bf16.mxu0 0
        %2282 = vmatpush2.bf16.msra.mxu0 0
        %2283 = vmatprep.subr.bf16.mxu0 0
        %2284 = vmatpush2.bf16.msra.mxu0 0
        %2285 = vmatprep.subr.bf16.mxu0 0
        %2286 = vmatpush2.bf16.msra.mxu0 0
        %2287 = vmatprep.subr.bf16.mxu0 0
        %2288 = vmatpush2.bf16.msra.mxu0 0
        %2289 = vmatprep.mubr.bf16.mxu0 0
        %2290 = vmatmul.mubr.bf16.gmra.mxu0 %v1661
        %v2291 = vpop.f32.mrf.mxu0
        %v2292 = vadd.f32 0.0, %v2291
        %v2293 = vpop.f32.mrf.mxu0
        %v2294 = vpop.f32.mrf.mxu0
        %v2295 = vadd.f32 0.0, %v2294
        %v2296 = vpop.f32.mrf.mxu0
        %2297 = vdwg.mxu0
        %v2298 = vmul.f32 %v2292, %v1989
        %v2299 = vmul.f32 %v2295, %v1989
        %2301 = vrot.lane.b32.xlu0 %v2147, 64
        %v2302 = vpop.permute.xlu0 %2301
        %v2305 = vsel %vm1514, %v2140, 0
        %2307 = vmatprep.subr.bf16.mxu0 0
        %2308 = vmatpush1.bf16.msra.mxu0 0
        %2309 = vmatprep.subr.bf16.mxu0 0
        %2310 = vmatpush1.bf16.msra.mxu0 0
        %2311 = vmatprep.subr.bf16.mxu0 0
        %2312 = vmatpush1.bf16.msra.mxu0 0
        %2313 = vmatprep.subr.bf16.mxu0 0
        %2314 = vmatpush1.bf16.msra.mxu0 0
        %2315 = vmatprep.subr.bf16.mxu0 0
        %2316 = vmatpush1.bf16.msra.mxu0 0
        %2317 = vmatprep.subr.bf16.mxu0 0
        %2318 = vmatpush1.bf16.msra.mxu0 0
        %2319 = vmatprep.subr.bf16.mxu0 0
        %2320 = vmatpush1.bf16.msra.mxu0 0
        %2321 = vmatprep.subr.bf16.mxu0 0
        %2322 = vmatpush1.bf16.msra.mxu0 %v2302
        %2323 = vmatprep.subr.bf16.mxu0 0
        %2324 = vmatpush2.bf16.msra.mxu0 0
        %2325 = vmatprep.subr.bf16.mxu0 0
        %2326 = vmatpush2.bf16.msra.mxu0 0
        %2327 = vmatprep.subr.bf16.mxu0 0
        %2328 = vmatpush2.bf16.msra.mxu0 0
        %2329 = vmatprep.subr.bf16.mxu0 0
        %2330 = vmatpush2.bf16.msra.mxu0 0
        %2331 = vmatprep.subr.bf16.mxu0 0
        %2332 = vmatpush2.bf16.msra.mxu0 0
        %2333 = vmatprep.subr.bf16.mxu0 0
        %2334 = vmatpush2.bf16.msra.mxu0 0
        %2335 = vmatprep.subr.bf16.mxu0 0
        %2336 = vmatpush2.bf16.msra.mxu0 0
        %2337 = vmatprep.subr.bf16.mxu0 0
        %2338 = vmatpush2.bf16.msra.mxu0 0
        %2339 = vmatprep.mubr.bf16.mxu0 0
        %2340 = vmatmul.mubr.bf16.gmra.mxu0 %v2305
        %v2341 = vpop.f32.mrf.mxu0
        %v2342 = vadd.f32 %v2298, %v2341
        %v2343 = vpop.f32.mrf.mxu0
        %v2344 = vpop.f32.mrf.mxu0
        %v2345 = vadd.f32 %v2299, %v2344
        %v2346 = vpop.f32.mrf.mxu0
        %2347 = vdwg.mxu0
        %v2348 = vrcp.pop %v2138
        %v2349 = vmul.f32 %v2342, %v2348
        %v2350 = vrcp.pop %v2139
        %v2351 = vmul.f32 %v2345, %v2350
        %v2352 = vadd.f32 %v1984, %v2349
        %v2353 = vadd.f32 %v1985, %v2351
        %vm2354 = vcmp.ge.s32.totalorder %v1601, 16
        %vm2355 = vcmp.lt.s32.totalorder %v1601, 24
        %vm2356 = vmand %vm2354, %vm2355
        %v2357 = vsel %vm2356, 1.0, 0.0
        %v2358 = vmul.f32 %v1491, %v2357
        %v2359 = vmul.f32 %v1492, %v2357
        %v2360 = vpack.c.bf16 %v2359, %v2358
        %v2361 = vmul.f32 %v1592, %v2357
        %v2362 = vmul.f32 %v1593, %v2357
        %v2363 = vmul.f32 %v1594, %v2357
        %v2364 = vmul.f32 %v1595, %v2357
        %v2365 = vmul.f32 %v1596, %v2357
        %v2366 = vmul.f32 %v1597, %v2357
        %v2367 = vmul.f32 %v1598, %v2357
        %v2368 = vmul.f32 %v1599, %v2357
        %v2369 = vsel %vm1446, %v2361, 0.0
        %2370 = vadd.xlane.f32.xlu0 %v2369
        %v2371 = vpop.xlane.xlu0 %2370
        %v2372 = vsel %vm1446, %v2362, 0.0
        %2373 = vadd.xlane.f32.xlu0 %v2372
        %v2374 = vpop.xlane.xlu0 %2373
        %v2375 = vsel %vm1446, %v2363, 0.0
        %2376 = vadd.xlane.f32.xlu0 %v2375
        %v2377 = vpop.xlane.xlu0 %2376
        %v2378 = vsel %vm1446, %v2364, 0.0
        %2379 = vadd.xlane.f32.xlu0 %v2378
        %v2380 = vpop.xlane.xlu0 %2379
        %v2381 = vsel %vm1446, %v2365, 0.0
        %2382 = vadd.xlane.f32.xlu0 %v2381
        %v2383 = vpop.xlane.xlu0 %2382
        %v2384 = vsel %vm1446, %v2366, 0.0
        %2385 = vadd.xlane.f32.xlu0 %v2384
        %v2386 = vpop.xlane.xlu0 %2385
        %v2387 = vsel %vm1446, %v2367, 0.0
        %2388 = vadd.xlane.f32.xlu0 %v2387
        %v2389 = vpop.xlane.xlu0 %2388
        %v2390 = vsel %vm1446, %v2368, 0.0
        %2391 = vadd.xlane.f32.xlu0 %v2390
        %v2392 = vpop.xlane.xlu0 %2391
        %v2393 = vmul.f32 %v2371, %v1410
        %v2394 = vmul.f32 %v2374, %v1411
        %v2395 = vmul.f32 %v2377, %v1412
        %v2396 = vmul.f32 %v2380, %v1413
        %v2397 = vmul.f32 %v2383, %v1414
        %v2398 = vmul.f32 %v2386, %v1415
        %v2399 = vmul.f32 %v2389, %v1416
        %v2400 = vmul.f32 %v2392, %v1417
        %v2401 = vpack.c.bf16 %v2394, %v2393
        %v2402 = vpack.c.bf16 %v2396, %v2395
        %v2403 = vpack.c.bf16 %v2398, %v2397
        %v2404 = vpack.c.bf16 %v2400, %v2399
        %2405 = vmatprep.subr.bf16.mxu0 0
        %2406 = vmatpush1.bf16.msra.mxu0 0
        %2407 = vmatprep.subr.bf16.mxu0 0
        %2408 = vmatpush1.bf16.msra.mxu0 0
        %2409 = vmatprep.subr.bf16.mxu0 0
        %2410 = vmatpush1.bf16.msra.mxu0 0
        %2411 = vmatprep.subr.bf16.mxu0 0
        %2412 = vmatpush1.bf16.msra.mxu0 0
        %2413 = vmatprep.subr.bf16.mxu0 0
        %2414 = vmatpush1.bf16.msra.mxu0 %v2404
        %2415 = vmatprep.subr.bf16.mxu0 0
        %2416 = vmatpush1.bf16.msra.mxu0 %v2403
        %2417 = vmatprep.subr.bf16.mxu0 0
        %2418 = vmatpush1.bf16.msra.mxu0 %v2402
        %2419 = vmatprep.subr.bf16.mxu0 0
        %2420 = vmatpush1.bf16.msra.mxu0 %v2401
        %2421 = vmatprep.subr.bf16.mxu0 0
        %2422 = vmatpush2.bf16.msra.mxu0 0
        %2423 = vmatprep.subr.bf16.mxu0 0
        %2424 = vmatpush2.bf16.msra.mxu0 0
        %2425 = vmatprep.subr.bf16.mxu0 0
        %2426 = vmatpush2.bf16.msra.mxu0 0
        %2427 = vmatprep.subr.bf16.mxu0 0
        %2428 = vmatpush2.bf16.msra.mxu0 0
        %2429 = vmatprep.subr.bf16.mxu0 0
        %2430 = vmatpush2.bf16.msra.mxu0 0
        %2431 = vmatprep.subr.bf16.mxu0 0
        %2432 = vmatpush2.bf16.msra.mxu0 0
        %2433 = vmatprep.subr.bf16.mxu0 0
        %2434 = vmatpush2.bf16.msra.mxu0 0
        %2435 = vmatprep.subr.bf16.mxu0 0
        %2436 = vmatpush2.bf16.msra.mxu0 0
        %2437 = vmatprep.mubr.bf16.mxu0 0
        %2438 = vmatmul.mubr.bf16.gmra.mxu0 %v1661
        %v2439 = vpop.f32.mrf.mxu0
        %v2440 = vadd.f32 0.0, %v2439
        %v2441 = vpop.f32.mrf.mxu0
        %v2442 = vpop.f32.mrf.mxu0
        %v2443 = vadd.f32 0.0, %v2442
        %v2444 = vpop.f32.mrf.mxu0
        %2445 = vdwg.mxu0
        %v2447 = vsel %vm1446, %v2360, 0
        %2449 = vmatprep.subr.bf16.mxu0 0
        %2450 = vmatpush1.bf16.xpose.msra.mxu0 0
        %2451 = vmatprep.subr.bf16.mxu0 0
        %2452 = vmatpush1.bf16.xpose.msra.mxu0 0
        %2453 = vmatprep.subr.bf16.mxu0 0
        %2454 = vmatpush1.bf16.xpose.msra.mxu0 0
        %2455 = vmatprep.subr.bf16.mxu0 0
        %2456 = vmatpush1.bf16.xpose.msra.mxu0 0
        %2457 = vmatprep.subr.bf16.mxu0 0
        %2458 = vmatpush1.bf16.xpose.msra.mxu0 0
        %2459 = vmatprep.subr.bf16.mxu0 0
        %2460 = vmatpush1.bf16.xpose.msra.mxu0 0
        %2461 = vmatprep.subr.bf16.mxu0 0
        %2462 = vmatpush1.bf16.xpose.msra.mxu0 0
        %2463 = vmatprep.subr.bf16.mxu0 0
        %2464 = vmatpush1.bf16.xpose.msra.mxu0 %v1711
        %2465 = vmatprep.subr.bf16.mxu0 0
        %2466 = vmatpush2.bf16.xpose.msra.mxu0 0
        %2467 = vmatprep.subr.bf16.mxu0 0
        %2468 = vmatpush2.bf16.xpose.msra.mxu0 0
        %2469 = vmatprep.subr.bf16.mxu0 0
        %2470 = vmatpush2.bf16.xpose.msra.mxu0 0
        %2471 = vmatprep.subr.bf16.mxu0 0
        %2472 = vmatpush2.bf16.xpose.msra.mxu0 0
        %2473 = vmatprep.subr.bf16.mxu0 0
        %2474 = vmatpush2.bf16.xpose.msra.mxu0 0
        %2475 = vmatprep.subr.bf16.mxu0 0
        %2476 = vmatpush2.bf16.xpose.msra.mxu0 0
        %2477 = vmatprep.subr.bf16.mxu0 0
        %2478 = vmatpush2.bf16.xpose.msra.mxu0 0
        %2479 = vmatprep.subr.bf16.mxu0 0
        %2480 = vmatpush2.bf16.xpose.msra.mxu0 0
        %2481 = vmatprep.mubr.bf16.mxu0 0
        %2482 = vmatmul.mubr.bf16.gmra.mxu0 %v2447
        %v2483 = vpop.f32.mrf.mxu0
        %v2484 = vadd.f32 %v2440, %v2483
        %v2485 = vpop.f32.mrf.mxu0
        %v2486 = vpop.f32.mrf.mxu0
        %v2487 = vadd.f32 %v2443, %v2486
        %v2488 = vpop.f32.mrf.mxu0
        %2489 = vdwg.mxu0
        %v2490 = vmax.f32 %v2484, -10.0
        %v2491 = vmax.f32 %v2487, -10.0
        %v2492 = vmin.f32 %v2490, 10.0
        %v2493 = vmin.f32 %v2491, 10.0
        %v2494 = vmul.f32 %v2492, 1.442695
        %v2495 = vpow.pop %v2494
        %v2496 = vmul.f32 %v2493, 1.442695
        %v2497 = vpow.pop %v2496
        %v2498 = vmul.f32 %v2495, %v1374
        %v2499 = vmul.f32 %v2497, %v1375
        %v2500 = vsel %vm1514, %v2498, 0.0
        %2501 = vadd.xlane.f32.xlu0 %v2500
        %v2502 = vpop.xlane.xlu0 %2501
        %v2503 = vsel %vm1514, %v2499, 0.0
        %2504 = vadd.xlane.f32.xlu0 %v2503
        %v2505 = vpop.xlane.xlu0 %2504
        %v2506 = vmax.f32 %v2502, 1e-09
        %v2507 = vmax.f32 %v2505, 1e-09
        %v2508 = vpack.c.bf16 %v2499, %v2498
        %2510 = vrot.lane.b32.xlu0 %v2357, 64
        %v2511 = vpop.permute.xlu0 %2510
        %v2513 = vmul.f32 %v1485, %v2511
        %v2514 = vmul.f32 %v1488, %v2511
        %v2515 = vpack.c.bf16 %v2514, %v2513
        %2516 = vmatprep.subr.bf16.mxu0 0
        %2517 = vmatpush1.bf16.msra.mxu0 0
        %2518 = vmatprep.subr.bf16.mxu0 0
        %2519 = vmatpush1.bf16.msra.mxu0 0
        %2520 = vmatprep.subr.bf16.mxu0 0
        %2521 = vmatpush1.bf16.msra.mxu0 0
        %2522 = vmatprep.subr.bf16.mxu0 0
        %2523 = vmatpush1.bf16.msra.mxu0 0
        %2524 = vmatprep.subr.bf16.mxu0 0
        %2525 = vmatpush1.bf16.msra.mxu0 0
        %2526 = vmatprep.subr.bf16.mxu0 0
        %2527 = vmatpush1.bf16.msra.mxu0 0
        %2528 = vmatprep.subr.bf16.mxu0 0
        %2529 = vmatpush1.bf16.msra.mxu0 0
        %2530 = vmatprep.subr.bf16.mxu0 0
        %2531 = vmatpush1.bf16.msra.mxu0 %v2508
        %2532 = vmatprep.subr.bf16.mxu0 0
        %2533 = vmatpush2.bf16.msra.mxu0 0
        %2534 = vmatprep.subr.bf16.mxu0 0
        %2535 = vmatpush2.bf16.msra.mxu0 0
        %2536 = vmatprep.subr.bf16.mxu0 0
        %2537 = vmatpush2.bf16.msra.mxu0 0
        %2538 = vmatprep.subr.bf16.mxu0 0
        %2539 = vmatpush2.bf16.msra.mxu0 0
        %2540 = vmatprep.subr.bf16.mxu0 0
        %2541 = vmatpush2.bf16.msra.mxu0 0
        %2542 = vmatprep.subr.bf16.mxu0 0
        %2543 = vmatpush2.bf16.msra.mxu0 0
        %2544 = vmatprep.subr.bf16.mxu0 0
        %2545 = vmatpush2.bf16.msra.mxu0 0
        %2546 = vmatprep.subr.bf16.mxu0 0
        %2547 = vmatpush2.bf16.msra.mxu0 0
        %2548 = vmatprep.mubr.bf16.mxu0 0
        %2549 = vmatmul.mubr.bf16.gmra.mxu0 %v1516
        %v2550 = vpop.f32.mrf.mxu0
        %v2551 = vadd.f32 0.0, %v2550
        %v2552 = vpop.f32.mrf.mxu0
        %v2553 = vpop.f32.mrf.mxu0
        %v2554 = vadd.f32 0.0, %v2553
        %v2555 = vpop.f32.mrf.mxu0
        %2556 = vmatprep.mubr.bf16.mxu0 0
        %2557 = vmatmul.mubr.bf16.gmra.mxu0 %v1519
        %v2558 = vpop.f32.mrf.mxu0
        %v2559 = vadd.f32 0.0, %v2558
        %v2560 = vpop.f32.mrf.mxu0
        %v2561 = vpop.f32.mrf.mxu0
        %v2562 = vadd.f32 0.0, %v2561
        %v2563 = vpop.f32.mrf.mxu0
        %2564 = vmatprep.mubr.bf16.mxu0 0
        %2565 = vmatmul.mubr.bf16.gmra.mxu0 %v1522
        %v2566 = vpop.f32.mrf.mxu0
        %v2567 = vadd.f32 0.0, %v2566
        %v2568 = vpop.f32.mrf.mxu0
        %v2569 = vpop.f32.mrf.mxu0
        %v2570 = vadd.f32 0.0, %v2569
        %v2571 = vpop.f32.mrf.mxu0
        %2572 = vmatprep.mubr.bf16.mxu0 0
        %2573 = vmatmul.mubr.bf16.gmra.mxu0 %v1525
        %v2574 = vpop.f32.mrf.mxu0
        %v2575 = vadd.f32 0.0, %v2574
        %v2576 = vpop.f32.mrf.mxu0
        %v2577 = vpop.f32.mrf.mxu0
        %v2578 = vadd.f32 0.0, %v2577
        %v2579 = vpop.f32.mrf.mxu0
        %2580 = vdwg.mxu0
        %v2581 = vmul.f32 %v2551, %v1410
        %v2582 = vmul.f32 %v2554, %v1411
        %v2583 = vmul.f32 %v2559, %v1412
        %v2584 = vmul.f32 %v2562, %v1413
        %v2585 = vmul.f32 %v2567, %v1414
        %v2586 = vmul.f32 %v2570, %v1415
        %v2587 = vmul.f32 %v2575, %v1416
        %v2588 = vmul.f32 %v2578, %v1417
        %v2589 = vsel %vm1514, %v2581, 0.0
        %2590 = vadd.xlane.f32.xlu0 %v2589
        %v2591 = vpop.xlane.xlu0 %2590
        %v2592 = vsel %vm1514, %v2582, 0.0
        %2593 = vadd.xlane.f32.xlu0 %v2592
        %v2594 = vpop.xlane.xlu0 %2593
        %v2595 = vsel %vm1514, %v2583, 0.0
        %2596 = vadd.xlane.f32.xlu0 %v2595
        %v2597 = vpop.xlane.xlu0 %2596
        %v2598 = vsel %vm1514, %v2584, 0.0
        %2599 = vadd.xlane.f32.xlu0 %v2598
        %v2600 = vpop.xlane.xlu0 %2599
        %v2601 = vsel %vm1514, %v2585, 0.0
        %2602 = vadd.xlane.f32.xlu0 %v2601
        %v2603 = vpop.xlane.xlu0 %2602
        %v2604 = vsel %vm1514, %v2586, 0.0
        %2605 = vadd.xlane.f32.xlu0 %v2604
        %v2606 = vpop.xlane.xlu0 %2605
        %v2607 = vsel %vm1514, %v2587, 0.0
        %2608 = vadd.xlane.f32.xlu0 %v2607
        %v2609 = vpop.xlane.xlu0 %2608
        %v2610 = vsel %vm1514, %v2588, 0.0
        %2611 = vadd.xlane.f32.xlu0 %v2610
        %v2612 = vpop.xlane.xlu0 %2611
        %v2613 = vmul.f32 %v2591, %v1364
        %v2614 = vmul.f32 %v2594, %v1365
        %v2615 = vmul.f32 %v2597, %v1366
        %v2616 = vmul.f32 %v2600, %v1367
        %v2617 = vmul.f32 %v2603, %v1368
        %v2618 = vmul.f32 %v2606, %v1369
        %v2619 = vmul.f32 %v2609, %v1370
        %v2620 = vmul.f32 %v2612, %v1371
        %v2621 = vpack.c.bf16 %v2614, %v2613
        %v2622 = vpack.c.bf16 %v2616, %v2615
        %v2623 = vpack.c.bf16 %v2618, %v2617
        %v2624 = vpack.c.bf16 %v2620, %v2619
        %2625 = vmatprep.subr.bf16.mxu0 0
        %2626 = vmatpush1.bf16.msra.mxu0 0
        %2627 = vmatprep.subr.bf16.mxu0 0
        %2628 = vmatpush1.bf16.msra.mxu0 0
        %2629 = vmatprep.subr.bf16.mxu0 0
        %2630 = vmatpush1.bf16.msra.mxu0 0
        %2631 = vmatprep.subr.bf16.mxu0 0
        %2632 = vmatpush1.bf16.msra.mxu0 0
        %2633 = vmatprep.subr.bf16.mxu0 0
        %2634 = vmatpush1.bf16.msra.mxu0 %v2624
        %2635 = vmatprep.subr.bf16.mxu0 0
        %2636 = vmatpush1.bf16.msra.mxu0 %v2623
        %2637 = vmatprep.subr.bf16.mxu0 0
        %2638 = vmatpush1.bf16.msra.mxu0 %v2622
        %2639 = vmatprep.subr.bf16.mxu0 0
        %2640 = vmatpush1.bf16.msra.mxu0 %v2621
        %2641 = vmatprep.subr.bf16.mxu0 0
        %2642 = vmatpush2.bf16.msra.mxu0 0
        %2643 = vmatprep.subr.bf16.mxu0 0
        %2644 = vmatpush2.bf16.msra.mxu0 0
        %2645 = vmatprep.subr.bf16.mxu0 0
        %2646 = vmatpush2.bf16.msra.mxu0 0
        %2647 = vmatprep.subr.bf16.mxu0 0
        %2648 = vmatpush2.bf16.msra.mxu0 0
        %2649 = vmatprep.subr.bf16.mxu0 0
        %2650 = vmatpush2.bf16.msra.mxu0 0
        %2651 = vmatprep.subr.bf16.mxu0 0
        %2652 = vmatpush2.bf16.msra.mxu0 0
        %2653 = vmatprep.subr.bf16.mxu0 0
        %2654 = vmatpush2.bf16.msra.mxu0 0
        %2655 = vmatprep.subr.bf16.mxu0 0
        %2656 = vmatpush2.bf16.msra.mxu0 0
        %2657 = vmatprep.mubr.bf16.mxu0 0
        %2658 = vmatmul.mubr.bf16.gmra.mxu0 %v1661
        %v2659 = vpop.f32.mrf.mxu0
        %v2660 = vadd.f32 0.0, %v2659
        %v2661 = vpop.f32.mrf.mxu0
        %v2662 = vpop.f32.mrf.mxu0
        %v2663 = vadd.f32 0.0, %v2662
        %v2664 = vpop.f32.mrf.mxu0
        %2665 = vdwg.mxu0
        %v2666 = vmul.f32 %v2660, %v2357
        %v2667 = vmul.f32 %v2663, %v2357
        %2669 = vrot.lane.b32.xlu0 %v2515, 64
        %v2670 = vpop.permute.xlu0 %2669
        %v2673 = vsel %vm1514, %v2508, 0
        %2675 = vmatprep.subr.bf16.mxu0 0
        %2676 = vmatpush1.bf16.msra.mxu0 0
        %2677 = vmatprep.subr.bf16.mxu0 0
        %2678 = vmatpush1.bf16.msra.mxu0 0
        %2679 = vmatprep.subr.bf16.mxu0 0
        %2680 = vmatpush1.bf16.msra.mxu0 0
        %2681 = vmatprep.subr.bf16.mxu0 0
        %2682 = vmatpush1.bf16.msra.mxu0 0
        %2683 = vmatprep.subr.bf16.mxu0 0
        %2684 = vmatpush1.bf16.msra.mxu0 0
        %2685 = vmatprep.subr.bf16.mxu0 0
        %2686 = vmatpush1.bf16.msra.mxu0 0
        %2687 = vmatprep.subr.bf16.mxu0 0
        %2688 = vmatpush1.bf16.msra.mxu0 0
        %2689 = vmatprep.subr.bf16.mxu0 0
        %2690 = vmatpush1.bf16.msra.mxu0 %v2670
        %2691 = vmatprep.subr.bf16.mxu0 0
        %2692 = vmatpush2.bf16.msra.mxu0 0
        %2693 = vmatprep.subr.bf16.mxu0 0
        %2694 = vmatpush2.bf16.msra.mxu0 0
        %2695 = vmatprep.subr.bf16.mxu0 0
        %2696 = vmatpush2.bf16.msra.mxu0 0
        %2697 = vmatprep.subr.bf16.mxu0 0
        %2698 = vmatpush2.bf16.msra.mxu0 0
        %2699 = vmatprep.subr.bf16.mxu0 0
        %2700 = vmatpush2.bf16.msra.mxu0 0
        %2701 = vmatprep.subr.bf16.mxu0 0
        %2702 = vmatpush2.bf16.msra.mxu0 0
        %2703 = vmatprep.subr.bf16.mxu0 0
        %2704 = vmatpush2.bf16.msra.mxu0 0
        %2705 = vmatprep.subr.bf16.mxu0 0
        %2706 = vmatpush2.bf16.msra.mxu0 0
        %2707 = vmatprep.mubr.bf16.mxu0 0
        %2708 = vmatmul.mubr.bf16.gmra.mxu0 %v2673
        %v2709 = vpop.f32.mrf.mxu0
        %v2710 = vadd.f32 %v2666, %v2709
        %v2711 = vpop.f32.mrf.mxu0
        %v2712 = vpop.f32.mrf.mxu0
        %v2713 = vadd.f32 %v2667, %v2712
        %v2714 = vpop.f32.mrf.mxu0
        %2715 = vdwg.mxu0
        %v2716 = vrcp.pop %v2506
        %v2717 = vmul.f32 %v2710, %v2716
        %v2718 = vrcp.pop %v2507
        %v2719 = vmul.f32 %v2713, %v2718
        %v2720 = vadd.f32 %v2352, %v2717
        %v2721 = vadd.f32 %v2353, %v2719
        %vm2722 = vcmp.ge.s32.totalorder %v1601, 24
        %vm2723 = vcmp.lt.s32.totalorder %v1601, 32
        %vm2724 = vmand %vm2722, %vm2723
        %v2725 = vsel %vm2724, 1.0, 0.0
        %v2726 = vmul.f32 %v1491, %v2725
        %v2727 = vmul.f32 %v1492, %v2725
        %v2728 = vpack.c.bf16 %v2727, %v2726
        %v2729 = vmul.f32 %v1592, %v2725
        %v2730 = vmul.f32 %v1593, %v2725
        %v2731 = vmul.f32 %v1594, %v2725
        %v2732 = vmul.f32 %v1595, %v2725
        %v2733 = vmul.f32 %v1596, %v2725
        %v2734 = vmul.f32 %v1597, %v2725
        %v2735 = vmul.f32 %v1598, %v2725
        %v2736 = vmul.f32 %v1599, %v2725
        %v2737 = vsel %vm1446, %v2729, 0.0
        %2738 = vadd.xlane.f32.xlu0 %v2737
        %v2739 = vpop.xlane.xlu0 %2738
        %v2740 = vsel %vm1446, %v2730, 0.0
        %2741 = vadd.xlane.f32.xlu0 %v2740
        %v2742 = vpop.xlane.xlu0 %2741
        %v2743 = vsel %vm1446, %v2731, 0.0
        %2744 = vadd.xlane.f32.xlu0 %v2743
        %v2745 = vpop.xlane.xlu0 %2744
        %v2746 = vsel %vm1446, %v2732, 0.0
        %2747 = vadd.xlane.f32.xlu0 %v2746
        %v2748 = vpop.xlane.xlu0 %2747
        %v2749 = vsel %vm1446, %v2733, 0.0
        %2750 = vadd.xlane.f32.xlu0 %v2749
        %v2751 = vpop.xlane.xlu0 %2750
        %v2752 = vsel %vm1446, %v2734, 0.0
        %2753 = vadd.xlane.f32.xlu0 %v2752
        %v2754 = vpop.xlane.xlu0 %2753
        %v2755 = vsel %vm1446, %v2735, 0.0
        %2756 = vadd.xlane.f32.xlu0 %v2755
        %v2757 = vpop.xlane.xlu0 %2756
        %v2758 = vsel %vm1446, %v2736, 0.0
        %2759 = vadd.xlane.f32.xlu0 %v2758
        %v2760 = vpop.xlane.xlu0 %2759
        %v2761 = vmul.f32 %v2739, %v1410
        %v2762 = vmul.f32 %v2742, %v1411
        %v2763 = vmul.f32 %v2745, %v1412
        %v2764 = vmul.f32 %v2748, %v1413
        %v2765 = vmul.f32 %v2751, %v1414
        %v2766 = vmul.f32 %v2754, %v1415
        %v2767 = vmul.f32 %v2757, %v1416
        %v2768 = vmul.f32 %v2760, %v1417
        %v2769 = vpack.c.bf16 %v2762, %v2761
        %v2770 = vpack.c.bf16 %v2764, %v2763
        %v2771 = vpack.c.bf16 %v2766, %v2765
        %v2772 = vpack.c.bf16 %v2768, %v2767
        %2773 = vmatprep.subr.bf16.mxu0 0
        %2774 = vmatpush1.bf16.msra.mxu0 0
        %2775 = vmatprep.subr.bf16.mxu0 0
        %2776 = vmatpush1.bf16.msra.mxu0 0
        %2777 = vmatprep.subr.bf16.mxu0 0
        %2778 = vmatpush1.bf16.msra.mxu0 0
        %2779 = vmatprep.subr.bf16.mxu0 0
        %2780 = vmatpush1.bf16.msra.mxu0 0
        %2781 = vmatprep.subr.bf16.mxu0 0
        %2782 = vmatpush1.bf16.msra.mxu0 %v2772
        %2783 = vmatprep.subr.bf16.mxu0 0
        %2784 = vmatpush1.bf16.msra.mxu0 %v2771
        %2785 = vmatprep.subr.bf16.mxu0 0
        %2786 = vmatpush1.bf16.msra.mxu0 %v2770
        %2787 = vmatprep.subr.bf16.mxu0 0
        %2788 = vmatpush1.bf16.msra.mxu0 %v2769
        %2789 = vmatprep.subr.bf16.mxu0 0
        %2790 = vmatpush2.bf16.msra.mxu0 0
        %2791 = vmatprep.subr.bf16.mxu0 0
        %2792 = vmatpush2.bf16.msra.mxu0 0
        %2793 = vmatprep.subr.bf16.mxu0 0
        %2794 = vmatpush2.bf16.msra.mxu0 0
        %2795 = vmatprep.subr.bf16.mxu0 0
        %2796 = vmatpush2.bf16.msra.mxu0 0
        %2797 = vmatprep.subr.bf16.mxu0 0
        %2798 = vmatpush2.bf16.msra.mxu0 0
        %2799 = vmatprep.subr.bf16.mxu0 0
        %2800 = vmatpush2.bf16.msra.mxu0 0
        %2801 = vmatprep.subr.bf16.mxu0 0
        %2802 = vmatpush2.bf16.msra.mxu0 0
        %2803 = vmatprep.subr.bf16.mxu0 0
        %2804 = vmatpush2.bf16.msra.mxu0 0
        %2805 = vmatprep.mubr.bf16.mxu0 0
        %2806 = vmatmul.mubr.bf16.gmra.mxu0 %v1661
        %v2807 = vpop.f32.mrf.mxu0
        %v2808 = vadd.f32 0.0, %v2807
        %v2809 = vpop.f32.mrf.mxu0
        %v2810 = vpop.f32.mrf.mxu0
        %v2811 = vadd.f32 0.0, %v2810
        %v2812 = vpop.f32.mrf.mxu0
        %2813 = vdwg.mxu0
        %v2815 = vsel %vm1446, %v2728, 0
        %2817 = vmatprep.subr.bf16.mxu0 0
        %2818 = vmatpush1.bf16.xpose.msra.mxu0 0
        %2819 = vmatprep.subr.bf16.mxu0 0
        %2820 = vmatpush1.bf16.xpose.msra.mxu0 0
        %2821 = vmatprep.subr.bf16.mxu0 0
        %2822 = vmatpush1.bf16.xpose.msra.mxu0 0
        %2823 = vmatprep.subr.bf16.mxu0 0
        %2824 = vmatpush1.bf16.xpose.msra.mxu0 0
        %2825 = vmatprep.subr.bf16.mxu0 0
        %2826 = vmatpush1.bf16.xpose.msra.mxu0 0
        %2827 = vmatprep.subr.bf16.mxu0 0
        %2828 = vmatpush1.bf16.xpose.msra.mxu0 0
        %2829 = vmatprep.subr.bf16.mxu0 0
        %2830 = vmatpush1.bf16.xpose.msra.mxu0 0
        %2831 = vmatprep.subr.bf16.mxu0 0
        %2832 = vmatpush1.bf16.xpose.msra.mxu0 %v1711
        %2833 = vmatprep.subr.bf16.mxu0 0
        %2834 = vmatpush2.bf16.xpose.msra.mxu0 0
        %2835 = vmatprep.subr.bf16.mxu0 0
        %2836 = vmatpush2.bf16.xpose.msra.mxu0 0
        %2837 = vmatprep.subr.bf16.mxu0 0
        %2838 = vmatpush2.bf16.xpose.msra.mxu0 0
        %2839 = vmatprep.subr.bf16.mxu0 0
        %2840 = vmatpush2.bf16.xpose.msra.mxu0 0
        %2841 = vmatprep.subr.bf16.mxu0 0
        %2842 = vmatpush2.bf16.xpose.msra.mxu0 0
        %2843 = vmatprep.subr.bf16.mxu0 0
        %2844 = vmatpush2.bf16.xpose.msra.mxu0 0
        %2845 = vmatprep.subr.bf16.mxu0 0
        %2846 = vmatpush2.bf16.xpose.msra.mxu0 0
        %2847 = vmatprep.subr.bf16.mxu0 0
        %2848 = vmatpush2.bf16.xpose.msra.mxu0 0
        %2849 = vmatprep.mubr.bf16.mxu0 0
        %2850 = vmatmul.mubr.bf16.gmra.mxu0 %v2815
        %v2851 = vpop.f32.mrf.mxu0
        %v2852 = vadd.f32 %v2808, %v2851
        %v2853 = vpop.f32.mrf.mxu0
        %v2854 = vpop.f32.mrf.mxu0
        %v2855 = vadd.f32 %v2811, %v2854
        %v2856 = vpop.f32.mrf.mxu0
        %2857 = vdwg.mxu0
        %v2858 = vmax.f32 %v2852, -10.0
        %v2859 = vmax.f32 %v2855, -10.0
        %v2860 = vmin.f32 %v2858, 10.0
        %v2861 = vmin.f32 %v2859, 10.0
        %v2862 = vmul.f32 %v2860, 1.442695
        %v2863 = vpow.pop %v2862
        %v2864 = vmul.f32 %v2861, 1.442695
        %v2865 = vpow.pop %v2864
        %v2866 = vmul.f32 %v2863, %v1374
        %v2867 = vmul.f32 %v2865, %v1375
        %v2868 = vsel %vm1514, %v2866, 0.0
        %2869 = vadd.xlane.f32.xlu0 %v2868
        %v2870 = vpop.xlane.xlu0 %2869
        %v2871 = vsel %vm1514, %v2867, 0.0
        %2872 = vadd.xlane.f32.xlu0 %v2871
        %v2873 = vpop.xlane.xlu0 %2872
        %v2874 = vmax.f32 %v2870, 1e-09
        %v2875 = vmax.f32 %v2873, 1e-09
        %v2876 = vpack.c.bf16 %v2867, %v2866
        %2878 = vrot.lane.b32.xlu0 %v2725, 64
        %v2879 = vpop.permute.xlu0 %2878
        %v2881 = vmul.f32 %v1485, %v2879
        %v2882 = vmul.f32 %v1488, %v2879
        %v2883 = vpack.c.bf16 %v2882, %v2881
        %2884 = vmatprep.subr.bf16.mxu0 0
        %2885 = vmatpush1.bf16.msra.mxu0 0
        %2886 = vmatprep.subr.bf16.mxu0 0
        %2887 = vmatpush1.bf16.msra.mxu0 0
        %2888 = vmatprep.subr.bf16.mxu0 0
        %2889 = vmatpush1.bf16.msra.mxu0 0
        %2890 = vmatprep.subr.bf16.mxu0 0
        %2891 = vmatpush1.bf16.msra.mxu0 0
        %2892 = vmatprep.subr.bf16.mxu0 0
        %2893 = vmatpush1.bf16.msra.mxu0 0
        %2894 = vmatprep.subr.bf16.mxu0 0
        %2895 = vmatpush1.bf16.msra.mxu0 0
        %2896 = vmatprep.subr.bf16.mxu0 0
        %2897 = vmatpush1.bf16.msra.mxu0 0
        %2898 = vmatprep.subr.bf16.mxu0 0
        %2899 = vmatpush1.bf16.msra.mxu0 %v2876
        %2900 = vmatprep.subr.bf16.mxu0 0
        %2901 = vmatpush2.bf16.msra.mxu0 0
        %2902 = vmatprep.subr.bf16.mxu0 0
        %2903 = vmatpush2.bf16.msra.mxu0 0
        %2904 = vmatprep.subr.bf16.mxu0 0
        %2905 = vmatpush2.bf16.msra.mxu0 0
        %2906 = vmatprep.subr.bf16.mxu0 0
        %2907 = vmatpush2.bf16.msra.mxu0 0
        %2908 = vmatprep.subr.bf16.mxu0 0
        %2909 = vmatpush2.bf16.msra.mxu0 0
        %2910 = vmatprep.subr.bf16.mxu0 0
        %2911 = vmatpush2.bf16.msra.mxu0 0
        %2912 = vmatprep.subr.bf16.mxu0 0
        %2913 = vmatpush2.bf16.msra.mxu0 0
        %2914 = vmatprep.subr.bf16.mxu0 0
        %2915 = vmatpush2.bf16.msra.mxu0 0
        %2916 = vmatprep.mubr.bf16.mxu0 0
        %2917 = vmatmul.mubr.bf16.gmra.mxu0 %v1516
        %v2918 = vpop.f32.mrf.mxu0
        %v2919 = vadd.f32 0.0, %v2918
        %v2920 = vpop.f32.mrf.mxu0
        %v2921 = vpop.f32.mrf.mxu0
        %v2922 = vadd.f32 0.0, %v2921
        %v2923 = vpop.f32.mrf.mxu0
        %2924 = vmatprep.mubr.bf16.mxu0 0
        %2925 = vmatmul.mubr.bf16.gmra.mxu0 %v1519
        %v2926 = vpop.f32.mrf.mxu0
        %v2927 = vadd.f32 0.0, %v2926
        %v2928 = vpop.f32.mrf.mxu0
        %v2929 = vpop.f32.mrf.mxu0
        %v2930 = vadd.f32 0.0, %v2929
        %v2931 = vpop.f32.mrf.mxu0
        %2932 = vmatprep.mubr.bf16.mxu0 0
        %2933 = vmatmul.mubr.bf16.gmra.mxu0 %v1522
        %v2934 = vpop.f32.mrf.mxu0
        %v2935 = vadd.f32 0.0, %v2934
        %v2936 = vpop.f32.mrf.mxu0
        %v2937 = vpop.f32.mrf.mxu0
        %v2938 = vadd.f32 0.0, %v2937
        %v2939 = vpop.f32.mrf.mxu0
        %2940 = vmatprep.mubr.bf16.mxu0 0
        %2941 = vmatmul.mubr.bf16.gmra.mxu0 %v1525
        %v2942 = vpop.f32.mrf.mxu0
        %v2943 = vadd.f32 0.0, %v2942
        %v2944 = vpop.f32.mrf.mxu0
        %v2945 = vpop.f32.mrf.mxu0
        %v2946 = vadd.f32 0.0, %v2945
        %v2947 = vpop.f32.mrf.mxu0
        %2948 = vdwg.mxu0
        %v2949 = vmul.f32 %v2919, %v1410
        %v2950 = vmul.f32 %v2922, %v1411
        %v2951 = vmul.f32 %v2927, %v1412
        %v2952 = vmul.f32 %v2930, %v1413
        %v2953 = vmul.f32 %v2935, %v1414
        %v2954 = vmul.f32 %v2938, %v1415
        %v2955 = vmul.f32 %v2943, %v1416
        %v2956 = vmul.f32 %v2946, %v1417
        %v2957 = vsel %vm1514, %v2949, 0.0
        %2958 = vadd.xlane.f32.xlu0 %v2957
        %v2959 = vpop.xlane.xlu0 %2958
        %v2960 = vsel %vm1514, %v2950, 0.0
        %2961 = vadd.xlane.f32.xlu0 %v2960
        %v2962 = vpop.xlane.xlu0 %2961
        %v2963 = vsel %vm1514, %v2951, 0.0
        %2964 = vadd.xlane.f32.xlu0 %v2963
        %v2965 = vpop.xlane.xlu0 %2964
        %v2966 = vsel %vm1514, %v2952, 0.0
        %2967 = vadd.xlane.f32.xlu0 %v2966
        %v2968 = vpop.xlane.xlu0 %2967
        %v2969 = vsel %vm1514, %v2953, 0.0
        %2970 = vadd.xlane.f32.xlu0 %v2969
        %v2971 = vpop.xlane.xlu0 %2970
        %v2972 = vsel %vm1514, %v2954, 0.0
        %2973 = vadd.xlane.f32.xlu0 %v2972
        %v2974 = vpop.xlane.xlu0 %2973
        %v2975 = vsel %vm1514, %v2955, 0.0
        %2976 = vadd.xlane.f32.xlu0 %v2975
        %v2977 = vpop.xlane.xlu0 %2976
        %v2978 = vsel %vm1514, %v2956, 0.0
        %2979 = vadd.xlane.f32.xlu0 %v2978
        %v2980 = vpop.xlane.xlu0 %2979
        %v2981 = vmul.f32 %v2959, %v1364
        %v2982 = vmul.f32 %v2962, %v1365
        %v2983 = vmul.f32 %v2965, %v1366
        %v2984 = vmul.f32 %v2968, %v1367
        %v2985 = vmul.f32 %v2971, %v1368
        %v2986 = vmul.f32 %v2974, %v1369
        %v2987 = vmul.f32 %v2977, %v1370
        %v2988 = vmul.f32 %v2980, %v1371
        %v2989 = vpack.c.bf16 %v2982, %v2981
        %v2990 = vpack.c.bf16 %v2984, %v2983
        %v2991 = vpack.c.bf16 %v2986, %v2985
        %v2992 = vpack.c.bf16 %v2988, %v2987
        %2993 = vmatprep.subr.bf16.mxu0 0
        %2994 = vmatpush1.bf16.msra.mxu0 0
        %2995 = vmatprep.subr.bf16.mxu0 0
        %2996 = vmatpush1.bf16.msra.mxu0 0
        %2997 = vmatprep.subr.bf16.mxu0 0
        %2998 = vmatpush1.bf16.msra.mxu0 0
        %2999 = vmatprep.subr.bf16.mxu0 0
        %3000 = vmatpush1.bf16.msra.mxu0 0
        %3001 = vmatprep.subr.bf16.mxu0 0
        %3002 = vmatpush1.bf16.msra.mxu0 %v2992
        %3003 = vmatprep.subr.bf16.mxu0 0
        %3004 = vmatpush1.bf16.msra.mxu0 %v2991
        %3005 = vmatprep.subr.bf16.mxu0 0
        %3006 = vmatpush1.bf16.msra.mxu0 %v2990
        %3007 = vmatprep.subr.bf16.mxu0 0
        %3008 = vmatpush1.bf16.msra.mxu0 %v2989
        %3009 = vmatprep.subr.bf16.mxu0 0
        %3010 = vmatpush2.bf16.msra.mxu0 0
        %3011 = vmatprep.subr.bf16.mxu0 0
        %3012 = vmatpush2.bf16.msra.mxu0 0
        %3013 = vmatprep.subr.bf16.mxu0 0
        %3014 = vmatpush2.bf16.msra.mxu0 0
        %3015 = vmatprep.subr.bf16.mxu0 0
        %3016 = vmatpush2.bf16.msra.mxu0 0
        %3017 = vmatprep.subr.bf16.mxu0 0
        %3018 = vmatpush2.bf16.msra.mxu0 0
        %3019 = vmatprep.subr.bf16.mxu0 0
        %3020 = vmatpush2.bf16.msra.mxu0 0
        %3021 = vmatprep.subr.bf16.mxu0 0
        %3022 = vmatpush2.bf16.msra.mxu0 0
        %3023 = vmatprep.subr.bf16.mxu0 0
        %3024 = vmatpush2.bf16.msra.mxu0 0
        %3025 = vmatprep.mubr.bf16.mxu0 0
        %3026 = vmatmul.mubr.bf16.gmra.mxu0 %v1661
        %v3027 = vpop.f32.mrf.mxu0
        %v3028 = vadd.f32 0.0, %v3027
        %v3029 = vpop.f32.mrf.mxu0
        %v3030 = vpop.f32.mrf.mxu0
        %v3031 = vadd.f32 0.0, %v3030
        %v3032 = vpop.f32.mrf.mxu0
        %3033 = vdwg.mxu0
        %v3034 = vmul.f32 %v3028, %v2725
        %v3035 = vmul.f32 %v3031, %v2725
        %3037 = vrot.lane.b32.xlu0 %v2883, 64
        %v3038 = vpop.permute.xlu0 %3037
        %v3041 = vsel %vm1514, %v2876, 0
        %3043 = vmatprep.subr.bf16.mxu0 0
        %3044 = vmatpush1.bf16.msra.mxu0 0
        %3045 = vmatprep.subr.bf16.mxu0 0
        %3046 = vmatpush1.bf16.msra.mxu0 0
        %3047 = vmatprep.subr.bf16.mxu0 0
        %3048 = vmatpush1.bf16.msra.mxu0 0
        %3049 = vmatprep.subr.bf16.mxu0 0
        %3050 = vmatpush1.bf16.msra.mxu0 0
        %3051 = vmatprep.subr.bf16.mxu0 0
        %3052 = vmatpush1.bf16.msra.mxu0 0
        %3053 = vmatprep.subr.bf16.mxu0 0
        %3054 = vmatpush1.bf16.msra.mxu0 0
        %3055 = vmatprep.subr.bf16.mxu0 0
        %3056 = vmatpush1.bf16.msra.mxu0 0
        %3057 = vmatprep.subr.bf16.mxu0 0
        %3058 = vmatpush1.bf16.msra.mxu0 %v3038
        %3059 = vmatprep.subr.bf16.mxu0 0
        %3060 = vmatpush2.bf16.msra.mxu0 0
        %3061 = vmatprep.subr.bf16.mxu0 0
        %3062 = vmatpush2.bf16.msra.mxu0 0
        %3063 = vmatprep.subr.bf16.mxu0 0
        %3064 = vmatpush2.bf16.msra.mxu0 0
        %3065 = vmatprep.subr.bf16.mxu0 0
        %3066 = vmatpush2.bf16.msra.mxu0 0
        %3067 = vmatprep.subr.bf16.mxu0 0
        %3068 = vmatpush2.bf16.msra.mxu0 0
        %3069 = vmatprep.subr.bf16.mxu0 0
        %3070 = vmatpush2.bf16.msra.mxu0 0
        %3071 = vmatprep.subr.bf16.mxu0 0
        %3072 = vmatpush2.bf16.msra.mxu0 0
        %3073 = vmatprep.subr.bf16.mxu0 0
        %3074 = vmatpush2.bf16.msra.mxu0 0
        %3075 = vmatprep.mubr.bf16.mxu0 0
        %3076 = vmatmul.mubr.bf16.gmra.mxu0 %v3041
        %v3077 = vpop.f32.mrf.mxu0
        %v3078 = vadd.f32 %v3034, %v3077
        %v3079 = vpop.f32.mrf.mxu0
        %v3080 = vpop.f32.mrf.mxu0
        %v3081 = vadd.f32 %v3035, %v3080
        %v3082 = vpop.f32.mrf.mxu0
        %3083 = vdwg.mxu0
        %v3084 = vrcp.pop %v2874
        %v3085 = vmul.f32 %v3078, %v3084
        %v3086 = vrcp.pop %v2875
        %v3087 = vmul.f32 %v3081, %v3086
        %v3088 = vadd.f32 %v2720, %v3085
        %v3089 = vadd.f32 %v2721, %v3087
        %v3090 = vpack.c.bf16 %v3089, %v3088
        %v3091 = vld [vmem:[%s1260] sm:$0xf]
        %v3092 = vld [vmem:[%s1260 + $0x4] sm:$0xf]
        %v3093 = vld [vmem:[%s1260 + $0x8] sm:$0xf]
        %v3094 = vld [vmem:[%s1260 + $0xc] sm:$0xf]
        %v3095 = vld [vmem:[%s1263] sm:$0x1]
        %v3097 = vlaneseq
        %v3098 = vshrl.u32 %v3097, 7
        %v3099 = vsub.s32 0, %v3098
        %v3100 = vrot.slane %v3095, %v3099
        %v3106 = vunpack.c.l.b16 %v3091
        %v3107 = vunpack.c.l.b16 %v3092
        %v3108 = vunpack.c.l.b16 %v3093
        %v3109 = vunpack.c.l.b16 %v3094
        %v3110 = vpack.c.b16 %v3107, %v3106
        %v3111 = vpack.c.b16 %v3109, %v3108
        %v3115 = vsel %vm1446, %v3090, 0
        %3117 = vmatprep.subr.bf16.mxu0 0
        %3118 = vmatpush1.bf16.msra.mxu0 0
        %3119 = vmatprep.subr.bf16.mxu0 0
        %3120 = vmatpush1.bf16.msra.mxu0 0
        %3121 = vmatprep.subr.bf16.mxu0 0
        %3122 = vmatpush1.bf16.msra.mxu0 0
        %3123 = vmatprep.subr.bf16.mxu0 0
        %3124 = vmatpush1.bf16.msra.mxu0 0
        %3125 = vmatprep.subr.bf16.mxu0 0
        %3126 = vmatpush1.bf16.msra.mxu0 0
        %3127 = vmatprep.subr.bf16.mxu0 0
        %3128 = vmatpush1.bf16.msra.mxu0 0
        %3129 = vmatprep.subr.bf16.mxu0 0
        %3130 = vmatpush1.bf16.msra.mxu0 %v3111
        %3131 = vmatprep.subr.bf16.mxu0 0
        %3132 = vmatpush1.bf16.msra.mxu0 %v3110
        %3133 = vmatprep.subr.bf16.mxu0 0
        %3134 = vmatpush2.bf16.msra.mxu0 0
        %3135 = vmatprep.subr.bf16.mxu0 0
        %3136 = vmatpush2.bf16.msra.mxu0 0
        %3137 = vmatprep.subr.bf16.mxu0 0
        %3138 = vmatpush2.bf16.msra.mxu0 0
        %3139 = vmatprep.subr.bf16.mxu0 0
        %3140 = vmatpush2.bf16.msra.mxu0 0
        %3141 = vmatprep.subr.bf16.mxu0 0
        %3142 = vmatpush2.bf16.msra.mxu0 0
        %3143 = vmatprep.subr.bf16.mxu0 0
        %3144 = vmatpush2.bf16.msra.mxu0 0
        %3145 = vmatprep.subr.bf16.mxu0 0
        %3146 = vmatpush2.bf16.msra.mxu0 0
        %3147 = vmatprep.subr.bf16.mxu0 0
        %3148 = vmatpush2.bf16.msra.mxu0 0
        %3149 = vmatprep.mubr.bf16.mxu0 0
        %3150 = vmatmul.mubr.bf16.gmra.mxu0 %v3115
        %v3151 = vpop.f32.mrf.mxu0
        %v3152 = vadd.f32 %v3100, %v3151
        %v3153 = vpop.f32.mrf.mxu0
        %v3154 = vpop.f32.mrf.mxu0
        %v3155 = vadd.f32 %v3100, %v3154
        %v3156 = vpop.f32.mrf.mxu0
        %3157 = vdwg.mxu0
        %v3158 = vadd.f32 %v1362, %v3152
        %v3159 = vadd.f32 %v1363, %v3155
        %v3160 = vld [vmem:[%s1266] sm:$0x1]
        %v3161 = vld [vmem:[%s1269] sm:$0x1]
        %v3162 = vsel %vm1446, %v3158, 0.0
        %3163 = vadd.xlane.f32.xlu0 %v3162
        %v3164 = vpop.xlane.xlu0 %3163
        %v3165 = vsel %vm1446, %v3159, 0.0
        %3166 = vadd.xlane.f32.xlu0 %v3165
        %v3167 = vpop.xlane.xlu0 %3166
        %v3168 = vrcp.pop 32.0
        %v3169 = vmul.f32 %v3164, %v3168
        %v3170 = vmul.f32 %v3167, %v3168
        %v3171 = vsub.f32 %v3158, %v3169
        %v3172 = vsub.f32 %v3159, %v3170
        %v3173 = vmul.f32 %v3171, %v3171
        %v3174 = vmul.f32 %v3172, %v3172
        %v3175 = vsel %vm1446, %v3173, 0.0
        %3176 = vadd.xlane.f32.xlu0 %v3175
        %v3177 = vpop.xlane.xlu0 %3176
        %v3178 = vsel %vm1446, %v3174, 0.0
        %3179 = vadd.xlane.f32.xlu0 %v3178
        %v3180 = vpop.xlane.xlu0 %3179
        %v3181 = vmul.f32 %v3177, %v3168
        %v3182 = vmul.f32 %v3180, %v3168
        %v3183 = vadd.f32 %v3181, 1e-05
        %v3184 = vadd.f32 %v3182, 1e-05
        %v3185 = vrsqrt.pop %v3183
        %v3186 = vrsqrt.pop %v3184
        %v3187 = vmul.f32 %v3171, %v3185
        %v3188 = vmul.f32 %v3172, %v3186
        %v3190 = vlaneseq
        %v3191 = vshrl.u32 %v3190, 7
        %v3192 = vsub.s32 0, %v3191
        %v3193 = vrot.slane %v3160, %v3192
        %v3195 = vmul.f32 %v3187, %v3193
        %v3196 = vmul.f32 %v3188, %v3193
        %v3198 = vlaneseq
        %v3199 = vshrl.u32 %v3198, 7
        %v3200 = vsub.s32 0, %v3199
        %v3201 = vrot.slane %v3161, %v3200
        %v3203 = vadd.f32 %v3195, %v3201
        %v3204 = vadd.f32 %v3196, %v3201
        %v3205 = vld [vmem:[%s1274] sm:$0xf]
        %v3206 = vld [vmem:[%s1274 + $0x4] sm:$0xf]
        %v3207 = vld [vmem:[%s1274 + $0x8] sm:$0xf]
        %v3208 = vld [vmem:[%s1274 + $0xc] sm:$0xf]
        %v3209 = vld [vmem:[%s1277] sm:$0x1]
        %v3210 = vld [vmem:[%s1282] sm:$0xf]
        %v3211 = vld [vmem:[%s1282 + $0x4] sm:$0xf]
        %v3212 = vld [vmem:[%s1282 + $0x8] sm:$0xf]
        %v3213 = vld [vmem:[%s1282 + $0xc] sm:$0xf]
        %v3214 = vld [vmem:[%s1282 + $0x10] sm:$0xf]
        %v3215 = vld [vmem:[%s1282 + $0x14] sm:$0xf]
        %v3216 = vld [vmem:[%s1282 + $0x18] sm:$0xf]
        %v3217 = vld [vmem:[%s1282 + $0x1c] sm:$0xf]
        %v3218 = vld [vmem:[%s1282 + $0x20] sm:$0xf]
        %v3219 = vld [vmem:[%s1282 + $0x24] sm:$0xf]
        %v3220 = vld [vmem:[%s1282 + $0x28] sm:$0xf]
        %v3221 = vld [vmem:[%s1282 + $0x2c] sm:$0xf]
        %v3222 = vld [vmem:[%s1282 + $0x30] sm:$0xf]
        %v3223 = vld [vmem:[%s1282 + $0x34] sm:$0xf]
        %v3224 = vld [vmem:[%s1282 + $0x38] sm:$0xf]
        %v3225 = vld [vmem:[%s1282 + $0x3c] sm:$0xf]
        %v3226 = vld [vmem:[%s1285] sm:$0x1]
        %v3227 = vld [vmem:[%s1288] sm:$0x1]
        %v3228 = vld [vmem:[%s1291] sm:$0x1]
        %v3229 = vpack.c.bf16 %v3204, %v3203
        %v3231 = vlaneseq
        %v3232 = vshrl.u32 %v3231, 7
        %v3233 = vsub.s32 0, %v3232
        %v3234 = vrot.slane %v3209, %v3233
        %v3240 = vunpack.c.l.b16 %v3205
        %v3241 = vunpack.c.l.b16 %v3206
        %v3242 = vunpack.c.l.b16 %v3207
        %v3243 = vunpack.c.l.b16 %v3208
        %v3244 = vpack.c.b16 %v3241, %v3240
        %v3245 = vpack.c.b16 %v3243, %v3242
        %v3249 = vsel %vm1446, %v3229, 0
        %3251 = vmatprep.subr.bf16.mxu0 0
        %3252 = vmatpush1.bf16.msra.mxu0 0
        %3253 = vmatprep.subr.bf16.mxu0 0
        %3254 = vmatpush1.bf16.msra.mxu0 0
        %3255 = vmatprep.subr.bf16.mxu0 0
        %3256 = vmatpush1.bf16.msra.mxu0 0
        %3257 = vmatprep.subr.bf16.mxu0 0
        %3258 = vmatpush1.bf16.msra.mxu0 0
        %3259 = vmatprep.subr.bf16.mxu0 0
        %3260 = vmatpush1.bf16.msra.mxu0 0
        %3261 = vmatprep.subr.bf16.mxu0 0
        %3262 = vmatpush1.bf16.msra.mxu0 0
        %3263 = vmatprep.subr.bf16.mxu0 0
        %3264 = vmatpush1.bf16.msra.mxu0 %v3245
        %3265 = vmatprep.subr.bf16.mxu0 0
        %3266 = vmatpush1.bf16.msra.mxu0 %v3244
        %3267 = vmatprep.subr.bf16.mxu0 0
        %3268 = vmatpush2.bf16.msra.mxu0 0
        %3269 = vmatprep.subr.bf16.mxu0 0
        %3270 = vmatpush2.bf16.msra.mxu0 0
        %3271 = vmatprep.subr.bf16.mxu0 0
        %3272 = vmatpush2.bf16.msra.mxu0 0
        %3273 = vmatprep.subr.bf16.mxu0 0
        %3274 = vmatpush2.bf16.msra.mxu0 0
        %3275 = vmatprep.subr.bf16.mxu0 0
        %3276 = vmatpush2.bf16.msra.mxu0 0
        %3277 = vmatprep.subr.bf16.mxu0 0
        %3278 = vmatpush2.bf16.msra.mxu0 0
        %3279 = vmatprep.subr.bf16.mxu0 0
        %3280 = vmatpush2.bf16.msra.mxu0 0
        %3281 = vmatprep.subr.bf16.mxu0 0
        %3282 = vmatpush2.bf16.msra.mxu0 0
        %3283 = vmatprep.mubr.bf16.mxu0 0
        %3284 = vmatmul.mubr.bf16.gmra.mxu0 %v3249
        %v3285 = vpop.f32.mrf.mxu0
        %v3286 = vadd.f32 %v3234, %v3285
        %v3287 = vpop.f32.mrf.mxu0
        %v3288 = vpop.f32.mrf.mxu0
        %v3289 = vadd.f32 %v3234, %v3288
        %v3290 = vpop.f32.mrf.mxu0
        %3291 = vdwg.mxu0
        %v3292 = vmax.f32 %v3286, 0.0
        %v3293 = vmax.f32 %v3289, 0.0
        %v3294 = vpack.c.bf16 %v3293, %v3292
        %v3296 = vlaneseq
        %v3297 = vshrl.u32 %v3296, 7
        %v3298 = vsub.s32 0, %v3297
        %v3299 = vrot.slane %v3226, %v3298
        %v3317 = vunpack.c.l.b16 %v3210
        %v3318 = vunpack.c.l.b16 %v3211
        %v3319 = vunpack.c.l.b16 %v3212
        %v3320 = vunpack.c.l.b16 %v3213
        %v3321 = vunpack.c.l.b16 %v3214
        %v3322 = vunpack.c.l.b16 %v3215
        %v3323 = vunpack.c.l.b16 %v3216
        %v3324 = vunpack.c.l.b16 %v3217
        %v3325 = vunpack.c.l.b16 %v3218
        %v3326 = vunpack.c.l.b16 %v3219
        %v3327 = vunpack.c.l.b16 %v3220
        %v3328 = vunpack.c.l.b16 %v3221
        %v3329 = vunpack.c.l.b16 %v3222
        %v3330 = vunpack.c.l.b16 %v3223
        %v3331 = vunpack.c.l.b16 %v3224
        %v3332 = vunpack.c.l.b16 %v3225
        %v3333 = vpack.c.b16 %v3318, %v3317
        %v3334 = vpack.c.b16 %v3320, %v3319
        %v3335 = vpack.c.b16 %v3322, %v3321
        %v3336 = vpack.c.b16 %v3324, %v3323
        %v3337 = vpack.c.b16 %v3326, %v3325
        %v3338 = vpack.c.b16 %v3328, %v3327
        %v3339 = vpack.c.b16 %v3330, %v3329
        %v3340 = vpack.c.b16 %v3332, %v3331
        %3349 = vmatprep.subr.bf16.mxu0 0
        %3350 = vmatpush1.bf16.msra.mxu0 %v3340
        %3351 = vmatprep.subr.bf16.mxu0 0
        %3352 = vmatpush1.bf16.msra.mxu0 %v3339
        %3353 = vmatprep.subr.bf16.mxu0 0
        %3354 = vmatpush1.bf16.msra.mxu0 %v3338
        %3355 = vmatprep.subr.bf16.mxu0 0
        %3356 = vmatpush1.bf16.msra.mxu0 %v3337
        %3357 = vmatprep.subr.bf16.mxu0 0
        %3358 = vmatpush1.bf16.msra.mxu0 %v3336
        %3359 = vmatprep.subr.bf16.mxu0 0
        %3360 = vmatpush1.bf16.msra.mxu0 %v3335
        %3361 = vmatprep.subr.bf16.mxu0 0
        %3362 = vmatpush1.bf16.msra.mxu0 %v3334
        %3363 = vmatprep.subr.bf16.mxu0 0
        %3364 = vmatpush1.bf16.msra.mxu0 %v3333
        %3365 = vmatprep.subr.bf16.mxu0 0
        %3366 = vmatpush2.bf16.msra.mxu0 0
        %3367 = vmatprep.subr.bf16.mxu0 0
        %3368 = vmatpush2.bf16.msra.mxu0 0
        %3369 = vmatprep.subr.bf16.mxu0 0
        %3370 = vmatpush2.bf16.msra.mxu0 0
        %3371 = vmatprep.subr.bf16.mxu0 0
        %3372 = vmatpush2.bf16.msra.mxu0 0
        %3373 = vmatprep.subr.bf16.mxu0 0
        %3374 = vmatpush2.bf16.msra.mxu0 0
        %3375 = vmatprep.subr.bf16.mxu0 0
        %3376 = vmatpush2.bf16.msra.mxu0 0
        %3377 = vmatprep.subr.bf16.mxu0 0
        %3378 = vmatpush2.bf16.msra.mxu0 0
        %3379 = vmatprep.subr.bf16.mxu0 0
        %3380 = vmatpush2.bf16.msra.mxu0 0
        %3381 = vmatprep.mubr.bf16.mxu0 0
        %3382 = vmatmul.mubr.bf16.gmra.mxu0 %v3294
        %v3383 = vpop.f32.mrf.mxu0
        %v3384 = vadd.f32 %v3299, %v3383
        %v3385 = vpop.f32.mrf.mxu0
        %v3386 = vpop.f32.mrf.mxu0
        %v3387 = vadd.f32 %v3299, %v3386
        %v3388 = vpop.f32.mrf.mxu0
        %3389 = vdwg.mxu0
        %v3390 = vadd.f32 %v3203, %v3384
        %v3391 = vadd.f32 %v3204, %v3387
        %v3392 = vsel %vm1446, %v3390, 0.0
        %3393 = vadd.xlane.f32.xlu0 %v3392
        %v3394 = vpop.xlane.xlu0 %3393
        %v3395 = vsel %vm1446, %v3391, 0.0
        %3396 = vadd.xlane.f32.xlu0 %v3395
        %v3397 = vpop.xlane.xlu0 %3396
        %v3398 = vmul.f32 %v3394, %v3168
        %v3399 = vmul.f32 %v3397, %v3168
        %v3400 = vsub.f32 %v3390, %v3398
        %v3401 = vsub.f32 %v3391, %v3399
        %v3402 = vmul.f32 %v3400, %v3400
        %v3403 = vmul.f32 %v3401, %v3401
        %v3404 = vsel %vm1446, %v3402, 0.0
        %3405 = vadd.xlane.f32.xlu0 %v3404
        %v3406 = vpop.xlane.xlu0 %3405
        %v3407 = vsel %vm1446, %v3403, 0.0
        %3408 = vadd.xlane.f32.xlu0 %v3407
        %v3409 = vpop.xlane.xlu0 %3408
        %v3410 = vmul.f32 %v3406, %v3168
        %v3411 = vmul.f32 %v3409, %v3168
        %v3412 = vadd.f32 %v3410, 1e-05
        %v3413 = vadd.f32 %v3411, 1e-05
        %v3414 = vrsqrt.pop %v3412
        %v3415 = vrsqrt.pop %v3413
        %v3416 = vmul.f32 %v3400, %v3414
        %v3417 = vmul.f32 %v3401, %v3415
        %v3419 = vlaneseq
        %v3420 = vshrl.u32 %v3419, 7
        %v3421 = vsub.s32 0, %v3420
        %v3422 = vrot.slane %v3227, %v3421
        %v3424 = vmul.f32 %v3416, %v3422
        %v3425 = vmul.f32 %v3417, %v3422
        %v3427 = vlaneseq
        %v3428 = vshrl.u32 %v3427, 7
        %v3429 = vsub.s32 0, %v3428
        %v3430 = vrot.slane %v3228, %v3429
        %v3432 = vadd.f32 %v3424, %v3430
        %v3433 = vadd.f32 %v3425, %v3430
        %v3442 = vunpack.c.l.b16 %v1392
        %v3443 = vunpack.c.l.b16 %v1393
        %v3444 = vunpack.c.l.b16 %v1394
        %v3445 = vunpack.c.l.b16 %v1395
        %v3446 = vunpack.c.l.b16 %v1396
        %v3447 = vunpack.c.l.b16 %v1397
        %v3448 = vunpack.c.l.b16 %v1398
        %v3449 = vunpack.c.l.b16 %v1399
        %v3450 = vpack.c.b16 %v3443, %v3442
        %v3451 = vpack.c.b16 %v3445, %v3444
        %v3452 = vpack.c.b16 %v3447, %v3446
        %v3453 = vpack.c.b16 %v3449, %v3448
        %v3455 = vsel %vm1514, %v3450, 0
        %v3458 = vsel %vm1514, %v3451, 0
        %v3461 = vsel %vm1514, %v3452, 0
        %v3464 = vsel %vm1514, %v3453, 0
        %3466 = vmatprep.subr.bf16.mxu0 0
        %3467 = vmatpush1.bf16.msra.mxu0 0
        %3468 = vmatprep.subr.bf16.mxu0 0
        %3469 = vmatpush1.bf16.msra.mxu0 0
        %3470 = vmatprep.subr.bf16.mxu0 0
        %3471 = vmatpush1.bf16.msra.mxu0 0
        %3472 = vmatprep.subr.bf16.mxu0 0
        %3473 = vmatpush1.bf16.msra.mxu0 0
        %3474 = vmatprep.subr.bf16.mxu0 0
        %3475 = vmatpush1.bf16.msra.mxu0 0
        %3476 = vmatprep.subr.bf16.mxu0 0
        %3477 = vmatpush1.bf16.msra.mxu0 0
        %3478 = vmatprep.subr.bf16.mxu0 0
        %3479 = vmatpush1.bf16.msra.mxu0 0
        %3480 = vmatprep.subr.bf16.mxu0 0
        %3481 = vmatpush1.bf16.msra.mxu0 %v1418
        %3482 = vmatprep.subr.bf16.mxu0 0
        %3483 = vmatpush2.bf16.msra.mxu0 0
        %3484 = vmatprep.subr.bf16.mxu0 0
        %3485 = vmatpush2.bf16.msra.mxu0 0
        %3486 = vmatprep.subr.bf16.mxu0 0
        %3487 = vmatpush2.bf16.msra.mxu0 0
        %3488 = vmatprep.subr.bf16.mxu0 0
        %3489 = vmatpush2.bf16.msra.mxu0 0
        %3490 = vmatprep.subr.bf16.mxu0 0
        %3491 = vmatpush2.bf16.msra.mxu0 0
        %3492 = vmatprep.subr.bf16.mxu0 0
        %3493 = vmatpush2.bf16.msra.mxu0 0
        %3494 = vmatprep.subr.bf16.mxu0 0
        %3495 = vmatpush2.bf16.msra.mxu0 0
        %3496 = vmatprep.subr.bf16.mxu0 0
        %3497 = vmatpush2.bf16.msra.mxu0 0
        %3498 = vmatprep.mubr.bf16.mxu0 0
        %3499 = vmatmul.mubr.bf16.gmra.mxu0 %v3455
        %v3500 = vpop.f32.mrf.mxu0
        %v3501 = vadd.f32 0.0, %v3500
        %v3502 = vpop.f32.mrf.mxu0
        %v3503 = vpop.f32.mrf.mxu0
        %v3504 = vadd.f32 0.0, %v3503
        %v3505 = vpop.f32.mrf.mxu0
        %3506 = vmatprep.mubr.bf16.mxu0 0
        %3507 = vmatmul.mubr.bf16.gmra.mxu0 %v3458
        %v3508 = vpop.f32.mrf.mxu0
        %v3509 = vadd.f32 0.0, %v3508
        %v3510 = vpop.f32.mrf.mxu0
        %v3511 = vpop.f32.mrf.mxu0
        %v3512 = vadd.f32 0.0, %v3511
        %v3513 = vpop.f32.mrf.mxu0
        %3514 = vmatprep.mubr.bf16.mxu0 0
        %3515 = vmatmul.mubr.bf16.gmra.mxu0 %v3461
        %v3516 = vpop.f32.mrf.mxu0
        %v3517 = vadd.f32 0.0, %v3516
        %v3518 = vpop.f32.mrf.mxu0
        %v3519 = vpop.f32.mrf.mxu0
        %v3520 = vadd.f32 0.0, %v3519
        %v3521 = vpop.f32.mrf.mxu0
        %3522 = vmatprep.mubr.bf16.mxu0 0
        %3523 = vmatmul.mubr.bf16.gmra.mxu0 %v3464
        %v3524 = vpop.f32.mrf.mxu0
        %v3525 = vadd.f32 0.0, %v3524
        %v3526 = vpop.f32.mrf.mxu0
        %v3527 = vpop.f32.mrf.mxu0
        %v3528 = vadd.f32 0.0, %v3527
        %v3529 = vpop.f32.mrf.mxu0
        %3530 = vdwg.mxu0
        %3531 = vmatprep.subr.bf16.mxu0 0
        %3532 = vmatpush1.bf16.msra.mxu0 0
        %3533 = vmatprep.subr.bf16.mxu0 0
        %3534 = vmatpush1.bf16.msra.mxu0 0
        %3535 = vmatprep.subr.bf16.mxu0 0
        %3536 = vmatpush1.bf16.msra.mxu0 0
        %3537 = vmatprep.subr.bf16.mxu0 0
        %3538 = vmatpush1.bf16.msra.mxu0 0
        %3539 = vmatprep.subr.bf16.mxu0 0
        %3540 = vmatpush1.bf16.msra.mxu0 0
        %3541 = vmatprep.subr.bf16.mxu0 0
        %3542 = vmatpush1.bf16.msra.mxu0 0
        %3543 = vmatprep.subr.bf16.mxu0 0
        %3544 = vmatpush1.bf16.msra.mxu0 0
        %3545 = vmatprep.subr.bf16.mxu0 0
        %3546 = vmatpush1.bf16.msra.mxu0 %v1418
        %3547 = vmatprep.subr.bf16.mxu0 0
        %3548 = vmatpush2.bf16.msra.mxu0 0
        %3549 = vmatprep.subr.bf16.mxu0 0
        %3550 = vmatpush2.bf16.msra.mxu0 0
        %3551 = vmatprep.subr.bf16.mxu0 0
        %3552 = vmatpush2.bf16.msra.mxu0 0
        %3553 = vmatprep.subr.bf16.mxu0 0
        %3554 = vmatpush2.bf16.msra.mxu0 0
        %3555 = vmatprep.subr.bf16.mxu0 0
        %3556 = vmatpush2.bf16.msra.mxu0 0
        %3557 = vmatprep.subr.bf16.mxu0 0
        %3558 = vmatpush2.bf16.msra.mxu0 0
        %3559 = vmatprep.subr.bf16.mxu0 0
        %3560 = vmatpush2.bf16.msra.mxu0 0
        %3561 = vmatprep.subr.bf16.mxu0 0
        %3562 = vmatpush2.bf16.msra.mxu0 0
        %3563 = vmatprep.mubr.bf16.mxu0 0
        %3564 = vmatmul.mubr.bf16.gmra.mxu0 %v1516
        %v3565 = vpop.f32.mrf.mxu0
        %v3566 = vadd.f32 0.0, %v3565
        %v3567 = vpop.f32.mrf.mxu0
        %v3568 = vpop.f32.mrf.mxu0
        %v3569 = vadd.f32 0.0, %v3568
        %v3570 = vpop.f32.mrf.mxu0
        %3571 = vmatprep.mubr.bf16.mxu0 0
        %3572 = vmatmul.mubr.bf16.gmra.mxu0 %v1519
        %v3573 = vpop.f32.mrf.mxu0
        %v3574 = vadd.f32 0.0, %v3573
        %v3575 = vpop.f32.mrf.mxu0
        %v3576 = vpop.f32.mrf.mxu0
        %v3577 = vadd.f32 0.0, %v3576
        %v3578 = vpop.f32.mrf.mxu0
        %3579 = vmatprep.mubr.bf16.mxu0 0
        %3580 = vmatmul.mubr.bf16.gmra.mxu0 %v1522
        %v3581 = vpop.f32.mrf.mxu0
        %v3582 = vadd.f32 0.0, %v3581
        %v3583 = vpop.f32.mrf.mxu0
        %v3584 = vpop.f32.mrf.mxu0
        %v3585 = vadd.f32 0.0, %v3584
        %v3586 = vpop.f32.mrf.mxu0
        %3587 = vmatprep.mubr.bf16.mxu0 0
        %3588 = vmatmul.mubr.bf16.gmra.mxu0 %v1525
        %v3589 = vpop.f32.mrf.mxu0
        %v3590 = vadd.f32 0.0, %v3589
        %v3591 = vpop.f32.mrf.mxu0
        %v3592 = vpop.f32.mrf.mxu0
        %v3593 = vadd.f32 0.0, %v3592
        %v3594 = vpop.f32.mrf.mxu0
        %3595 = vdwg.mxu0
        %v3596 = vld [vmem:[%s1296] sm:$0xf]
        %v3597 = vld [vmem:[%s1296 + $0x4] sm:$0xf]
        %v3598 = vld [vmem:[%s1296 + $0x8] sm:$0xf]
        %v3599 = vld [vmem:[%s1296 + $0xc] sm:$0xf]
        %v3600 = vld [vmem:[%s1299] sm:$0x1]
        %v3602 = vlaneseq
        %v3603 = vshrl.u32 %v3602, 7
        %v3604 = vsub.s32 0, %v3603
        %v3605 = vrot.slane %v3600, %v3604
        %v3611 = vunpack.c.l.b16 %v3596
        %v3612 = vunpack.c.l.b16 %v3597
        %v3613 = vunpack.c.l.b16 %v3598
        %v3614 = vunpack.c.l.b16 %v3599
        %v3615 = vpack.c.b16 %v3612, %v3611
        %v3616 = vpack.c.b16 %v3614, %v3613
        %v3620 = vsel %vm1446, %v1419, 0
        %v3623 = vsel %vm1446, %v1420, 0
        %v3626 = vsel %vm1446, %v1421, 0
        %v3629 = vsel %vm1446, %v1422, 0
        %3631 = vmatprep.subr.bf16.mxu0 0
        %3632 = vmatpush1.bf16.msra.mxu0 0
        %3633 = vmatprep.subr.bf16.mxu0 0
        %3634 = vmatpush1.bf16.msra.mxu0 0
        %3635 = vmatprep.subr.bf16.mxu0 0
        %3636 = vmatpush1.bf16.msra.mxu0 0
        %3637 = vmatprep.subr.bf16.mxu0 0
        %3638 = vmatpush1.bf16.msra.mxu0 0
        %3639 = vmatprep.subr.bf16.mxu0 0
        %3640 = vmatpush1.bf16.msra.mxu0 0
        %3641 = vmatprep.subr.bf16.mxu0 0
        %3642 = vmatpush1.bf16.msra.mxu0 0
        %3643 = vmatprep.subr.bf16.mxu0 0
        %3644 = vmatpush1.bf16.msra.mxu0 %v3616
        %3645 = vmatprep.subr.bf16.mxu0 0
        %3646 = vmatpush1.bf16.msra.mxu0 %v3615
        %3647 = vmatprep.subr.bf16.mxu0 0
        %3648 = vmatpush2.bf16.msra.mxu0 0
        %3649 = vmatprep.subr.bf16.mxu0 0
        %3650 = vmatpush2.bf16.msra.mxu0 0
        %3651 = vmatprep.subr.bf16.mxu0 0
        %3652 = vmatpush2.bf16.msra.mxu0 0
        %3653 = vmatprep.subr.bf16.mxu0 0
        %3654 = vmatpush2.bf16.msra.mxu0 0
        %3655 = vmatprep.subr.bf16.mxu0 0
        %3656 = vmatpush2.bf16.msra.mxu0 0
        %3657 = vmatprep.subr.bf16.mxu0 0
        %3658 = vmatpush2.bf16.msra.mxu0 0
        %3659 = vmatprep.subr.bf16.mxu0 0
        %3660 = vmatpush2.bf16.msra.mxu0 0
        %3661 = vmatprep.subr.bf16.mxu0 0
        %3662 = vmatpush2.bf16.msra.mxu0 0
        %3663 = vmatprep.mubr.bf16.mxu0 0
        %3664 = vmatmul.mubr.bf16.gmra.mxu0 %v3620
        %v3665 = vpop.f32.mrf.mxu0
        %v3666 = vadd.f32 %v3605, %v3665
        %v3667 = vpop.f32.mrf.mxu0
        %v3668 = vpop.f32.mrf.mxu0
        %v3669 = vadd.f32 %v3605, %v3668
        %v3670 = vpop.f32.mrf.mxu0
        %3671 = vmatprep.mubr.bf16.mxu0 0
        %3672 = vmatmul.mubr.bf16.gmra.mxu0 %v3623
        %v3673 = vpop.f32.mrf.mxu0
        %v3674 = vadd.f32 %v3605, %v3673
        %v3675 = vpop.f32.mrf.mxu0
        %v3676 = vpop.f32.mrf.mxu0
        %v3677 = vadd.f32 %v3605, %v3676
        %v3678 = vpop.f32.mrf.mxu0
        %3679 = vmatprep.mubr.bf16.mxu0 0
        %3680 = vmatmul.mubr.bf16.gmra.mxu0 %v3626
        %v3681 = vpop.f32.mrf.mxu0
        %v3682 = vadd.f32 %v3605, %v3681
        %v3683 = vpop.f32.mrf.mxu0
        %v3684 = vpop.f32.mrf.mxu0
        %v3685 = vadd.f32 %v3605, %v3684
        %v3686 = vpop.f32.mrf.mxu0
        %3687 = vmatprep.mubr.bf16.mxu0 0
        %3688 = vmatmul.mubr.bf16.gmra.mxu0 %v3629
        %v3689 = vpop.f32.mrf.mxu0
        %v3690 = vadd.f32 %v3605, %v3689
        %v3691 = vpop.f32.mrf.mxu0
        %v3692 = vpop.f32.mrf.mxu0
        %v3693 = vadd.f32 %v3605, %v3692
        %v3694 = vpop.f32.mrf.mxu0
        %3695 = vdwg.mxu0
        %v3696 = vadd.f32 %v3666, %v3501
        %v3697 = vadd.f32 %v3669, %v3504
        %v3698 = vadd.f32 %v3674, %v3509
        %v3699 = vadd.f32 %v3677, %v3512
        %v3700 = vadd.f32 %v3682, %v3517
        %v3701 = vadd.f32 %v3685, %v3520
        %v3702 = vadd.f32 %v3690, %v3525
        %v3703 = vadd.f32 %v3693, %v3528
        %v3704 = vmul.f32 %v3696, 0.35355338
        %v3705 = vmul.f32 %v3697, 0.35355338
        %v3706 = vmul.f32 %v3698, 0.35355338
        %v3707 = vmul.f32 %v3699, 0.35355338
        %v3708 = vmul.f32 %v3700, 0.35355338
        %v3709 = vmul.f32 %v3701, 0.35355338
        %v3710 = vmul.f32 %v3702, 0.35355338
        %v3711 = vmul.f32 %v3703, 0.35355338
        %3720 = vrot.lane.b32.xlu0 %v3566, 64
        %v3721 = vpop.permute.xlu0 %3720
        %3722 = vrot.lane.b32.xlu0 %v3569, 64
        %v3723 = vpop.permute.xlu0 %3722
        %3724 = vrot.lane.b32.xlu0 %v3574, 64
        %v3725 = vpop.permute.xlu0 %3724
        %3726 = vrot.lane.b32.xlu0 %v3577, 64
        %v3727 = vpop.permute.xlu0 %3726
        %3728 = vrot.lane.b32.xlu0 %v3582, 64
        %v3729 = vpop.permute.xlu0 %3728
        %3730 = vrot.lane.b32.xlu0 %v3585, 64
        %v3731 = vpop.permute.xlu0 %3730
        %3732 = vrot.lane.b32.xlu0 %v3590, 64
        %v3733 = vpop.permute.xlu0 %3732
        %3734 = vrot.lane.b32.xlu0 %v3593, 64
        %v3735 = vpop.permute.xlu0 %3734
        %v3744 = vadd.f32 %v3666, %v3721
        %v3745 = vadd.f32 %v3669, %v3723
        %v3746 = vadd.f32 %v3674, %v3725
        %v3747 = vadd.f32 %v3677, %v3727
        %v3748 = vadd.f32 %v3682, %v3729
        %v3749 = vadd.f32 %v3685, %v3731
        %v3750 = vadd.f32 %v3690, %v3733
        %v3751 = vadd.f32 %v3693, %v3735
        %v3752 = vpack.c.bf16 %v3669, %v3666
        %v3753 = vpack.c.bf16 %v3677, %v3674
        %v3754 = vpack.c.bf16 %v3685, %v3682
        %v3755 = vpack.c.bf16 %v3693, %v3690
        %v3756 = vmul.f32 %v3704, %v1606
        %v3757 = vmul.f32 %v3705, %v1606
        %v3758 = vmul.f32 %v3706, %v1606
        %v3759 = vmul.f32 %v3707, %v1606
        %v3760 = vmul.f32 %v3708, %v1606
        %v3761 = vmul.f32 %v3709, %v1606
        %v3762 = vmul.f32 %v3710, %v1606
        %v3763 = vmul.f32 %v3711, %v1606
        %v3764 = vpack.c.bf16 %v3757, %v3756
        %v3765 = vpack.c.bf16 %v3759, %v3758
        %v3766 = vpack.c.bf16 %v3761, %v3760
        %v3767 = vpack.c.bf16 %v3763, %v3762
        %3772 = vrot.lane.b32.xlu0 %v3752, 96
        %v3773 = vpop.permute.xlu0 %3772
        %3774 = vrot.lane.b32.xlu0 %v3753, 96
        %v3775 = vpop.permute.xlu0 %3774
        %3776 = vrot.lane.b32.xlu0 %v3754, 96
        %v3777 = vpop.permute.xlu0 %3776
        %3778 = vrot.lane.b32.xlu0 %v3755, 96
        %v3779 = vpop.permute.xlu0 %3778
        %v3781 = vsel %vm1446, %v3764, 0
        %v3784 = vsel %vm1446, %v3765, 0
        %v3787 = vsel %vm1446, %v3766, 0
        %v3790 = vsel %vm1446, %v3767, 0
        %v3793 = vsel %vm1446, %v3773, 0
        %v3796 = vsel %vm1446, %v3775, 0
        %v3799 = vsel %vm1446, %v3777, 0
        %v3802 = vsel %vm1446, %v3779, 0
        %3804 = vmatprep.subr.bf16.mxu0 0
        %3805 = vmatpush1.bf16.xpose.msra.mxu0 0
        %3806 = vmatprep.subr.bf16.mxu0 0
        %3807 = vmatpush1.bf16.xpose.msra.mxu0 0
        %3808 = vmatprep.subr.bf16.mxu0 0
        %3809 = vmatpush1.bf16.xpose.msra.mxu0 0
        %3810 = vmatprep.subr.bf16.mxu0 0
        %3811 = vmatpush1.bf16.xpose.msra.mxu0 0
        %3812 = vmatprep.subr.bf16.mxu0 0
        %3813 = vmatpush1.bf16.xpose.msra.mxu0 %v3802
        %3814 = vmatprep.subr.bf16.mxu0 0
        %3815 = vmatpush1.bf16.xpose.msra.mxu0 %v3799
        %3816 = vmatprep.subr.bf16.mxu0 0
        %3817 = vmatpush1.bf16.xpose.msra.mxu0 %v3796
        %3818 = vmatprep.subr.bf16.mxu0 0
        %3819 = vmatpush1.bf16.xpose.msra.mxu0 %v3793
        %3820 = vmatprep.subr.bf16.mxu0 0
        %3821 = vmatpush2.bf16.xpose.msra.mxu0 0
        %3822 = vmatprep.subr.bf16.mxu0 0
        %3823 = vmatpush2.bf16.xpose.msra.mxu0 0
        %3824 = vmatprep.subr.bf16.mxu0 0
        %3825 = vmatpush2.bf16.xpose.msra.mxu0 0
        %3826 = vmatprep.subr.bf16.mxu0 0
        %3827 = vmatpush2.bf16.xpose.msra.mxu0 0
        %3828 = vmatprep.subr.bf16.mxu0 0
        %3829 = vmatpush2.bf16.xpose.msra.mxu0 0
        %3830 = vmatprep.subr.bf16.mxu0 0
        %3831 = vmatpush2.bf16.xpose.msra.mxu0 0
        %3832 = vmatprep.subr.bf16.mxu0 0
        %3833 = vmatpush2.bf16.xpose.msra.mxu0 0
        %3834 = vmatprep.subr.bf16.mxu0 0
        %3835 = vmatpush2.bf16.xpose.msra.mxu0 0
        %3836 = vmatprep.mubr.bf16.mxu0 0
        %3837 = vmatmul.mubr.bf16.gmra.mxu0 %v3781
        %v3838 = vpop.f32.mrf.mxu0
        %v3839 = vadd.f32 0.0, %v3838
        %v3840 = vpop.f32.mrf.mxu0
        %v3841 = vpop.f32.mrf.mxu0
        %v3842 = vadd.f32 0.0, %v3841
        %v3843 = vpop.f32.mrf.mxu0
        %3844 = vmatprep.mubr.bf16.mxu0 0
        %3845 = vmatmul.mubr.bf16.gmra.mxu0 %v3784
        %v3846 = vpop.f32.mrf.mxu0
        %v3847 = vadd.f32 0.0, %v3846
        %v3848 = vpop.f32.mrf.mxu0
        %v3849 = vpop.f32.mrf.mxu0
        %v3850 = vadd.f32 0.0, %v3849
        %v3851 = vpop.f32.mrf.mxu0
        %3852 = vmatprep.mubr.bf16.mxu0 0
        %3853 = vmatmul.mubr.bf16.gmra.mxu0 %v3787
        %v3854 = vpop.f32.mrf.mxu0
        %v3855 = vadd.f32 0.0, %v3854
        %v3856 = vpop.f32.mrf.mxu0
        %v3857 = vpop.f32.mrf.mxu0
        %v3858 = vadd.f32 0.0, %v3857
        %v3859 = vpop.f32.mrf.mxu0
        %3860 = vmatprep.mubr.bf16.mxu0 0
        %3861 = vmatmul.mubr.bf16.gmra.mxu0 %v3790
        %v3862 = vpop.f32.mrf.mxu0
        %v3863 = vadd.f32 0.0, %v3862
        %v3864 = vpop.f32.mrf.mxu0
        %v3865 = vpop.f32.mrf.mxu0
        %v3866 = vadd.f32 0.0, %v3865
        %v3867 = vpop.f32.mrf.mxu0
        %3868 = vdwg.mxu0
        %v3869 = vmax.f32 %v3839, -10.0
        %v3870 = vmax.f32 %v3842, -10.0
        %v3871 = vmax.f32 %v3847, -10.0
        %v3872 = vmax.f32 %v3850, -10.0
        %v3873 = vmax.f32 %v3855, -10.0
        %v3874 = vmax.f32 %v3858, -10.0
        %v3875 = vmax.f32 %v3863, -10.0
        %v3876 = vmax.f32 %v3866, -10.0
        %v3877 = vmin.f32 %v3869, 10.0
        %v3878 = vmin.f32 %v3870, 10.0
        %v3879 = vmin.f32 %v3871, 10.0
        %v3880 = vmin.f32 %v3872, 10.0
        %v3881 = vmin.f32 %v3873, 10.0
        %v3882 = vmin.f32 %v3874, 10.0
        %v3883 = vmin.f32 %v3875, 10.0
        %v3884 = vmin.f32 %v3876, 10.0
        %v3885 = vmul.f32 %v3877, 1.442695
        %v3886 = vpow.pop %v3885
        %v3887 = vmul.f32 %v3878, 1.442695
        %v3888 = vpow.pop %v3887
        %v3889 = vmul.f32 %v3879, 1.442695
        %v3890 = vpow.pop %v3889
        %v3891 = vmul.f32 %v3880, 1.442695
        %v3892 = vpow.pop %v3891
        %v3893 = vmul.f32 %v3881, 1.442695
        %v3894 = vpow.pop %v3893
        %v3895 = vmul.f32 %v3882, 1.442695
        %v3896 = vpow.pop %v3895
        %v3897 = vmul.f32 %v3883, 1.442695
        %v3898 = vpow.pop %v3897
        %v3899 = vmul.f32 %v3884, 1.442695
        %v3900 = vpow.pop %v3899
        %v3901 = vmul.f32 %v3886, %v1384
        %v3902 = vmul.f32 %v3888, %v1385
        %v3903 = vmul.f32 %v3890, %v1386
        %v3904 = vmul.f32 %v3892, %v1387
        %v3905 = vmul.f32 %v3894, %v1388
        %v3906 = vmul.f32 %v3896, %v1389
        %v3907 = vmul.f32 %v3898, %v1390
        %v3908 = vmul.f32 %v3900, %v1391
        %v3909 = vsel %vm1659, %v3901, 0.0
        %3910 = vadd.xlane.f32.xlu0 %v3909
        %v3911 = vpop.xlane.xlu0 %3910
        %v3912 = vsel %vm1659, %v3902, 0.0
        %3913 = vadd.xlane.f32.xlu0 %v3912
        %v3914 = vpop.xlane.xlu0 %3913
        %v3915 = vsel %vm1659, %v3903, 0.0
        %3916 = vadd.xlane.f32.xlu0 %v3915
        %v3917 = vpop.xlane.xlu0 %3916
        %v3918 = vsel %vm1659, %v3904, 0.0
        %3919 = vadd.xlane.f32.xlu0 %v3918
        %v3920 = vpop.xlane.xlu0 %3919
        %v3921 = vsel %vm1659, %v3905, 0.0
        %3922 = vadd.xlane.f32.xlu0 %v3921
        %v3923 = vpop.xlane.xlu0 %3922
        %v3924 = vsel %vm1659, %v3906, 0.0
        %3925 = vadd.xlane.f32.xlu0 %v3924
        %v3926 = vpop.xlane.xlu0 %3925
        %v3927 = vsel %vm1659, %v3907, 0.0
        %3928 = vadd.xlane.f32.xlu0 %v3927
        %v3929 = vpop.xlane.xlu0 %3928
        %v3930 = vsel %vm1659, %v3908, 0.0
        %3931 = vadd.xlane.f32.xlu0 %v3930
        %v3932 = vpop.xlane.xlu0 %3931
        %v3933 = vmax.f32 %v3911, 1e-09
        %v3934 = vmax.f32 %v3914, 1e-09
        %v3935 = vmax.f32 %v3917, 1e-09
        %v3936 = vmax.f32 %v3920, 1e-09
        %v3937 = vmax.f32 %v3923, 1e-09
        %v3938 = vmax.f32 %v3926, 1e-09
        %v3939 = vmax.f32 %v3929, 1e-09
        %v3940 = vmax.f32 %v3932, 1e-09
        %v3941 = vpack.c.bf16 %v3902, %v3901
        %v3942 = vpack.c.bf16 %v3904, %v3903
        %v3943 = vpack.c.bf16 %v3906, %v3905
        %v3944 = vpack.c.bf16 %v3908, %v3907
        %v3945 = vmul.f32 %v3744, %v1775
        %v3946 = vmul.f32 %v3745, %v1775
        %v3947 = vmul.f32 %v3746, %v1775
        %v3948 = vmul.f32 %v3747, %v1775
        %v3949 = vmul.f32 %v3748, %v1775
        %v3950 = vmul.f32 %v3749, %v1775
        %v3951 = vmul.f32 %v3750, %v1775
        %v3952 = vmul.f32 %v3751, %v1775
        %v3953 = vpack.c.bf16 %v3946, %v3945
        %v3954 = vpack.c.bf16 %v3948, %v3947
        %v3955 = vpack.c.bf16 %v3950, %v3949
        %v3956 = vpack.c.bf16 %v3952, %v3951
        %3961 = vrot.lane.b32.xlu0 %v3953, 64
        %v3962 = vpop.permute.xlu0 %3961
        %3963 = vrot.lane.b32.xlu0 %v3954, 64
        %v3964 = vpop.permute.xlu0 %3963
        %3965 = vrot.lane.b32.xlu0 %v3955, 64
        %v3966 = vpop.permute.xlu0 %3965
        %3967 = vrot.lane.b32.xlu0 %v3956, 64
        %v3968 = vpop.permute.xlu0 %3967
        %v3974 = vsel %vm1659, %v3941, 0
        %v3977 = vsel %vm1659, %v3942, 0
        %v3980 = vsel %vm1659, %v3943, 0
        %v3983 = vsel %vm1659, %v3944, 0
        %3985 = vmatprep.subr.bf16.mxu0 0
        %3986 = vmatpush1.bf16.msra.mxu0 0
        %3987 = vmatprep.subr.bf16.mxu0 0
        %3988 = vmatpush1.bf16.msra.mxu0 0
        %3989 = vmatprep.subr.bf16.mxu0 0
        %3990 = vmatpush1.bf16.msra.mxu0 0
        %3991 = vmatprep.subr.bf16.mxu0 0
        %3992 = vmatpush1.bf16.msra.mxu0 0
        %3993 = vmatprep.subr.bf16.mxu0 0
        %3994 = vmatpush1.bf16.msra.mxu0 %v3968
        %3995 = vmatprep.subr.bf16.mxu0 0
        %3996 = vmatpush1.bf16.msra.mxu0 %v3966
        %3997 = vmatprep.subr.bf16.mxu0 0
        %3998 = vmatpush1.bf16.msra.mxu0 %v3964
        %3999 = vmatprep.subr.bf16.mxu0 0
        %4000 = vmatpush1.bf16.msra.mxu0 %v3962
        %4001 = vmatprep.subr.bf16.mxu0 0
        %4002 = vmatpush2.bf16.msra.mxu0 0
        %4003 = vmatprep.subr.bf16.mxu0 0
        %4004 = vmatpush2.bf16.msra.mxu0 0
        %4005 = vmatprep.subr.bf16.mxu0 0
        %4006 = vmatpush2.bf16.msra.mxu0 0
        %4007 = vmatprep.subr.bf16.mxu0 0
        %4008 = vmatpush2.bf16.msra.mxu0 0
        %4009 = vmatprep.subr.bf16.mxu0 0
        %4010 = vmatpush2.bf16.msra.mxu0 0
        %4011 = vmatprep.subr.bf16.mxu0 0
        %4012 = vmatpush2.bf16.msra.mxu0 0
        %4013 = vmatprep.subr.bf16.mxu0 0
        %4014 = vmatpush2.bf16.msra.mxu0 0
        %4015 = vmatprep.subr.bf16.mxu0 0
        %4016 = vmatpush2.bf16.msra.mxu0 0
        %4017 = vmatprep.mubr.bf16.mxu0 0
        %4018 = vmatmul.mubr.bf16.gmra.mxu0 %v3974
        %v4019 = vpop.f32.mrf.mxu0
        %v4020 = vadd.f32 0.0, %v4019
        %v4021 = vpop.f32.mrf.mxu0
        %v4022 = vpop.f32.mrf.mxu0
        %v4023 = vadd.f32 0.0, %v4022
        %v4024 = vpop.f32.mrf.mxu0
        %4025 = vmatprep.mubr.bf16.mxu0 0
        %4026 = vmatmul.mubr.bf16.gmra.mxu0 %v3977
        %v4027 = vpop.f32.mrf.mxu0
        %v4028 = vadd.f32 0.0, %v4027
        %v4029 = vpop.f32.mrf.mxu0
        %v4030 = vpop.f32.mrf.mxu0
        %v4031 = vadd.f32 0.0, %v4030
        %v4032 = vpop.f32.mrf.mxu0
        %4033 = vmatprep.mubr.bf16.mxu0 0
        %4034 = vmatmul.mubr.bf16.gmra.mxu0 %v3980
        %v4035 = vpop.f32.mrf.mxu0
        %v4036 = vadd.f32 0.0, %v4035
        %v4037 = vpop.f32.mrf.mxu0
        %v4038 = vpop.f32.mrf.mxu0
        %v4039 = vadd.f32 0.0, %v4038
        %v4040 = vpop.f32.mrf.mxu0
        %4041 = vmatprep.mubr.bf16.mxu0 0
        %4042 = vmatmul.mubr.bf16.gmra.mxu0 %v3983
        %v4043 = vpop.f32.mrf.mxu0
        %v4044 = vadd.f32 0.0, %v4043
        %v4045 = vpop.f32.mrf.mxu0
        %v4046 = vpop.f32.mrf.mxu0
        %v4047 = vadd.f32 0.0, %v4046
        %v4048 = vpop.f32.mrf.mxu0
        %4049 = vdwg.mxu0
        %v4050 = vrcp.pop %v3933
        %v4051 = vmul.f32 %v4020, %v4050
        %v4052 = vrcp.pop %v3934
        %v4053 = vmul.f32 %v4023, %v4052
        %v4054 = vrcp.pop %v3935
        %v4055 = vmul.f32 %v4028, %v4054
        %v4056 = vrcp.pop %v3936
        %v4057 = vmul.f32 %v4031, %v4056
        %v4058 = vrcp.pop %v3937
        %v4059 = vmul.f32 %v4036, %v4058
        %v4060 = vrcp.pop %v3938
        %v4061 = vmul.f32 %v4039, %v4060
        %v4062 = vrcp.pop %v3939
        %v4063 = vmul.f32 %v4044, %v4062
        %v4064 = vrcp.pop %v3940
        %v4065 = vmul.f32 %v4047, %v4064
        %v4066 = vadd.f32 %v4051, 0.0
        %v4067 = vadd.f32 %v4053, 0.0
        %v4068 = vadd.f32 %v4055, 0.0
        %v4069 = vadd.f32 %v4057, 0.0
        %v4070 = vadd.f32 %v4059, 0.0
        %v4071 = vadd.f32 %v4061, 0.0
        %v4072 = vadd.f32 %v4063, 0.0
        %v4073 = vadd.f32 %v4065, 0.0
        %v4074 = vmul.f32 %v3704, %v1989
        %v4075 = vmul.f32 %v3705, %v1989
        %v4076 = vmul.f32 %v3706, %v1989
        %v4077 = vmul.f32 %v3707, %v1989
        %v4078 = vmul.f32 %v3708, %v1989
        %v4079 = vmul.f32 %v3709, %v1989
        %v4080 = vmul.f32 %v3710, %v1989
        %v4081 = vmul.f32 %v3711, %v1989
        %v4082 = vpack.c.bf16 %v4075, %v4074
        %v4083 = vpack.c.bf16 %v4077, %v4076
        %v4084 = vpack.c.bf16 %v4079, %v4078
        %v4085 = vpack.c.bf16 %v4081, %v4080
        %v4087 = vsel %vm1446, %v4082, 0
        %v4090 = vsel %vm1446, %v4083, 0
        %v4093 = vsel %vm1446, %v4084, 0
        %v4096 = vsel %vm1446, %v4085, 0
        %4098 = vmatprep.subr.bf16.mxu0 0
        %4099 = vmatpush1.bf16.xpose.msra.mxu0 0
        %4100 = vmatprep.subr.bf16.mxu0 0
        %4101 = vmatpush1.bf16.xpose.msra.mxu0 0
        %4102 = vmatprep.subr.bf16.mxu0 0
        %4103 = vmatpush1.bf16.xpose.msra.mxu0 0
        %4104 = vmatprep.subr.bf16.mxu0 0
        %4105 = vmatpush1.bf16.xpose.msra.mxu0 0
        %4106 = vmatprep.subr.bf16.mxu0 0
        %4107 = vmatpush1.bf16.xpose.msra.mxu0 %v3802
        %4108 = vmatprep.subr.bf16.mxu0 0
        %4109 = vmatpush1.bf16.xpose.msra.mxu0 %v3799
        %4110 = vmatprep.subr.bf16.mxu0 0
        %4111 = vmatpush1.bf16.xpose.msra.mxu0 %v3796
        %4112 = vmatprep.subr.bf16.mxu0 0
        %4113 = vmatpush1.bf16.xpose.msra.mxu0 %v3793
        %4114 = vmatprep.subr.bf16.mxu0 0
        %4115 = vmatpush2.bf16.xpose.msra.mxu0 0
        %4116 = vmatprep.subr.bf16.mxu0 0
        %4117 = vmatpush2.bf16.xpose.msra.mxu0 0
        %4118 = vmatprep.subr.bf16.mxu0 0
        %4119 = vmatpush2.bf16.xpose.msra.mxu0 0
        %4120 = vmatprep.subr.bf16.mxu0 0
        %4121 = vmatpush2.bf16.xpose.msra.mxu0 0
        %4122 = vmatprep.subr.bf16.mxu0 0
        %4123 = vmatpush2.bf16.xpose.msra.mxu0 0
        %4124 = vmatprep.subr.bf16.mxu0 0
        %4125 = vmatpush2.bf16.xpose.msra.mxu0 0
        %4126 = vmatprep.subr.bf16.mxu0 0
        %4127 = vmatpush2.bf16.xpose.msra.mxu0 0
        %4128 = vmatprep.subr.bf16.mxu0 0
        %4129 = vmatpush2.bf16.xpose.msra.mxu0 0
        %4130 = vmatprep.mubr.bf16.mxu0 0
        %4131 = vmatmul.mubr.bf16.gmra.mxu0 %v4087
        %v4132 = vpop.f32.mrf.mxu0
        %v4133 = vadd.f32 0.0, %v4132
        %v4134 = vpop.f32.mrf.mxu0
        %v4135 = vpop.f32.mrf.mxu0
        %v4136 = vadd.f32 0.0, %v4135
        %v4137 = vpop.f32.mrf.mxu0
        %4138 = vmatprep.mubr.bf16.mxu0 0
        %4139 = vmatmul.mubr.bf16.gmra.mxu0 %v4090
        %v4140 = vpop.f32.mrf.mxu0
        %v4141 = vadd.f32 0.0, %v4140
        %v4142 = vpop.f32.mrf.mxu0
        %v4143 = vpop.f32.mrf.mxu0
        %v4144 = vadd.f32 0.0, %v4143
        %v4145 = vpop.f32.mrf.mxu0
        %4146 = vmatprep.mubr.bf16.mxu0 0
        %4147 = vmatmul.mubr.bf16.gmra.mxu0 %v4093
        %v4148 = vpop.f32.mrf.mxu0
        %v4149 = vadd.f32 0.0, %v4148
        %v4150 = vpop.f32.mrf.mxu0
        %v4151 = vpop.f32.mrf.mxu0
        %v4152 = vadd.f32 0.0, %v4151
        %v4153 = vpop.f32.mrf.mxu0
        %4154 = vmatprep.mubr.bf16.mxu0 0
        %4155 = vmatmul.mubr.bf16.gmra.mxu0 %v4096
        %v4156 = vpop.f32.mrf.mxu0
        %v4157 = vadd.f32 0.0, %v4156
        %v4158 = vpop.f32.mrf.mxu0
        %v4159 = vpop.f32.mrf.mxu0
        %v4160 = vadd.f32 0.0, %v4159
        %v4161 = vpop.f32.mrf.mxu0
        %4162 = vdwg.mxu0
        %v4163 = vmax.f32 %v4133, -10.0
        %v4164 = vmax.f32 %v4136, -10.0
        %v4165 = vmax.f32 %v4141, -10.0
        %v4166 = vmax.f32 %v4144, -10.0
        %v4167 = vmax.f32 %v4149, -10.0
        %v4168 = vmax.f32 %v4152, -10.0
        %v4169 = vmax.f32 %v4157, -10.0
        %v4170 = vmax.f32 %v4160, -10.0
        %v4171 = vmin.f32 %v4163, 10.0
        %v4172 = vmin.f32 %v4164, 10.0
        %v4173 = vmin.f32 %v4165, 10.0
        %v4174 = vmin.f32 %v4166, 10.0
        %v4175 = vmin.f32 %v4167, 10.0
        %v4176 = vmin.f32 %v4168, 10.0
        %v4177 = vmin.f32 %v4169, 10.0
        %v4178 = vmin.f32 %v4170, 10.0
        %v4179 = vmul.f32 %v4171, 1.442695
        %v4180 = vpow.pop %v4179
        %v4181 = vmul.f32 %v4172, 1.442695
        %v4182 = vpow.pop %v4181
        %v4183 = vmul.f32 %v4173, 1.442695
        %v4184 = vpow.pop %v4183
        %v4185 = vmul.f32 %v4174, 1.442695
        %v4186 = vpow.pop %v4185
        %v4187 = vmul.f32 %v4175, 1.442695
        %v4188 = vpow.pop %v4187
        %v4189 = vmul.f32 %v4176, 1.442695
        %v4190 = vpow.pop %v4189
        %v4191 = vmul.f32 %v4177, 1.442695
        %v4192 = vpow.pop %v4191
        %v4193 = vmul.f32 %v4178, 1.442695
        %v4194 = vpow.pop %v4193
        %v4195 = vmul.f32 %v4180, %v1384
        %v4196 = vmul.f32 %v4182, %v1385
        %v4197 = vmul.f32 %v4184, %v1386
        %v4198 = vmul.f32 %v4186, %v1387
        %v4199 = vmul.f32 %v4188, %v1388
        %v4200 = vmul.f32 %v4190, %v1389
        %v4201 = vmul.f32 %v4192, %v1390
        %v4202 = vmul.f32 %v4194, %v1391
        %v4203 = vsel %vm1659, %v4195, 0.0
        %4204 = vadd.xlane.f32.xlu0 %v4203
        %v4205 = vpop.xlane.xlu0 %4204
        %v4206 = vsel %vm1659, %v4196, 0.0
        %4207 = vadd.xlane.f32.xlu0 %v4206
        %v4208 = vpop.xlane.xlu0 %4207
        %v4209 = vsel %vm1659, %v4197, 0.0
        %4210 = vadd.xlane.f32.xlu0 %v4209
        %v4211 = vpop.xlane.xlu0 %4210
        %v4212 = vsel %vm1659, %v4198, 0.0
        %4213 = vadd.xlane.f32.xlu0 %v4212
        %v4214 = vpop.xlane.xlu0 %4213
        %v4215 = vsel %vm1659, %v4199, 0.0
        %4216 = vadd.xlane.f32.xlu0 %v4215
        %v4217 = vpop.xlane.xlu0 %4216
        %v4218 = vsel %vm1659, %v4200, 0.0
        %4219 = vadd.xlane.f32.xlu0 %v4218
        %v4220 = vpop.xlane.xlu0 %4219
        %v4221 = vsel %vm1659, %v4201, 0.0
        %4222 = vadd.xlane.f32.xlu0 %v4221
        %v4223 = vpop.xlane.xlu0 %4222
        %v4224 = vsel %vm1659, %v4202, 0.0
        %4225 = vadd.xlane.f32.xlu0 %v4224
        %v4226 = vpop.xlane.xlu0 %4225
        %v4227 = vmax.f32 %v4205, 1e-09
        %v4228 = vmax.f32 %v4208, 1e-09
        %v4229 = vmax.f32 %v4211, 1e-09
        %v4230 = vmax.f32 %v4214, 1e-09
        %v4231 = vmax.f32 %v4217, 1e-09
        %v4232 = vmax.f32 %v4220, 1e-09
        %v4233 = vmax.f32 %v4223, 1e-09
        %v4234 = vmax.f32 %v4226, 1e-09
        %v4235 = vpack.c.bf16 %v4196, %v4195
        %v4236 = vpack.c.bf16 %v4198, %v4197
        %v4237 = vpack.c.bf16 %v4200, %v4199
        %v4238 = vpack.c.bf16 %v4202, %v4201
        %v4239 = vmul.f32 %v3744, %v2143
        %v4240 = vmul.f32 %v3745, %v2143
        %v4241 = vmul.f32 %v3746, %v2143
        %v4242 = vmul.f32 %v3747, %v2143
        %v4243 = vmul.f32 %v3748, %v2143
        %v4244 = vmul.f32 %v3749, %v2143
        %v4245 = vmul.f32 %v3750, %v2143
        %v4246 = vmul.f32 %v3751, %v2143
        %v4247 = vpack.c.bf16 %v4240, %v4239
        %v4248 = vpack.c.bf16 %v4242, %v4241
        %v4249 = vpack.c.bf16 %v4244, %v4243
        %v4250 = vpack.c.bf16 %v4246, %v4245
        %4255 = vrot.lane.b32.xlu0 %v4247, 64
        %v4256 = vpop.permute.xlu0 %4255
        %4257 = vrot.lane.b32.xlu0 %v4248, 64
        %v4258 = vpop.permute.xlu0 %4257
        %4259 = vrot.lane.b32.xlu0 %v4249, 64
        %v4260 = vpop.permute.xlu0 %4259
        %4261 = vrot.lane.b32.xlu0 %v4250, 64
        %v4262 = vpop.permute.xlu0 %4261
        %v4268 = vsel %vm1659, %v4235, 0
        %v4271 = vsel %vm1659, %v4236, 0
        %v4274 = vsel %vm1659, %v4237, 0
        %v4277 = vsel %vm1659, %v4238, 0
        %4279 = vmatprep.subr.bf16.mxu0 0
        %4280 = vmatpush1.bf16.msra.mxu0 0
        %4281 = vmatprep.subr.bf16.mxu0 0
        %4282 = vmatpush1.bf16.msra.mxu0 0
        %4283 = vmatprep.subr.bf16.mxu0 0
        %4284 = vmatpush1.bf16.msra.mxu0 0
        %4285 = vmatprep.subr.bf16.mxu0 0
        %4286 = vmatpush1.bf16.msra.mxu0 0
        %4287 = vmatprep.subr.bf16.mxu0 0
        %4288 = vmatpush1.bf16.msra.mxu0 %v4262
        %4289 = vmatprep.subr.bf16.mxu0 0
        %4290 = vmatpush1.bf16.msra.mxu0 %v4260
        %4291 = vmatprep.subr.bf16.mxu0 0
        %4292 = vmatpush1.bf16.msra.mxu0 %v4258
        %4293 = vmatprep.subr.bf16.mxu0 0
        %4294 = vmatpush1.bf16.msra.mxu0 %v4256
        %4295 = vmatprep.subr.bf16.mxu0 0
        %4296 = vmatpush2.bf16.msra.mxu0 0
        %4297 = vmatprep.subr.bf16.mxu0 0
        %4298 = vmatpush2.bf16.msra.mxu0 0
        %4299 = vmatprep.subr.bf16.mxu0 0
        %4300 = vmatpush2.bf16.msra.mxu0 0
        %4301 = vmatprep.subr.bf16.mxu0 0
        %4302 = vmatpush2.bf16.msra.mxu0 0
        %4303 = vmatprep.subr.bf16.mxu0 0
        %4304 = vmatpush2.bf16.msra.mxu0 0
        %4305 = vmatprep.subr.bf16.mxu0 0
        %4306 = vmatpush2.bf16.msra.mxu0 0
        %4307 = vmatprep.subr.bf16.mxu0 0
        %4308 = vmatpush2.bf16.msra.mxu0 0
        %4309 = vmatprep.subr.bf16.mxu0 0
        %4310 = vmatpush2.bf16.msra.mxu0 0
        %4311 = vmatprep.mubr.bf16.mxu0 0
        %4312 = vmatmul.mubr.bf16.gmra.mxu0 %v4268
        %v4313 = vpop.f32.mrf.mxu0
        %v4314 = vadd.f32 0.0, %v4313
        %v4315 = vpop.f32.mrf.mxu0
        %v4316 = vpop.f32.mrf.mxu0
        %v4317 = vadd.f32 0.0, %v4316
        %v4318 = vpop.f32.mrf.mxu0
        %4319 = vmatprep.mubr.bf16.mxu0 0
        %4320 = vmatmul.mubr.bf16.gmra.mxu0 %v4271
        %v4321 = vpop.f32.mrf.mxu0
        %v4322 = vadd.f32 0.0, %v4321
        %v4323 = vpop.f32.mrf.mxu0
        %v4324 = vpop.f32.mrf.mxu0
        %v4325 = vadd.f32 0.0, %v4324
        %v4326 = vpop.f32.mrf.mxu0
        %4327 = vmatprep.mubr.bf16.mxu0 0
        %4328 = vmatmul.mubr.bf16.gmra.mxu0 %v4274
        %v4329 = vpop.f32.mrf.mxu0
        %v4330 = vadd.f32 0.0, %v4329
        %v4331 = vpop.f32.mrf.mxu0
        %v4332 = vpop.f32.mrf.mxu0
        %v4333 = vadd.f32 0.0, %v4332
        %v4334 = vpop.f32.mrf.mxu0
        %4335 = vmatprep.mubr.bf16.mxu0 0
        %4336 = vmatmul.mubr.bf16.gmra.mxu0 %v4277
        %v4337 = vpop.f32.mrf.mxu0
        %v4338 = vadd.f32 0.0, %v4337
        %v4339 = vpop.f32.mrf.mxu0
        %v4340 = vpop.f32.mrf.mxu0
        %v4341 = vadd.f32 0.0, %v4340
        %v4342 = vpop.f32.mrf.mxu0
        %4343 = vdwg.mxu0
        %v4344 = vrcp.pop %v4227
        %v4345 = vmul.f32 %v4314, %v4344
        %v4346 = vrcp.pop %v4228
        %v4347 = vmul.f32 %v4317, %v4346
        %v4348 = vrcp.pop %v4229
        %v4349 = vmul.f32 %v4322, %v4348
        %v4350 = vrcp.pop %v4230
        %v4351 = vmul.f32 %v4325, %v4350
        %v4352 = vrcp.pop %v4231
        %v4353 = vmul.f32 %v4330, %v4352
        %v4354 = vrcp.pop %v4232
        %v4355 = vmul.f32 %v4333, %v4354
        %v4356 = vrcp.pop %v4233
        %v4357 = vmul.f32 %v4338, %v4356
        %v4358 = vrcp.pop %v4234
        %v4359 = vmul.f32 %v4341, %v4358
        %v4360 = vadd.f32 %v4066, %v4345
        %v4361 = vadd.f32 %v4067, %v4347
        %v4362 = vadd.f32 %v4068, %v4349
        %v4363 = vadd.f32 %v4069, %v4351
        %v4364 = vadd.f32 %v4070, %v4353
        %v4365 = vadd.f32 %v4071, %v4355
        %v4366 = vadd.f32 %v4072, %v4357
        %v4367 = vadd.f32 %v4073, %v4359
        %v4368 = vmul.f32 %v3704, %v2357
        %v4369 = vmul.f32 %v3705, %v2357
        %v4370 = vmul.f32 %v3706, %v2357
        %v4371 = vmul.f32 %v3707, %v2357
        %v4372 = vmul.f32 %v3708, %v2357
        %v4373 = vmul.f32 %v3709, %v2357
        %v4374 = vmul.f32 %v3710, %v2357
        %v4375 = vmul.f32 %v3711, %v2357
        %v4376 = vpack.c.bf16 %v4369, %v4368
        %v4377 = vpack.c.bf16 %v4371, %v4370
        %v4378 = vpack.c.bf16 %v4373, %v4372
        %v4379 = vpack.c.bf16 %v4375, %v4374
        %v4381 = vsel %vm1446, %v4376, 0
        %v4384 = vsel %vm1446, %v4377, 0
        %v4387 = vsel %vm1446, %v4378, 0
        %v4390 = vsel %vm1446, %v4379, 0
        %4392 = vmatprep.subr.bf16.mxu0 0
        %4393 = vmatpush1.bf16.xpose.msra.mxu0 0
        %4394 = vmatprep.subr.bf16.mxu0 0
        %4395 = vmatpush1.bf16.xpose.msra.mxu0 0
        %4396 = vmatprep.subr.bf16.mxu0 0
        %4397 = vmatpush1.bf16.xpose.msra.mxu0 0
        %4398 = vmatprep.subr.bf16.mxu0 0
        %4399 = vmatpush1.bf16.xpose.msra.mxu0 0
        %4400 = vmatprep.subr.bf16.mxu0 0
        %4401 = vmatpush1.bf16.xpose.msra.mxu0 %v3802
        %4402 = vmatprep.subr.bf16.mxu0 0
        %4403 = vmatpush1.bf16.xpose.msra.mxu0 %v3799
        %4404 = vmatprep.subr.bf16.mxu0 0
        %4405 = vmatpush1.bf16.xpose.msra.mxu0 %v3796
        %4406 = vmatprep.subr.bf16.mxu0 0
        %4407 = vmatpush1.bf16.xpose.msra.mxu0 %v3793
        %4408 = vmatprep.subr.bf16.mxu0 0
        %4409 = vmatpush2.bf16.xpose.msra.mxu0 0
        %4410 = vmatprep.subr.bf16.mxu0 0
        %4411 = vmatpush2.bf16.xpose.msra.mxu0 0
        %4412 = vmatprep.subr.bf16.mxu0 0
        %4413 = vmatpush2.bf16.xpose.msra.mxu0 0
        %4414 = vmatprep.subr.bf16.mxu0 0
        %4415 = vmatpush2.bf16.xpose.msra.mxu0 0
        %4416 = vmatprep.subr.bf16.mxu0 0
        %4417 = vmatpush2.bf16.xpose.msra.mxu0 0
        %4418 = vmatprep.subr.bf16.mxu0 0
        %4419 = vmatpush2.bf16.xpose.msra.mxu0 0
        %4420 = vmatprep.subr.bf16.mxu0 0
        %4421 = vmatpush2.bf16.xpose.msra.mxu0 0
        %4422 = vmatprep.subr.bf16.mxu0 0
        %4423 = vmatpush2.bf16.xpose.msra.mxu0 0
        %4424 = vmatprep.mubr.bf16.mxu0 0
        %4425 = vmatmul.mubr.bf16.gmra.mxu0 %v4381
        %v4426 = vpop.f32.mrf.mxu0
        %v4427 = vadd.f32 0.0, %v4426
        %v4428 = vpop.f32.mrf.mxu0
        %v4429 = vpop.f32.mrf.mxu0
        %v4430 = vadd.f32 0.0, %v4429
        %v4431 = vpop.f32.mrf.mxu0
        %4432 = vmatprep.mubr.bf16.mxu0 0
        %4433 = vmatmul.mubr.bf16.gmra.mxu0 %v4384
        %v4434 = vpop.f32.mrf.mxu0
        %v4435 = vadd.f32 0.0, %v4434
        %v4436 = vpop.f32.mrf.mxu0
        %v4437 = vpop.f32.mrf.mxu0
        %v4438 = vadd.f32 0.0, %v4437
        %v4439 = vpop.f32.mrf.mxu0
        %4440 = vmatprep.mubr.bf16.mxu0 0
        %4441 = vmatmul.mubr.bf16.gmra.mxu0 %v4387
        %v4442 = vpop.f32.mrf.mxu0
        %v4443 = vadd.f32 0.0, %v4442
        %v4444 = vpop.f32.mrf.mxu0
        %v4445 = vpop.f32.mrf.mxu0
        %v4446 = vadd.f32 0.0, %v4445
        %v4447 = vpop.f32.mrf.mxu0
        %4448 = vmatprep.mubr.bf16.mxu0 0
        %4449 = vmatmul.mubr.bf16.gmra.mxu0 %v4390
        %v4450 = vpop.f32.mrf.mxu0
        %v4451 = vadd.f32 0.0, %v4450
        %v4452 = vpop.f32.mrf.mxu0
        %v4453 = vpop.f32.mrf.mxu0
        %v4454 = vadd.f32 0.0, %v4453
        %v4455 = vpop.f32.mrf.mxu0
        %4456 = vdwg.mxu0
        %v4457 = vmax.f32 %v4427, -10.0
        %v4458 = vmax.f32 %v4430, -10.0
        %v4459 = vmax.f32 %v4435, -10.0
        %v4460 = vmax.f32 %v4438, -10.0
        %v4461 = vmax.f32 %v4443, -10.0
        %v4462 = vmax.f32 %v4446, -10.0
        %v4463 = vmax.f32 %v4451, -10.0
        %v4464 = vmax.f32 %v4454, -10.0
        %v4465 = vmin.f32 %v4457, 10.0
        %v4466 = vmin.f32 %v4458, 10.0
        %v4467 = vmin.f32 %v4459, 10.0
        %v4468 = vmin.f32 %v4460, 10.0
        %v4469 = vmin.f32 %v4461, 10.0
        %v4470 = vmin.f32 %v4462, 10.0
        %v4471 = vmin.f32 %v4463, 10.0
        %v4472 = vmin.f32 %v4464, 10.0
        %v4473 = vmul.f32 %v4465, 1.442695
        %v4474 = vpow.pop %v4473
        %v4475 = vmul.f32 %v4466, 1.442695
        %v4476 = vpow.pop %v4475
        %v4477 = vmul.f32 %v4467, 1.442695
        %v4478 = vpow.pop %v4477
        %v4479 = vmul.f32 %v4468, 1.442695
        %v4480 = vpow.pop %v4479
        %v4481 = vmul.f32 %v4469, 1.442695
        %v4482 = vpow.pop %v4481
        %v4483 = vmul.f32 %v4470, 1.442695
        %v4484 = vpow.pop %v4483
        %v4485 = vmul.f32 %v4471, 1.442695
        %v4486 = vpow.pop %v4485
        %v4487 = vmul.f32 %v4472, 1.442695
        %v4488 = vpow.pop %v4487
        %v4489 = vmul.f32 %v4474, %v1384
        %v4490 = vmul.f32 %v4476, %v1385
        %v4491 = vmul.f32 %v4478, %v1386
        %v4492 = vmul.f32 %v4480, %v1387
        %v4493 = vmul.f32 %v4482, %v1388
        %v4494 = vmul.f32 %v4484, %v1389
        %v4495 = vmul.f32 %v4486, %v1390
        %v4496 = vmul.f32 %v4488, %v1391
        %v4497 = vsel %vm1659, %v4489, 0.0
        %4498 = vadd.xlane.f32.xlu0 %v4497
        %v4499 = vpop.xlane.xlu0 %4498
        %v4500 = vsel %vm1659, %v4490, 0.0
        %4501 = vadd.xlane.f32.xlu0 %v4500
        %v4502 = vpop.xlane.xlu0 %4501
        %v4503 = vsel %vm1659, %v4491, 0.0
        %4504 = vadd.xlane.f32.xlu0 %v4503
        %v4505 = vpop.xlane.xlu0 %4504
        %v4506 = vsel %vm1659, %v4492, 0.0
        %4507 = vadd.xlane.f32.xlu0 %v4506
        %v4508 = vpop.xlane.xlu0 %4507
        %v4509 = vsel %vm1659, %v4493, 0.0
        %4510 = vadd.xlane.f32.xlu0 %v4509
        %v4511 = vpop.xlane.xlu0 %4510
        %v4512 = vsel %vm1659, %v4494, 0.0
        %4513 = vadd.xlane.f32.xlu0 %v4512
        %v4514 = vpop.xlane.xlu0 %4513
        %v4515 = vsel %vm1659, %v4495, 0.0
        %4516 = vadd.xlane.f32.xlu0 %v4515
        %v4517 = vpop.xlane.xlu0 %4516
        %v4518 = vsel %vm1659, %v4496, 0.0
        %4519 = vadd.xlane.f32.xlu0 %v4518
        %v4520 = vpop.xlane.xlu0 %4519
        %v4521 = vmax.f32 %v4499, 1e-09
        %v4522 = vmax.f32 %v4502, 1e-09
        %v4523 = vmax.f32 %v4505, 1e-09
        %v4524 = vmax.f32 %v4508, 1e-09
        %v4525 = vmax.f32 %v4511, 1e-09
        %v4526 = vmax.f32 %v4514, 1e-09
        %v4527 = vmax.f32 %v4517, 1e-09
        %v4528 = vmax.f32 %v4520, 1e-09
        %v4529 = vpack.c.bf16 %v4490, %v4489
        %v4530 = vpack.c.bf16 %v4492, %v4491
        %v4531 = vpack.c.bf16 %v4494, %v4493
        %v4532 = vpack.c.bf16 %v4496, %v4495
        %v4533 = vmul.f32 %v3744, %v2511
        %v4534 = vmul.f32 %v3745, %v2511
        %v4535 = vmul.f32 %v3746, %v2511
        %v4536 = vmul.f32 %v3747, %v2511
        %v4537 = vmul.f32 %v3748, %v2511
        %v4538 = vmul.f32 %v3749, %v2511
        %v4539 = vmul.f32 %v3750, %v2511
        %v4540 = vmul.f32 %v3751, %v2511
        %v4541 = vpack.c.bf16 %v4534, %v4533
        %v4542 = vpack.c.bf16 %v4536, %v4535
        %v4543 = vpack.c.bf16 %v4538, %v4537
        %v4544 = vpack.c.bf16 %v4540, %v4539
        %4549 = vrot.lane.b32.xlu0 %v4541, 64
        %v4550 = vpop.permute.xlu0 %4549
        %4551 = vrot.lane.b32.xlu0 %v4542, 64
        %v4552 = vpop.permute.xlu0 %4551
        %4553 = vrot.lane.b32.xlu0 %v4543, 64
        %v4554 = vpop.permute.xlu0 %4553
        %4555 = vrot.lane.b32.xlu0 %v4544, 64
        %v4556 = vpop.permute.xlu0 %4555
        %v4562 = vsel %vm1659, %v4529, 0
        %v4565 = vsel %vm1659, %v4530, 0
        %v4568 = vsel %vm1659, %v4531, 0
        %v4571 = vsel %vm1659, %v4532, 0
        %4573 = vmatprep.subr.bf16.mxu0 0
        %4574 = vmatpush1.bf16.msra.mxu0 0
        %4575 = vmatprep.subr.bf16.mxu0 0
        %4576 = vmatpush1.bf16.msra.mxu0 0
        %4577 = vmatprep.subr.bf16.mxu0 0
        %4578 = vmatpush1.bf16.msra.mxu0 0
        %4579 = vmatprep.subr.bf16.mxu0 0
        %4580 = vmatpush1.bf16.msra.mxu0 0
        %4581 = vmatprep.subr.bf16.mxu0 0
        %4582 = vmatpush1.bf16.msra.mxu0 %v4556
        %4583 = vmatprep.subr.bf16.mxu0 0
        %4584 = vmatpush1.bf16.msra.mxu0 %v4554
        %4585 = vmatprep.subr.bf16.mxu0 0
        %4586 = vmatpush1.bf16.msra.mxu0 %v4552
        %4587 = vmatprep.subr.bf16.mxu0 0
        %4588 = vmatpush1.bf16.msra.mxu0 %v4550
        %4589 = vmatprep.subr.bf16.mxu0 0
        %4590 = vmatpush2.bf16.msra.mxu0 0
        %4591 = vmatprep.subr.bf16.mxu0 0
        %4592 = vmatpush2.bf16.msra.mxu0 0
        %4593 = vmatprep.subr.bf16.mxu0 0
        %4594 = vmatpush2.bf16.msra.mxu0 0
        %4595 = vmatprep.subr.bf16.mxu0 0
        %4596 = vmatpush2.bf16.msra.mxu0 0
        %4597 = vmatprep.subr.bf16.mxu0 0
        %4598 = vmatpush2.bf16.msra.mxu0 0
        %4599 = vmatprep.subr.bf16.mxu0 0
        %4600 = vmatpush2.bf16.msra.mxu0 0
        %4601 = vmatprep.subr.bf16.mxu0 0
        %4602 = vmatpush2.bf16.msra.mxu0 0
        %4603 = vmatprep.subr.bf16.mxu0 0
        %4604 = vmatpush2.bf16.msra.mxu0 0
        %4605 = vmatprep.mubr.bf16.mxu0 0
        %4606 = vmatmul.mubr.bf16.gmra.mxu0 %v4562
        %v4607 = vpop.f32.mrf.mxu0
        %v4608 = vadd.f32 0.0, %v4607
        %v4609 = vpop.f32.mrf.mxu0
        %v4610 = vpop.f32.mrf.mxu0
        %v4611 = vadd.f32 0.0, %v4610
        %v4612 = vpop.f32.mrf.mxu0
        %4613 = vmatprep.mubr.bf16.mxu0 0
        %4614 = vmatmul.mubr.bf16.gmra.mxu0 %v4565
        %v4615 = vpop.f32.mrf.mxu0
        %v4616 = vadd.f32 0.0, %v4615
        %v4617 = vpop.f32.mrf.mxu0
        %v4618 = vpop.f32.mrf.mxu0
        %v4619 = vadd.f32 0.0, %v4618
        %v4620 = vpop.f32.mrf.mxu0
        %4621 = vmatprep.mubr.bf16.mxu0 0
        %4622 = vmatmul.mubr.bf16.gmra.mxu0 %v4568
        %v4623 = vpop.f32.mrf.mxu0
        %v4624 = vadd.f32 0.0, %v4623
        %v4625 = vpop.f32.mrf.mxu0
        %v4626 = vpop.f32.mrf.mxu0
        %v4627 = vadd.f32 0.0, %v4626
        %v4628 = vpop.f32.mrf.mxu0
        %4629 = vmatprep.mubr.bf16.mxu0 0
        %4630 = vmatmul.mubr.bf16.gmra.mxu0 %v4571
        %v4631 = vpop.f32.mrf.mxu0
        %v4632 = vadd.f32 0.0, %v4631
        %v4633 = vpop.f32.mrf.mxu0
        %v4634 = vpop.f32.mrf.mxu0
        %v4635 = vadd.f32 0.0, %v4634
        %v4636 = vpop.f32.mrf.mxu0
        %4637 = vdwg.mxu0
        %v4638 = vrcp.pop %v4521
        %v4639 = vmul.f32 %v4608, %v4638
        %v4640 = vrcp.pop %v4522
        %v4641 = vmul.f32 %v4611, %v4640
        %v4642 = vrcp.pop %v4523
        %v4643 = vmul.f32 %v4616, %v4642
        %v4644 = vrcp.pop %v4524
        %v4645 = vmul.f32 %v4619, %v4644
        %v4646 = vrcp.pop %v4525
        %v4647 = vmul.f32 %v4624, %v4646
        %v4648 = vrcp.pop %v4526
        %v4649 = vmul.f32 %v4627, %v4648
        %v4650 = vrcp.pop %v4527
        %v4651 = vmul.f32 %v4632, %v4650
        %v4652 = vrcp.pop %v4528
        %v4653 = vmul.f32 %v4635, %v4652
        %v4654 = vadd.f32 %v4360, %v4639
        %v4655 = vadd.f32 %v4361, %v4641
        %v4656 = vadd.f32 %v4362, %v4643
        %v4657 = vadd.f32 %v4363, %v4645
        %v4658 = vadd.f32 %v4364, %v4647
        %v4659 = vadd.f32 %v4365, %v4649
        %v4660 = vadd.f32 %v4366, %v4651
        %v4661 = vadd.f32 %v4367, %v4653
        %v4662 = vmul.f32 %v3704, %v2725
        %v4663 = vmul.f32 %v3705, %v2725
        %v4664 = vmul.f32 %v3706, %v2725
        %v4665 = vmul.f32 %v3707, %v2725
        %v4666 = vmul.f32 %v3708, %v2725
        %v4667 = vmul.f32 %v3709, %v2725
        %v4668 = vmul.f32 %v3710, %v2725
        %v4669 = vmul.f32 %v3711, %v2725
        %v4670 = vpack.c.bf16 %v4663, %v4662
        %v4671 = vpack.c.bf16 %v4665, %v4664
        %v4672 = vpack.c.bf16 %v4667, %v4666
        %v4673 = vpack.c.bf16 %v4669, %v4668
        %v4675 = vsel %vm1446, %v4670, 0
        %v4678 = vsel %vm1446, %v4671, 0
        %v4681 = vsel %vm1446, %v4672, 0
        %v4684 = vsel %vm1446, %v4673, 0
        %4686 = vmatprep.subr.bf16.mxu0 0
        %4687 = vmatpush1.bf16.xpose.msra.mxu0 0
        %4688 = vmatprep.subr.bf16.mxu0 0
        %4689 = vmatpush1.bf16.xpose.msra.mxu0 0
        %4690 = vmatprep.subr.bf16.mxu0 0
        %4691 = vmatpush1.bf16.xpose.msra.mxu0 0
        %4692 = vmatprep.subr.bf16.mxu0 0
        %4693 = vmatpush1.bf16.xpose.msra.mxu0 0
        %4694 = vmatprep.subr.bf16.mxu0 0
        %4695 = vmatpush1.bf16.xpose.msra.mxu0 %v3802
        %4696 = vmatprep.subr.bf16.mxu0 0
        %4697 = vmatpush1.bf16.xpose.msra.mxu0 %v3799
        %4698 = vmatprep.subr.bf16.mxu0 0
        %4699 = vmatpush1.bf16.xpose.msra.mxu0 %v3796
        %4700 = vmatprep.subr.bf16.mxu0 0
        %4701 = vmatpush1.bf16.xpose.msra.mxu0 %v3793
        %4702 = vmatprep.subr.bf16.mxu0 0
        %4703 = vmatpush2.bf16.xpose.msra.mxu0 0
        %4704 = vmatprep.subr.bf16.mxu0 0
        %4705 = vmatpush2.bf16.xpose.msra.mxu0 0
        %4706 = vmatprep.subr.bf16.mxu0 0
        %4707 = vmatpush2.bf16.xpose.msra.mxu0 0
        %4708 = vmatprep.subr.bf16.mxu0 0
        %4709 = vmatpush2.bf16.xpose.msra.mxu0 0
        %4710 = vmatprep.subr.bf16.mxu0 0
        %4711 = vmatpush2.bf16.xpose.msra.mxu0 0
        %4712 = vmatprep.subr.bf16.mxu0 0
        %4713 = vmatpush2.bf16.xpose.msra.mxu0 0
        %4714 = vmatprep.subr.bf16.mxu0 0
        %4715 = vmatpush2.bf16.xpose.msra.mxu0 0
        %4716 = vmatprep.subr.bf16.mxu0 0
        %4717 = vmatpush2.bf16.xpose.msra.mxu0 0
        %4718 = vmatprep.mubr.bf16.mxu0 0
        %4719 = vmatmul.mubr.bf16.gmra.mxu0 %v4675
        %v4720 = vpop.f32.mrf.mxu0
        %v4721 = vadd.f32 0.0, %v4720
        %v4722 = vpop.f32.mrf.mxu0
        %v4723 = vpop.f32.mrf.mxu0
        %v4724 = vadd.f32 0.0, %v4723
        %v4725 = vpop.f32.mrf.mxu0
        %4726 = vmatprep.mubr.bf16.mxu0 0
        %4727 = vmatmul.mubr.bf16.gmra.mxu0 %v4678
        %v4728 = vpop.f32.mrf.mxu0
        %v4729 = vadd.f32 0.0, %v4728
        %v4730 = vpop.f32.mrf.mxu0
        %v4731 = vpop.f32.mrf.mxu0
        %v4732 = vadd.f32 0.0, %v4731
        %v4733 = vpop.f32.mrf.mxu0
        %4734 = vmatprep.mubr.bf16.mxu0 0
        %4735 = vmatmul.mubr.bf16.gmra.mxu0 %v4681
        %v4736 = vpop.f32.mrf.mxu0
        %v4737 = vadd.f32 0.0, %v4736
        %v4738 = vpop.f32.mrf.mxu0
        %v4739 = vpop.f32.mrf.mxu0
        %v4740 = vadd.f32 0.0, %v4739
        %v4741 = vpop.f32.mrf.mxu0
        %4742 = vmatprep.mubr.bf16.mxu0 0
        %4743 = vmatmul.mubr.bf16.gmra.mxu0 %v4684
        %v4744 = vpop.f32.mrf.mxu0
        %v4745 = vadd.f32 0.0, %v4744
        %v4746 = vpop.f32.mrf.mxu0
        %v4747 = vpop.f32.mrf.mxu0
        %v4748 = vadd.f32 0.0, %v4747
        %v4749 = vpop.f32.mrf.mxu0
        %4750 = vdwg.mxu0
        %v4751 = vmax.f32 %v4721, -10.0
        %v4752 = vmax.f32 %v4724, -10.0
        %v4753 = vmax.f32 %v4729, -10.0
        %v4754 = vmax.f32 %v4732, -10.0
        %v4755 = vmax.f32 %v4737, -10.0
        %v4756 = vmax.f32 %v4740, -10.0
        %v4757 = vmax.f32 %v4745, -10.0
        %v4758 = vmax.f32 %v4748, -10.0
        %v4759 = vmin.f32 %v4751, 10.0
        %v4760 = vmin.f32 %v4752, 10.0
        %v4761 = vmin.f32 %v4753, 10.0
        %v4762 = vmin.f32 %v4754, 10.0
        %v4763 = vmin.f32 %v4755, 10.0
        %v4764 = vmin.f32 %v4756, 10.0
        %v4765 = vmin.f32 %v4757, 10.0
        %v4766 = vmin.f32 %v4758, 10.0
        %v4767 = vmul.f32 %v4759, 1.442695
        %v4768 = vpow.pop %v4767
        %v4769 = vmul.f32 %v4760, 1.442695
        %v4770 = vpow.pop %v4769
        %v4771 = vmul.f32 %v4761, 1.442695
        %v4772 = vpow.pop %v4771
        %v4773 = vmul.f32 %v4762, 1.442695
        %v4774 = vpow.pop %v4773
        %v4775 = vmul.f32 %v4763, 1.442695
        %v4776 = vpow.pop %v4775
        %v4777 = vmul.f32 %v4764, 1.442695
        %v4778 = vpow.pop %v4777
        %v4779 = vmul.f32 %v4765, 1.442695
        %v4780 = vpow.pop %v4779
        %v4781 = vmul.f32 %v4766, 1.442695
        %v4782 = vpow.pop %v4781
        %v4783 = vmul.f32 %v4768, %v1384
        %v4784 = vmul.f32 %v4770, %v1385
        %v4785 = vmul.f32 %v4772, %v1386
        %v4786 = vmul.f32 %v4774, %v1387
        %v4787 = vmul.f32 %v4776, %v1388
        %v4788 = vmul.f32 %v4778, %v1389
        %v4789 = vmul.f32 %v4780, %v1390
        %v4790 = vmul.f32 %v4782, %v1391
        %v4791 = vsel %vm1659, %v4783, 0.0
        %4792 = vadd.xlane.f32.xlu0 %v4791
        %v4793 = vpop.xlane.xlu0 %4792
        %v4794 = vsel %vm1659, %v4784, 0.0
        %4795 = vadd.xlane.f32.xlu0 %v4794
        %v4796 = vpop.xlane.xlu0 %4795
        %v4797 = vsel %vm1659, %v4785, 0.0
        %4798 = vadd.xlane.f32.xlu0 %v4797
        %v4799 = vpop.xlane.xlu0 %4798
        %v4800 = vsel %vm1659, %v4786, 0.0
        %4801 = vadd.xlane.f32.xlu0 %v4800
        %v4802 = vpop.xlane.xlu0 %4801
        %v4803 = vsel %vm1659, %v4787, 0.0
        %4804 = vadd.xlane.f32.xlu0 %v4803
        %v4805 = vpop.xlane.xlu0 %4804
        %v4806 = vsel %vm1659, %v4788, 0.0
        %4807 = vadd.xlane.f32.xlu0 %v4806
        %v4808 = vpop.xlane.xlu0 %4807
        %v4809 = vsel %vm1659, %v4789, 0.0
        %4810 = vadd.xlane.f32.xlu0 %v4809
        %v4811 = vpop.xlane.xlu0 %4810
        %v4812 = vsel %vm1659, %v4790, 0.0
        %4813 = vadd.xlane.f32.xlu0 %v4812
        %v4814 = vpop.xlane.xlu0 %4813
        %v4815 = vmax.f32 %v4793, 1e-09
        %v4816 = vmax.f32 %v4796, 1e-09
        %v4817 = vmax.f32 %v4799, 1e-09
        %v4818 = vmax.f32 %v4802, 1e-09
        %v4819 = vmax.f32 %v4805, 1e-09
        %v4820 = vmax.f32 %v4808, 1e-09
        %v4821 = vmax.f32 %v4811, 1e-09
        %v4822 = vmax.f32 %v4814, 1e-09
        %v4823 = vpack.c.bf16 %v4784, %v4783
        %v4824 = vpack.c.bf16 %v4786, %v4785
        %v4825 = vpack.c.bf16 %v4788, %v4787
        %v4826 = vpack.c.bf16 %v4790, %v4789
        %v4827 = vmul.f32 %v3744, %v2879
        %v4828 = vmul.f32 %v3745, %v2879
        %v4829 = vmul.f32 %v3746, %v2879
        %v4830 = vmul.f32 %v3747, %v2879
        %v4831 = vmul.f32 %v3748, %v2879
        %v4832 = vmul.f32 %v3749, %v2879
        %v4833 = vmul.f32 %v3750, %v2879
        %v4834 = vmul.f32 %v3751, %v2879
        %v4835 = vpack.c.bf16 %v4828, %v4827
        %v4836 = vpack.c.bf16 %v4830, %v4829
        %v4837 = vpack.c.bf16 %v4832, %v4831
        %v4838 = vpack.c.bf16 %v4834, %v4833
        %4843 = vrot.lane.b32.xlu0 %v4835, 64
        %v4844 = vpop.permute.xlu0 %4843
        %4845 = vrot.lane.b32.xlu0 %v4836, 64
        %v4846 = vpop.permute.xlu0 %4845
        %4847 = vrot.lane.b32.xlu0 %v4837, 64
        %v4848 = vpop.permute.xlu0 %4847
        %4849 = vrot.lane.b32.xlu0 %v4838, 64
        %v4850 = vpop.permute.xlu0 %4849
        %v4856 = vsel %vm1659, %v4823, 0
        %v4859 = vsel %vm1659, %v4824, 0
        %v4862 = vsel %vm1659, %v4825, 0
        %v4865 = vsel %vm1659, %v4826, 0
        %4867 = vmatprep.subr.bf16.mxu0 0
        %4868 = vmatpush1.bf16.msra.mxu0 0
        %4869 = vmatprep.subr.bf16.mxu0 0
        %4870 = vmatpush1.bf16.msra.mxu0 0
        %4871 = vmatprep.subr.bf16.mxu0 0
        %4872 = vmatpush1.bf16.msra.mxu0 0
        %4873 = vmatprep.subr.bf16.mxu0 0
        %4874 = vmatpush1.bf16.msra.mxu0 0
        %4875 = vmatprep.subr.bf16.mxu0 0
        %4876 = vmatpush1.bf16.msra.mxu0 %v4850
        %4877 = vmatprep.subr.bf16.mxu0 0
        %4878 = vmatpush1.bf16.msra.mxu0 %v4848
        %4879 = vmatprep.subr.bf16.mxu0 0
        %4880 = vmatpush1.bf16.msra.mxu0 %v4846
        %4881 = vmatprep.subr.bf16.mxu0 0
        %4882 = vmatpush1.bf16.msra.mxu0 %v4844
        %4883 = vmatprep.subr.bf16.mxu0 0
        %4884 = vmatpush2.bf16.msra.mxu0 0
        %4885 = vmatprep.subr.bf16.mxu0 0
        %4886 = vmatpush2.bf16.msra.mxu0 0
        %4887 = vmatprep.subr.bf16.mxu0 0
        %4888 = vmatpush2.bf16.msra.mxu0 0
        %4889 = vmatprep.subr.bf16.mxu0 0
        %4890 = vmatpush2.bf16.msra.mxu0 0
        %4891 = vmatprep.subr.bf16.mxu0 0
        %4892 = vmatpush2.bf16.msra.mxu0 0
        %4893 = vmatprep.subr.bf16.mxu0 0
        %4894 = vmatpush2.bf16.msra.mxu0 0
        %4895 = vmatprep.subr.bf16.mxu0 0
        %4896 = vmatpush2.bf16.msra.mxu0 0
        %4897 = vmatprep.subr.bf16.mxu0 0
        %4898 = vmatpush2.bf16.msra.mxu0 0
        %4899 = vmatprep.mubr.bf16.mxu0 0
        %4900 = vmatmul.mubr.bf16.gmra.mxu0 %v4856
        %v4901 = vpop.f32.mrf.mxu0
        %v4902 = vadd.f32 0.0, %v4901
        %v4903 = vpop.f32.mrf.mxu0
        %v4904 = vpop.f32.mrf.mxu0
        %v4905 = vadd.f32 0.0, %v4904
        %v4906 = vpop.f32.mrf.mxu0
        %4907 = vmatprep.mubr.bf16.mxu0 0
        %4908 = vmatmul.mubr.bf16.gmra.mxu0 %v4859
        %v4909 = vpop.f32.mrf.mxu0
        %v4910 = vadd.f32 0.0, %v4909
        %v4911 = vpop.f32.mrf.mxu0
        %v4912 = vpop.f32.mrf.mxu0
        %v4913 = vadd.f32 0.0, %v4912
        %v4914 = vpop.f32.mrf.mxu0
        %4915 = vmatprep.mubr.bf16.mxu0 0
        %4916 = vmatmul.mubr.bf16.gmra.mxu0 %v4862
        %v4917 = vpop.f32.mrf.mxu0
        %v4918 = vadd.f32 0.0, %v4917
        %v4919 = vpop.f32.mrf.mxu0
        %v4920 = vpop.f32.mrf.mxu0
        %v4921 = vadd.f32 0.0, %v4920
        %v4922 = vpop.f32.mrf.mxu0
        %4923 = vmatprep.mubr.bf16.mxu0 0
        %4924 = vmatmul.mubr.bf16.gmra.mxu0 %v4865
        %v4925 = vpop.f32.mrf.mxu0
        %v4926 = vadd.f32 0.0, %v4925
        %v4927 = vpop.f32.mrf.mxu0
        %v4928 = vpop.f32.mrf.mxu0
        %v4929 = vadd.f32 0.0, %v4928
        %v4930 = vpop.f32.mrf.mxu0
        %4931 = vdwg.mxu0
        %v4932 = vrcp.pop %v4815
        %v4933 = vmul.f32 %v4902, %v4932
        %v4934 = vrcp.pop %v4816
        %v4935 = vmul.f32 %v4905, %v4934
        %v4936 = vrcp.pop %v4817
        %v4937 = vmul.f32 %v4910, %v4936
        %v4938 = vrcp.pop %v4818
        %v4939 = vmul.f32 %v4913, %v4938
        %v4940 = vrcp.pop %v4819
        %v4941 = vmul.f32 %v4918, %v4940
        %v4942 = vrcp.pop %v4820
        %v4943 = vmul.f32 %v4921, %v4942
        %v4944 = vrcp.pop %v4821
        %v4945 = vmul.f32 %v4926, %v4944
        %v4946 = vrcp.pop %v4822
        %v4947 = vmul.f32 %v4929, %v4946
        %v4948 = vadd.f32 %v4654, %v4933
        %v4949 = vadd.f32 %v4655, %v4935
        %v4950 = vadd.f32 %v4656, %v4937
        %v4951 = vadd.f32 %v4657, %v4939
        %v4952 = vadd.f32 %v4658, %v4941
        %v4953 = vadd.f32 %v4659, %v4943
        %v4954 = vadd.f32 %v4660, %v4945
        %v4955 = vadd.f32 %v4661, %v4947
        %v4956 = vpack.c.bf16 %v4949, %v4948
        %v4957 = vpack.c.bf16 %v4951, %v4950
        %v4958 = vpack.c.bf16 %v4953, %v4952
        %v4959 = vpack.c.bf16 %v4955, %v4954
        %v4960 = vld [vmem:[%s1304] sm:$0xf]
        %v4961 = vld [vmem:[%s1304 + $0x4] sm:$0xf]
        %v4962 = vld [vmem:[%s1304 + $0x8] sm:$0xf]
        %v4963 = vld [vmem:[%s1304 + $0xc] sm:$0xf]
        %v4964 = vld [vmem:[%s1307] sm:$0x1]
        %v4966 = vlaneseq
        %v4967 = vshrl.u32 %v4966, 7
        %v4968 = vsub.s32 0, %v4967
        %v4969 = vrot.slane %v4964, %v4968
        %v4975 = vunpack.c.l.b16 %v4960
        %v4976 = vunpack.c.l.b16 %v4961
        %v4977 = vunpack.c.l.b16 %v4962
        %v4978 = vunpack.c.l.b16 %v4963
        %v4979 = vpack.c.b16 %v4976, %v4975
        %v4980 = vpack.c.b16 %v4978, %v4977
        %v4984 = vsel %vm1446, %v4956, 0
        %v4987 = vsel %vm1446, %v4957, 0
        %v4990 = vsel %vm1446, %v4958, 0
        %v4993 = vsel %vm1446, %v4959, 0
        %4995 = vmatprep.subr.bf16.mxu0 0
        %4996 = vmatpush1.bf16.msra.mxu0 0
        %4997 = vmatprep.subr.bf16.mxu0 0
        %4998 = vmatpush1.bf16.msra.mxu0 0
        %4999 = vmatprep.subr.bf16.mxu0 0
        %5000 = vmatpush1.bf16.msra.mxu0 0
        %5001 = vmatprep.subr.bf16.mxu0 0
        %5002 = vmatpush1.bf16.msra.mxu0 0
        %5003 = vmatprep.subr.bf16.mxu0 0
        %5004 = vmatpush1.bf16.msra.mxu0 0
        %5005 = vmatprep.subr.bf16.mxu0 0
        %5006 = vmatpush1.bf16.msra.mxu0 0
        %5007 = vmatprep.subr.bf16.mxu0 0
        %5008 = vmatpush1.bf16.msra.mxu0 %v4980
        %5009 = vmatprep.subr.bf16.mxu0 0
        %5010 = vmatpush1.bf16.msra.mxu0 %v4979
        %5011 = vmatprep.subr.bf16.mxu0 0
        %5012 = vmatpush2.bf16.msra.mxu0 0
        %5013 = vmatprep.subr.bf16.mxu0 0
        %5014 = vmatpush2.bf16.msra.mxu0 0
        %5015 = vmatprep.subr.bf16.mxu0 0
        %5016 = vmatpush2.bf16.msra.mxu0 0
        %5017 = vmatprep.subr.bf16.mxu0 0
        %5018 = vmatpush2.bf16.msra.mxu0 0
        %5019 = vmatprep.subr.bf16.mxu0 0
        %5020 = vmatpush2.bf16.msra.mxu0 0
        %5021 = vmatprep.subr.bf16.mxu0 0
        %5022 = vmatpush2.bf16.msra.mxu0 0
        %5023 = vmatprep.subr.bf16.mxu0 0
        %5024 = vmatpush2.bf16.msra.mxu0 0
        %5025 = vmatprep.subr.bf16.mxu0 0
        %5026 = vmatpush2.bf16.msra.mxu0 0
        %5027 = vmatprep.mubr.bf16.mxu0 0
        %5028 = vmatmul.mubr.bf16.gmra.mxu0 %v4984
        %v5029 = vpop.f32.mrf.mxu0
        %v5030 = vadd.f32 %v4969, %v5029
        %v5031 = vpop.f32.mrf.mxu0
        %v5032 = vpop.f32.mrf.mxu0
        %v5033 = vadd.f32 %v4969, %v5032
        %v5034 = vpop.f32.mrf.mxu0
        %5035 = vmatprep.mubr.bf16.mxu0 0
        %5036 = vmatmul.mubr.bf16.gmra.mxu0 %v4987
        %v5037 = vpop.f32.mrf.mxu0
        %v5038 = vadd.f32 %v4969, %v5037
        %v5039 = vpop.f32.mrf.mxu0
        %v5040 = vpop.f32.mrf.mxu0
        %v5041 = vadd.f32 %v4969, %v5040
        %v5042 = vpop.f32.mrf.mxu0
        %5043 = vmatprep.mubr.bf16.mxu0 0
        %5044 = vmatmul.mubr.bf16.gmra.mxu0 %v4990
        %v5045 = vpop.f32.mrf.mxu0
        %v5046 = vadd.f32 %v4969, %v5045
        %v5047 = vpop.f32.mrf.mxu0
        %v5048 = vpop.f32.mrf.mxu0
        %v5049 = vadd.f32 %v4969, %v5048
        %v5050 = vpop.f32.mrf.mxu0
        %5051 = vmatprep.mubr.bf16.mxu0 0
        %5052 = vmatmul.mubr.bf16.gmra.mxu0 %v4993
        %v5053 = vpop.f32.mrf.mxu0
        %v5054 = vadd.f32 %v4969, %v5053
        %v5055 = vpop.f32.mrf.mxu0
        %v5056 = vpop.f32.mrf.mxu0
        %v5057 = vadd.f32 %v4969, %v5056
        %v5058 = vpop.f32.mrf.mxu0
        %5059 = vdwg.mxu0
        %v5060 = vadd.f32 %v1364, %v5030
        %v5061 = vadd.f32 %v1365, %v5033
        %v5062 = vadd.f32 %v1366, %v5038
        %v5063 = vadd.f32 %v1367, %v5041
        %v5064 = vadd.f32 %v1368, %v5046
        %v5065 = vadd.f32 %v1369, %v5049
        %v5066 = vadd.f32 %v1370, %v5054
        %v5067 = vadd.f32 %v1371, %v5057
        %v5068 = vld [vmem:[%s1310] sm:$0x1]
        %v5069 = vld [vmem:[%s1313] sm:$0x1]
        %v5070 = vsel %vm1446, %v5060, 0.0
        %5071 = vadd.xlane.f32.xlu0 %v5070
        %v5072 = vpop.xlane.xlu0 %5071
        %v5073 = vsel %vm1446, %v5061, 0.0
        %5074 = vadd.xlane.f32.xlu0 %v5073
        %v5075 = vpop.xlane.xlu0 %5074
        %v5076 = vsel %vm1446, %v5062, 0.0
        %5077 = vadd.xlane.f32.xlu0 %v5076
        %v5078 = vpop.xlane.xlu0 %5077
        %v5079 = vsel %vm1446, %v5063, 0.0
        %5080 = vadd.xlane.f32.xlu0 %v5079
        %v5081 = vpop.xlane.xlu0 %5080
        %v5082 = vsel %vm1446, %v5064, 0.0
        %5083 = vadd.xlane.f32.xlu0 %v5082
        %v5084 = vpop.xlane.xlu0 %5083
        %v5085 = vsel %vm1446, %v5065, 0.0
        %5086 = vadd.xlane.f32.xlu0 %v5085
        %v5087 = vpop.xlane.xlu0 %5086
        %v5088 = vsel %vm1446, %v5066, 0.0
        %5089 = vadd.xlane.f32.xlu0 %v5088
        %v5090 = vpop.xlane.xlu0 %5089
        %v5091 = vsel %vm1446, %v5067, 0.0
        %5092 = vadd.xlane.f32.xlu0 %v5091
        %v5093 = vpop.xlane.xlu0 %5092
        %v5094 = vmul.f32 %v5072, %v3168
        %v5095 = vmul.f32 %v5075, %v3168
        %v5096 = vmul.f32 %v5078, %v3168
        %v5097 = vmul.f32 %v5081, %v3168
        %v5098 = vmul.f32 %v5084, %v3168
        %v5099 = vmul.f32 %v5087, %v3168
        %v5100 = vmul.f32 %v5090, %v3168
        %v5101 = vmul.f32 %v5093, %v3168
        %v5102 = vsub.f32 %v5060, %v5094
        %v5103 = vsub.f32 %v5061, %v5095
        %v5104 = vsub.f32 %v5062, %v5096
        %v5105 = vsub.f32 %v5063, %v5097
        %v5106 = vsub.f32 %v5064, %v5098
        %v5107 = vsub.f32 %v5065, %v5099
        %v5108 = vsub.f32 %v5066, %v5100
        %v5109 = vsub.f32 %v5067, %v5101
        %v5110 = vmul.f32 %v5102, %v5102
        %v5111 = vmul.f32 %v5103, %v5103
        %v5112 = vmul.f32 %v5104, %v5104
        %v5113 = vmul.f32 %v5105, %v5105
        %v5114 = vmul.f32 %v5106, %v5106
        %v5115 = vmul.f32 %v5107, %v5107
        %v5116 = vmul.f32 %v5108, %v5108
        %v5117 = vmul.f32 %v5109, %v5109
        %v5118 = vsel %vm1446, %v5110, 0.0
        %5119 = vadd.xlane.f32.xlu0 %v5118
        %v5120 = vpop.xlane.xlu0 %5119
        %v5121 = vsel %vm1446, %v5111, 0.0
        %5122 = vadd.xlane.f32.xlu0 %v5121
        %v5123 = vpop.xlane.xlu0 %5122
        %v5124 = vsel %vm1446, %v5112, 0.0
        %5125 = vadd.xlane.f32.xlu0 %v5124
        %v5126 = vpop.xlane.xlu0 %5125
        %v5127 = vsel %vm1446, %v5113, 0.0
        %5128 = vadd.xlane.f32.xlu0 %v5127
        %v5129 = vpop.xlane.xlu0 %5128
        %v5130 = vsel %vm1446, %v5114, 0.0
        %5131 = vadd.xlane.f32.xlu0 %v5130
        %v5132 = vpop.xlane.xlu0 %5131
        %v5133 = vsel %vm1446, %v5115, 0.0
        %5134 = vadd.xlane.f32.xlu0 %v5133
        %v5135 = vpop.xlane.xlu0 %5134
        %v5136 = vsel %vm1446, %v5116, 0.0
        %5137 = vadd.xlane.f32.xlu0 %v5136
        %v5138 = vpop.xlane.xlu0 %5137
        %v5139 = vsel %vm1446, %v5117, 0.0
        %5140 = vadd.xlane.f32.xlu0 %v5139
        %v5141 = vpop.xlane.xlu0 %5140
        %v5142 = vmul.f32 %v5120, %v3168
        %v5143 = vmul.f32 %v5123, %v3168
        %v5144 = vmul.f32 %v5126, %v3168
        %v5145 = vmul.f32 %v5129, %v3168
        %v5146 = vmul.f32 %v5132, %v3168
        %v5147 = vmul.f32 %v5135, %v3168
        %v5148 = vmul.f32 %v5138, %v3168
        %v5149 = vmul.f32 %v5141, %v3168
        %v5150 = vadd.f32 %v5142, 1e-05
        %v5151 = vadd.f32 %v5143, 1e-05
        %v5152 = vadd.f32 %v5144, 1e-05
        %v5153 = vadd.f32 %v5145, 1e-05
        %v5154 = vadd.f32 %v5146, 1e-05
        %v5155 = vadd.f32 %v5147, 1e-05
        %v5156 = vadd.f32 %v5148, 1e-05
        %v5157 = vadd.f32 %v5149, 1e-05
        %v5158 = vrsqrt.pop %v5150
        %v5159 = vrsqrt.pop %v5151
        %v5160 = vrsqrt.pop %v5152
        %v5161 = vrsqrt.pop %v5153
        %v5162 = vrsqrt.pop %v5154
        %v5163 = vrsqrt.pop %v5155
        %v5164 = vrsqrt.pop %v5156
        %v5165 = vrsqrt.pop %v5157
        %v5166 = vmul.f32 %v5102, %v5158
        %v5167 = vmul.f32 %v5103, %v5159
        %v5168 = vmul.f32 %v5104, %v5160
        %v5169 = vmul.f32 %v5105, %v5161
        %v5170 = vmul.f32 %v5106, %v5162
        %v5171 = vmul.f32 %v5107, %v5163
        %v5172 = vmul.f32 %v5108, %v5164
        %v5173 = vmul.f32 %v5109, %v5165
        %v5175 = vlaneseq
        %v5176 = vshrl.u32 %v5175, 7
        %v5177 = vsub.s32 0, %v5176
        %v5178 = vrot.slane %v5068, %v5177
        %v5180 = vmul.f32 %v5166, %v5178
        %v5181 = vmul.f32 %v5167, %v5178
        %v5182 = vmul.f32 %v5168, %v5178
        %v5183 = vmul.f32 %v5169, %v5178
        %v5184 = vmul.f32 %v5170, %v5178
        %v5185 = vmul.f32 %v5171, %v5178
        %v5186 = vmul.f32 %v5172, %v5178
        %v5187 = vmul.f32 %v5173, %v5178
        %v5189 = vlaneseq
        %v5190 = vshrl.u32 %v5189, 7
        %v5191 = vsub.s32 0, %v5190
        %v5192 = vrot.slane %v5069, %v5191
        %v5194 = vadd.f32 %v5180, %v5192
        %v5195 = vadd.f32 %v5181, %v5192
        %v5196 = vadd.f32 %v5182, %v5192
        %v5197 = vadd.f32 %v5183, %v5192
        %v5198 = vadd.f32 %v5184, %v5192
        %v5199 = vadd.f32 %v5185, %v5192
        %v5200 = vadd.f32 %v5186, %v5192
        %v5201 = vadd.f32 %v5187, %v5192
        %v5202 = vld [vmem:[%s1318] sm:$0xf]
        %v5203 = vld [vmem:[%s1318 + $0x4] sm:$0xf]
        %v5204 = vld [vmem:[%s1318 + $0x8] sm:$0xf]
        %v5205 = vld [vmem:[%s1318 + $0xc] sm:$0xf]
        %v5206 = vld [vmem:[%s1321] sm:$0x1]
        %v5207 = vld [vmem:[%s1326] sm:$0xf]
        %v5208 = vld [vmem:[%s1326 + $0x4] sm:$0xf]
        %v5209 = vld [vmem:[%s1326 + $0x8] sm:$0xf]
        %v5210 = vld [vmem:[%s1326 + $0xc] sm:$0xf]
        %v5211 = vld [vmem:[%s1326 + $0x10] sm:$0xf]
        %v5212 = vld [vmem:[%s1326 + $0x14] sm:$0xf]
        %v5213 = vld [vmem:[%s1326 + $0x18] sm:$0xf]
        %v5214 = vld [vmem:[%s1326 + $0x1c] sm:$0xf]
        %v5215 = vld [vmem:[%s1326 + $0x20] sm:$0xf]
        %v5216 = vld [vmem:[%s1326 + $0x24] sm:$0xf]
        %v5217 = vld [vmem:[%s1326 + $0x28] sm:$0xf]
        %v5218 = vld [vmem:[%s1326 + $0x2c] sm:$0xf]
        %v5219 = vld [vmem:[%s1326 + $0x30] sm:$0xf]
        %v5220 = vld [vmem:[%s1326 + $0x34] sm:$0xf]
        %v5221 = vld [vmem:[%s1326 + $0x38] sm:$0xf]
        %v5222 = vld [vmem:[%s1326 + $0x3c] sm:$0xf]
        %v5223 = vld [vmem:[%s1329] sm:$0x1]
        %v5224 = vld [vmem:[%s1332] sm:$0x1]
        %v5225 = vld [vmem:[%s1335] sm:$0x1]
        %v5226 = vpack.c.bf16 %v5195, %v5194
        %v5227 = vpack.c.bf16 %v5197, %v5196
        %v5228 = vpack.c.bf16 %v5199, %v5198
        %v5229 = vpack.c.bf16 %v5201, %v5200
        %v5231 = vlaneseq
        %v5232 = vshrl.u32 %v5231, 7
        %v5233 = vsub.s32 0, %v5232
        %v5234 = vrot.slane %v5206, %v5233
        %v5240 = vunpack.c.l.b16 %v5202
        %v5241 = vunpack.c.l.b16 %v5203
        %v5242 = vunpack.c.l.b16 %v5204
        %v5243 = vunpack.c.l.b16 %v5205
        %v5244 = vpack.c.b16 %v5241, %v5240
        %v5245 = vpack.c.b16 %v5243, %v5242
        %v5249 = vsel %vm1446, %v5226, 0
        %v5252 = vsel %vm1446, %v5227, 0
        %v5255 = vsel %vm1446, %v5228, 0
        %v5258 = vsel %vm1446, %v5229, 0
        %5260 = vmatprep.subr.bf16.mxu0 0
        %5261 = vmatpush1.bf16.msra.mxu0 0
        %5262 = vmatprep.subr.bf16.mxu0 0
        %5263 = vmatpush1.bf16.msra.mxu0 0
        %5264 = vmatprep.subr.bf16.mxu0 0
        %5265 = vmatpush1.bf16.msra.mxu0 0
        %5266 = vmatprep.subr.bf16.mxu0 0
        %5267 = vmatpush1.bf16.msra.mxu0 0
        %5268 = vmatprep.subr.bf16.mxu0 0
        %5269 = vmatpush1.bf16.msra.mxu0 0
        %5270 = vmatprep.subr.bf16.mxu0 0
        %5271 = vmatpush1.bf16.msra.mxu0 0
        %5272 = vmatprep.subr.bf16.mxu0 0
        %5273 = vmatpush1.bf16.msra.mxu0 %v5245
        %5274 = vmatprep.subr.bf16.mxu0 0
        %5275 = vmatpush1.bf16.msra.mxu0 %v5244
        %5276 = vmatprep.subr.bf16.mxu0 0
        %5277 = vmatpush2.bf16.msra.mxu0 0
        %5278 = vmatprep.subr.bf16.mxu0 0
        %5279 = vmatpush2.bf16.msra.mxu0 0
        %5280 = vmatprep.subr.bf16.mxu0 0
        %5281 = vmatpush2.bf16.msra.mxu0 0
        %5282 = vmatprep.subr.bf16.mxu0 0
        %5283 = vmatpush2.bf16.msra.mxu0 0
        %5284 = vmatprep.subr.bf16.mxu0 0
        %5285 = vmatpush2.bf16.msra.mxu0 0
        %5286 = vmatprep.subr.bf16.mxu0 0
        %5287 = vmatpush2.bf16.msra.mxu0 0
        %5288 = vmatprep.subr.bf16.mxu0 0
        %5289 = vmatpush2.bf16.msra.mxu0 0
        %5290 = vmatprep.subr.bf16.mxu0 0
        %5291 = vmatpush2.bf16.msra.mxu0 0
        %5292 = vmatprep.mubr.bf16.mxu0 0
        %5293 = vmatmul.mubr.bf16.gmra.mxu0 %v5249
        %v5294 = vpop.f32.mrf.mxu0
        %v5295 = vadd.f32 %v5234, %v5294
        %v5296 = vpop.f32.mrf.mxu0
        %v5297 = vpop.f32.mrf.mxu0
        %v5298 = vadd.f32 %v5234, %v5297
        %v5299 = vpop.f32.mrf.mxu0
        %5300 = vmatprep.mubr.bf16.mxu0 0
        %5301 = vmatmul.mubr.bf16.gmra.mxu0 %v5252
        %v5302 = vpop.f32.mrf.mxu0
        %v5303 = vadd.f32 %v5234, %v5302
        %v5304 = vpop.f32.mrf.mxu0
        %v5305 = vpop.f32.mrf.mxu0
        %v5306 = vadd.f32 %v5234, %v5305
        %v5307 = vpop.f32.mrf.mxu0
        %5308 = vmatprep.mubr.bf16.mxu0 0
        %5309 = vmatmul.mubr.bf16.gmra.mxu0 %v5255
        %v5310 = vpop.f32.mrf.mxu0
        %v5311 = vadd.f32 %v5234, %v5310
        %v5312 = vpop.f32.mrf.mxu0
        %v5313 = vpop.f32.mrf.mxu0
        %v5314 = vadd.f32 %v5234, %v5313
        %v5315 = vpop.f32.mrf.mxu0
        %5316 = vmatprep.mubr.bf16.mxu0 0
        %5317 = vmatmul.mubr.bf16.gmra.mxu0 %v5258
        %v5318 = vpop.f32.mrf.mxu0
        %v5319 = vadd.f32 %v5234, %v5318
        %v5320 = vpop.f32.mrf.mxu0
        %v5321 = vpop.f32.mrf.mxu0
        %v5322 = vadd.f32 %v5234, %v5321
        %v5323 = vpop.f32.mrf.mxu0
        %5324 = vdwg.mxu0
        %v5325 = vmax.f32 %v5295, 0.0
        %v5326 = vmax.f32 %v5298, 0.0
        %v5327 = vmax.f32 %v5303, 0.0
        %v5328 = vmax.f32 %v5306, 0.0
        %v5329 = vmax.f32 %v5311, 0.0
        %v5330 = vmax.f32 %v5314, 0.0
        %v5331 = vmax.f32 %v5319, 0.0
        %v5332 = vmax.f32 %v5322, 0.0
        %v5333 = vpack.c.bf16 %v5326, %v5325
        %v5334 = vpack.c.bf16 %v5328, %v5327
        %v5335 = vpack.c.bf16 %v5330, %v5329
        %v5336 = vpack.c.bf16 %v5332, %v5331
        %v5338 = vlaneseq
        %v5339 = vshrl.u32 %v5338, 7
        %v5340 = vsub.s32 0, %v5339
        %v5341 = vrot.slane %v5223, %v5340
        %v5359 = vunpack.c.l.b16 %v5207
        %v5360 = vunpack.c.l.b16 %v5208
        %v5361 = vunpack.c.l.b16 %v5209
        %v5362 = vunpack.c.l.b16 %v5210
        %v5363 = vunpack.c.l.b16 %v5211
        %v5364 = vunpack.c.l.b16 %v5212
        %v5365 = vunpack.c.l.b16 %v5213
        %v5366 = vunpack.c.l.b16 %v5214
        %v5367 = vunpack.c.l.b16 %v5215
        %v5368 = vunpack.c.l.b16 %v5216
        %v5369 = vunpack.c.l.b16 %v5217
        %v5370 = vunpack.c.l.b16 %v5218
        %v5371 = vunpack.c.l.b16 %v5219
        %v5372 = vunpack.c.l.b16 %v5220
        %v5373 = vunpack.c.l.b16 %v5221
        %v5374 = vunpack.c.l.b16 %v5222
        %v5375 = vpack.c.b16 %v5360, %v5359
        %v5376 = vpack.c.b16 %v5362, %v5361
        %v5377 = vpack.c.b16 %v5364, %v5363
        %v5378 = vpack.c.b16 %v5366, %v5365
        %v5379 = vpack.c.b16 %v5368, %v5367
        %v5380 = vpack.c.b16 %v5370, %v5369
        %v5381 = vpack.c.b16 %v5372, %v5371
        %v5382 = vpack.c.b16 %v5374, %v5373
        %5391 = vmatprep.subr.bf16.mxu0 0
        %5392 = vmatpush1.bf16.msra.mxu0 %v5382
        %5393 = vmatprep.subr.bf16.mxu0 0
        %5394 = vmatpush1.bf16.msra.mxu0 %v5381
        %5395 = vmatprep.subr.bf16.mxu0 0
        %5396 = vmatpush1.bf16.msra.mxu0 %v5380
        %5397 = vmatprep.subr.bf16.mxu0 0
        %5398 = vmatpush1.bf16.msra.mxu0 %v5379
        %5399 = vmatprep.subr.bf16.mxu0 0
        %5400 = vmatpush1.bf16.msra.mxu0 %v5378
        %5401 = vmatprep.subr.bf16.mxu0 0
        %5402 = vmatpush1.bf16.msra.mxu0 %v5377
        %5403 = vmatprep.subr.bf16.mxu0 0
        %5404 = vmatpush1.bf16.msra.mxu0 %v5376
        %5405 = vmatprep.subr.bf16.mxu0 0
        %5406 = vmatpush1.bf16.msra.mxu0 %v5375
        %5407 = vmatprep.subr.bf16.mxu0 0
        %5408 = vmatpush2.bf16.msra.mxu0 0
        %5409 = vmatprep.subr.bf16.mxu0 0
        %5410 = vmatpush2.bf16.msra.mxu0 0
        %5411 = vmatprep.subr.bf16.mxu0 0
        %5412 = vmatpush2.bf16.msra.mxu0 0
        %5413 = vmatprep.subr.bf16.mxu0 0
        %5414 = vmatpush2.bf16.msra.mxu0 0
        %5415 = vmatprep.subr.bf16.mxu0 0
        %5416 = vmatpush2.bf16.msra.mxu0 0
        %5417 = vmatprep.subr.bf16.mxu0 0
        %5418 = vmatpush2.bf16.msra.mxu0 0
        %5419 = vmatprep.subr.bf16.mxu0 0
        %5420 = vmatpush2.bf16.msra.mxu0 0
        %5421 = vmatprep.subr.bf16.mxu0 0
        %5422 = vmatpush2.bf16.msra.mxu0 0
        %5423 = vmatprep.mubr.bf16.mxu0 0
        %5424 = vmatmul.mubr.bf16.gmra.mxu0 %v5333
        %v5425 = vpop.f32.mrf.mxu0
        %v5426 = vadd.f32 %v5341, %v5425
        %v5427 = vpop.f32.mrf.mxu0
        %v5428 = vpop.f32.mrf.mxu0
        %v5429 = vadd.f32 %v5341, %v5428
        %v5430 = vpop.f32.mrf.mxu0
        %5431 = vmatprep.mubr.bf16.mxu0 0
        %5432 = vmatmul.mubr.bf16.gmra.mxu0 %v5334
        %v5433 = vpop.f32.mrf.mxu0
        %v5434 = vadd.f32 %v5341, %v5433
        %v5435 = vpop.f32.mrf.mxu0
        %v5436 = vpop.f32.mrf.mxu0
        %v5437 = vadd.f32 %v5341, %v5436
        %v5438 = vpop.f32.mrf.mxu0
        %5439 = vmatprep.mubr.bf16.mxu0 0
        %5440 = vmatmul.mubr.bf16.gmra.mxu0 %v5335
        %v5441 = vpop.f32.mrf.mxu0
        %v5442 = vadd.f32 %v5341, %v5441
        %v5443 = vpop.f32.mrf.mxu0
        %v5444 = vpop.f32.mrf.mxu0
        %v5445 = vadd.f32 %v5341, %v5444
        %v5446 = vpop.f32.mrf.mxu0
        %5447 = vmatprep.mubr.bf16.mxu0 0
        %5448 = vmatmul.mubr.bf16.gmra.mxu0 %v5336
        %v5449 = vpop.f32.mrf.mxu0
        %v5450 = vadd.f32 %v5341, %v5449
        %v5451 = vpop.f32.mrf.mxu0
        %v5452 = vpop.f32.mrf.mxu0
        %v5453 = vadd.f32 %v5341, %v5452
        %v5454 = vpop.f32.mrf.mxu0
        %5455 = vdwg.mxu0
        %v5456 = vadd.f32 %v5194, %v5426
        %v5457 = vadd.f32 %v5195, %v5429
        %v5458 = vadd.f32 %v5196, %v5434
        %v5459 = vadd.f32 %v5197, %v5437
        %v5460 = vadd.f32 %v5198, %v5442
        %v5461 = vadd.f32 %v5199, %v5445
        %v5462 = vadd.f32 %v5200, %v5450
        %v5463 = vadd.f32 %v5201, %v5453
        %v5464 = vsel %vm1446, %v5456, 0.0
        %5465 = vadd.xlane.f32.xlu0 %v5464
        %v5466 = vpop.xlane.xlu0 %5465
        %v5467 = vsel %vm1446, %v5457, 0.0
        %5468 = vadd.xlane.f32.xlu0 %v5467
        %v5469 = vpop.xlane.xlu0 %5468
        %v5470 = vsel %vm1446, %v5458, 0.0
        %5471 = vadd.xlane.f32.xlu0 %v5470
        %v5472 = vpop.xlane.xlu0 %5471
        %v5473 = vsel %vm1446, %v5459, 0.0
        %5474 = vadd.xlane.f32.xlu0 %v5473
        %v5475 = vpop.xlane.xlu0 %5474
        %v5476 = vsel %vm1446, %v5460, 0.0
        %5477 = vadd.xlane.f32.xlu0 %v5476
        %v5478 = vpop.xlane.xlu0 %5477
        %v5479 = vsel %vm1446, %v5461, 0.0
        %5480 = vadd.xlane.f32.xlu0 %v5479
        %v5481 = vpop.xlane.xlu0 %5480
        %v5482 = vsel %vm1446, %v5462, 0.0
        %5483 = vadd.xlane.f32.xlu0 %v5482
        %v5484 = vpop.xlane.xlu0 %5483
        %v5485 = vsel %vm1446, %v5463, 0.0
        %5486 = vadd.xlane.f32.xlu0 %v5485
        %v5487 = vpop.xlane.xlu0 %5486
        %v5488 = vmul.f32 %v5466, %v3168
        %v5489 = vmul.f32 %v5469, %v3168
        %v5490 = vmul.f32 %v5472, %v3168
        %v5491 = vmul.f32 %v5475, %v3168
        %v5492 = vmul.f32 %v5478, %v3168
        %v5493 = vmul.f32 %v5481, %v3168
        %v5494 = vmul.f32 %v5484, %v3168
        %v5495 = vmul.f32 %v5487, %v3168
        %v5496 = vsub.f32 %v5456, %v5488
        %v5497 = vsub.f32 %v5457, %v5489
        %v5498 = vsub.f32 %v5458, %v5490
        %v5499 = vsub.f32 %v5459, %v5491
        %v5500 = vsub.f32 %v5460, %v5492
        %v5501 = vsub.f32 %v5461, %v5493
        %v5502 = vsub.f32 %v5462, %v5494
        %v5503 = vsub.f32 %v5463, %v5495
        %v5504 = vmul.f32 %v5496, %v5496
        %v5505 = vmul.f32 %v5497, %v5497
        %v5506 = vmul.f32 %v5498, %v5498
        %v5507 = vmul.f32 %v5499, %v5499
        %v5508 = vmul.f32 %v5500, %v5500
        %v5509 = vmul.f32 %v5501, %v5501
        %v5510 = vmul.f32 %v5502, %v5502
        %v5511 = vmul.f32 %v5503, %v5503
        %v5512 = vsel %vm1446, %v5504, 0.0
        %5513 = vadd.xlane.f32.xlu0 %v5512
        %v5514 = vpop.xlane.xlu0 %5513
        %v5515 = vsel %vm1446, %v5505, 0.0
        %5516 = vadd.xlane.f32.xlu0 %v5515
        %v5517 = vpop.xlane.xlu0 %5516
        %v5518 = vsel %vm1446, %v5506, 0.0
        %5519 = vadd.xlane.f32.xlu0 %v5518
        %v5520 = vpop.xlane.xlu0 %5519
        %v5521 = vsel %vm1446, %v5507, 0.0
        %5522 = vadd.xlane.f32.xlu0 %v5521
        %v5523 = vpop.xlane.xlu0 %5522
        %v5524 = vsel %vm1446, %v5508, 0.0
        %5525 = vadd.xlane.f32.xlu0 %v5524
        %v5526 = vpop.xlane.xlu0 %5525
        %v5527 = vsel %vm1446, %v5509, 0.0
        %5528 = vadd.xlane.f32.xlu0 %v5527
        %v5529 = vpop.xlane.xlu0 %5528
        %v5530 = vsel %vm1446, %v5510, 0.0
        %5531 = vadd.xlane.f32.xlu0 %v5530
        %v5532 = vpop.xlane.xlu0 %5531
        %v5533 = vsel %vm1446, %v5511, 0.0
        %5534 = vadd.xlane.f32.xlu0 %v5533
        %v5535 = vpop.xlane.xlu0 %5534
        %v5536 = vmul.f32 %v5514, %v3168
        %v5537 = vmul.f32 %v5517, %v3168
        %v5538 = vmul.f32 %v5520, %v3168
        %v5539 = vmul.f32 %v5523, %v3168
        %v5540 = vmul.f32 %v5526, %v3168
        %v5541 = vmul.f32 %v5529, %v3168
        %v5542 = vmul.f32 %v5532, %v3168
        %v5543 = vmul.f32 %v5535, %v3168
        %v5544 = vadd.f32 %v5536, 1e-05
        %v5545 = vadd.f32 %v5537, 1e-05
        %v5546 = vadd.f32 %v5538, 1e-05
        %v5547 = vadd.f32 %v5539, 1e-05
        %v5548 = vadd.f32 %v5540, 1e-05
        %v5549 = vadd.f32 %v5541, 1e-05
        %v5550 = vadd.f32 %v5542, 1e-05
        %v5551 = vadd.f32 %v5543, 1e-05
        %v5552 = vrsqrt.pop %v5544
        %v5553 = vrsqrt.pop %v5545
        %v5554 = vrsqrt.pop %v5546
        %v5555 = vrsqrt.pop %v5547
        %v5556 = vrsqrt.pop %v5548
        %v5557 = vrsqrt.pop %v5549
        %v5558 = vrsqrt.pop %v5550
        %v5559 = vrsqrt.pop %v5551
        %v5560 = vmul.f32 %v5496, %v5552
        %v5561 = vmul.f32 %v5497, %v5553
        %v5562 = vmul.f32 %v5498, %v5554
        %v5563 = vmul.f32 %v5499, %v5555
        %v5564 = vmul.f32 %v5500, %v5556
        %v5565 = vmul.f32 %v5501, %v5557
        %v5566 = vmul.f32 %v5502, %v5558
        %v5567 = vmul.f32 %v5503, %v5559
        %v5569 = vlaneseq
        %v5570 = vshrl.u32 %v5569, 7
        %v5571 = vsub.s32 0, %v5570
        %v5572 = vrot.slane %v5224, %v5571
        %v5574 = vmul.f32 %v5560, %v5572
        %v5575 = vmul.f32 %v5561, %v5572
        %v5576 = vmul.f32 %v5562, %v5572
        %v5577 = vmul.f32 %v5563, %v5572
        %v5578 = vmul.f32 %v5564, %v5572
        %v5579 = vmul.f32 %v5565, %v5572
        %v5580 = vmul.f32 %v5566, %v5572
        %v5581 = vmul.f32 %v5567, %v5572
        %v5583 = vlaneseq
        %v5584 = vshrl.u32 %v5583, 7
        %v5585 = vsub.s32 0, %v5584
        %v5586 = vrot.slane %v5225, %v5585
        %v5588 = vadd.f32 %v5574, %v5586
        %v5589 = vadd.f32 %v5575, %v5586
        %v5590 = vadd.f32 %v5576, %v5586
        %v5591 = vadd.f32 %v5577, %v5586
        %v5592 = vadd.f32 %v5578, %v5586
        %v5593 = vadd.f32 %v5579, %v5586
        %v5594 = vadd.f32 %v5580, %v5586
        %v5595 = vadd.f32 %v5581, %v5586
        %5596 = vst.msk [vmem:[#allocation2] sm:$0xff] %vm1446, %v3432
        %5597 = vst.msk [vmem:[#allocation2 + $0x8] sm:$0xff] %vm1446, %v3433
        %5598 = vst.msk [vmem:[#allocation3] sm:$0xff] %vm1446, %v5588
        %5599 = vst.msk [vmem:[#allocation3 + $0x8] sm:$0xff] %vm1446, %v5589
        %5600 = vst.msk [vmem:[#allocation3 + $0x10] sm:$0xff] %vm1446, %v5590
        %5601 = vst.msk [vmem:[#allocation3 + $0x18] sm:$0xff] %vm1446, %v5591
        %5602 = vst.msk [vmem:[#allocation3 + $0x20] sm:$0xff] %vm1446, %v5592
        %5603 = vst.msk [vmem:[#allocation3 + $0x28] sm:$0xff] %vm1446, %v5593
        %5604 = vst.msk [vmem:[#allocation3 + $0x30] sm:$0xff] %vm1446, %v5594
        %5605 = vst.msk [vmem:[#allocation3 + $0x38] sm:$0xff] %vm1446, %v5595
        %p5606 = scmp.eq.s32.totalorder %s79, 1
        // Predicated region
        $region149: #{lgesql_forward.1} parent=143 // pred_check
          %p5607 = pneg %p5606
        $region150: #{lgesql_forward.1} parent=143 // pred_check_branch
          %5609 = sbr.rel (%p5607) target = $region152
        $region151: #{lgesql_forward.1} parent=143 // pred_region
          %5610 = vst.msk [vmem:[#allocation4] sm:$0xff] %vm1446, %v3432
          %5611 = vst.msk [vmem:[#allocation4 + $0x8] sm:$0xff] %vm1446, %v3433
          %5612 = vst.msk [vmem:[#allocation6] sm:$0xff] %vm1446, %v5588
          %5613 = vst.msk [vmem:[#allocation6 + $0x8] sm:$0xff] %vm1446, %v5589
          %5614 = vst.msk [vmem:[#allocation6 + $0x10] sm:$0xff] %vm1446, %v5590
          %5615 = vst.msk [vmem:[#allocation6 + $0x18] sm:$0xff] %vm1446, %v5591
          %5616 = vst.msk [vmem:[#allocation6 + $0x20] sm:$0xff] %vm1446, %v5592
          %5617 = vst.msk [vmem:[#allocation6 + $0x28] sm:$0xff] %vm1446, %v5593
          %5618 = vst.msk [vmem:[#allocation6 + $0x30] sm:$0xff] %vm1446, %v5594
          %5619 = vst.msk [vmem:[#allocation6 + $0x38] sm:$0xff] %vm1446, %v5595
        $region152: #{lgesql_forward.1} parent=143 // pred_fallthru
          _
        // Predicated region
        $region153: #{lgesql_forward.1} parent=143 // pred_check
          %p5620 = pneg %p863
        $region154: #{lgesql_forward.1} parent=143 // pred_check_branch
          %5622 = sbr.rel (%p5620) target = $region156
        $region155: #{lgesql_forward.1} parent=143 // pred_region
          %s5624 = ssub.s32 256, 256
          %5625 = vsyncadd [#allocation5], %s5624
          %s5626 = sshll.u32 [#allocation4], 4
          %s5627 = int_to_ptr.vmem [resolvable:$true] %s5626
          %5632 = dma.vmem_to_hbm [thread:$0]  %s5627, 256, %s63, [#allocation5], 128, 128, 8
        $region156: #{lgesql_forward.1} parent=143 // pred_fallthru
          _
        // Predicated region
        $region157: #{lgesql_forward.1} parent=143 // pred_check
          %p5633 = pneg %p884
        $region158: #{lgesql_forward.1} parent=143 // pred_check_branch
          %5635 = sbr.rel (%p5633) target = $region160
        $region159: #{lgesql_forward.1} parent=143 // pred_region
          %s5637 = ssub.s32 1024, 1024
          %5638 = vsyncadd [#allocation7], %s5637
          %s5639 = sshll.u32 [#allocation6], 4
          %s5640 = int_to_ptr.vmem [resolvable:$true] %s5639
          %5645 = dma.vmem_to_hbm [thread:$0]  %s5640, 1024, %s65, [#allocation7], 128, 128, 8
        $region160: #{lgesql_forward.1} parent=143 // pred_fallthru
          _
        // Predicated region
        $region161: #{lgesql_forward.1} parent=143 // pred_check
          %p5646 = pneg %p863
        $region162: #{lgesql_forward.1} parent=143 // pred_check_branch
          %5648 = sbr.rel (%p5646) target = $region164
        $region163: #{lgesql_forward.1} parent=143 // pred_region
          %5649 = dma.done [#allocation5], 256
        $region164: #{lgesql_forward.1} parent=143 // pred_fallthru
          _
        // Predicated region
        $region165: #{lgesql_forward.1} parent=143 // pred_check
          %p5650 = pneg %p884
        $region166: #{lgesql_forward.1} parent=143 // pred_check_branch
          %5652 = sbr.rel (%p5650) target = $region168
        $region167: #{lgesql_forward.1} parent=143 // pred_region
          %5653 = dma.done [#allocation7], 1024
        $region168: #{lgesql_forward.1} parent=143 // pred_fallthru
          _
      $region144: #{lgesql_forward.1} parent=5 // pred_fallthru
        _
      %p5654 = scmp.le.s32.totalorder 2, %s74
      // Predicated region
      $region169: #{lgesql_forward.1} parent=5 // pred_check
        %p5655 = pneg %p5654
      $region170: #{lgesql_forward.1} parent=5 // pred_check_branch
        %5657 = sbr.rel (%p5655) target = $region172
      $region171: #{lgesql_forward.1} parent=5 // pred_region
        %s5658 = ssub.s32 %s74, 2
      $region172: #{lgesql_forward.1} parent=5 // pred_fallthru
        _
    $region6: #{lgesql_forward.1} parent=1 // loop_footer
      %s78 = sadd.s32 1, %s74
    $region7: #{lgesql_forward.1} parent=1 // loop_footer_branch
      %73 = sbr.rel target = $region3
    $region8: #{lgesql_forward.1} parent=1 // loop_exit
      _
    %5659 = vsyncpa [#allocation5], 1
    %s5660 = scalar_lea.sflag [#allocation5], 1
    %5661 = vsyncpa %s5660, 1
    %5662 = vsyncpa [#allocation7], 1

</llo_original>
